<compile_context>
chip_gen: v7x
topology: tpu7x:2x2x1
jax: 0.10.0
libtpu: 0.0.40
codegen_flags: <defaults>
</compile_context>

<pallas_src>
import functools

import jax
import jax.numpy as jnp
from jax import lax
from jax.experimental import pallas as pl
from jax.experimental.pallas import tpu as pltpu


TB = 8  # batch elements per grid step (keeps per-step VMEM ~7 MiB: v7x-safe)


# ----------------------------- Pallas kernels ------------------------------

def _conv1_kernel(p_ref, w_ref, b_ref, o_ref):
    """conv1 (as one matmul over all 4 pool offsets) + bias + ReLU + 2x2 max-pool.

    p_ref: (TB*169, 576)  superset im2col patches (one row per pooled position)
    w_ref: (576, 128)     zero-padded conv1 weight, columns = (dy, dx, co)
    b_ref: (1, 128)       conv1 bias tiled over the 4 pool offsets
    o_ref: (TB*169, 32)   pooled, ReLU'd conv1 output (lanes = co)
    """
    y = jnp.dot(p_ref[...], w_ref[...], preferred_element_type=jnp.float32)
    y = jnp.maximum(y + b_ref[...], 0.0)            # relu(conv + b) per offset
    c = o_ref.shape[1]                              # 32
    # max over the 4 pool-offset lane groups == 2x2 max-pool (relu is monotone)
    o_ref[...] = jnp.maximum(jnp.maximum(y[:, :c], y[:, c:2 * c]),
                             jnp.maximum(y[:, 2 * c:3 * c], y[:, 3 * c:4 * c]))


def _head_kernel(p2_ref, w2_ref, b2_ref, w1_ref, b1_ref, wf_ref, bf_ref, o_ref):
    """conv2 + bias + ReLU + 2x2 max-pool + flatten + fc1 + ReLU + fc2, fused.

    p2_ref: (9, TB, 800)  5x5x32 windows of the pooled conv1 map, one per pooled
                          conv2 position q2 = ph2*3 + pw2
    w2_ref: (800, 256)    zero-padded conv2 weight, columns = (dy2, dx2, co)
    b2_ref: (1, 256)      conv2 bias tiled over the 4 pool offsets
    w1_ref: (9, 64, 128)  fc1 weight pre-permuted to (q2, co, hidden)
    b1_ref: (1, 128)      fc1 bias
    wf_ref: (128, A)      fc2 weight (transposed)
    bf_ref: (1, A)        fc2 bias
    o_ref:  (TB, A)
    """
    tb = p2_ref.shape[1]
    hid = w1_ref.shape[2]
    c = w2_ref.shape[1] // 4                        # 64
    h = jnp.zeros((tb, hid), jnp.float32)
    for q in range(p2_ref.shape[0]):                # 9, static unroll
        y = jnp.dot(p2_ref[q], w2_ref[...], preferred_element_type=jnp.float32)
        y = jnp.maximum(y + b2_ref[...], 0.0)
        a = jnp.maximum(jnp.maximum(y[:, :c], y[:, c:2 * c]),
                        jnp.maximum(y[:, 2 * c:3 * c], y[:, 3 * c:4 * c]))
        # flatten is folded into fc1: accumulate the q2-th slice of fc1
        h = h + jnp.dot(a, w1_ref[q], preferred_element_type=jnp.float32)
    h = jnp.maximum(h + b1_ref[...], 0.0)
    o_ref[...] = jnp.dot(h, wf_ref[...], preferred_element_type=jnp.float32) + bf_ref[...]


# --------------------------- parameter preparation --------------------------

def _prepare_params(params):
    """Turn PyTorch-layout parameters into kernel-ready, MXU-friendly layouts."""
    # conv1: build (576, 128) weight.  K order = (dhb, dwb, h_in, w_in, ci) over
    # the 2x2 superset of 6x6 input blocks; N order = (dy, dx, co).
    w1_t = params["conv1_w"].transpose(2, 3, 1, 0)              # (5,5,4,32)
    cols = []
    for dy in (0, 1):
        for dx in (0, 1):
            m = jnp.pad(w1_t, ((3 * dy, 7 - 3 * dy), (3 * dx, 7 - 3 * dx),
                               (0, 0), (0, 0)))                  # (12,12,4,32)
            m = m.reshape(2, 6, 2, 6, 4, 32).transpose(0, 2, 1, 3, 4, 5)
            cols.append(m.reshape(576, 32))
    w1p = jnp.concatenate(cols, axis=1)                          # (576,128)
    b1p = jnp.tile(params["conv1_b"], 4).reshape(1, 128)

    # conv2: build (800, 256) weight.  K order = (h_off, w_off, ci) over the
    # 5x5 window of each pooled conv2 position; N order = (dy2, dx2, co).
    w2_t = params["conv2_w"].transpose(2, 3, 1, 0)               # (3,3,32,64)
    cols = []
    for dy in (0, 1):
        for dx in (0, 1):
            m = jnp.pad(w2_t, ((2 * dy, 2 - 2 * dy), (2 * dx, 2 - 2 * dx),
                               (0, 0), (0, 0)))                  # (5,5,32,64)
            cols.append(m.reshape(800, 64))
    w2p = jnp.concatenate(cols, axis=1)                          # (800,256)
    b2p = jnp.tile(params["conv2_b"], 4).reshape(1, 256)

    # fc1: permute columns so it consumes (q2, co) activation layout directly
    # (PyTorch flatten order of (B,64,3,3) is feature = co*9 + q2).
    w1r = params["fc1_w"].T.reshape(64, 9, 128).transpose(1, 0, 2)  # (9,64,128)
    bf1 = params["fc1_b"].reshape(1, -1)
    wf2 = params["fc2_w"].T                                      # (128, A)
    bf2 = params["fc2_b"].reshape(1, -1)
    return w1p, b1p, w2p, b2p, w1r, bf1, wf2, bf2


# ------------------------------- forward pass -------------------------------

@jax.jit
def dqn_forward(x_nchw, params):
    """Pallas implementation of DQN.forward.  x_nchw: (B, 4, 84, 84) float32."""
    B = x_nchw.shape[0]
    num_actions = params["fc2_w"].shape[0]
    w1p, b1p, w2p, b2p, w1r, bf1, wf2, bf2 = _prepare_params(params)

    bp = -(-B // TB) * TB                       # pad batch to a multiple of TB
    if bp != B:
        x_nchw = jnp.pad(x_nchw, ((0, bp - B), (0, 0), (0, 0), (0, 0)))
    nb = bp // TB

    # ---- conv1 patches: static reshape/slice/concat only (no gathers) ------
    x = jnp.transpose(x_nchw, (0, 2, 3, 1))                       # NHWC
    xb = (x.reshape(bp, 14, 6, 14, 6, 4)
            .transpose(0, 1, 3, 2, 4, 5)
            .reshape(bp, 14, 14, 144))                            # 6x6x4 blocks
    p1 = jnp.concatenate(
        [xb[:, a:a + 13, b:b + 13, :] for a in (0, 1) for b in (0, 1)],
        axis=-1)                                                  # (bp,13,13,576)
    p1 = p1.reshape(bp * 169, 576)

    a1 = pl.pallas_call(
        _conv1_kernel,
        out_shape=jax.ShapeDtypeStruct((bp * 169, 32), jnp.float32),
        grid=(nb,),
        in_specs=[
            pl.BlockSpec((TB * 169, 576), lambda i: (i, 0)),
            pl.BlockSpec((576, 128), lambda i: (0, 0)),
            pl.BlockSpec((1, 128), lambda i: (0, 0)),
        ],
        out_specs=pl.BlockSpec((TB * 169, 32), lambda i: (i, 0)),
        compiler_params=pltpu.CompilerParams(dimension_semantics=("parallel",)),
    )(p1, w1p, b1p)

    # ---- conv2 patches: 9 static 5x5 windows of the pooled 13x13 map --------
    a1 = a1.reshape(bp, 13, 13, 32)
    p2 = jnp.stack(
        [a1[:, 4 * r:4 * r + 5, 4 * c:4 * c + 5, :].reshape(bp, 800)
         for r in range(3) for c in range(3)],
        axis=0)                                                   # (9, bp, 800)

    out = pl.pallas_call(
        _head_kernel,
        out_shape=jax.ShapeDtypeStruct((bp, num_actions), jnp.float32),
        grid=(nb,),
        in_specs=[
            pl.BlockSpec((9, TB, 800), lambda i: (0, i, 0)),
            pl.BlockSpec((800, 256), lambda i: (0, 0)),
            pl.BlockSpec((1, 256), lambda i: (0, 0)),
            pl.BlockSpec((9, 64, 128), lambda i: (0, 0, 0)),
            pl.BlockSpec((1, 128), lambda i: (0, 0)),
            pl.BlockSpec((128, num_actions), lambda i: (0, 0)),
            pl.BlockSpec((1, num_actions), lambda i: (0, 0)),
        ],
        out_specs=pl.BlockSpec((TB, num_actions), lambda i: (i, 0)),
        compiler_params=pltpu.CompilerParams(dimension_semantics=("parallel",)),
    )(p2, w2p, b2p, w1r, bf1, wf2, bf2)

    return out[:B]


# ------------------------ pure-JAX reference check -------------------------

def dqn_reference(x, params):
    hp = lax.Precision.HIGHEST
    y = lax.conv_general_dilated(x, params["conv1_w"], (3, 3), "VALID",
                                 dimension_numbers=("NCHW", "OIHW", "NCHW"),
                                 precision=hp)
    y = jnp.maximum(y + params["conv1_b"][None, :, None, None], 0.0)
    y = lax.reduce_window(y, -jnp.inf, lax.max, (1, 1, 2, 2), (1, 1, 2, 2), "VALID")
    y = lax.conv_general_dilated(y, params["conv2_w"], (2, 2), "VALID",
                                 dimension_numbers=("NCHW", "OIHW", "NCHW"),
                                 precision=hp)
    y = jnp.maximum(y + params["conv2_b"][None, :, None, None], 0.0)
    y = lax.reduce_window(y, -jnp.inf, lax.max, (1, 1, 2, 2), (1, 1, 2, 2), "VALID")
    y = y.reshape(y.shape[0], -1)
    y = jnp.maximum(jnp.dot(y, params["fc1_w"].T, precision=hp) + params["fc1_b"], 0.0)
    return jnp.dot(y, params["fc2_w"].T, precision=hp) + params["fc2_b"]


# --------------------------------- main -------------------------------------

if __name__ == "__main__":
    num_actions = 4
    key = jax.random.PRNGKey(0)
    ks = jax.random.split(key, 9)
    # PyTorch shapes: conv (Cout,Cin,KH,KW), linear (out,in)
    params = {
        "conv1_w": 0.05 * jax.random.normal(ks[0], (32, 4, 5, 5), jnp.float32),
        "conv1_b": 0.05 * jax.random.normal(ks[1], (32,), jnp.float32),
        "conv2_w": 0.05 * jax.random.normal(ks[2], (64, 32, 3, 3), jnp.float32),
        "conv2_b": 0.05 * jax.random.normal(ks[3], (64,), jnp.float32),
        "fc1_w":   0.05 * jax.random.normal(ks[4], (128, 576), jnp.float32),
        "fc1_b":   0.05 * jax.random.normal(ks[5], (128,), jnp.float32),
        "fc2_w":   0.05 * jax.random.normal(ks[6], (num_actions, 128), jnp.float32),
        "fc2_b":   0.05 * jax.random.normal(ks[7], (num_actions,), jnp.float32),
    }
    # fc1 expects 576 = 64*3*3 flattened features -> input spatial must be 84x84
    x = jax.random.normal(ks[8], (2, 4, 84, 84), jnp.float32)

    out = jax.block_until_ready(dqn_forward(x, params))
    ref = jax.block_until_ready(dqn_reference(x, params))

    assert out.shape == (2, num_actions), out.shape
    assert jnp.allclose(out, ref, atol=1e-3, rtol=1e-3), (out, ref)
    print("KERNEL_OK")
</pallas_src>

<mosaic_0001>
module attributes {stable_mosaic.version = 11 : i64} {
  func.func @_conv1_kernel(%arg0: i32, %arg1: memref<1352x576xf32, #tpu.memory_space<vmem>>, %arg2: memref<576x128xf32, #tpu.memory_space<vmem>>, %arg3: memref<1x128xf32, #tpu.memory_space<vmem>>, %arg4: memref<1352x32xf32, #tpu.memory_space<vmem>>) attributes {dimension_semantics = [#tpu.dimension_semantics<parallel>], iteration_bounds = array<i64: 1>, scalar_prefetch = 0 : i64, scratch_operands = 0 : i64, tpu.core_type = #tpu.core_type<tc>, window_params = [{transform_indices = @transform_0, window_bounds = array<i64: 1352, 576>}, {pipeline_mode = #tpu.pipeline_mode<synchronous>, transform_indices = @transform_1, window_bounds = array<i64: 576, 128>}, {pipeline_mode = #tpu.pipeline_mode<synchronous>, transform_indices = @transform_2, window_bounds = array<i64: 1, 128>}, {transform_indices = @transform_3, window_bounds = array<i64: 1352, 32>}]} {
    %c0 = arith.constant 0 : index
    %c0_0 = arith.constant 0 : index
    %0 = vector.load %arg1[%c0, %c0_0] : memref<1352x576xf32, #tpu.memory_space<vmem>>, vector<1352x576xf32>
    %c0_1 = arith.constant 0 : index
    %c0_2 = arith.constant 0 : index
    %1 = vector.load %arg2[%c0_1, %c0_2] : memref<576x128xf32, #tpu.memory_space<vmem>>, vector<576x128xf32>
    %cst = arith.constant dense<0.000000e+00> : vector<1352x128xf32>
    %2 = tpu.matmul %0, %1, %cst {dimension_numbers = #tpu.dot_dimension_numbers<[1], [0], [0], [1], [0, 0, 1, 1], [], []>} : vector<1352x576xf32>, vector<576x128xf32>, vector<1352x128xf32> -> vector<1352x128xf32>
    %c0_3 = arith.constant 0 : index
    %c0_4 = arith.constant 0 : index
    %3 = vector.load %arg3[%c0_3, %c0_4] : memref<1x128xf32, #tpu.memory_space<vmem>>, vector<1x128xf32>
    %4 = vector.broadcast %3 : vector<1x128xf32> to vector<1352x128xf32>
    %5 = arith.addf %2, %4 : vector<1352x128xf32>
    %cst_5 = arith.constant 0.000000e+00 : f32
    %6 = vector.broadcast %cst_5 : f32 to vector<1352x128xf32>
    %7 = arith.maximumf %5, %6 : vector<1352x128xf32>
    %8 = vector.extract_strided_slice %7 {offsets = [0, 0], sizes = [1352, 32], strides = [1, 1]} : vector<1352x128xf32> to vector<1352x32xf32>
    %9 = vector.extract_strided_slice %7 {offsets = [0, 32], sizes = [1352, 32], strides = [1, 1]} : vector<1352x128xf32> to vector<1352x32xf32>
    %10 = arith.maximumf %8, %9 : vector<1352x32xf32>
    %11 = vector.extract_strided_slice %7 {offsets = [0, 64], sizes = [1352, 32], strides = [1, 1]} : vector<1352x128xf32> to vector<1352x32xf32>
    %12 = vector.extract_strided_slice %7 {offsets = [0, 96], sizes = [1352, 32], strides = [1, 1]} : vector<1352x128xf32> to vector<1352x32xf32>
    %13 = arith.maximumf %11, %12 : vector<1352x32xf32>
    %14 = arith.maximumf %10, %13 : vector<1352x32xf32>
    %c0_6 = arith.constant 0 : index
    %c0_7 = arith.constant 0 : index
    %15 = vector.load %arg4[%c0_6, %c0_7] : memref<1352x32xf32, #tpu.memory_space<vmem>>, vector<1352x32xf32>
    tpu.vector_store %arg4[%c0_6, %c0_7], %14 {strides = array<i32>} : memref<1352x32xf32, #tpu.memory_space<vmem>>, vector<1352x32xf32>,
    return
  }
  func.func @transform_0(%arg0: i32) -> (i32, i32) {
    %c0_i32 = arith.constant 0 : i32
    %c0_i32_0 = arith.constant 0 : i32
    return %arg0, %c0_i32 : i32, i32
  }
  func.func @transform_1(%arg0: i32) -> (i32, i32) {
    %c0_i32 = arith.constant 0 : i32
    %c0_i32_0 = arith.constant 0 : i32
    %c0_i32_1 = arith.constant 0 : i32
    return %c0_i32, %c0_i32_0 : i32, i32
  }
  func.func @transform_2(%arg0: i32) -> (i32, i32) {
    %c0_i32 = arith.constant 0 : i32
    %c0_i32_0 = arith.constant 0 : i32
    %c0_i32_1 = arith.constant 0 : i32
    return %c0_i32, %c0_i32_0 : i32, i32
  }
  func.func @transform_3(%arg0: i32) -> (i32, i32) {
    %c0_i32 = arith.constant 0 : i32
    %c0_i32_0 = arith.constant 0 : i32
    return %arg0, %c0_i32 : i32, i32
  }
}

module attributes {stable_mosaic.version = 11 : i64} {
  func.func @_head_kernel(%arg0: i32, %arg1: memref<9x8x800xf32, #tpu.memory_space<vmem>>, %arg2: memref<800x256xf32, #tpu.memory_space<vmem>>, %arg3: memref<1x256xf32, #tpu.memory_space<vmem>>, %arg4: memref<9x64x128xf32, #tpu.memory_space<vmem>>, %arg5: memref<1x128xf32, #tpu.memory_space<vmem>>, %arg6: memref<128x4xf32, #tpu.memory_space<vmem>>, %arg7: memref<1x4xf32, #tpu.memory_space<vmem>>, %arg8: memref<8x4xf32, #tpu.memory_space<vmem>>) attributes {dimension_semantics = [#tpu.dimension_semantics<parallel>], iteration_bounds = array<i64: 1>, scalar_prefetch = 0 : i64, scratch_operands = 0 : i64, tpu.core_type = #tpu.core_type<tc>, window_params = [{transform_indices = @transform_0, window_bounds = array<i64: 9, 8, 800>}, {pipeline_mode = #tpu.pipeline_mode<synchronous>, transform_indices = @transform_1, window_bounds = array<i64: 800, 256>}, {pipeline_mode = #tpu.pipeline_mode<synchronous>, transform_indices = @transform_2, window_bounds = array<i64: 1, 256>}, {pipeline_mode = #tpu.pipeline_mode<synchronous>, transform_indices = @transform_3, window_bounds = array<i64: 9, 64, 128>}, {pipeline_mode = #tpu.pipeline_mode<synchronous>, transform_indices = @transform_4, window_bounds = array<i64: 1, 128>}, {pipeline_mode = #tpu.pipeline_mode<synchronous>, transform_indices = @transform_5, window_bounds = array<i64: 128, 4>}, {pipeline_mode = #tpu.pipeline_mode<synchronous>, transform_indices = @transform_6, window_bounds = array<i64: 1, 4>}, {transform_indices = @transform_7, window_bounds = array<i64: 8, 4>}]} {
    %cst = arith.constant 0.000000e+00 : f32
    %0 = vector.broadcast %cst : f32 to vector<8x128xf32>
    %c0 = arith.constant 0 : index
    %c0_0 = arith.constant 0 : index
    %c0_1 = arith.constant 0 : index
    %1 = vector.load %arg1[%c0, %c0_0, %c0_1] : memref<9x8x800xf32, #tpu.memory_space<vmem>>, vector<1x8x800xf32>
    %2 = vector.shape_cast %1 : vector<1x8x800xf32> to vector<8x800xf32>
    %c0_2 = arith.constant 0 : index
    %c0_3 = arith.constant 0 : index
    %3 = vector.load %arg2[%c0_2, %c0_3] : memref<800x256xf32, #tpu.memory_space<vmem>>, vector<800x256xf32>
    %cst_4 = arith.constant dense<0.000000e+00> : vector<8x256xf32>
    %4 = tpu.matmul %2, %3, %cst_4 {dimension_numbers = #tpu.dot_dimension_numbers<[1], [0], [0], [1], [0, 0, 1, 1], [], []>} : vector<8x800xf32>, vector<800x256xf32>, vector<8x256xf32> -> vector<8x256xf32>
    %c0_5 = arith.constant 0 : index
    %c0_6 = arith.constant 0 : index
    %5 = vector.load %arg3[%c0_5, %c0_6] : memref<1x256xf32, #tpu.memory_space<vmem>>, vector<1x256xf32>
    %6 = vector.broadcast %5 : vector<1x256xf32> to vector<8x256xf32>
    %7 = arith.addf %4, %6 : vector<8x256xf32>
    %cst_7 = arith.constant 0.000000e+00 : f32
    %8 = vector.broadcast %cst_7 : f32 to vector<8x256xf32>
    %9 = arith.maximumf %7, %8 : vector<8x256xf32>
    %10 = vector.extract_strided_slice %9 {offsets = [0, 0], sizes = [8, 64], strides = [1, 1]} : vector<8x256xf32> to vector<8x64xf32>
    %11 = vector.extract_strided_slice %9 {offsets = [0, 64], sizes = [8, 64], strides = [1, 1]} : vector<8x256xf32> to vector<8x64xf32>
    %12 = arith.maximumf %10, %11 : vector<8x64xf32>
    %13 = vector.extract_strided_slice %9 {offsets = [0, 128], sizes = [8, 64], strides = [1, 1]} : vector<8x256xf32> to vector<8x64xf32>
    %14 = vector.extract_strided_slice %9 {offsets = [0, 192], sizes = [8, 64], strides = [1, 1]} : vector<8x256xf32> to vector<8x64xf32>
    %15 = arith.maximumf %13, %14 : vector<8x64xf32>
    %16 = arith.maximumf %12, %15 : vector<8x64xf32>
    %c0_8 = arith.constant 0 : index
    %c0_9 = arith.constant 0 : index
    %c0_10 = arith.constant 0 : index
    %17 = vector.load %arg4[%c0_8, %c0_9, %c0_10] : memref<9x64x128xf32, #tpu.memory_space<vmem>>, vector<1x64x128xf32>
    %18 = vector.shape_cast %17 : vector<1x64x128xf32> to vector<64x128xf32>
    %cst_11 = arith.constant dense<0.000000e+00> : vector<8x128xf32>
    %19 = tpu.matmul %16, %18, %cst_11 {dimension_numbers = #tpu.dot_dimension_numbers<[1], [0], [0], [1], [0, 0, 1, 1], [], []>} : vector<8x64xf32>, vector<64x128xf32>, vector<8x128xf32> -> vector<8x128xf32>
    %20 = arith.addf %0, %19 : vector<8x128xf32>
    %c1 = arith.constant 1 : index
    %c0_12 = arith.constant 0 : index
    %c0_13 = arith.constant 0 : index
    %21 = vector.load %arg1[%c1, %c0_12, %c0_13] : memref<9x8x800xf32, #tpu.memory_space<vmem>>, vector<1x8x800xf32>
    %22 = vector.shape_cast %21 : vector<1x8x800xf32> to vector<8x800xf32>
    %c0_14 = arith.constant 0 : index
    %c0_15 = arith.constant 0 : index
    %23 = vector.load %arg2[%c0_14, %c0_15] : memref<800x256xf32, #tpu.memory_space<vmem>>, vector<800x256xf32>
    %cst_16 = arith.constant dense<0.000000e+00> : vector<8x256xf32>
    %24 = tpu.matmul %22, %23, %cst_16 {dimension_numbers = #tpu.dot_dimension_numbers<[1], [0], [0], [1], [0, 0, 1, 1], [], []>} : vector<8x800xf32>, vector<800x256xf32>, vector<8x256xf32> -> vector<8x256xf32>
    %c0_17 = arith.constant 0 : index
    %c0_18 = arith.constant 0 : index
    %25 = vector.load %arg3[%c0_17, %c0_18] : memref<1x256xf32, #tpu.memory_space<vmem>>, vector<1x256xf32>
    %26 = vector.broadcast %25 : vector<1x256xf32> to vector<8x256xf32>
    %27 = arith.addf %24, %26 : vector<8x256xf32>
    %cst_19 = arith.constant 0.000000e+00 : f32
    %28 = vector.broadcast %cst_19 : f32 to vector<8x256xf32>
    %29 = arith.maximumf %27, %28 : vector<8x256xf32>
    %30 = vector.extract_strided_slice %29 {offsets = [0, 0], sizes = [8, 64], strides = [1, 1]} : vector<8x256xf32> to vector<8x64xf32>
    %31 = vector.extract_strided_slice %29 {offsets = [0, 64], sizes = [8, 64], strides = [1, 1]} : vector<8x256xf32> to vector<8x64xf32>
    %32 = arith.maximumf %30, %31 : vector<8x64xf32>
    %33 = vector.extract_strided_slice %29 {offsets = [0, 128], sizes = [8, 64], strides = [1, 1]} : vector<8x256xf32> to vector<8x64xf32>
    %34 = vector.extract_strided_slice %29 {offsets = [0, 192], sizes = [8, 64], strides = [1, 1]} : vector<8x256xf32> to vector<8x64xf32>
    %35 = arith.maximumf %33, %34 : vector<8x64xf32>
    %36 = arith.maximumf %32, %35 : vector<8x64xf32>
    %c1_20 = arith.constant 1 : index
    %c0_21 = arith.constant 0 : index
    %c0_22 = arith.constant 0 : index
    %37 = vector.load %arg4[%c1_20, %c0_21, %c0_22] : memref<9x64x128xf32, #tpu.memory_space<vmem>>, vector<1x64x128xf32>
    %38 = vector.shape_cast %37 : vector<1x64x128xf32> to vector<64x128xf32>
    %cst_23 = arith.constant dense<0.000000e+00> : vector<8x128xf32>
    %39 = tpu.matmul %36, %38, %cst_23 {dimension_numbers = #tpu.dot_dimension_numbers<[1], [0], [0], [1], [0, 0, 1, 1], [], []>} : vector<8x64xf32>, vector<64x128xf32>, vector<8x128xf32> -> vector<8x128xf32>
    %40 = arith.addf %20, %39 : vector<8x128xf32>
    %c2 = arith.constant 2 : index
    %c0_24 = arith.constant 0 : index
    %c0_25 = arith.constant 0 : index
    %41 = vector.load %arg1[%c2, %c0_24, %c0_25] : memref<9x8x800xf32, #tpu.memory_space<vmem>>, vector<1x8x800xf32>
    %42 = vector.shape_cast %41 : vector<1x8x800xf32> to vector<8x800xf32>
    %c0_26 = arith.constant 0 : index
    %c0_27 = arith.constant 0 : index
    %43 = vector.load %arg2[%c0_26, %c0_27] : memref<800x256xf32, #tpu.memory_space<vmem>>, vector<800x256xf32>
    %cst_28 = arith.constant dense<0.000000e+00> : vector<8x256xf32>
    %44 = tpu.matmul %42, %43, %cst_28 {dimension_numbers = #tpu.dot_dimension_numbers<[1], [0], [0], [1], [0, 0, 1, 1], [], []>} : vector<8x800xf32>, vector<800x256xf32>, vector<8x256xf32> -> vector<8x256xf32>
    %c0_29 = arith.constant 0 : index
    %c0_30 = arith.constant 0 : index
    %45 = vector.load %arg3[%c0_29, %c0_30] : memref<1x256xf32, #tpu.memory_space<vmem>>, vector<1x256xf32>
    %46 = vector.broadcast %45 : vector<1x256xf32> to vector<8x256xf32>
    %47 = arith.addf %44, %46 : vector<8x256xf32>
    %cst_31 = arith.constant 0.000000e+00 : f32
    %48 = vector.broadcast %cst_31 : f32 to vector<8x256xf32>
    %49 = arith.maximumf %47, %48 : vector<8x256xf32>
    %50 = vector.extract_strided_slice %49 {offsets = [0, 0], sizes = [8, 64], strides = [1, 1]} : vector<8x256xf32> to vector<8x64xf32>
    %51 = vector.extract_strided_slice %49 {offsets = [0, 64], sizes = [8, 64], strides = [1, 1]} : vector<8x256xf32> to vector<8x64xf32>
    %52 = arith.maximumf %50, %51 : vector<8x64xf32>
    %53 = vector.extract_strided_slice %49 {offsets = [0, 128], sizes = [8, 64], strides = [1, 1]} : vector<8x256xf32> to vector<8x64xf32>
    %54 = vector.extract_strided_slice %49 {offsets = [0, 192], sizes = [8, 64], strides = [1, 1]} : vector<8x256xf32> to vector<8x64xf32>
    %55 = arith.maximumf %53, %54 : vector<8x64xf32>
    %56 = arith.maximumf %52, %55 : vector<8x64xf32>
    %c2_32 = arith.constant 2 : index
    %c0_33 = arith.constant 0 : index
    %c0_34 = arith.constant 0 : index
    %57 = vector.load %arg4[%c2_32, %c0_33, %c0_34] : memref<9x64x128xf32, #tpu.memory_space<vmem>>, vector<1x64x128xf32>
    %58 = vector.shape_cast %57 : vector<1x64x128xf32> to vector<64x128xf32>
    %cst_35 = arith.constant dense<0.000000e+00> : vector<8x128xf32>
    %59 = tpu.matmul %56, %58, %cst_35 {dimension_numbers = #tpu.dot_dimension_numbers<[1], [0], [0], [1], [0, 0, 1, 1], [], []>} : vector<8x64xf32>, vector<64x128xf32>, vector<8x128xf32> -> vector<8x128xf32>
    %60 = arith.addf %40, %59 : vector<8x128xf32>
    %c3 = arith.constant 3 : index
    %c0_36 = arith.constant 0 : index
    %c0_37 = arith.constant 0 : index
    %61 = vector.load %arg1[%c3, %c0_36, %c0_37] : memref<9x8x800xf32, #tpu.memory_space<vmem>>, vector<1x8x800xf32>
    %62 = vector.shape_cast %61 : vector<1x8x800xf32> to vector<8x800xf32>
    %c0_38 = arith.constant 0 : index
    %c0_39 = arith.constant 0 : index
    %63 = vector.load %arg2[%c0_38, %c0_39] : memref<800x256xf32, #tpu.memory_space<vmem>>, vector<800x256xf32>
    %cst_40 = arith.constant dense<0.000000e+00> : vector<8x256xf32>
    %64 = tpu.matmul %62, %63, %cst_40 {dimension_numbers = #tpu.dot_dimension_numbers<[1], [0], [0], [1], [0, 0, 1, 1], [], []>} : vector<8x800xf32>, vector<800x256xf32>, vector<8x256xf32> -> vector<8x256xf32>
    %c0_41 = arith.constant 0 : index
    %c0_42 = arith.constant 0 : index
    %65 = vector.load %arg3[%c0_41, %c0_42] : memref<1x256xf32, #tpu.memory_space<vmem>>, vector<1x256xf32>
    %66 = vector.broadcast %65 : vector<1x256xf32> to vector<8x256xf32>
    %67 = arith.addf %64, %66 : vector<8x256xf32>
    %cst_43 = arith.constant 0.000000e+00 : f32
    %68 = vector.broadcast %cst_43 : f32 to vector<8x256xf32>
    %69 = arith.maximumf %67, %68 : vector<8x256xf32>
    %70 = vector.extract_strided_slice %69 {offsets = [0, 0], sizes = [8, 64], strides = [1, 1]} : vector<8x256xf32> to vector<8x64xf32>
    %71 = vector.extract_strided_slice %69 {offsets = [0, 64], sizes = [8, 64], strides = [1, 1]} : vector<8x256xf32> to vector<8x64xf32>
    %72 = arith.maximumf %70, %71 : vector<8x64xf32>
    %73 = vector.extract_strided_slice %69 {offsets = [0, 128], sizes = [8, 64], strides = [1, 1]} : vector<8x256xf32> to vector<8x64xf32>
    %74 = vector.extract_strided_slice %69 {offsets = [0, 192], sizes = [8, 64], strides = [1, 1]} : vector<8x256xf32> to vector<8x64xf32>
    %75 = arith.maximumf %73, %74 : vector<8x64xf32>
    %76 = arith.maximumf %72, %75 : vector<8x64xf32>
    %c3_44 = arith.constant 3 : index
    %c0_45 = arith.constant 0 : index
    %c0_46 = arith.constant 0 : index
    %77 = vector.load %arg4[%c3_44, %c0_45, %c0_46] : memref<9x64x128xf32, #tpu.memory_space<vmem>>, vector<1x64x128xf32>
    %78 = vector.shape_cast %77 : vector<1x64x128xf32> to vector<64x128xf32>
    %cst_47 = arith.constant dense<0.000000e+00> : vector<8x128xf32>
    %79 = tpu.matmul %76, %78, %cst_47 {dimension_numbers = #tpu.dot_dimension_numbers<[1], [0], [0], [1], [0, 0, 1, 1], [], []>} : vector<8x64xf32>, vector<64x128xf32>, vector<8x128xf32> -> vector<8x128xf32>
    %80 = arith.addf %60, %79 : vector<8x128xf32>
    %c4 = arith.constant 4 : index
    %c0_48 = arith.constant 0 : index
    %c0_49 = arith.constant 0 : index
    %81 = vector.load %arg1[%c4, %c0_48, %c0_49] : memref<9x8x800xf32, #tpu.memory_space<vmem>>, vector<1x8x800xf32>
    %82 = vector.shape_cast %81 : vector<1x8x800xf32> to vector<8x800xf32>
    %c0_50 = arith.constant 0 : index
    %c0_51 = arith.constant 0 : index
    %83 = vector.load %arg2[%c0_50, %c0_51] : memref<800x256xf32, #tpu.memory_space<vmem>>, vector<800x256xf32>
    %cst_52 = arith.constant dense<0.000000e+00> : vector<8x256xf32>
    %84 = tpu.matmul %82, %83, %cst_52 {dimension_numbers = #tpu.dot_dimension_numbers<[1], [0], [0], [1], [0, 0, 1, 1], [], []>} : vector<8x800xf32>, vector<800x256xf32>, vector<8x256xf32> -> vector<8x256xf32>
    %c0_53 = arith.constant 0 : index
    %c0_54 = arith.constant 0 : index
    %85 = vector.load %arg3[%c0_53, %c0_54] : memref<1x256xf32, #tpu.memory_space<vmem>>, vector<1x256xf32>
    %86 = vector.broadcast %85 : vector<1x256xf32> to vector<8x256xf32>
    %87 = arith.addf %84, %86 : vector<8x256xf32>
    %cst_55 = arith.constant 0.000000e+00 : f32
    %88 = vector.broadcast %cst_55 : f32 to vector<8x256xf32>
    %89 = arith.maximumf %87, %88 : vector<8x256xf32>
    %90 = vector.extract_strided_slice %89 {offsets = [0, 0], sizes = [8, 64], strides = [1, 1]} : vector<8x256xf32> to vector<8x64xf32>
    %91 = vector.extract_strided_slice %89 {offsets = [0, 64], sizes = [8, 64], strides = [1, 1]} : vector<8x256xf32> to vector<8x64xf32>
    %92 = arith.maximumf %90, %91 : vector<8x64xf32>
    %93 = vector.extract_strided_slice %89 {offsets = [0, 128], sizes = [8, 64], strides = [1, 1]} : vector<8x256xf32> to vector<8x64xf32>
    %94 = vector.extract_strided_slice %89 {offsets = [0, 192], sizes = [8, 64], strides = [1, 1]} : vector<8x256xf32> to vector<8x64xf32>
    %95 = arith.maximumf %93, %94 : vector<8x64xf32>
    %96 = arith.maximumf %92, %95 : vector<8x64xf32>
    %c4_56 = arith.constant 4 : index
    %c0_57 = arith.constant 0 : index
    %c0_58 = arith.constant 0 : index
    %97 = vector.load %arg4[%c4_56, %c0_57, %c0_58] : memref<9x64x128xf32, #tpu.memory_space<vmem>>, vector<1x64x128xf32>
    %98 = vector.shape_cast %97 : vector<1x64x128xf32> to vector<64x128xf32>
    %cst_59 = arith.constant dense<0.000000e+00> : vector<8x128xf32>
    %99 = tpu.matmul %96, %98, %cst_59 {dimension_numbers = #tpu.dot_dimension_numbers<[1], [0], [0], [1], [0, 0, 1, 1], [], []>} : vector<8x64xf32>, vector<64x128xf32>, vector<8x128xf32> -> vector<8x128xf32>
    %100 = arith.addf %80, %99 : vector<8x128xf32>
    %c5 = arith.constant 5 : index
    %c0_60 = arith.constant 0 : index
    %c0_61 = arith.constant 0 : index
    %101 = vector.load %arg1[%c5, %c0_60, %c0_61] : memref<9x8x800xf32, #tpu.memory_space<vmem>>, vector<1x8x800xf32>
    %102 = vector.shape_cast %101 : vector<1x8x800xf32> to vector<8x800xf32>
    %c0_62 = arith.constant 0 : index
    %c0_63 = arith.constant 0 : index
    %103 = vector.load %arg2[%c0_62, %c0_63] : memref<800x256xf32, #tpu.memory_space<vmem>>, vector<800x256xf32>
    %cst_64 = arith.constant dense<0.000000e+00> : vector<8x256xf32>
    %104 = tpu.matmul %102, %103, %cst_64 {dimension_numbers = #tpu.dot_dimension_numbers<[1], [0], [0], [1], [0, 0, 1, 1], [], []>} : vector<8x800xf32>, vector<800x256xf32>, vector<8x256xf32> -> vector<8x256xf32>
    %c0_65 = arith.constant 0 : index
    %c0_66 = arith.constant 0 : index
    %105 = vector.load %arg3[%c0_65, %c0_66] : memref<1x256xf32, #tpu.memory_space<vmem>>, vector<1x256xf32>
    %106 = vector.broadcast %105 : vector<1x256xf32> to vector<8x256xf32>
    %107 = arith.addf %104, %106 : vector<8x256xf32>
    %cst_67 = arith.constant 0.000000e+00 : f32
    %108 = vector.broadcast %cst_67 : f32 to vector<8x256xf32>
    %109 = arith.maximumf %107, %108 : vector<8x256xf32>
    %110 = vector.extract_strided_slice %109 {offsets = [0, 0], sizes = [8, 64], strides = [1, 1]} : vector<8x256xf32> to vector<8x64xf32>
    %111 = vector.extract_strided_slice %109 {offsets = [0, 64], sizes = [8, 64], strides = [1, 1]} : vector<8x256xf32> to vector<8x64xf32>
    %112 = arith.maximumf %110, %111 : vector<8x64xf32>
    %113 = vector.extract_strided_slice %109 {offsets = [0, 128], sizes = [8, 64], strides = [1, 1]} : vector<8x256xf32> to vector<8x64xf32>
    %114 = vector.extract_strided_slice %109 {offsets = [0, 192], sizes = [8, 64], strides = [1, 1]} : vector<8x256xf32> to vector<8x64xf32>
    %115 = arith.maximumf %113, %114 : vector<8x64xf32>
    %116 = arith.maximumf %112, %115 : vector<8x64xf32>
    %c5_68 = arith.constant 5 : index
    %c0_69 = arith.constant 0 : index
    %c0_70 = arith.constant 0 : index
    %117 = vector.load %arg4[%c5_68, %c0_69, %c0_70] : memref<9x64x128xf32, #tpu.memory_space<vmem>>, vector<1x64x128xf32>
    %118 = vector.shape_cast %117 : vector<1x64x128xf32> to vector<64x128xf32>
    %cst_71 = arith.constant dense<0.000000e+00> : vector<8x128xf32>
    %119 = tpu.matmul %116, %118, %cst_71 {dimension_numbers = #tpu.dot_dimension_numbers<[1], [0], [0], [1], [0, 0, 1, 1], [], []>} : vector<8x64xf32>, vector<64x128xf32>, vector<8x128xf32> -> vector<8x128xf32>
    %120 = arith.addf %100, %119 : vector<8x128xf32>
    %c6 = arith.constant 6 : index
    %c0_72 = arith.constant 0 : index
    %c0_73 = arith.constant 0 : index
    %121 = vector.load %arg1[%c6, %c0_72, %c0_73] : memref<9x8x800xf32, #tpu.memory_space<vmem>>, vector<1x8x800xf32>
    %122 = vector.shape_cast %121 : vector<1x8x800xf32> to vector<8x800xf32>
    %c0_74 = arith.constant 0 : index
    %c0_75 = arith.constant 0 : index
    %123 = vector.load %arg2[%c0_74, %c0_75] : memref<800x256xf32, #tpu.memory_space<vmem>>, vector<800x256xf32>
    %cst_76 = arith.constant dense<0.000000e+00> : vector<8x256xf32>
    %124 = tpu.matmul %122, %123, %cst_76 {dimension_numbers = #tpu.dot_dimension_numbers<[1], [0], [0], [1], [0, 0, 1, 1], [], []>} : vector<8x800xf32>, vector<800x256xf32>, vector<8x256xf32> -> vector<8x256xf32>
    %c0_77 = arith.constant 0 : index
    %c0_78 = arith.constant 0 : index
    %125 = vector.load %arg3[%c0_77, %c0_78] : memref<1x256xf32, #tpu.memory_space<vmem>>, vector<1x256xf32>
    %126 = vector.broadcast %125 : vector<1x256xf32> to vector<8x256xf32>
    %127 = arith.addf %124, %126 : vector<8x256xf32>
    %cst_79 = arith.constant 0.000000e+00 : f32
    %128 = vector.broadcast %cst_79 : f32 to vector<8x256xf32>
    %129 = arith.maximumf %127, %128 : vector<8x256xf32>
    %130 = vector.extract_strided_slice %129 {offsets = [0, 0], sizes = [8, 64], strides = [1, 1]} : vector<8x256xf32> to vector<8x64xf32>
    %131 = vector.extract_strided_slice %129 {offsets = [0, 64], sizes = [8, 64], strides = [1, 1]} : vector<8x256xf32> to vector<8x64xf32>
    %132 = arith.maximumf %130, %131 : vector<8x64xf32>
    %133 = vector.extract_strided_slice %129 {offsets = [0, 128], sizes = [8, 64], strides = [1, 1]} : vector<8x256xf32> to vector<8x64xf32>
    %134 = vector.extract_strided_slice %129 {offsets = [0, 192], sizes = [8, 64], strides = [1, 1]} : vector<8x256xf32> to vector<8x64xf32>
    %135 = arith.maximumf %133, %134 : vector<8x64xf32>
    %136 = arith.maximumf %132, %135 : vector<8x64xf32>
    %c6_80 = arith.constant 6 : index
    %c0_81 = arith.constant 0 : index
    %c0_82 = arith.constant 0 : index
    %137 = vector.load %arg4[%c6_80, %c0_81, %c0_82] : memref<9x64x128xf32, #tpu.memory_space<vmem>>, vector<1x64x128xf32>
    %138 = vector.shape_cast %137 : vector<1x64x128xf32> to vector<64x128xf32>
    %cst_83 = arith.constant dense<0.000000e+00> : vector<8x128xf32>
    %139 = tpu.matmul %136, %138, %cst_83 {dimension_numbers = #tpu.dot_dimension_numbers<[1], [0], [0], [1], [0, 0, 1, 1], [], []>} : vector<8x64xf32>, vector<64x128xf32>, vector<8x128xf32> -> vector<8x128xf32>
    %140 = arith.addf %120, %139 : vector<8x128xf32>
    %c7 = arith.constant 7 : index
    %c0_84 = arith.constant 0 : index
    %c0_85 = arith.constant 0 : index
    %141 = vector.load %arg1[%c7, %c0_84, %c0_85] : memref<9x8x800xf32, #tpu.memory_space<vmem>>, vector<1x8x800xf32>
    %142 = vector.shape_cast %141 : vector<1x8x800xf32> to vector<8x800xf32>
    %c0_86 = arith.constant 0 : index
    %c0_87 = arith.constant 0 : index
    %143 = vector.load %arg2[%c0_86, %c0_87] : memref<800x256xf32, #tpu.memory_space<vmem>>, vector<800x256xf32>
    %cst_88 = arith.constant dense<0.000000e+00> : vector<8x256xf32>
    %144 = tpu.matmul %142, %143, %cst_88 {dimension_numbers = #tpu.dot_dimension_numbers<[1], [0], [0], [1], [0, 0, 1, 1], [], []>} : vector<8x800xf32>, vector<800x256xf32>, vector<8x256xf32> -> vector<8x256xf32>
    %c0_89 = arith.constant 0 : index
    %c0_90 = arith.constant 0 : index
    %145 = vector.load %arg3[%c0_89, %c0_90] : memref<1x256xf32, #tpu.memory_space<vmem>>, vector<1x256xf32>
    %146 = vector.broadcast %145 : vector<1x256xf32> to vector<8x256xf32>
    %147 = arith.addf %144, %146 : vector<8x256xf32>
    %cst_91 = arith.constant 0.000000e+00 : f32
    %148 = vector.broadcast %cst_91 : f32 to vector<8x256xf32>
    %149 = arith.maximumf %147, %148 : vector<8x256xf32>
    %150 = vector.extract_strided_slice %149 {offsets = [0, 0], sizes = [8, 64], strides = [1, 1]} : vector<8x256xf32> to vector<8x64xf32>
    %151 = vector.extract_strided_slice %149 {offsets = [0, 64], sizes = [8, 64], strides = [1, 1]} : vector<8x256xf32> to vector<8x64xf32>
    %152 = arith.maximumf %150, %151 : vector<8x64xf32>
    %153 = vector.extract_strided_slice %149 {offsets = [0, 128], sizes = [8, 64], strides = [1, 1]} : vector<8x256xf32> to vector<8x64xf32>
    %154 = vector.extract_strided_slice %149 {offsets = [0, 192], sizes = [8, 64], strides = [1, 1]} : vector<8x256xf32> to vector<8x64xf32>
    %155 = arith.maximumf %153, %154 : vector<8x64xf32>
    %156 = arith.maximumf %152, %155 : vector<8x64xf32>
    %c7_92 = arith.constant 7 : index
    %c0_93 = arith.constant 0 : index
    %c0_94 = arith.constant 0 : index
    %157 = vector.load %arg4[%c7_92, %c0_93, %c0_94] : memref<9x64x128xf32, #tpu.memory_space<vmem>>, vector<1x64x128xf32>
    %158 = vector.shape_cast %157 : vector<1x64x128xf32> to vector<64x128xf32>
    %cst_95 = arith.constant dense<0.000000e+00> : vector<8x128xf32>
    %159 = tpu.matmul %156, %158, %cst_95 {dimension_numbers = #tpu.dot_dimension_numbers<[1], [0], [0], [1], [0, 0, 1, 1], [], []>} : vector<8x64xf32>, vector<64x128xf32>, vector<8x128xf32> -> vector<8x128xf32>
    %160 = arith.addf %140, %159 : vector<8x128xf32>
    %c8 = arith.constant 8 : index
    %c0_96 = arith.constant 0 : index
    %c0_97 = arith.constant 0 : index
    %161 = vector.load %arg1[%c8, %c0_96, %c0_97] : memref<9x8x800xf32, #tpu.memory_space<vmem>>, vector<1x8x800xf32>
    %162 = vector.shape_cast %161 : vector<1x8x800xf32> to vector<8x800xf32>
    %c0_98 = arith.constant 0 : index
    %c0_99 = arith.constant 0 : index
    %163 = vector.load %arg2[%c0_98, %c0_99] : memref<800x256xf32, #tpu.memory_space<vmem>>, vector<800x256xf32>
    %cst_100 = arith.constant dense<0.000000e+00> : vector<8x256xf32>
    %164 = tpu.matmul %162, %163, %cst_100 {dimension_numbers = #tpu.dot_dimension_numbers<[1], [0], [0], [1], [0, 0, 1, 1], [], []>} : vector<8x800xf32>, vector<800x256xf32>, vector<8x256xf32> -> vector<8x256xf32>
    %c0_101 = arith.constant 0 : index
    %c0_102 = arith.constant 0 : index
    %165 = vector.load %arg3[%c0_101, %c0_102] : memref<1x256xf32, #tpu.memory_space<vmem>>, vector<1x256xf32>
    %166 = vector.broadcast %165 : vector<1x256xf32> to vector<8x256xf32>
    %167 = arith.addf %164, %166 : vector<8x256xf32>
    %cst_103 = arith.constant 0.000000e+00 : f32
    %168 = vector.broadcast %cst_103 : f32 to vector<8x256xf32>
    %169 = arith.maximumf %167, %168 : vector<8x256xf32>
    %170 = vector.extract_strided_slice %169 {offsets = [0, 0], sizes = [8, 64], strides = [1, 1]} : vector<8x256xf32> to vector<8x64xf32>
    %171 = vector.extract_strided_slice %169 {offsets = [0, 64], sizes = [8, 64], strides = [1, 1]} : vector<8x256xf32> to vector<8x64xf32>
    %172 = arith.maximumf %170, %171 : vector<8x64xf32>
    %173 = vector.extract_strided_slice %169 {offsets = [0, 128], sizes = [8, 64], strides = [1, 1]} : vector<8x256xf32> to vector<8x64xf32>
    %174 = vector.extract_strided_slice %169 {offsets = [0, 192], sizes = [8, 64], strides = [1, 1]} : vector<8x256xf32> to vector<8x64xf32>
    %175 = arith.maximumf %173, %174 : vector<8x64xf32>
    %176 = arith.maximumf %172, %175 : vector<8x64xf32>
    %c8_104 = arith.constant 8 : index
    %c0_105 = arith.constant 0 : index
    %c0_106 = arith.constant 0 : index
    %177 = vector.load %arg4[%c8_104, %c0_105, %c0_106] : memref<9x64x128xf32, #tpu.memory_space<vmem>>, vector<1x64x128xf32>
    %178 = vector.shape_cast %177 : vector<1x64x128xf32> to vector<64x128xf32>
    %cst_107 = arith.constant dense<0.000000e+00> : vector<8x128xf32>
    %179 = tpu.matmul %176, %178, %cst_107 {dimension_numbers = #tpu.dot_dimension_numbers<[1], [0], [0], [1], [0, 0, 1, 1], [], []>} : vector<8x64xf32>, vector<64x128xf32>, vector<8x128xf32> -> vector<8x128xf32>
    %180 = arith.addf %160, %179 : vector<8x128xf32>
    %c0_108 = arith.constant 0 : index
    %c0_109 = arith.constant 0 : index
    %181 = vector.load %arg5[%c0_108, %c0_109] : memref<1x128xf32, #tpu.memory_space<vmem>>, vector<1x128xf32>
    %182 = vector.broadcast %181 : vector<1x128xf32> to vector<8x128xf32>
    %183 = arith.addf %180, %182 : vector<8x128xf32>
    %cst_110 = arith.constant 0.000000e+00 : f32
    %184 = vector.broadcast %cst_110 : f32 to vector<8x128xf32>
    %185 = arith.maximumf %183, %184 : vector<8x128xf32>
    %c0_111 = arith.constant 0 : index
    %c0_112 = arith.constant 0 : index
    %186 = vector.load %arg6[%c0_111, %c0_112] : memref<128x4xf32, #tpu.memory_space<vmem>>, vector<128x4xf32>
    %cst_113 = arith.constant dense<0.000000e+00> : vector<8x4xf32>
    %187 = tpu.matmul %185, %186, %cst_113 {dimension_numbers = #tpu.dot_dimension_numbers<[1], [0], [0], [1], [0, 0, 1, 1], [], []>} : vector<8x128xf32>, vector<128x4xf32>, vector<8x4xf32> -> vector<8x4xf32>
    %c0_114 = arith.constant 0 : index
    %c0_115 = arith.constant 0 : index
    %188 = vector.load %arg7[%c0_114, %c0_115] : memref<1x4xf32, #tpu.memory_space<vmem>>, vector<1x4xf32>
    %189 = vector.broadcast %188 : vector<1x4xf32> to vector<8x4xf32>
    %190 = arith.addf %187, %189 : vector<8x4xf32>
    %c0_116 = arith.constant 0 : index
    %c0_117 = arith.constant 0 : index
    %191 = vector.load %arg8[%c0_116, %c0_117] : memref<8x4xf32, #tpu.memory_space<vmem>>, vector<8x4xf32>
    tpu.vector_store %arg8[%c0_116, %c0_117], %190 {strides = array<i32>} : memref<8x4xf32, #tpu.memory_space<vmem>>, vector<8x4xf32>,
    return
  }
  func.func @transform_0(%arg0: i32) -> (i32, i32, i32) {
    %c0_i32 = arith.constant 0 : i32
    %c0_i32_0 = arith.constant 0 : i32
    %c0_i32_1 = arith.constant 0 : i32
    return %c0_i32, %arg0, %c0_i32_0 : i32, i32, i32
  }
  func.func @transform_1(%arg0: i32) -> (i32, i32) {
    %c0_i32 = arith.constant 0 : i32
    %c0_i32_0 = arith.constant 0 : i32
    %c0_i32_1 = arith.constant 0 : i32
    return %c0_i32, %c0_i32_0 : i32, i32
  }
  func.func @transform_2(%arg0: i32) -> (i32, i32) {
    %c0_i32 = arith.constant 0 : i32
    %c0_i32_0 = arith.constant 0 : i32
    %c0_i32_1 = arith.constant 0 : i32
    return %c0_i32, %c0_i32_0 : i32, i32
  }
  func.func @transform_3(%arg0: i32) -> (i32, i32, i32) {
    %c0_i32 = arith.constant 0 : i32
    %c0_i32_0 = arith.constant 0 : i32
    %c0_i32_1 = arith.constant 0 : i32
    %c0_i32_2 = arith.constant 0 : i32
    return %c0_i32, %c0_i32_0, %c0_i32_1 : i32, i32, i32
  }
  func.func @transform_4(%arg0: i32) -> (i32, i32) {
    %c0_i32 = arith.constant 0 : i32
    %c0_i32_0 = arith.constant 0 : i32
    %c0_i32_1 = arith.constant 0 : i32
    return %c0_i32, %c0_i32_0 : i32, i32
  }
  func.func @transform_5(%arg0: i32) -> (i32, i32) {
    %c0_i32 = arith.constant 0 : i32
    %c0_i32_0 = arith.constant 0 : i32
    %c0_i32_1 = arith.constant 0 : i32
    return %c0_i32, %c0_i32_0 : i32, i32
  }
  func.func @transform_6(%arg0: i32) -> (i32, i32) {
    %c0_i32 = arith.constant 0 : i32
    %c0_i32_0 = arith.constant 0 : i32
    %c0_i32_1 = arith.constant 0 : i32
    return %c0_i32, %c0_i32_0 : i32, i32
  }
  func.func @transform_7(%arg0: i32) -> (i32, i32) {
    %c0_i32 = arith.constant 0 : i32
    %c0_i32_0 = arith.constant 0 : i32
    return %arg0, %c0_i32 : i32, i32
  }
}

</mosaic_0001>

<llo_original>
// kernel: tile.13
$region0: #{tile.13}
  #allocation0 [shape = 's32[1]{0}', space=sflag, size = 0x4, scoped, tag = 'scoped memory for tile.13']
  %s0 = inlined_call_operand.vmem [shape: f32[32], index: 0, kind: input, shape index: {}]
  %s1 = inlined_call_operand.vmem [shape: f32[4,32], index: 1, kind: output, shape index: {}]
  // Predicated region
  $region2: #{tile.13} parent=0 // pred_check
    _
  $region3: #{tile.13} parent=0 // pred_check_branch
    %3 = sbr.rel (0) target = $region5
  $region4: #{tile.13} parent=0 // pred_region
    _
  $region5: #{tile.13} parent=0 // pred_fallthru
    _
  %v4 = vld [vmem:[%s0] ss:$0 sm:$0xff]
  %5 = vst [vmem:[%s1] sm:$0xf] %v4

// kernel: tile.14
$region0: #{tile.14}
  %s0 = inlined_call_operand.vmem [shape: f32[4,32], index: 0, kind: input, shape index: {}]
  %s1 = inlined_call_operand.vmem [shape: f32[1,128], index: 1, kind: output, shape index: {}]
  $region1: #{tile.14} parent=0
    #allocation0 [shape = 'u8[4096]{0}', space=vmem, size = 0x1000, scoped, tag = 'scoped mem for output reshape']
    #allocation1 [shape = 'u8[4096]{0}', space=vmem, size = 0x1000, scoped, tag = 'scoped mem for input reshape']
    %s3 = sshllo.u32 0, 4
    %v4 = vld [vmem:[%s0] sm:%s3]
    %5 = vst [vmem:[#allocation1] sm:%s3] %v4
    %v6 = vld [vmem:[#allocation1] sm:$0x1]
    %vm7 = vcmask 261120
    %8 = vst.msk [vmem:[#allocation0] sm:$0x1] %vm7, %v6
    %s9 = scalar_lea.vmem [#allocation1], 3
    %v10 = vld [vmem:[%s9] sm:$0x1]
    %11 = vrot.lane.b32.xlu0 %v10, 96
    %v12 = vpop.permute.xlu0 %11
    %vm13 = vcmask 1048320
    %14 = vst.msk [vmem:[#allocation0] sm:$0x1] %vm13, %v12
    %s15 = scalar_lea.vmem [#allocation1], 2
    %v16 = vld [vmem:[%s15] sm:$0x1]
    %17 = vrot.lane.b32.xlu0 %v16, 64
    %v18 = vpop.permute.xlu0 %17
    %vm19 = vcmask 785920
    %20 = vst.msk [vmem:[#allocation0] sm:$0x1] %vm19, %v18
    %s21 = scalar_lea.vmem [#allocation1], 1
    %v22 = vld [vmem:[%s21] sm:$0x1]
    %23 = vrot.lane.b32.xlu0 %v22, 32
    %v24 = vpop.permute.xlu0 %23
    %vm25 = vcmask 523520
    %26 = vst.msk [vmem:[#allocation0] sm:$0x1] %vm25, %v24
    %s28 = sshllo.u32 0, 1
    %v30 = vld [vmem:[#allocation0] sm:%s28]
    %s31 = sshllo.u32 0, 1
    %32 = vst [vmem:[%s1] sm:%s31] %v30

// kernel: tile.18
$region0: #{tile.18}
  #allocation0 [shape = 's32[1]{0}', space=sflag, size = 0x4, scoped, tag = 'scoped memory for tile.18']
  %s0 = inlined_call_operand.vmem [shape: f32[64], index: 0, kind: input, shape index: {}]
  %s1 = inlined_call_operand.vmem [shape: f32[4,64], index: 1, kind: output, shape index: {}]
  // Predicated region
  $region2: #{tile.18} parent=0 // pred_check
    _
  $region3: #{tile.18} parent=0 // pred_check_branch
    %3 = sbr.rel (0) target = $region5
  $region4: #{tile.18} parent=0 // pred_region
    _
  $region5: #{tile.18} parent=0 // pred_fallthru
    _
  %v4 = vld [vmem:[%s0] ss:$0 sm:$0xff]
  %5 = vst [vmem:[%s1] sm:$0xf] %v4

// kernel: tile.19
$region0: #{tile.19}
  %s0 = inlined_call_operand.vmem [shape: f32[4,64], index: 0, kind: input, shape index: {}]
  %s1 = inlined_call_operand.vmem [shape: f32[1,256], index: 1, kind: output, shape index: {}]
  $region1: #{tile.19} parent=0
    #allocation0 [shape = 'u8[8192]{0}', space=vmem, size = 0x2000, scoped, tag = 'scoped mem for output reshape']
    #allocation1 [shape = 'u8[4096]{0}', space=vmem, size = 0x1000, scoped, tag = 'scoped mem for input reshape']
    %s3 = sshllo.u32 0, 4
    %v4 = vld [vmem:[%s0] sm:%s3]
    %5 = vst [vmem:[#allocation1] sm:%s3] %v4
    %s6 = smov 3
    %v7 = vld [vmem:[#allocation1] ss:$2 sm:%s6]
    %vm8 = vcmask 523264
    %9 = vst.msk [vmem:[#allocation0] ss:$8 sm:$0x3] %vm8, %v7
    %s10 = scalar_lea.vmem [#allocation1], 1
    %s11 = smov 3
    %v12 = vld [vmem:[%s10] ss:$2 sm:%s11]
    %13 = vrot.lane.b32.xlu0 %v12, 64
    %v14 = vpop.permute.xlu0 %13
    %vm15 = vcmask 1048064
    %16 = vst.msk [vmem:[#allocation0] ss:$8 sm:$0x3] %vm15, %v14
    %s18 = sshllo.u32 0, 1
    %v20 = vld [vmem:[#allocation0] sm:%s18]
    %s21 = sshllo.u32 0, 1
    %22 = vst [vmem:[%s1] sm:%s21] %v20
    %s23 = scalar_lea.vmem [#allocation0], 8
    %v24 = vld [vmem:[%s23] sm:%s18]
    %s25 = sshllo.u32 0, 1
    %s26 = scalar_lea.vmem %s1, 1
    %27 = vst [vmem:[%s26] sm:%s25] %v24

// kernel: dqn_forward.2
$region0: #{dqn_forward.2}
  #allocation0 [shape = 'u32[]', space=smem, size = 0x4, offset = 0x4, fixed_abs, tag = 'smem constant byte address 0x4 - core index']
  #allocation1 [shape = 'u32[144,128]{1,0:T(1,128)}', space=vmem, size = 0x12000, scoped, tag = 'internal scratch']
  %s0 = inlined_call_operand.vmem [shape: f32[1352,576], index: 0, kind: input, shape index: {}]
  %s1 = inlined_call_operand.vmem [shape: f32[576,128], index: 1, kind: input, shape index: {}]
  %s2 = inlined_call_operand.vmem [shape: f32[1,128], index: 2, kind: input, shape index: {}]
  %s3 = inlined_call_operand.vmem [shape: f32[1352,32], index: 3, kind: output, shape index: {}]
  %s4 = sld [smem:[#allocation0]]
  $region22: #{dqn_forward.2} parent=0
    _
  %s6 = ssub.s32 1, %s4
  %s7 = scalar_select 0, %s6, %s4
  // Predicated region
  $region2: #{dqn_forward.2} parent=0 // pred_check
    _
  $region3: #{dqn_forward.2} parent=0 // pred_check_branch
    %9 = sbr.rel (0) target = $region5
  $region4: #{dqn_forward.2} parent=0 // pred_region
    _
  $region5: #{dqn_forward.2} parent=0 // pred_fallthru
    _
  // Predicated region
  $region6: #{dqn_forward.2} parent=0 // pred_check
    _
  $region7: #{dqn_forward.2} parent=0 // pred_check_branch
    %11 = sbr.rel (0) target = $region9
  $region8: #{dqn_forward.2} parent=0 // pred_region
    _
  $region9: #{dqn_forward.2} parent=0 // pred_fallthru
    _
  // Predicated region
  $region10: #{dqn_forward.2} parent=0 // pred_check
    _
  $region11: #{dqn_forward.2} parent=0 // pred_check_branch
    %13 = sbr.rel (0) target = $region13
  $region12: #{dqn_forward.2} parent=0 // pred_region
    _
  $region13: #{dqn_forward.2} parent=0 // pred_fallthru
    _
  %v14 = vld [vmem:[%s0] sm:$0xff]
  %v15 = vld [vmem:[%s0 + $0x8] sm:$0xff]
  %v16 = vld [vmem:[%s0 + $0x10] sm:$0xff]
  %v17 = vld [vmem:[%s0 + $0x18] sm:$0xff]
  %v18 = vld [vmem:[%s0 + $0x20] sm:$0xff]
  %v19 = vld [vmem:[%s0 + $0x28] sm:$0xff]
  %v20 = vld [vmem:[%s0 + $0x30] sm:$0xff]
  %v21 = vld [vmem:[%s0 + $0x38] sm:$0xff]
  %v22 = vld [vmem:[%s0 + $0x40] sm:$0xff]
  %v23 = vld [vmem:[%s0 + $0x48] sm:$0xff]
  %v24 = vld [vmem:[%s0 + $0x50] sm:$0xff]
  %v25 = vld [vmem:[%s0 + $0x58] sm:$0xff]
  %v26 = vld [vmem:[%s0 + $0x60] sm:$0xff]
  %v27 = vld [vmem:[%s0 + $0x68] sm:$0xff]
  %v28 = vld [vmem:[%s0 + $0x70] sm:$0xff]
  %v29 = vld [vmem:[%s0 + $0x78] sm:$0xff]
  %v30 = vld [vmem:[%s0 + $0x80] sm:$0xff]
  %v31 = vld [vmem:[%s0 + $0x88] sm:$0xff]
  %v32 = vld [vmem:[%s0 + $0x90] sm:$0xff]
  %v33 = vld [vmem:[%s0 + $0x98] sm:$0xff]
  %v34 = vld [vmem:[%s0 + $0xa0] sm:$0xff]
  %v35 = vld [vmem:[%s0 + $0xa8] sm:$0xff]
  %v36 = vld [vmem:[%s0 + $0xb0] sm:$0xff]
  %v37 = vld [vmem:[%s0 + $0xb8] sm:$0xff]
  %v38 = vld [vmem:[%s0 + $0xc0] sm:$0xff]
  %v39 = vld [vmem:[%s0 + $0xc8] sm:$0xff]
  %v40 = vld [vmem:[%s0 + $0xd0] sm:$0xff]
  %v41 = vld [vmem:[%s0 + $0xd8] sm:$0xff]
  %v42 = vld [vmem:[%s0 + $0xe0] sm:$0xff]
  %v43 = vld [vmem:[%s0 + $0xe8] sm:$0xff]
  %v44 = vld [vmem:[%s0 + $0xf0] sm:$0xff]
  %v45 = vld [vmem:[%s0 + $0xf8] sm:$0xff]
  %v46 = vld [vmem:[%s0 + $0x100] sm:$0xff]
  %v47 = vld [vmem:[%s0 + $0x108] sm:$0xff]
  %v48 = vld [vmem:[%s0 + $0x110] sm:$0xff]
  %v49 = vld [vmem:[%s0 + $0x118] sm:$0xff]
  %v50 = vld [vmem:[%s0 + $0x120] sm:$0xff]
  %v51 = vld [vmem:[%s0 + $0x128] sm:$0xff]
  %v52 = vld [vmem:[%s0 + $0x130] sm:$0xff]
  %v53 = vld [vmem:[%s0 + $0x138] sm:$0xff]
  %v54 = vld [vmem:[%s0 + $0x140] sm:$0xff]
  %v55 = vld [vmem:[%s0 + $0x148] sm:$0xff]
  %v56 = vld [vmem:[%s0 + $0x150] sm:$0xff]
  %v57 = vld [vmem:[%s0 + $0x158] sm:$0xff]
  %v58 = vld [vmem:[%s0 + $0x160] sm:$0xff]
  %v59 = vld [vmem:[%s0 + $0x168] sm:$0xff]
  %v60 = vld [vmem:[%s0 + $0x170] sm:$0xff]
  %v61 = vld [vmem:[%s0 + $0x178] sm:$0xff]
  %v62 = vld [vmem:[%s0 + $0x180] sm:$0xff]
  %v63 = vld [vmem:[%s0 + $0x188] sm:$0xff]
  %v64 = vld [vmem:[%s0 + $0x190] sm:$0xff]
  %v65 = vld [vmem:[%s0 + $0x198] sm:$0xff]
  %v66 = vld [vmem:[%s0 + $0x1a0] sm:$0xff]
  %v67 = vld [vmem:[%s0 + $0x1a8] sm:$0xff]
  %v68 = vld [vmem:[%s0 + $0x1b0] sm:$0xff]
  %v69 = vld [vmem:[%s0 + $0x1b8] sm:$0xff]
  %v70 = vld [vmem:[%s0 + $0x1c0] sm:$0xff]
  %v71 = vld [vmem:[%s0 + $0x1c8] sm:$0xff]
  %v72 = vld [vmem:[%s0 + $0x1d0] sm:$0xff]
  %v73 = vld [vmem:[%s0 + $0x1d8] sm:$0xff]
  %v74 = vld [vmem:[%s0 + $0x1e0] sm:$0xff]
  %v75 = vld [vmem:[%s0 + $0x1e8] sm:$0xff]
  %v76 = vld [vmem:[%s0 + $0x1f0] sm:$0xff]
  %v77 = vld [vmem:[%s0 + $0x1f8] sm:$0xff]
  %v78 = vld [vmem:[%s0 + $0x200] sm:$0xff]
  %v79 = vld [vmem:[%s0 + $0x208] sm:$0xff]
  %v80 = vld [vmem:[%s0 + $0x210] sm:$0xff]
  %v81 = vld [vmem:[%s0 + $0x218] sm:$0xff]
  %v82 = vld [vmem:[%s0 + $0x220] sm:$0xff]
  %v83 = vld [vmem:[%s0 + $0x228] sm:$0xff]
  %v84 = vld [vmem:[%s0 + $0x230] sm:$0xff]
  %v85 = vld [vmem:[%s0 + $0x238] sm:$0xff]
  %v86 = vld [vmem:[%s0 + $0x240] sm:$0xff]
  %v87 = vld [vmem:[%s0 + $0x248] sm:$0xff]
  %v88 = vld [vmem:[%s0 + $0x250] sm:$0xff]
  %v89 = vld [vmem:[%s0 + $0x258] sm:$0xff]
  %v90 = vld [vmem:[%s0 + $0x260] sm:$0xff]
  %v91 = vld [vmem:[%s0 + $0x268] sm:$0xff]
  %v92 = vld [vmem:[%s0 + $0x270] sm:$0xff]
  %v93 = vld [vmem:[%s0 + $0x278] sm:$0xff]
  %v94 = vld [vmem:[%s0 + $0x280] sm:$0xff]
  %v95 = vld [vmem:[%s0 + $0x288] sm:$0xff]
  %v96 = vld [vmem:[%s0 + $0x290] sm:$0xff]
  %v97 = vld [vmem:[%s0 + $0x298] sm:$0xff]
  %v98 = vld [vmem:[%s0 + $0x2a0] sm:$0xff]
  %v99 = vld [vmem:[%s0 + $0x2a8] sm:$0xff]
  %v100 = vld [vmem:[%s0 + $0x2b0] sm:$0xff]
  %v101 = vld [vmem:[%s0 + $0x2b8] sm:$0xff]
  %v102 = vld [vmem:[%s0 + $0x2c0] sm:$0xff]
  %v103 = vld [vmem:[%s0 + $0x2c8] sm:$0xff]
  %v104 = vld [vmem:[%s0 + $0x2d0] sm:$0xff]
  %v105 = vld [vmem:[%s0 + $0x2d8] sm:$0xff]
  %v106 = vld [vmem:[%s0 + $0x2e0] sm:$0xff]
  %v107 = vld [vmem:[%s0 + $0x2e8] sm:$0xff]
  %v108 = vld [vmem:[%s0 + $0x2f0] sm:$0xff]
  %v109 = vld [vmem:[%s0 + $0x2f8] sm:$0xff]
  %v110 = vld [vmem:[%s0 + $0x300] sm:$0xff]
  %v111 = vld [vmem:[%s0 + $0x308] sm:$0xff]
  %v112 = vld [vmem:[%s0 + $0x310] sm:$0xff]
  %v113 = vld [vmem:[%s0 + $0x318] sm:$0xff]
  %v114 = vld [vmem:[%s0 + $0x320] sm:$0xff]
  %v115 = vld [vmem:[%s0 + $0x328] sm:$0xff]
  %v116 = vld [vmem:[%s0 + $0x330] sm:$0xff]
  %v117 = vld [vmem:[%s0 + $0x338] sm:$0xff]
  %v118 = vld [vmem:[%s0 + $0x340] sm:$0xff]
  %v119 = vld [vmem:[%s0 + $0x348] sm:$0xff]
  %v120 = vld [vmem:[%s0 + $0x350] sm:$0xff]
  %v121 = vld [vmem:[%s0 + $0x358] sm:$0xff]
  %v122 = vld [vmem:[%s0 + $0x360] sm:$0xff]
  %v123 = vld [vmem:[%s0 + $0x368] sm:$0xff]
  %v124 = vld [vmem:[%s0 + $0x370] sm:$0xff]
  %v125 = vld [vmem:[%s0 + $0x378] sm:$0xff]
  %v126 = vld [vmem:[%s0 + $0x380] sm:$0xff]
  %v127 = vld [vmem:[%s0 + $0x388] sm:$0xff]
  %v128 = vld [vmem:[%s0 + $0x390] sm:$0xff]
  %v129 = vld [vmem:[%s0 + $0x398] sm:$0xff]
  %v130 = vld [vmem:[%s0 + $0x3a0] sm:$0xff]
  %v131 = vld [vmem:[%s0 + $0x3a8] sm:$0xff]
  %v132 = vld [vmem:[%s0 + $0x3b0] sm:$0xff]
  %v133 = vld [vmem:[%s0 + $0x3b8] sm:$0xff]
  %v134 = vld [vmem:[%s0 + $0x3c0] sm:$0xff]
  %v135 = vld [vmem:[%s0 + $0x3c8] sm:$0xff]
  %v136 = vld [vmem:[%s0 + $0x3d0] sm:$0xff]
  %v137 = vld [vmem:[%s0 + $0x3d8] sm:$0xff]
  %v138 = vld [vmem:[%s0 + $0x3e0] sm:$0xff]
  %v139 = vld [vmem:[%s0 + $0x3e8] sm:$0xff]
  %v140 = vld [vmem:[%s0 + $0x3f0] sm:$0xff]
  %v141 = vld [vmem:[%s0 + $0x3f8] sm:$0xff]
  %v142 = vld [vmem:[%s0 + $0x400] sm:$0xff]
  %v143 = vld [vmem:[%s0 + $0x408] sm:$0xff]
  %v144 = vld [vmem:[%s0 + $0x410] sm:$0xff]
  %v145 = vld [vmem:[%s0 + $0x418] sm:$0xff]
  %v146 = vld [vmem:[%s0 + $0x420] sm:$0xff]
  %v147 = vld [vmem:[%s0 + $0x428] sm:$0xff]
  %v148 = vld [vmem:[%s0 + $0x430] sm:$0xff]
  %v149 = vld [vmem:[%s0 + $0x438] sm:$0xff]
  %v150 = vld [vmem:[%s0 + $0x440] sm:$0xff]
  %v151 = vld [vmem:[%s0 + $0x448] sm:$0xff]
  %v152 = vld [vmem:[%s0 + $0x450] sm:$0xff]
  %v153 = vld [vmem:[%s0 + $0x458] sm:$0xff]
  %v154 = vld [vmem:[%s0 + $0x460] sm:$0xff]
  %v155 = vld [vmem:[%s0 + $0x468] sm:$0xff]
  %v156 = vld [vmem:[%s0 + $0x470] sm:$0xff]
  %v157 = vld [vmem:[%s0 + $0x478] sm:$0xff]
  %v158 = vld [vmem:[%s0 + $0x480] sm:$0xff]
  %v159 = vld [vmem:[%s0 + $0x488] sm:$0xff]
  %v160 = vld [vmem:[%s0 + $0x490] sm:$0xff]
  %v161 = vld [vmem:[%s0 + $0x498] sm:$0xff]
  %v162 = vld [vmem:[%s0 + $0x4a0] sm:$0xff]
  %v163 = vld [vmem:[%s0 + $0x4a8] sm:$0xff]
  %v164 = vld [vmem:[%s0 + $0x4b0] sm:$0xff]
  %v165 = vld [vmem:[%s0 + $0x4b8] sm:$0xff]
  %v166 = vld [vmem:[%s0 + $0x4c0] sm:$0xff]
  %v167 = vld [vmem:[%s0 + $0x4c8] sm:$0xff]
  %v168 = vld [vmem:[%s0 + $0x4d0] sm:$0xff]
  %v169 = vld [vmem:[%s0 + $0x4d8] sm:$0xff]
  %v170 = vld [vmem:[%s0 + $0x4e0] sm:$0xff]
  %v171 = vld [vmem:[%s0 + $0x4e8] sm:$0xff]
  %v172 = vld [vmem:[%s0 + $0x4f0] sm:$0xff]
  %v173 = vld [vmem:[%s0 + $0x4f8] sm:$0xff]
  %v174 = vld [vmem:[%s0 + $0x500] sm:$0xff]
  %v175 = vld [vmem:[%s0 + $0x508] sm:$0xff]
  %v176 = vld [vmem:[%s0 + $0x510] sm:$0xff]
  %v177 = vld [vmem:[%s0 + $0x518] sm:$0xff]
  %v178 = vld [vmem:[%s0 + $0x520] sm:$0xff]
  %v179 = vld [vmem:[%s0 + $0x528] sm:$0xff]
  %v180 = vld [vmem:[%s0 + $0x530] sm:$0xff]
  %v181 = vld [vmem:[%s0 + $0x538] sm:$0xff]
  %v182 = vld [vmem:[%s0 + $0x540] sm:$0xff]
  %v183 = vld [vmem:[%s0 + $0x548] sm:$0xff]
  %v184 = vld [vmem:[%s0 + $0x550] sm:$0xff]
  %v185 = vld [vmem:[%s0 + $0x558] sm:$0xff]
  %v186 = vld [vmem:[%s0 + $0x560] sm:$0xff]
  %v187 = vld [vmem:[%s0 + $0x568] sm:$0xff]
  %v188 = vld [vmem:[%s0 + $0x570] sm:$0xff]
  %v189 = vld [vmem:[%s0 + $0x578] sm:$0xff]
  %v190 = vld [vmem:[%s0 + $0x580] sm:$0xff]
  %v191 = vld [vmem:[%s0 + $0x588] sm:$0xff]
  %v192 = vld [vmem:[%s0 + $0x590] sm:$0xff]
  %v193 = vld [vmem:[%s0 + $0x598] sm:$0xff]
  %v194 = vld [vmem:[%s0 + $0x5a0] sm:$0xff]
  %v195 = vld [vmem:[%s0 + $0x5a8] sm:$0xff]
  %v196 = vld [vmem:[%s0 + $0x5b0] sm:$0xff]
  %v197 = vld [vmem:[%s0 + $0x5b8] sm:$0xff]
  %v198 = vld [vmem:[%s0 + $0x5c0] sm:$0xff]
  %v199 = vld [vmem:[%s0 + $0x5c8] sm:$0xff]
  %v200 = vld [vmem:[%s0 + $0x5d0] sm:$0xff]
  %v201 = vld [vmem:[%s0 + $0x5d8] sm:$0xff]
  %v202 = vld [vmem:[%s0 + $0x5e0] sm:$0xff]
  %v203 = vld [vmem:[%s0 + $0x5e8] sm:$0xff]
  %v204 = vld [vmem:[%s0 + $0x5f0] sm:$0xff]
  %v205 = vld [vmem:[%s0 + $0x5f8] sm:$0xff]
  %v206 = vld [vmem:[%s0 + $0x600] sm:$0xff]
  %v207 = vld [vmem:[%s0 + $0x608] sm:$0xff]
  %v208 = vld [vmem:[%s0 + $0x610] sm:$0xff]
  %v209 = vld [vmem:[%s0 + $0x618] sm:$0xff]
  %v210 = vld [vmem:[%s0 + $0x620] sm:$0xff]
  %v211 = vld [vmem:[%s0 + $0x628] sm:$0xff]
  %v212 = vld [vmem:[%s0 + $0x630] sm:$0xff]
  %v213 = vld [vmem:[%s0 + $0x638] sm:$0xff]
  %v214 = vld [vmem:[%s0 + $0x640] sm:$0xff]
  %v215 = vld [vmem:[%s0 + $0x648] sm:$0xff]
  %v216 = vld [vmem:[%s0 + $0x650] sm:$0xff]
  %v217 = vld [vmem:[%s0 + $0x658] sm:$0xff]
  %v218 = vld [vmem:[%s0 + $0x660] sm:$0xff]
  %v219 = vld [vmem:[%s0 + $0x668] sm:$0xff]
  %v220 = vld [vmem:[%s0 + $0x670] sm:$0xff]
  %v221 = vld [vmem:[%s0 + $0x678] sm:$0xff]
  %v222 = vld [vmem:[%s0 + $0x680] sm:$0xff]
  %v223 = vld [vmem:[%s0 + $0x688] sm:$0xff]
  %v224 = vld [vmem:[%s0 + $0x690] sm:$0xff]
  %v225 = vld [vmem:[%s0 + $0x698] sm:$0xff]
  %v226 = vld [vmem:[%s0 + $0x6a0] sm:$0xff]
  %v227 = vld [vmem:[%s0 + $0x6a8] sm:$0xff]
  %v228 = vld [vmem:[%s0 + $0x6b0] sm:$0xff]
  %v229 = vld [vmem:[%s0 + $0x6b8] sm:$0xff]
  %v230 = vld [vmem:[%s0 + $0x6c0] sm:$0xff]
  %v231 = vld [vmem:[%s0 + $0x6c8] sm:$0xff]
  %v232 = vld [vmem:[%s0 + $0x6d0] sm:$0xff]
  %v233 = vld [vmem:[%s0 + $0x6d8] sm:$0xff]
  %v234 = vld [vmem:[%s0 + $0x6e0] sm:$0xff]
  %v235 = vld [vmem:[%s0 + $0x6e8] sm:$0xff]
  %v236 = vld [vmem:[%s0 + $0x6f0] sm:$0xff]
  %v237 = vld [vmem:[%s0 + $0x6f8] sm:$0xff]
  %v238 = vld [vmem:[%s0 + $0x700] sm:$0xff]
  %v239 = vld [vmem:[%s0 + $0x708] sm:$0xff]
  %v240 = vld [vmem:[%s0 + $0x710] sm:$0xff]
  %v241 = vld [vmem:[%s0 + $0x718] sm:$0xff]
  %v242 = vld [vmem:[%s0 + $0x720] sm:$0xff]
  %v243 = vld [vmem:[%s0 + $0x728] sm:$0xff]
  %v244 = vld [vmem:[%s0 + $0x730] sm:$0xff]
  %v245 = vld [vmem:[%s0 + $0x738] sm:$0xff]
  %v246 = vld [vmem:[%s0 + $0x740] sm:$0xff]
  %v247 = vld [vmem:[%s0 + $0x748] sm:$0xff]
  %v248 = vld [vmem:[%s0 + $0x750] sm:$0xff]
  %v249 = vld [vmem:[%s0 + $0x758] sm:$0xff]
  %v250 = vld [vmem:[%s0 + $0x760] sm:$0xff]
  %v251 = vld [vmem:[%s0 + $0x768] sm:$0xff]
  %v252 = vld [vmem:[%s0 + $0x770] sm:$0xff]
  %v253 = vld [vmem:[%s0 + $0x778] sm:$0xff]
  %v254 = vld [vmem:[%s0 + $0x780] sm:$0xff]
  %v255 = vld [vmem:[%s0 + $0x788] sm:$0xff]
  %v256 = vld [vmem:[%s0 + $0x790] sm:$0xff]
  %v257 = vld [vmem:[%s0 + $0x798] sm:$0xff]
  %v258 = vld [vmem:[%s0 + $0x7a0] sm:$0xff]
  %v259 = vld [vmem:[%s0 + $0x7a8] sm:$0xff]
  %v260 = vld [vmem:[%s0 + $0x7b0] sm:$0xff]
  %v261 = vld [vmem:[%s0 + $0x7b8] sm:$0xff]
  %v262 = vld [vmem:[%s0 + $0x7c0] sm:$0xff]
  %v263 = vld [vmem:[%s0 + $0x7c8] sm:$0xff]
  %v264 = vld [vmem:[%s0 + $0x7d0] sm:$0xff]
  %v265 = vld [vmem:[%s0 + $0x7d8] sm:$0xff]
  %v266 = vld [vmem:[%s0 + $0x7e0] sm:$0xff]
  %v267 = vld [vmem:[%s0 + $0x7e8] sm:$0xff]
  %v268 = vld [vmem:[%s0 + $0x7f0] sm:$0xff]
  %v269 = vld [vmem:[%s0 + $0x7f8] sm:$0xff]
  %v270 = vld [vmem:[%s0 + $0x800] sm:$0xff]
  %v271 = vld [vmem:[%s0 + $0x808] sm:$0xff]
  %v272 = vld [vmem:[%s0 + $0x810] sm:$0xff]
  %v273 = vld [vmem:[%s0 + $0x818] sm:$0xff]
  %v274 = vld [vmem:[%s0 + $0x820] sm:$0xff]
  %v275 = vld [vmem:[%s0 + $0x828] sm:$0xff]
  %v276 = vld [vmem:[%s0 + $0x830] sm:$0xff]
  %v277 = vld [vmem:[%s0 + $0x838] sm:$0xff]
  %v278 = vld [vmem:[%s0 + $0x840] sm:$0xff]
  %v279 = vld [vmem:[%s0 + $0x848] sm:$0xff]
  %v280 = vld [vmem:[%s0 + $0x850] sm:$0xff]
  %v281 = vld [vmem:[%s0 + $0x858] sm:$0xff]
  %v282 = vld [vmem:[%s0 + $0x860] sm:$0xff]
  %v283 = vld [vmem:[%s0 + $0x868] sm:$0xff]
  %v284 = vld [vmem:[%s0 + $0x870] sm:$0xff]
  %v285 = vld [vmem:[%s0 + $0x878] sm:$0xff]
  %v286 = vld [vmem:[%s0 + $0x880] sm:$0xff]
  %v287 = vld [vmem:[%s0 + $0x888] sm:$0xff]
  %v288 = vld [vmem:[%s0 + $0x890] sm:$0xff]
  %v289 = vld [vmem:[%s0 + $0x898] sm:$0xff]
  %v290 = vld [vmem:[%s0 + $0x8a0] sm:$0xff]
  %v291 = vld [vmem:[%s0 + $0x8a8] sm:$0xff]
  %v292 = vld [vmem:[%s0 + $0x8b0] sm:$0xff]
  %v293 = vld [vmem:[%s0 + $0x8b8] sm:$0xff]
  %v294 = vld [vmem:[%s0 + $0x8c0] sm:$0xff]
  %v295 = vld [vmem:[%s0 + $0x8c8] sm:$0xff]
  %v296 = vld [vmem:[%s0 + $0x8d0] sm:$0xff]
  %v297 = vld [vmem:[%s0 + $0x8d8] sm:$0xff]
  %v298 = vld [vmem:[%s0 + $0x8e0] sm:$0xff]
  %v299 = vld [vmem:[%s0 + $0x8e8] sm:$0xff]
  %v300 = vld [vmem:[%s0 + $0x8f0] sm:$0xff]
  %v301 = vld [vmem:[%s0 + $0x8f8] sm:$0xff]
  %v302 = vld [vmem:[%s0 + $0x900] sm:$0xff]
  %v303 = vld [vmem:[%s0 + $0x908] sm:$0xff]
  %v304 = vld [vmem:[%s0 + $0x910] sm:$0xff]
  %v305 = vld [vmem:[%s0 + $0x918] sm:$0xff]
  %v306 = vld [vmem:[%s0 + $0x920] sm:$0xff]
  %v307 = vld [vmem:[%s0 + $0x928] sm:$0xff]
  %v308 = vld [vmem:[%s0 + $0x930] sm:$0xff]
  %v309 = vld [vmem:[%s0 + $0x938] sm:$0xff]
  %v310 = vld [vmem:[%s0 + $0x940] sm:$0xff]
  %v311 = vld [vmem:[%s0 + $0x948] sm:$0xff]
  %v312 = vld [vmem:[%s0 + $0x950] sm:$0xff]
  %v313 = vld [vmem:[%s0 + $0x958] sm:$0xff]
  %v314 = vld [vmem:[%s0 + $0x960] sm:$0xff]
  %v315 = vld [vmem:[%s0 + $0x968] sm:$0xff]
  %v316 = vld [vmem:[%s0 + $0x970] sm:$0xff]
  %v317 = vld [vmem:[%s0 + $0x978] sm:$0xff]
  %v318 = vld [vmem:[%s0 + $0x980] sm:$0xff]
  %v319 = vld [vmem:[%s0 + $0x988] sm:$0xff]
  %v320 = vld [vmem:[%s0 + $0x990] sm:$0xff]
  %v321 = vld [vmem:[%s0 + $0x998] sm:$0xff]
  %v322 = vld [vmem:[%s0 + $0x9a0] sm:$0xff]
  %v323 = vld [vmem:[%s0 + $0x9a8] sm:$0xff]
  %v324 = vld [vmem:[%s0 + $0x9b0] sm:$0xff]
  %v325 = vld [vmem:[%s0 + $0x9b8] sm:$0xff]
  %v326 = vld [vmem:[%s0 + $0x9c0] sm:$0xff]
  %v327 = vld [vmem:[%s0 + $0x9c8] sm:$0xff]
  %v328 = vld [vmem:[%s0 + $0x9d0] sm:$0xff]
  %v329 = vld [vmem:[%s0 + $0x9d8] sm:$0xff]
  %v330 = vld [vmem:[%s0 + $0x9e0] sm:$0xff]
  %v331 = vld [vmem:[%s0 + $0x9e8] sm:$0xff]
  %v332 = vld [vmem:[%s0 + $0x9f0] sm:$0xff]
  %v333 = vld [vmem:[%s0 + $0x9f8] sm:$0xff]
  %v334 = vld [vmem:[%s0 + $0xa00] sm:$0xff]
  %v335 = vld [vmem:[%s0 + $0xa08] sm:$0xff]
  %v336 = vld [vmem:[%s0 + $0xa10] sm:$0xff]
  %v337 = vld [vmem:[%s0 + $0xa18] sm:$0xff]
  %v338 = vld [vmem:[%s0 + $0xa20] sm:$0xff]
  %v339 = vld [vmem:[%s0 + $0xa28] sm:$0xff]
  %v340 = vld [vmem:[%s0 + $0xa30] sm:$0xff]
  %v341 = vld [vmem:[%s0 + $0xa38] sm:$0xff]
  %v342 = vld [vmem:[%s0 + $0xa40] sm:$0xff]
  %v343 = vld [vmem:[%s0 + $0xa48] sm:$0xff]
  %v344 = vld [vmem:[%s0 + $0xa50] sm:$0xff]
  %v345 = vld [vmem:[%s0 + $0xa58] sm:$0xff]
  %v346 = vld [vmem:[%s0 + $0xa60] sm:$0xff]
  %v347 = vld [vmem:[%s0 + $0xa68] sm:$0xff]
  %v348 = vld [vmem:[%s0 + $0xa70] sm:$0xff]
  %v349 = vld [vmem:[%s0 + $0xa78] sm:$0xff]
  %v350 = vld [vmem:[%s0 + $0xa80] sm:$0xff]
  %v351 = vld [vmem:[%s0 + $0xa88] sm:$0xff]
  %v352 = vld [vmem:[%s0 + $0xa90] sm:$0xff]
  %v353 = vld [vmem:[%s0 + $0xa98] sm:$0xff]
  %v354 = vld [vmem:[%s0 + $0xaa0] sm:$0xff]
  %v355 = vld [vmem:[%s0 + $0xaa8] sm:$0xff]
  %v356 = vld [vmem:[%s0 + $0xab0] sm:$0xff]
  %v357 = vld [vmem:[%s0 + $0xab8] sm:$0xff]
  %v358 = vld [vmem:[%s0 + $0xac0] sm:$0xff]
  %v359 = vld [vmem:[%s0 + $0xac8] sm:$0xff]
  %v360 = vld [vmem:[%s0 + $0xad0] sm:$0xff]
  %v361 = vld [vmem:[%s0 + $0xad8] sm:$0xff]
  %v362 = vld [vmem:[%s0 + $0xae0] sm:$0xff]
  %v363 = vld [vmem:[%s0 + $0xae8] sm:$0xff]
  %v364 = vld [vmem:[%s0 + $0xaf0] sm:$0xff]
  %v365 = vld [vmem:[%s0 + $0xaf8] sm:$0xff]
  %v366 = vld [vmem:[%s0 + $0xb00] sm:$0xff]
  %v367 = vld [vmem:[%s0 + $0xb08] sm:$0xff]
  %v368 = vld [vmem:[%s0 + $0xb10] sm:$0xff]
  %v369 = vld [vmem:[%s0 + $0xb18] sm:$0xff]
  %v370 = vld [vmem:[%s0 + $0xb20] sm:$0xff]
  %v371 = vld [vmem:[%s0 + $0xb28] sm:$0xff]
  %v372 = vld [vmem:[%s0 + $0xb30] sm:$0xff]
  %v373 = vld [vmem:[%s0 + $0xb38] sm:$0xff]
  %v374 = vld [vmem:[%s0 + $0xb40] sm:$0xff]
  %v375 = vld [vmem:[%s0 + $0xb48] sm:$0xff]
  %v376 = vld [vmem:[%s0 + $0xb50] sm:$0xff]
  %v377 = vld [vmem:[%s0 + $0xb58] sm:$0xff]
  %v378 = vld [vmem:[%s0 + $0xb60] sm:$0xff]
  %v379 = vld [vmem:[%s0 + $0xb68] sm:$0xff]
  %v380 = vld [vmem:[%s0 + $0xb70] sm:$0xff]
  %v381 = vld [vmem:[%s0 + $0xb78] sm:$0xff]
  %v382 = vld [vmem:[%s0 + $0xb80] sm:$0xff]
  %v383 = vld [vmem:[%s0 + $0xb88] sm:$0xff]
  %v384 = vld [vmem:[%s0 + $0xb90] sm:$0xff]
  %v385 = vld [vmem:[%s0 + $0xb98] sm:$0xff]
  %v386 = vld [vmem:[%s0 + $0xba0] sm:$0xff]
  %v387 = vld [vmem:[%s0 + $0xba8] sm:$0xff]
  %v388 = vld [vmem:[%s0 + $0xbb0] sm:$0xff]
  %v389 = vld [vmem:[%s0 + $0xbb8] sm:$0xff]
  %v390 = vld [vmem:[%s0 + $0xbc0] sm:$0xff]
  %v391 = vld [vmem:[%s0 + $0xbc8] sm:$0xff]
  %v392 = vld [vmem:[%s0 + $0xbd0] sm:$0xff]
  %v393 = vld [vmem:[%s0 + $0xbd8] sm:$0xff]
  %v394 = vld [vmem:[%s0 + $0xbe0] sm:$0xff]
  %v395 = vld [vmem:[%s0 + $0xbe8] sm:$0xff]
  %v396 = vld [vmem:[%s0 + $0xbf0] sm:$0xff]
  %v397 = vld [vmem:[%s0 + $0xbf8] sm:$0xff]
  %v398 = vld [vmem:[%s0 + $0xc00] sm:$0xff]
  %v399 = vld [vmem:[%s0 + $0xc08] sm:$0xff]
  %v400 = vld [vmem:[%s0 + $0xc10] sm:$0xff]
  %v401 = vld [vmem:[%s0 + $0xc18] sm:$0xff]
  %v402 = vld [vmem:[%s0 + $0xc20] sm:$0xff]
  %v403 = vld [vmem:[%s0 + $0xc28] sm:$0xff]
  %v404 = vld [vmem:[%s0 + $0xc30] sm:$0xff]
  %v405 = vld [vmem:[%s0 + $0xc38] sm:$0xff]
  %v406 = vld [vmem:[%s0 + $0xc40] sm:$0xff]
  %v407 = vld [vmem:[%s0 + $0xc48] sm:$0xff]
  %v408 = vld [vmem:[%s0 + $0xc50] sm:$0xff]
  %v409 = vld [vmem:[%s0 + $0xc58] sm:$0xff]
  %v410 = vld [vmem:[%s0 + $0xc60] sm:$0xff]
  %v411 = vld [vmem:[%s0 + $0xc68] sm:$0xff]
  %v412 = vld [vmem:[%s0 + $0xc70] sm:$0xff]
  %v413 = vld [vmem:[%s0 + $0xc78] sm:$0xff]
  %v414 = vld [vmem:[%s0 + $0xc80] sm:$0xff]
  %v415 = vld [vmem:[%s0 + $0xc88] sm:$0xff]
  %v416 = vld [vmem:[%s0 + $0xc90] sm:$0xff]
  %v417 = vld [vmem:[%s0 + $0xc98] sm:$0xff]
  %v418 = vld [vmem:[%s0 + $0xca0] sm:$0xff]
  %v419 = vld [vmem:[%s0 + $0xca8] sm:$0xff]
  %v420 = vld [vmem:[%s0 + $0xcb0] sm:$0xff]
  %v421 = vld [vmem:[%s0 + $0xcb8] sm:$0xff]
  %v422 = vld [vmem:[%s0 + $0xcc0] sm:$0xff]
  %v423 = vld [vmem:[%s0 + $0xcc8] sm:$0xff]
  %v424 = vld [vmem:[%s0 + $0xcd0] sm:$0xff]
  %v425 = vld [vmem:[%s0 + $0xcd8] sm:$0xff]
  %v426 = vld [vmem:[%s0 + $0xce0] sm:$0xff]
  %v427 = vld [vmem:[%s0 + $0xce8] sm:$0xff]
  %v428 = vld [vmem:[%s0 + $0xcf0] sm:$0xff]
  %v429 = vld [vmem:[%s0 + $0xcf8] sm:$0xff]
  %v430 = vld [vmem:[%s0 + $0xd00] sm:$0xff]
  %v431 = vld [vmem:[%s0 + $0xd08] sm:$0xff]
  %v432 = vld [vmem:[%s0 + $0xd10] sm:$0xff]
  %v433 = vld [vmem:[%s0 + $0xd18] sm:$0xff]
  %v434 = vld [vmem:[%s0 + $0xd20] sm:$0xff]
  %v435 = vld [vmem:[%s0 + $0xd28] sm:$0xff]
  %v436 = vld [vmem:[%s0 + $0xd30] sm:$0xff]
  %v437 = vld [vmem:[%s0 + $0xd38] sm:$0xff]
  %v438 = vld [vmem:[%s0 + $0xd40] sm:$0xff]
  %v439 = vld [vmem:[%s0 + $0xd48] sm:$0xff]
  %v440 = vld [vmem:[%s0 + $0xd50] sm:$0xff]
  %v441 = vld [vmem:[%s0 + $0xd58] sm:$0xff]
  %v442 = vld [vmem:[%s0 + $0xd60] sm:$0xff]
  %v443 = vld [vmem:[%s0 + $0xd68] sm:$0xff]
  %v444 = vld [vmem:[%s0 + $0xd70] sm:$0xff]
  %v445 = vld [vmem:[%s0 + $0xd78] sm:$0xff]
  %v446 = vld [vmem:[%s0 + $0xd80] sm:$0xff]
  %v447 = vld [vmem:[%s0 + $0xd88] sm:$0xff]
  %v448 = vld [vmem:[%s0 + $0xd90] sm:$0xff]
  %v449 = vld [vmem:[%s0 + $0xd98] sm:$0xff]
  %v450 = vld [vmem:[%s0 + $0xda0] sm:$0xff]
  %v451 = vld [vmem:[%s0 + $0xda8] sm:$0xff]
  %v452 = vld [vmem:[%s0 + $0xdb0] sm:$0xff]
  %v453 = vld [vmem:[%s0 + $0xdb8] sm:$0xff]
  %v454 = vld [vmem:[%s0 + $0xdc0] sm:$0xff]
  %v455 = vld [vmem:[%s0 + $0xdc8] sm:$0xff]
  %v456 = vld [vmem:[%s0 + $0xdd0] sm:$0xff]
  %v457 = vld [vmem:[%s0 + $0xdd8] sm:$0xff]
  %v458 = vld [vmem:[%s0 + $0xde0] sm:$0xff]
  %v459 = vld [vmem:[%s0 + $0xde8] sm:$0xff]
  %v460 = vld [vmem:[%s0 + $0xdf0] sm:$0xff]
  %v461 = vld [vmem:[%s0 + $0xdf8] sm:$0xff]
  %v462 = vld [vmem:[%s0 + $0xe00] sm:$0xff]
  %v463 = vld [vmem:[%s0 + $0xe08] sm:$0xff]
  %v464 = vld [vmem:[%s0 + $0xe10] sm:$0xff]
  %v465 = vld [vmem:[%s0 + $0xe18] sm:$0xff]
  %v466 = vld [vmem:[%s0 + $0xe20] sm:$0xff]
  %v467 = vld [vmem:[%s0 + $0xe28] sm:$0xff]
  %v468 = vld [vmem:[%s0 + $0xe30] sm:$0xff]
  %v469 = vld [vmem:[%s0 + $0xe38] sm:$0xff]
  %v470 = vld [vmem:[%s0 + $0xe40] sm:$0xff]
  %v471 = vld [vmem:[%s0 + $0xe48] sm:$0xff]
  %v472 = vld [vmem:[%s0 + $0xe50] sm:$0xff]
  %v473 = vld [vmem:[%s0 + $0xe58] sm:$0xff]
  %v474 = vld [vmem:[%s0 + $0xe60] sm:$0xff]
  %v475 = vld [vmem:[%s0 + $0xe68] sm:$0xff]
  %v476 = vld [vmem:[%s0 + $0xe70] sm:$0xff]
  %v477 = vld [vmem:[%s0 + $0xe78] sm:$0xff]
  %v478 = vld [vmem:[%s0 + $0xe80] sm:$0xff]
  %v479 = vld [vmem:[%s0 + $0xe88] sm:$0xff]
  %v480 = vld [vmem:[%s0 + $0xe90] sm:$0xff]
  %v481 = vld [vmem:[%s0 + $0xe98] sm:$0xff]
  %v482 = vld [vmem:[%s0 + $0xea0] sm:$0xff]
  %v483 = vld [vmem:[%s0 + $0xea8] sm:$0xff]
  %v484 = vld [vmem:[%s0 + $0xeb0] sm:$0xff]
  %v485 = vld [vmem:[%s0 + $0xeb8] sm:$0xff]
  %v486 = vld [vmem:[%s0 + $0xec0] sm:$0xff]
  %v487 = vld [vmem:[%s0 + $0xec8] sm:$0xff]
  %v488 = vld [vmem:[%s0 + $0xed0] sm:$0xff]
  %v489 = vld [vmem:[%s0 + $0xed8] sm:$0xff]
  %v490 = vld [vmem:[%s0 + $0xee0] sm:$0xff]
  %v491 = vld [vmem:[%s0 + $0xee8] sm:$0xff]
  %v492 = vld [vmem:[%s0 + $0xef0] sm:$0xff]
  %v493 = vld [vmem:[%s0 + $0xef8] sm:$0xff]
  %v494 = vld [vmem:[%s0 + $0xf00] sm:$0xff]
  %v495 = vld [vmem:[%s0 + $0xf08] sm:$0xff]
  %v496 = vld [vmem:[%s0 + $0xf10] sm:$0xff]
  %v497 = vld [vmem:[%s0 + $0xf18] sm:$0xff]
  %v498 = vld [vmem:[%s0 + $0xf20] sm:$0xff]
  %v499 = vld [vmem:[%s0 + $0xf28] sm:$0xff]
  %v500 = vld [vmem:[%s0 + $0xf30] sm:$0xff]
  %v501 = vld [vmem:[%s0 + $0xf38] sm:$0xff]
  %v502 = vld [vmem:[%s0 + $0xf40] sm:$0xff]
  %v503 = vld [vmem:[%s0 + $0xf48] sm:$0xff]
  %v504 = vld [vmem:[%s0 + $0xf50] sm:$0xff]
  %v505 = vld [vmem:[%s0 + $0xf58] sm:$0xff]
  %v506 = vld [vmem:[%s0 + $0xf60] sm:$0xff]
  %v507 = vld [vmem:[%s0 + $0xf68] sm:$0xff]
  %v508 = vld [vmem:[%s0 + $0xf70] sm:$0xff]
  %v509 = vld [vmem:[%s0 + $0xf78] sm:$0xff]
  %v510 = vld [vmem:[%s0 + $0xf80] sm:$0xff]
  %v511 = vld [vmem:[%s0 + $0xf88] sm:$0xff]
  %v512 = vld [vmem:[%s0 + $0xf90] sm:$0xff]
  %v513 = vld [vmem:[%s0 + $0xf98] sm:$0xff]
  %v514 = vld [vmem:[%s0 + $0xfa0] sm:$0xff]
  %v515 = vld [vmem:[%s0 + $0xfa8] sm:$0xff]
  %v516 = vld [vmem:[%s0 + $0xfb0] sm:$0xff]
  %v517 = vld [vmem:[%s0 + $0xfb8] sm:$0xff]
  %v518 = vld [vmem:[%s0 + $0xfc0] sm:$0xff]
  %v519 = vld [vmem:[%s0 + $0xfc8] sm:$0xff]
  %v520 = vld [vmem:[%s0 + $0xfd0] sm:$0xff]
  %v521 = vld [vmem:[%s0 + $0xfd8] sm:$0xff]
  %v522 = vld [vmem:[%s0 + $0xfe0] sm:$0xff]
  %v523 = vld [vmem:[%s0 + $0xfe8] sm:$0xff]
  %v524 = vld [vmem:[%s0 + $0xff0] sm:$0xff]
  %v525 = vld [vmem:[%s0 + $0xff8] sm:$0xff]
  %v526 = vld [vmem:[%s0 + $0x1000] sm:$0xff]
  %v527 = vld [vmem:[%s0 + $0x1008] sm:$0xff]
  %v528 = vld [vmem:[%s0 + $0x1010] sm:$0xff]
  %v529 = vld [vmem:[%s0 + $0x1018] sm:$0xff]
  %v530 = vld [vmem:[%s0 + $0x1020] sm:$0xff]
  %v531 = vld [vmem:[%s0 + $0x1028] sm:$0xff]
  %v532 = vld [vmem:[%s0 + $0x1030] sm:$0xff]
  %v533 = vld [vmem:[%s0 + $0x1038] sm:$0xff]
  %v534 = vld [vmem:[%s0 + $0x1040] sm:$0xff]
  %v535 = vld [vmem:[%s0 + $0x1048] sm:$0xff]
  %v536 = vld [vmem:[%s0 + $0x1050] sm:$0xff]
  %v537 = vld [vmem:[%s0 + $0x1058] sm:$0xff]
  %v538 = vld [vmem:[%s0 + $0x1060] sm:$0xff]
  %v539 = vld [vmem:[%s0 + $0x1068] sm:$0xff]
  %v540 = vld [vmem:[%s0 + $0x1070] sm:$0xff]
  %v541 = vld [vmem:[%s0 + $0x1078] sm:$0xff]
  %v542 = vld [vmem:[%s0 + $0x1080] sm:$0xff]
  %v543 = vld [vmem:[%s0 + $0x1088] sm:$0xff]
  %v544 = vld [vmem:[%s0 + $0x1090] sm:$0xff]
  %v545 = vld [vmem:[%s0 + $0x1098] sm:$0xff]
  %v546 = vld [vmem:[%s0 + $0x10a0] sm:$0xff]
  %v547 = vld [vmem:[%s0 + $0x10a8] sm:$0xff]
  %v548 = vld [vmem:[%s0 + $0x10b0] sm:$0xff]
  %v549 = vld [vmem:[%s0 + $0x10b8] sm:$0xff]
  %v550 = vld [vmem:[%s0 + $0x10c0] sm:$0xff]
  %v551 = vld [vmem:[%s0 + $0x10c8] sm:$0xff]
  %v552 = vld [vmem:[%s0 + $0x10d0] sm:$0xff]
  %v553 = vld [vmem:[%s0 + $0x10d8] sm:$0xff]
  %v554 = vld [vmem:[%s0 + $0x10e0] sm:$0xff]
  %v555 = vld [vmem:[%s0 + $0x10e8] sm:$0xff]
  %v556 = vld [vmem:[%s0 + $0x10f0] sm:$0xff]
  %v557 = vld [vmem:[%s0 + $0x10f8] sm:$0xff]
  %v558 = vld [vmem:[%s0 + $0x1100] sm:$0xff]
  %v559 = vld [vmem:[%s0 + $0x1108] sm:$0xff]
  %v560 = vld [vmem:[%s0 + $0x1110] sm:$0xff]
  %v561 = vld [vmem:[%s0 + $0x1118] sm:$0xff]
  %v562 = vld [vmem:[%s0 + $0x1120] sm:$0xff]
  %v563 = vld [vmem:[%s0 + $0x1128] sm:$0xff]
  %v564 = vld [vmem:[%s0 + $0x1130] sm:$0xff]
  %v565 = vld [vmem:[%s0 + $0x1138] sm:$0xff]
  %v566 = vld [vmem:[%s0 + $0x1140] sm:$0xff]
  %v567 = vld [vmem:[%s0 + $0x1148] sm:$0xff]
  %v568 = vld [vmem:[%s0 + $0x1150] sm:$0xff]
  %v569 = vld [vmem:[%s0 + $0x1158] sm:$0xff]
  %v570 = vld [vmem:[%s0 + $0x1160] sm:$0xff]
  %v571 = vld [vmem:[%s0 + $0x1168] sm:$0xff]
  %v572 = vld [vmem:[%s0 + $0x1170] sm:$0xff]
  %v573 = vld [vmem:[%s0 + $0x1178] sm:$0xff]
  %v574 = vld [vmem:[%s0 + $0x1180] sm:$0xff]
  %v575 = vld [vmem:[%s0 + $0x1188] sm:$0xff]
  %v576 = vld [vmem:[%s0 + $0x1190] sm:$0xff]
  %v577 = vld [vmem:[%s0 + $0x1198] sm:$0xff]
  %v578 = vld [vmem:[%s0 + $0x11a0] sm:$0xff]
  %v579 = vld [vmem:[%s0 + $0x11a8] sm:$0xff]
  %v580 = vld [vmem:[%s0 + $0x11b0] sm:$0xff]
  %v581 = vld [vmem:[%s0 + $0x11b8] sm:$0xff]
  %v582 = vld [vmem:[%s0 + $0x11c0] sm:$0xff]
  %v583 = vld [vmem:[%s0 + $0x11c8] sm:$0xff]
  %v584 = vld [vmem:[%s0 + $0x11d0] sm:$0xff]
  %v585 = vld [vmem:[%s0 + $0x11d8] sm:$0xff]
  %v586 = vld [vmem:[%s0 + $0x11e0] sm:$0xff]
  %v587 = vld [vmem:[%s0 + $0x11e8] sm:$0xff]
  %v588 = vld [vmem:[%s0 + $0x11f0] sm:$0xff]
  %v589 = vld [vmem:[%s0 + $0x11f8] sm:$0xff]
  %v590 = vld [vmem:[%s0 + $0x1200] sm:$0xff]
  %v591 = vld [vmem:[%s0 + $0x1208] sm:$0xff]
  %v592 = vld [vmem:[%s0 + $0x1210] sm:$0xff]
  %v593 = vld [vmem:[%s0 + $0x1218] sm:$0xff]
  %v594 = vld [vmem:[%s0 + $0x1220] sm:$0xff]
  %v595 = vld [vmem:[%s0 + $0x1228] sm:$0xff]
  %v596 = vld [vmem:[%s0 + $0x1230] sm:$0xff]
  %v597 = vld [vmem:[%s0 + $0x1238] sm:$0xff]
  %v598 = vld [vmem:[%s0 + $0x1240] sm:$0xff]
  %v599 = vld [vmem:[%s0 + $0x1248] sm:$0xff]
  %v600 = vld [vmem:[%s0 + $0x1250] sm:$0xff]
  %v601 = vld [vmem:[%s0 + $0x1258] sm:$0xff]
  %v602 = vld [vmem:[%s0 + $0x1260] sm:$0xff]
  %v603 = vld [vmem:[%s0 + $0x1268] sm:$0xff]
  %v604 = vld [vmem:[%s0 + $0x1270] sm:$0xff]
  %v605 = vld [vmem:[%s0 + $0x1278] sm:$0xff]
  %v606 = vld [vmem:[%s0 + $0x1280] sm:$0xff]
  %v607 = vld [vmem:[%s0 + $0x1288] sm:$0xff]
  %v608 = vld [vmem:[%s0 + $0x1290] sm:$0xff]
  %v609 = vld [vmem:[%s0 + $0x1298] sm:$0xff]
  %v610 = vld [vmem:[%s0 + $0x12a0] sm:$0xff]
  %v611 = vld [vmem:[%s0 + $0x12a8] sm:$0xff]
  %v612 = vld [vmem:[%s0 + $0x12b0] sm:$0xff]
  %v613 = vld [vmem:[%s0 + $0x12b8] sm:$0xff]
  %v614 = vld [vmem:[%s0 + $0x12c0] sm:$0xff]
  %v615 = vld [vmem:[%s0 + $0x12c8] sm:$0xff]
  %v616 = vld [vmem:[%s0 + $0x12d0] sm:$0xff]
  %v617 = vld [vmem:[%s0 + $0x12d8] sm:$0xff]
  %v618 = vld [vmem:[%s0 + $0x12e0] sm:$0xff]
  %v619 = vld [vmem:[%s0 + $0x12e8] sm:$0xff]
  %v620 = vld [vmem:[%s0 + $0x12f0] sm:$0xff]
  %v621 = vld [vmem:[%s0 + $0x12f8] sm:$0xff]
  %v622 = vld [vmem:[%s0 + $0x1300] sm:$0xff]
  %v623 = vld [vmem:[%s0 + $0x1308] sm:$0xff]
  %v624 = vld [vmem:[%s0 + $0x1310] sm:$0xff]
  %v625 = vld [vmem:[%s0 + $0x1318] sm:$0xff]
  %v626 = vld [vmem:[%s0 + $0x1320] sm:$0xff]
  %v627 = vld [vmem:[%s0 + $0x1328] sm:$0xff]
  %v628 = vld [vmem:[%s0 + $0x1330] sm:$0xff]
  %v629 = vld [vmem:[%s0 + $0x1338] sm:$0xff]
  %v630 = vld [vmem:[%s0 + $0x1340] sm:$0xff]
  %v631 = vld [vmem:[%s0 + $0x1348] sm:$0xff]
  %v632 = vld [vmem:[%s0 + $0x1350] sm:$0xff]
  %v633 = vld [vmem:[%s0 + $0x1358] sm:$0xff]
  %v634 = vld [vmem:[%s0 + $0x1360] sm:$0xff]
  %v635 = vld [vmem:[%s0 + $0x1368] sm:$0xff]
  %v636 = vld [vmem:[%s0 + $0x1370] sm:$0xff]
  %v637 = vld [vmem:[%s0 + $0x1378] sm:$0xff]
  %v638 = vld [vmem:[%s0 + $0x1380] sm:$0xff]
  %v639 = vld [vmem:[%s0 + $0x1388] sm:$0xff]
  %v640 = vld [vmem:[%s0 + $0x1390] sm:$0xff]
  %v641 = vld [vmem:[%s0 + $0x1398] sm:$0xff]
  %v642 = vld [vmem:[%s0 + $0x13a0] sm:$0xff]
  %v643 = vld [vmem:[%s0 + $0x13a8] sm:$0xff]
  %v644 = vld [vmem:[%s0 + $0x13b0] sm:$0xff]
  %v645 = vld [vmem:[%s0 + $0x13b8] sm:$0xff]
  %v646 = vld [vmem:[%s0 + $0x13c0] sm:$0xff]
  %v647 = vld [vmem:[%s0 + $0x13c8] sm:$0xff]
  %v648 = vld [vmem:[%s0 + $0x13d0] sm:$0xff]
  %v649 = vld [vmem:[%s0 + $0x13d8] sm:$0xff]
  %v650 = vld [vmem:[%s0 + $0x13e0] sm:$0xff]
  %v651 = vld [vmem:[%s0 + $0x13e8] sm:$0xff]
  %v652 = vld [vmem:[%s0 + $0x13f0] sm:$0xff]
  %v653 = vld [vmem:[%s0 + $0x13f8] sm:$0xff]
  %v654 = vld [vmem:[%s0 + $0x1400] sm:$0xff]
  %v655 = vld [vmem:[%s0 + $0x1408] sm:$0xff]
  %v656 = vld [vmem:[%s0 + $0x1410] sm:$0xff]
  %v657 = vld [vmem:[%s0 + $0x1418] sm:$0xff]
  %v658 = vld [vmem:[%s0 + $0x1420] sm:$0xff]
  %v659 = vld [vmem:[%s0 + $0x1428] sm:$0xff]
  %v660 = vld [vmem:[%s0 + $0x1430] sm:$0xff]
  %v661 = vld [vmem:[%s0 + $0x1438] sm:$0xff]
  %v662 = vld [vmem:[%s0 + $0x1440] sm:$0xff]
  %v663 = vld [vmem:[%s0 + $0x1448] sm:$0xff]
  %v664 = vld [vmem:[%s0 + $0x1450] sm:$0xff]
  %v665 = vld [vmem:[%s0 + $0x1458] sm:$0xff]
  %v666 = vld [vmem:[%s0 + $0x1460] sm:$0xff]
  %v667 = vld [vmem:[%s0 + $0x1468] sm:$0xff]
  %v668 = vld [vmem:[%s0 + $0x1470] sm:$0xff]
  %v669 = vld [vmem:[%s0 + $0x1478] sm:$0xff]
  %v670 = vld [vmem:[%s0 + $0x1480] sm:$0xff]
  %v671 = vld [vmem:[%s0 + $0x1488] sm:$0xff]
  %v672 = vld [vmem:[%s0 + $0x1490] sm:$0xff]
  %v673 = vld [vmem:[%s0 + $0x1498] sm:$0xff]
  %v674 = vld [vmem:[%s0 + $0x14a0] sm:$0xff]
  %v675 = vld [vmem:[%s0 + $0x14a8] sm:$0xff]
  %v676 = vld [vmem:[%s0 + $0x14b0] sm:$0xff]
  %v677 = vld [vmem:[%s0 + $0x14b8] sm:$0xff]
  %v678 = vld [vmem:[%s0 + $0x14c0] sm:$0xff]
  %v679 = vld [vmem:[%s0 + $0x14c8] sm:$0xff]
  %v680 = vld [vmem:[%s0 + $0x14d0] sm:$0xff]
  %v681 = vld [vmem:[%s0 + $0x14d8] sm:$0xff]
  %v682 = vld [vmem:[%s0 + $0x14e0] sm:$0xff]
  %v683 = vld [vmem:[%s0 + $0x14e8] sm:$0xff]
  %v684 = vld [vmem:[%s0 + $0x14f0] sm:$0xff]
  %v685 = vld [vmem:[%s0 + $0x14f8] sm:$0xff]
  %v686 = vld [vmem:[%s0 + $0x1500] sm:$0xff]
  %v687 = vld [vmem:[%s0 + $0x1508] sm:$0xff]
  %v688 = vld [vmem:[%s0 + $0x1510] sm:$0xff]
  %v689 = vld [vmem:[%s0 + $0x1518] sm:$0xff]
  %v690 = vld [vmem:[%s0 + $0x1520] sm:$0xff]
  %v691 = vld [vmem:[%s0 + $0x1528] sm:$0xff]
  %v692 = vld [vmem:[%s0 + $0x1530] sm:$0xff]
  %v693 = vld [vmem:[%s0 + $0x1538] sm:$0xff]
  %v694 = vld [vmem:[%s0 + $0x1540] sm:$0xff]
  %v695 = vld [vmem:[%s0 + $0x1548] sm:$0xff]
  %v696 = vld [vmem:[%s0 + $0x1550] sm:$0xff]
  %v697 = vld [vmem:[%s0 + $0x1558] sm:$0xff]
  %v698 = vld [vmem:[%s0 + $0x1560] sm:$0xff]
  %v699 = vld [vmem:[%s0 + $0x1568] sm:$0xff]
  %v700 = vld [vmem:[%s0 + $0x1570] sm:$0xff]
  %v701 = vld [vmem:[%s0 + $0x1578] sm:$0xff]
  %v702 = vld [vmem:[%s0 + $0x1580] sm:$0xff]
  %v703 = vld [vmem:[%s0 + $0x1588] sm:$0xff]
  %v704 = vld [vmem:[%s0 + $0x1590] sm:$0xff]
  %v705 = vld [vmem:[%s0 + $0x1598] sm:$0xff]
  %v706 = vld [vmem:[%s0 + $0x15a0] sm:$0xff]
  %v707 = vld [vmem:[%s0 + $0x15a8] sm:$0xff]
  %v708 = vld [vmem:[%s0 + $0x15b0] sm:$0xff]
  %v709 = vld [vmem:[%s0 + $0x15b8] sm:$0xff]
  %v710 = vld [vmem:[%s0 + $0x15c0] sm:$0xff]
  %v711 = vld [vmem:[%s0 + $0x15c8] sm:$0xff]
  %v712 = vld [vmem:[%s0 + $0x15d0] sm:$0xff]
  %v713 = vld [vmem:[%s0 + $0x15d8] sm:$0xff]
  %v714 = vld [vmem:[%s0 + $0x15e0] sm:$0xff]
  %v715 = vld [vmem:[%s0 + $0x15e8] sm:$0xff]
  %v716 = vld [vmem:[%s0 + $0x15f0] sm:$0xff]
  %v717 = vld [vmem:[%s0 + $0x15f8] sm:$0xff]
  %v718 = vld [vmem:[%s0 + $0x1600] sm:$0xff]
  %v719 = vld [vmem:[%s0 + $0x1608] sm:$0xff]
  %v720 = vld [vmem:[%s0 + $0x1610] sm:$0xff]
  %v721 = vld [vmem:[%s0 + $0x1618] sm:$0xff]
  %v722 = vld [vmem:[%s0 + $0x1620] sm:$0xff]
  %v723 = vld [vmem:[%s0 + $0x1628] sm:$0xff]
  %v724 = vld [vmem:[%s0 + $0x1630] sm:$0xff]
  %v725 = vld [vmem:[%s0 + $0x1638] sm:$0xff]
  %v726 = vld [vmem:[%s0 + $0x1640] sm:$0xff]
  %v727 = vld [vmem:[%s0 + $0x1648] sm:$0xff]
  %v728 = vld [vmem:[%s0 + $0x1650] sm:$0xff]
  %v729 = vld [vmem:[%s0 + $0x1658] sm:$0xff]
  %v730 = vld [vmem:[%s0 + $0x1660] sm:$0xff]
  %v731 = vld [vmem:[%s0 + $0x1668] sm:$0xff]
  %v732 = vld [vmem:[%s0 + $0x1670] sm:$0xff]
  %v733 = vld [vmem:[%s0 + $0x1678] sm:$0xff]
  %v734 = vld [vmem:[%s0 + $0x1680] sm:$0xff]
  %v735 = vld [vmem:[%s0 + $0x1688] sm:$0xff]
  %v736 = vld [vmem:[%s0 + $0x1690] sm:$0xff]
  %v737 = vld [vmem:[%s0 + $0x1698] sm:$0xff]
  %v738 = vld [vmem:[%s0 + $0x16a0] sm:$0xff]
  %v739 = vld [vmem:[%s0 + $0x16a8] sm:$0xff]
  %v740 = vld [vmem:[%s0 + $0x16b0] sm:$0xff]
  %v741 = vld [vmem:[%s0 + $0x16b8] sm:$0xff]
  %v742 = vld [vmem:[%s0 + $0x16c0] sm:$0xff]
  %v743 = vld [vmem:[%s0 + $0x16c8] sm:$0xff]
  %v744 = vld [vmem:[%s0 + $0x16d0] sm:$0xff]
  %v745 = vld [vmem:[%s0 + $0x16d8] sm:$0xff]
  %v746 = vld [vmem:[%s0 + $0x16e0] sm:$0xff]
  %v747 = vld [vmem:[%s0 + $0x16e8] sm:$0xff]
  %v748 = vld [vmem:[%s0 + $0x16f0] sm:$0xff]
  %v749 = vld [vmem:[%s0 + $0x16f8] sm:$0xff]
  %v750 = vld [vmem:[%s0 + $0x1700] sm:$0xff]
  %v751 = vld [vmem:[%s0 + $0x1708] sm:$0xff]
  %v752 = vld [vmem:[%s0 + $0x1710] sm:$0xff]
  %v753 = vld [vmem:[%s0 + $0x1718] sm:$0xff]
  %v754 = vld [vmem:[%s0 + $0x1720] sm:$0xff]
  %v755 = vld [vmem:[%s0 + $0x1728] sm:$0xff]
  %v756 = vld [vmem:[%s0 + $0x1730] sm:$0xff]
  %v757 = vld [vmem:[%s0 + $0x1738] sm:$0xff]
  %v758 = vld [vmem:[%s0 + $0x1740] sm:$0xff]
  %v759 = vld [vmem:[%s0 + $0x1748] sm:$0xff]
  %v760 = vld [vmem:[%s0 + $0x1750] sm:$0xff]
  %v761 = vld [vmem:[%s0 + $0x1758] sm:$0xff]
  %v762 = vld [vmem:[%s0 + $0x1760] sm:$0xff]
  %v763 = vld [vmem:[%s0 + $0x1768] sm:$0xff]
  %v764 = vld [vmem:[%s0 + $0x1770] sm:$0xff]
  %v765 = vld [vmem:[%s0 + $0x1778] sm:$0xff]
  %v766 = vld [vmem:[%s0 + $0x1780] sm:$0xff]
  %v767 = vld [vmem:[%s0 + $0x1788] sm:$0xff]
  %v768 = vld [vmem:[%s0 + $0x1790] sm:$0xff]
  %v769 = vld [vmem:[%s0 + $0x1798] sm:$0xff]
  %v770 = vld [vmem:[%s0 + $0x17a0] sm:$0xff]
  %v771 = vld [vmem:[%s0 + $0x17a8] sm:$0xff]
  %v772 = vld [vmem:[%s0 + $0x17b0] sm:$0xff]
  %v773 = vld [vmem:[%s0 + $0x17b8] sm:$0xff]
  %v774 = vld [vmem:[%s0 + $0x17c0] sm:$0xff]
  %v775 = vld [vmem:[%s0 + $0x17c8] sm:$0xff]
  %v776 = vld [vmem:[%s0 + $0x17d0] sm:$0xff]
  %v777 = vld [vmem:[%s0 + $0x17d8] sm:$0xff]
  %v778 = vld [vmem:[%s0 + $0x17e0] sm:$0xff]
  %v779 = vld [vmem:[%s0 + $0x17e8] sm:$0xff]
  %v780 = vld [vmem:[%s0 + $0x17f0] sm:$0xff]
  %v781 = vld [vmem:[%s0 + $0x17f8] sm:$0xff]
  %v782 = vld [vmem:[%s0 + $0x1800] sm:$0xff]
  %v783 = vld [vmem:[%s0 + $0x1808] sm:$0xff]
  %v784 = vld [vmem:[%s0 + $0x1810] sm:$0xff]
  %v785 = vld [vmem:[%s0 + $0x1818] sm:$0xff]
  %v786 = vld [vmem:[%s0 + $0x1820] sm:$0xff]
  %v787 = vld [vmem:[%s0 + $0x1828] sm:$0xff]
  %v788 = vld [vmem:[%s0 + $0x1830] sm:$0xff]
  %v789 = vld [vmem:[%s0 + $0x1838] sm:$0xff]
  %v790 = vld [vmem:[%s0 + $0x1840] sm:$0xff]
  %v791 = vld [vmem:[%s0 + $0x1848] sm:$0xff]
  %v792 = vld [vmem:[%s0 + $0x1850] sm:$0xff]
  %v793 = vld [vmem:[%s0 + $0x1858] sm:$0xff]
  %v794 = vld [vmem:[%s0 + $0x1860] sm:$0xff]
  %v795 = vld [vmem:[%s0 + $0x1868] sm:$0xff]
  %v796 = vld [vmem:[%s0 + $0x1870] sm:$0xff]
  %v797 = vld [vmem:[%s0 + $0x1878] sm:$0xff]
  %v798 = vld [vmem:[%s0 + $0x1880] sm:$0xff]
  %v799 = vld [vmem:[%s0 + $0x1888] sm:$0xff]
  %v800 = vld [vmem:[%s0 + $0x1890] sm:$0xff]
  %v801 = vld [vmem:[%s0 + $0x1898] sm:$0xff]
  %v802 = vld [vmem:[%s0 + $0x18a0] sm:$0xff]
  %v803 = vld [vmem:[%s0 + $0x18a8] sm:$0xff]
  %v804 = vld [vmem:[%s0 + $0x18b0] sm:$0xff]
  %v805 = vld [vmem:[%s0 + $0x18b8] sm:$0xff]
  %v806 = vld [vmem:[%s0 + $0x18c0] sm:$0xff]
  %v807 = vld [vmem:[%s0 + $0x18c8] sm:$0xff]
  %v808 = vld [vmem:[%s0 + $0x18d0] sm:$0xff]
  %v809 = vld [vmem:[%s0 + $0x18d8] sm:$0xff]
  %v810 = vld [vmem:[%s0 + $0x18e0] sm:$0xff]
  %v811 = vld [vmem:[%s0 + $0x18e8] sm:$0xff]
  %v812 = vld [vmem:[%s0 + $0x18f0] sm:$0xff]
  %v813 = vld [vmem:[%s0 + $0x18f8] sm:$0xff]
  %v814 = vld [vmem:[%s0 + $0x1900] sm:$0xff]
  %v815 = vld [vmem:[%s0 + $0x1908] sm:$0xff]
  %v816 = vld [vmem:[%s0 + $0x1910] sm:$0xff]
  %v817 = vld [vmem:[%s0 + $0x1918] sm:$0xff]
  %v818 = vld [vmem:[%s0 + $0x1920] sm:$0xff]
  %v819 = vld [vmem:[%s0 + $0x1928] sm:$0xff]
  %v820 = vld [vmem:[%s0 + $0x1930] sm:$0xff]
  %v821 = vld [vmem:[%s0 + $0x1938] sm:$0xff]
  %v822 = vld [vmem:[%s0 + $0x1940] sm:$0xff]
  %v823 = vld [vmem:[%s0 + $0x1948] sm:$0xff]
  %v824 = vld [vmem:[%s0 + $0x1950] sm:$0xff]
  %v825 = vld [vmem:[%s0 + $0x1958] sm:$0xff]
  %v826 = vld [vmem:[%s0 + $0x1960] sm:$0xff]
  %v827 = vld [vmem:[%s0 + $0x1968] sm:$0xff]
  %v828 = vld [vmem:[%s0 + $0x1970] sm:$0xff]
  %v829 = vld [vmem:[%s0 + $0x1978] sm:$0xff]
  %v830 = vld [vmem:[%s0 + $0x1980] sm:$0xff]
  %v831 = vld [vmem:[%s0 + $0x1988] sm:$0xff]
  %v832 = vld [vmem:[%s0 + $0x1990] sm:$0xff]
  %v833 = vld [vmem:[%s0 + $0x1998] sm:$0xff]
  %v834 = vld [vmem:[%s0 + $0x19a0] sm:$0xff]
  %v835 = vld [vmem:[%s0 + $0x19a8] sm:$0xff]
  %v836 = vld [vmem:[%s0 + $0x19b0] sm:$0xff]
  %v837 = vld [vmem:[%s0 + $0x19b8] sm:$0xff]
  %v838 = vld [vmem:[%s0 + $0x19c0] sm:$0xff]
  %v839 = vld [vmem:[%s0 + $0x19c8] sm:$0xff]
  %v840 = vld [vmem:[%s0 + $0x19d0] sm:$0xff]
  %v841 = vld [vmem:[%s0 + $0x19d8] sm:$0xff]
  %v842 = vld [vmem:[%s0 + $0x19e0] sm:$0xff]
  %v843 = vld [vmem:[%s0 + $0x19e8] sm:$0xff]
  %v844 = vld [vmem:[%s0 + $0x19f0] sm:$0xff]
  %v845 = vld [vmem:[%s0 + $0x19f8] sm:$0xff]
  %v846 = vld [vmem:[%s0 + $0x1a00] sm:$0xff]
  %v847 = vld [vmem:[%s0 + $0x1a08] sm:$0xff]
  %v848 = vld [vmem:[%s0 + $0x1a10] sm:$0xff]
  %v849 = vld [vmem:[%s0 + $0x1a18] sm:$0xff]
  %v850 = vld [vmem:[%s0 + $0x1a20] sm:$0xff]
  %v851 = vld [vmem:[%s0 + $0x1a28] sm:$0xff]
  %v852 = vld [vmem:[%s0 + $0x1a30] sm:$0xff]
  %v853 = vld [vmem:[%s0 + $0x1a38] sm:$0xff]
  %v854 = vld [vmem:[%s0 + $0x1a40] sm:$0xff]
  %v855 = vld [vmem:[%s0 + $0x1a48] sm:$0xff]
  %v856 = vld [vmem:[%s0 + $0x1a50] sm:$0xff]
  %v857 = vld [vmem:[%s0 + $0x1a58] sm:$0xff]
  %v858 = vld [vmem:[%s0 + $0x1a60] sm:$0xff]
  %v859 = vld [vmem:[%s1] sm:$0xff]
  %v860 = vld [vmem:[%s1 + $0x8] sm:$0xff]
  %v861 = vld [vmem:[%s1 + $0x10] sm:$0xff]
  %v862 = vld [vmem:[%s1 + $0x18] sm:$0xff]
  %v863 = vld [vmem:[%s1 + $0x20] sm:$0xff]
  %v864 = vld [vmem:[%s1 + $0x28] sm:$0xff]
  %v865 = vld [vmem:[%s1 + $0x30] sm:$0xff]
  %v866 = vld [vmem:[%s1 + $0x38] sm:$0xff]
  %v867 = vld [vmem:[%s1 + $0x40] sm:$0xff]
  %v868 = vld [vmem:[%s1 + $0x48] sm:$0xff]
  %v869 = vld [vmem:[%s1 + $0x50] sm:$0xff]
  %v870 = vld [vmem:[%s1 + $0x58] sm:$0xff]
  %v871 = vld [vmem:[%s1 + $0x60] sm:$0xff]
  %v872 = vld [vmem:[%s1 + $0x68] sm:$0xff]
  %v873 = vld [vmem:[%s1 + $0x70] sm:$0xff]
  %v874 = vld [vmem:[%s1 + $0x78] sm:$0xff]
  %v875 = vld [vmem:[%s1 + $0x80] sm:$0xff]
  %v876 = vld [vmem:[%s1 + $0x88] sm:$0xff]
  %v877 = vld [vmem:[%s1 + $0x90] sm:$0xff]
  %v878 = vld [vmem:[%s1 + $0x98] sm:$0xff]
  %v879 = vld [vmem:[%s1 + $0xa0] sm:$0xff]
  %v880 = vld [vmem:[%s1 + $0xa8] sm:$0xff]
  %v881 = vld [vmem:[%s1 + $0xb0] sm:$0xff]
  %v882 = vld [vmem:[%s1 + $0xb8] sm:$0xff]
  %v883 = vld [vmem:[%s1 + $0xc0] sm:$0xff]
  %v884 = vld [vmem:[%s1 + $0xc8] sm:$0xff]
  %v885 = vld [vmem:[%s1 + $0xd0] sm:$0xff]
  %v886 = vld [vmem:[%s1 + $0xd8] sm:$0xff]
  %v887 = vld [vmem:[%s1 + $0xe0] sm:$0xff]
  %v888 = vld [vmem:[%s1 + $0xe8] sm:$0xff]
  %v889 = vld [vmem:[%s1 + $0xf0] sm:$0xff]
  %v890 = vld [vmem:[%s1 + $0xf8] sm:$0xff]
  %v891 = vld [vmem:[%s1 + $0x100] sm:$0xff]
  %v892 = vld [vmem:[%s1 + $0x108] sm:$0xff]
  %v893 = vld [vmem:[%s1 + $0x110] sm:$0xff]
  %v894 = vld [vmem:[%s1 + $0x118] sm:$0xff]
  %v895 = vld [vmem:[%s1 + $0x120] sm:$0xff]
  %v896 = vld [vmem:[%s1 + $0x128] sm:$0xff]
  %v897 = vld [vmem:[%s1 + $0x130] sm:$0xff]
  %v898 = vld [vmem:[%s1 + $0x138] sm:$0xff]
  %v899 = vld [vmem:[%s1 + $0x140] sm:$0xff]
  %v900 = vld [vmem:[%s1 + $0x148] sm:$0xff]
  %v901 = vld [vmem:[%s1 + $0x150] sm:$0xff]
  %v902 = vld [vmem:[%s1 + $0x158] sm:$0xff]
  %v903 = vld [vmem:[%s1 + $0x160] sm:$0xff]
  %v904 = vld [vmem:[%s1 + $0x168] sm:$0xff]
  %v905 = vld [vmem:[%s1 + $0x170] sm:$0xff]
  %v906 = vld [vmem:[%s1 + $0x178] sm:$0xff]
  %v907 = vld [vmem:[%s1 + $0x180] sm:$0xff]
  %v908 = vld [vmem:[%s1 + $0x188] sm:$0xff]
  %v909 = vld [vmem:[%s1 + $0x190] sm:$0xff]
  %v910 = vld [vmem:[%s1 + $0x198] sm:$0xff]
  %v911 = vld [vmem:[%s1 + $0x1a0] sm:$0xff]
  %v912 = vld [vmem:[%s1 + $0x1a8] sm:$0xff]
  %v913 = vld [vmem:[%s1 + $0x1b0] sm:$0xff]
  %v914 = vld [vmem:[%s1 + $0x1b8] sm:$0xff]
  %v915 = vld [vmem:[%s1 + $0x1c0] sm:$0xff]
  %v916 = vld [vmem:[%s1 + $0x1c8] sm:$0xff]
  %v917 = vld [vmem:[%s1 + $0x1d0] sm:$0xff]
  %v918 = vld [vmem:[%s1 + $0x1d8] sm:$0xff]
  %v919 = vld [vmem:[%s1 + $0x1e0] sm:$0xff]
  %v920 = vld [vmem:[%s1 + $0x1e8] sm:$0xff]
  %v921 = vld [vmem:[%s1 + $0x1f0] sm:$0xff]
  %v922 = vld [vmem:[%s1 + $0x1f8] sm:$0xff]
  %v923 = vld [vmem:[%s1 + $0x200] sm:$0xff]
  %v924 = vld [vmem:[%s1 + $0x208] sm:$0xff]
  %v925 = vld [vmem:[%s1 + $0x210] sm:$0xff]
  %v926 = vld [vmem:[%s1 + $0x218] sm:$0xff]
  %v927 = vld [vmem:[%s1 + $0x220] sm:$0xff]
  %v928 = vld [vmem:[%s1 + $0x228] sm:$0xff]
  %v929 = vld [vmem:[%s1 + $0x230] sm:$0xff]
  %v930 = vld [vmem:[%s1 + $0x238] sm:$0xff]
  %v931 = vld [vmem:[%s2] sm:$0x1]
  %v933 = vlaneseq
  %v934 = vshrl.u32 %v933, 7
  %v935 = vsub.s32 0, %v934
  %v936 = vrot.slane %v931, %v935
  %vm938 = vcmask 523264
  %v940 = vsel %vm938, %v18, 0
  %v943 = vsel %vm938, %v23, 0
  %v946 = vsel %vm938, %v28, 0
  %v949 = vsel %vm938, %v33, 0
  %v952 = vsel %vm938, %v38, 0
  %v955 = vsel %vm938, %v43, 0
  %v958 = vsel %vm938, %v48, 0
  %v961 = vsel %vm938, %v53, 0
  %v964 = vsel %vm938, %v58, 0
  %v967 = vsel %vm938, %v63, 0
  %v970 = vsel %vm938, %v68, 0
  %v973 = vsel %vm938, %v73, 0
  %v976 = vsel %vm938, %v78, 0
  %v979 = vsel %vm938, %v83, 0
  %v982 = vsel %vm938, %v88, 0
  %v985 = vsel %vm938, %v93, 0
  %v988 = vsel %vm938, %v98, 0
  %v991 = vsel %vm938, %v103, 0
  %v994 = vsel %vm938, %v108, 0
  %v997 = vsel %vm938, %v113, 0
  %v1000 = vsel %vm938, %v118, 0
  %v1003 = vsel %vm938, %v123, 0
  %v1006 = vsel %vm938, %v128, 0
  %v1009 = vsel %vm938, %v133, 0
  %v1012 = vsel %vm938, %v138, 0
  %v1015 = vsel %vm938, %v143, 0
  %v1018 = vsel %vm938, %v148, 0
  %v1021 = vsel %vm938, %v153, 0
  %v1024 = vsel %vm938, %v158, 0
  %v1027 = vsel %vm938, %v163, 0
  %v1030 = vsel %vm938, %v168, 0
  %v1033 = vsel %vm938, %v173, 0
  %v1036 = vsel %vm938, %v178, 0
  %v1039 = vsel %vm938, %v183, 0
  %v1042 = vsel %vm938, %v188, 0
  %v1045 = vsel %vm938, %v193, 0
  %v1048 = vsel %vm938, %v198, 0
  %v1051 = vsel %vm938, %v203, 0
  %v1054 = vsel %vm938, %v208, 0
  %v1057 = vsel %vm938, %v213, 0
  %v1060 = vsel %vm938, %v218, 0
  %v1063 = vsel %vm938, %v223, 0
  %v1066 = vsel %vm938, %v228, 0
  %v1069 = vsel %vm938, %v233, 0
  %v1072 = vsel %vm938, %v238, 0
  %v1075 = vsel %vm938, %v243, 0
  %v1078 = vsel %vm938, %v248, 0
  %v1081 = vsel %vm938, %v253, 0
  %v1084 = vsel %vm938, %v258, 0
  %v1087 = vsel %vm938, %v263, 0
  %v1090 = vsel %vm938, %v268, 0
  %v1093 = vsel %vm938, %v273, 0
  %v1096 = vsel %vm938, %v278, 0
  %v1099 = vsel %vm938, %v283, 0
  %v1102 = vsel %vm938, %v288, 0
  %v1105 = vsel %vm938, %v293, 0
  %v1108 = vsel %vm938, %v298, 0
  %v1111 = vsel %vm938, %v303, 0
  %v1114 = vsel %vm938, %v308, 0
  %v1117 = vsel %vm938, %v313, 0
  %v1120 = vsel %vm938, %v318, 0
  %v1123 = vsel %vm938, %v323, 0
  %v1126 = vsel %vm938, %v328, 0
  %v1129 = vsel %vm938, %v333, 0
  %v1132 = vsel %vm938, %v338, 0
  %v1135 = vsel %vm938, %v343, 0
  %v1138 = vsel %vm938, %v348, 0
  %v1141 = vsel %vm938, %v353, 0
  %v1144 = vsel %vm938, %v358, 0
  %v1147 = vsel %vm938, %v363, 0
  %v1150 = vsel %vm938, %v368, 0
  %v1153 = vsel %vm938, %v373, 0
  %v1156 = vsel %vm938, %v378, 0
  %v1159 = vsel %vm938, %v383, 0
  %v1162 = vsel %vm938, %v388, 0
  %v1165 = vsel %vm938, %v393, 0
  %v1168 = vsel %vm938, %v398, 0
  %v1171 = vsel %vm938, %v403, 0
  %v1174 = vsel %vm938, %v408, 0
  %v1177 = vsel %vm938, %v413, 0
  %v1180 = vsel %vm938, %v418, 0
  %v1183 = vsel %vm938, %v423, 0
  %v1186 = vsel %vm938, %v428, 0
  %v1189 = vsel %vm938, %v433, 0
  %v1192 = vsel %vm938, %v438, 0
  %v1195 = vsel %vm938, %v443, 0
  %v1198 = vsel %vm938, %v448, 0
  %v1201 = vsel %vm938, %v453, 0
  %v1204 = vsel %vm938, %v458, 0
  %v1207 = vsel %vm938, %v463, 0
  %v1210 = vsel %vm938, %v468, 0
  %v1213 = vsel %vm938, %v473, 0
  %v1216 = vsel %vm938, %v478, 0
  %v1219 = vsel %vm938, %v483, 0
  %v1222 = vsel %vm938, %v488, 0
  %v1225 = vsel %vm938, %v493, 0
  %v1228 = vsel %vm938, %v498, 0
  %v1231 = vsel %vm938, %v503, 0
  %v1234 = vsel %vm938, %v508, 0
  %v1237 = vsel %vm938, %v513, 0
  %v1240 = vsel %vm938, %v518, 0
  %v1243 = vsel %vm938, %v523, 0
  %v1246 = vsel %vm938, %v528, 0
  %v1249 = vsel %vm938, %v533, 0
  %v1252 = vsel %vm938, %v538, 0
  %v1255 = vsel %vm938, %v543, 0
  %v1258 = vsel %vm938, %v548, 0
  %v1261 = vsel %vm938, %v553, 0
  %v1264 = vsel %vm938, %v558, 0
  %v1267 = vsel %vm938, %v563, 0
  %v1270 = vsel %vm938, %v568, 0
  %v1273 = vsel %vm938, %v573, 0
  %v1276 = vsel %vm938, %v578, 0
  %v1279 = vsel %vm938, %v583, 0
  %v1282 = vsel %vm938, %v588, 0
  %v1285 = vsel %vm938, %v593, 0
  %v1288 = vsel %vm938, %v598, 0
  %v1291 = vsel %vm938, %v603, 0
  %v1294 = vsel %vm938, %v608, 0
  %v1297 = vsel %vm938, %v613, 0
  %v1300 = vsel %vm938, %v618, 0
  %v1303 = vsel %vm938, %v623, 0
  %v1306 = vsel %vm938, %v628, 0
  %v1309 = vsel %vm938, %v633, 0
  %v1312 = vsel %vm938, %v638, 0
  %v1315 = vsel %vm938, %v643, 0
  %v1318 = vsel %vm938, %v648, 0
  %v1321 = vsel %vm938, %v653, 0
  %v1324 = vsel %vm938, %v658, 0
  %v1327 = vsel %vm938, %v663, 0
  %v1330 = vsel %vm938, %v668, 0
  %v1333 = vsel %vm938, %v673, 0
  %v1336 = vsel %vm938, %v678, 0
  %v1339 = vsel %vm938, %v683, 0
  %v1342 = vsel %vm938, %v688, 0
  %v1345 = vsel %vm938, %v693, 0
  %v1348 = vsel %vm938, %v698, 0
  %v1351 = vsel %vm938, %v703, 0
  %v1354 = vsel %vm938, %v708, 0
  %v1357 = vsel %vm938, %v713, 0
  %v1360 = vsel %vm938, %v718, 0
  %v1363 = vsel %vm938, %v723, 0
  %v1366 = vsel %vm938, %v728, 0
  %v1369 = vsel %vm938, %v733, 0
  %v1372 = vsel %vm938, %v738, 0
  %v1375 = vsel %vm938, %v743, 0
  %v1378 = vsel %vm938, %v748, 0
  %v1381 = vsel %vm938, %v753, 0
  %v1384 = vsel %vm938, %v758, 0
  %v1387 = vsel %vm938, %v763, 0
  %v1390 = vsel %vm938, %v768, 0
  %v1393 = vsel %vm938, %v773, 0
  %v1396 = vsel %vm938, %v778, 0
  %v1399 = vsel %vm938, %v783, 0
  %v1402 = vsel %vm938, %v788, 0
  %v1405 = vsel %vm938, %v793, 0
  %v1408 = vsel %vm938, %v798, 0
  %v1411 = vsel %vm938, %v803, 0
  %v1414 = vsel %vm938, %v808, 0
  %v1417 = vsel %vm938, %v813, 0
  %v1420 = vsel %vm938, %v818, 0
  %v1423 = vsel %vm938, %v823, 0
  %v1426 = vsel %vm938, %v828, 0
  %v1429 = vsel %vm938, %v833, 0
  %v1432 = vsel %vm938, %v838, 0
  %v1435 = vsel %vm938, %v843, 0
  %v1438 = vsel %vm938, %v848, 0
  %v1441 = vsel %vm938, %v853, 0
  %v1444 = vsel %vm938, %v858, 0
  %1446 = vmatprep.subr.mxu0 0.0
  %1447 = vmatpush1.msra.mxu0 %v859
  %1448 = vmatprep.subr.mxu0 0.0
  %1449 = vmatpush1.msra.mxu0 %v860
  %1450 = vmatprep.subr.mxu0 0.0
  %1451 = vmatpush1.msra.mxu0 %v861
  %1452 = vmatprep.subr.mxu0 0.0
  %1453 = vmatpush1.msra.mxu0 %v862
  %1454 = vmatprep.subr.mxu0 0.0
  %1455 = vmatpush1.msra.mxu0 %v863
  %1456 = vmatprep.subr.mxu0 0.0
  %1457 = vmatpush1.msra.mxu0 %v864
  %1458 = vmatprep.subr.mxu0 0.0
  %1459 = vmatpush1.msra.mxu0 %v865
  %1460 = vmatprep.subr.mxu0 0.0
  %1461 = vmatpush1.msra.mxu0 %v866
  %1462 = vmatprep.subr.mxu0 0.0
  %1463 = vmatpush1.msra.mxu0 %v867
  %1464 = vmatprep.subr.mxu0 0.0
  %1465 = vmatpush1.msra.mxu0 %v868
  %1466 = vmatprep.subr.mxu0 0.0
  %1467 = vmatpush1.msra.mxu0 %v869
  %1468 = vmatprep.subr.mxu0 0.0
  %1469 = vmatpush1.msra.mxu0 %v870
  %1470 = vmatprep.subr.mxu0 0.0
  %1471 = vmatpush1.msra.mxu0 %v871
  %1472 = vmatprep.subr.mxu0 0.0
  %1473 = vmatpush1.msra.mxu0 %v872
  %1474 = vmatprep.subr.mxu0 0.0
  %1475 = vmatpush1.msra.mxu0 %v873
  %1476 = vmatprep.subr.mxu0 0.0
  %1477 = vmatpush1.msra.mxu0 %v874
  %1478 = vmatprep.subr.mxu0 0.0
  %1479 = vmatpush1.msra.mxu0 %v875
  %1480 = vmatprep.subr.mxu0 0.0
  %1481 = vmatpush1.msra.mxu0 %v876
  %1482 = vmatprep.subr.mxu0 0.0
  %1483 = vmatpush1.msra.mxu0 %v877
  %1484 = vmatprep.subr.mxu0 0.0
  %1485 = vmatpush1.msra.mxu0 %v878
  %1486 = vmatprep.subr.mxu0 0.0
  %1487 = vmatpush1.msra.mxu0 %v879
  %1488 = vmatprep.subr.mxu0 0.0
  %1489 = vmatpush1.msra.mxu0 %v880
  %1490 = vmatprep.subr.mxu0 0.0
  %1491 = vmatpush1.msra.mxu0 %v881
  %1492 = vmatprep.subr.mxu0 0.0
  %1493 = vmatpush1.msra.mxu0 %v882
  %1494 = vmatprep.subr.mxu0 0.0
  %1495 = vmatpush1.msra.mxu0 %v883
  %1496 = vmatprep.subr.mxu0 0.0
  %1497 = vmatpush1.msra.mxu0 %v884
  %1498 = vmatprep.subr.mxu0 0.0
  %1499 = vmatpush1.msra.mxu0 %v885
  %1500 = vmatprep.subr.mxu0 0.0
  %1501 = vmatpush1.msra.mxu0 %v886
  %1502 = vmatprep.subr.mxu0 0.0
  %1503 = vmatpush1.msra.mxu0 %v887
  %1504 = vmatprep.subr.mxu0 0.0
  %1505 = vmatpush1.msra.mxu0 %v888
  %1506 = vmatprep.subr.mxu0 0.0
  %1507 = vmatpush1.msra.mxu0 %v889
  %1508 = vmatprep.subr.mxu0 0.0
  %1509 = vmatpush1.msra.mxu0 %v890
  %1510 = vmatprep.mubr.f32.mxu0 %v15
  %1511 = vmatmul.mubr.f32.gmra.mrb[0].mxu0 %v14
  %v1512 = vpop.f32.mrb[0].mxu0
  %v1513 = vadd.f32 %v936, %v1512
  %v1514 = vpop.f32.mrb[0].mxu0
  %1515 = vmatprep.mubr.f32.mxu0 %v20
  %1516 = vmatmul.mubr.f32.gmra.mrb[0].mxu0 %v19
  %v1517 = vpop.f32.mrb[0].mxu0
  %v1518 = vadd.f32 %v936, %v1517
  %v1519 = vpop.f32.mrb[0].mxu0
  %1520 = vmatprep.mubr.f32.mxu0 %v25
  %1521 = vmatmul.mubr.f32.gmra.mrb[0].mxu0 %v24
  %v1522 = vpop.f32.mrb[0].mxu0
  %v1523 = vadd.f32 %v936, %v1522
  %v1524 = vpop.f32.mrb[0].mxu0
  %1525 = vmatprep.mubr.f32.mxu0 %v30
  %1526 = vmatmul.mubr.f32.gmra.mrb[0].mxu0 %v29
  %v1527 = vpop.f32.mrb[0].mxu0
  %v1528 = vadd.f32 %v936, %v1527
  %v1529 = vpop.f32.mrb[0].mxu0
  %1530 = vmatprep.mubr.f32.mxu0 %v35
  %1531 = vmatmul.mubr.f32.gmra.mrb[0].mxu0 %v34
  %v1532 = vpop.f32.mrb[0].mxu0
  %v1533 = vadd.f32 %v936, %v1532
  %v1534 = vpop.f32.mrb[0].mxu0
  %1535 = vmatprep.mubr.f32.mxu0 %v40
  %1536 = vmatmul.mubr.f32.gmra.mrb[0].mxu0 %v39
  %v1537 = vpop.f32.mrb[0].mxu0
  %v1538 = vadd.f32 %v936, %v1537
  %v1539 = vpop.f32.mrb[0].mxu0
  %1540 = vmatprep.mubr.f32.mxu0 %v45
  %1541 = vmatmul.mubr.f32.gmra.mrb[0].mxu0 %v44
  %v1542 = vpop.f32.mrb[0].mxu0
  %v1543 = vadd.f32 %v936, %v1542
  %v1544 = vpop.f32.mrb[0].mxu0
  %1545 = vmatprep.mubr.f32.mxu0 %v50
  %1546 = vmatmul.mubr.f32.gmra.mrb[0].mxu0 %v49
  %v1547 = vpop.f32.mrb[0].mxu0
  %v1548 = vadd.f32 %v936, %v1547
  %v1549 = vpop.f32.mrb[0].mxu0
  %1550 = vmatprep.mubr.f32.mxu0 %v55
  %1551 = vmatmul.mubr.f32.gmra.mrb[0].mxu0 %v54
  %v1552 = vpop.f32.mrb[0].mxu0
  %v1553 = vadd.f32 %v936, %v1552
  %v1554 = vpop.f32.mrb[0].mxu0
  %1555 = vmatprep.mubr.f32.mxu0 %v60
  %1556 = vmatmul.mubr.f32.gmra.mrb[0].mxu0 %v59
  %v1557 = vpop.f32.mrb[0].mxu0
  %v1558 = vadd.f32 %v936, %v1557
  %v1559 = vpop.f32.mrb[0].mxu0
  %1560 = vmatprep.mubr.f32.mxu0 %v65
  %1561 = vmatmul.mubr.f32.gmra.mrb[0].mxu0 %v64
  %v1562 = vpop.f32.mrb[0].mxu0
  %v1563 = vadd.f32 %v936, %v1562
  %v1564 = vpop.f32.mrb[0].mxu0
  %1565 = vmatprep.mubr.f32.mxu0 %v70
  %1566 = vmatmul.mubr.f32.gmra.mrb[0].mxu0 %v69
  %v1567 = vpop.f32.mrb[0].mxu0
  %v1568 = vadd.f32 %v936, %v1567
  %v1569 = vpop.f32.mrb[0].mxu0
  %1570 = vmatprep.mubr.f32.mxu0 %v75
  %1571 = vmatmul.mubr.f32.gmra.mrb[0].mxu0 %v74
  %v1572 = vpop.f32.mrb[0].mxu0
  %v1573 = vadd.f32 %v936, %v1572
  %v1574 = vpop.f32.mrb[0].mxu0
  %1575 = vmatprep.mubr.f32.mxu0 %v80
  %1576 = vmatmul.mubr.f32.gmra.mrb[0].mxu0 %v79
  %v1577 = vpop.f32.mrb[0].mxu0
  %v1578 = vadd.f32 %v936, %v1577
  %v1579 = vpop.f32.mrb[0].mxu0
  %1580 = vmatprep.mubr.f32.mxu0 %v85
  %1581 = vmatmul.mubr.f32.gmra.mrb[0].mxu0 %v84
  %v1582 = vpop.f32.mrb[0].mxu0
  %v1583 = vadd.f32 %v936, %v1582
  %v1584 = vpop.f32.mrb[0].mxu0
  %1585 = vmatprep.mubr.f32.mxu0 %v90
  %1586 = vmatmul.mubr.f32.gmra.mrb[0].mxu0 %v89
  %v1587 = vpop.f32.mrb[0].mxu0
  %v1588 = vadd.f32 %v936, %v1587
  %v1589 = vpop.f32.mrb[0].mxu0
  %1590 = vmatprep.mubr.f32.mxu0 %v95
  %1591 = vmatmul.mubr.f32.gmra.mrb[0].mxu0 %v94
  %v1592 = vpop.f32.mrb[0].mxu0
  %v1593 = vadd.f32 %v936, %v1592
  %v1594 = vpop.f32.mrb[0].mxu0
  %1595 = vmatprep.mubr.f32.mxu0 %v100
  %1596 = vmatmul.mubr.f32.gmra.mrb[0].mxu0 %v99
  %v1597 = vpop.f32.mrb[0].mxu0
  %v1598 = vadd.f32 %v936, %v1597
  %v1599 = vpop.f32.mrb[0].mxu0
  %1600 = vmatprep.mubr.f32.mxu0 %v105
  %1601 = vmatmul.mubr.f32.gmra.mrb[0].mxu0 %v104
  %v1602 = vpop.f32.mrb[0].mxu0
  %v1603 = vadd.f32 %v936, %v1602
  %v1604 = vpop.f32.mrb[0].mxu0
  %1605 = vmatprep.mubr.f32.mxu0 %v110
  %1606 = vmatmul.mubr.f32.gmra.mrb[0].mxu0 %v109
  %v1607 = vpop.f32.mrb[0].mxu0
  %v1608 = vadd.f32 %v936, %v1607
  %v1609 = vpop.f32.mrb[0].mxu0
  %1610 = vmatprep.mubr.f32.mxu0 %v115
  %1611 = vmatmul.mubr.f32.gmra.mrb[0].mxu0 %v114
  %v1612 = vpop.f32.mrb[0].mxu0
  %v1613 = vadd.f32 %v936, %v1612
  %v1614 = vpop.f32.mrb[0].mxu0
  %1615 = vmatprep.mubr.f32.mxu0 %v120
  %1616 = vmatmul.mubr.f32.gmra.mrb[0].mxu0 %v119
  %v1617 = vpop.f32.mrb[0].mxu0
  %v1618 = vadd.f32 %v936, %v1617
  %v1619 = vpop.f32.mrb[0].mxu0
  %1620 = vmatprep.mubr.f32.mxu0 %v125
  %1621 = vmatmul.mubr.f32.gmra.mrb[0].mxu0 %v124
  %v1622 = vpop.f32.mrb[0].mxu0
  %v1623 = vadd.f32 %v936, %v1622
  %v1624 = vpop.f32.mrb[0].mxu0
  %1625 = vmatprep.mubr.f32.mxu0 %v130
  %1626 = vmatmul.mubr.f32.gmra.mrb[0].mxu0 %v129
  %v1627 = vpop.f32.mrb[0].mxu0
  %v1628 = vadd.f32 %v936, %v1627
  %v1629 = vpop.f32.mrb[0].mxu0
  %1630 = vmatprep.mubr.f32.mxu0 %v135
  %1631 = vmatmul.mubr.f32.gmra.mrb[0].mxu0 %v134
  %v1632 = vpop.f32.mrb[0].mxu0
  %v1633 = vadd.f32 %v936, %v1632
  %v1634 = vpop.f32.mrb[0].mxu0
  %1635 = vmatprep.mubr.f32.mxu0 %v140
  %1636 = vmatmul.mubr.f32.gmra.mrb[0].mxu0 %v139
  %v1637 = vpop.f32.mrb[0].mxu0
  %v1638 = vadd.f32 %v936, %v1637
  %v1639 = vpop.f32.mrb[0].mxu0
  %1640 = vmatprep.mubr.f32.mxu0 %v145
  %1641 = vmatmul.mubr.f32.gmra.mrb[0].mxu0 %v144
  %v1642 = vpop.f32.mrb[0].mxu0
  %v1643 = vadd.f32 %v936, %v1642
  %v1644 = vpop.f32.mrb[0].mxu0
  %1645 = vmatprep.mubr.f32.mxu0 %v150
  %1646 = vmatmul.mubr.f32.gmra.mrb[0].mxu0 %v149
  %v1647 = vpop.f32.mrb[0].mxu0
  %v1648 = vadd.f32 %v936, %v1647
  %v1649 = vpop.f32.mrb[0].mxu0
  %1650 = vmatprep.mubr.f32.mxu0 %v155
  %1651 = vmatmul.mubr.f32.gmra.mrb[0].mxu0 %v154
  %v1652 = vpop.f32.mrb[0].mxu0
  %v1653 = vadd.f32 %v936, %v1652
  %v1654 = vpop.f32.mrb[0].mxu0
  %1655 = vmatprep.mubr.f32.mxu0 %v160
  %1656 = vmatmul.mubr.f32.gmra.mrb[0].mxu0 %v159
  %v1657 = vpop.f32.mrb[0].mxu0
  %v1658 = vadd.f32 %v936, %v1657
  %v1659 = vpop.f32.mrb[0].mxu0
  %1660 = vmatprep.mubr.f32.mxu0 %v165
  %1661 = vmatmul.mubr.f32.gmra.mrb[0].mxu0 %v164
  %v1662 = vpop.f32.mrb[0].mxu0
  %v1663 = vadd.f32 %v936, %v1662
  %v1664 = vpop.f32.mrb[0].mxu0
  %1665 = vmatprep.mubr.f32.mxu0 %v170
  %1666 = vmatmul.mubr.f32.gmra.mrb[0].mxu0 %v169
  %v1667 = vpop.f32.mrb[0].mxu0
  %v1668 = vadd.f32 %v936, %v1667
  %v1669 = vpop.f32.mrb[0].mxu0
  %1670 = vmatprep.mubr.f32.mxu0 %v175
  %1671 = vmatmul.mubr.f32.gmra.mrb[0].mxu0 %v174
  %v1672 = vpop.f32.mrb[0].mxu0
  %v1673 = vadd.f32 %v936, %v1672
  %v1674 = vpop.f32.mrb[0].mxu0
  %1675 = vmatprep.mubr.f32.mxu0 %v180
  %1676 = vmatmul.mubr.f32.gmra.mrb[0].mxu0 %v179
  %v1677 = vpop.f32.mrb[0].mxu0
  %v1678 = vadd.f32 %v936, %v1677
  %v1679 = vpop.f32.mrb[0].mxu0
  %1680 = vmatprep.mubr.f32.mxu0 %v185
  %1681 = vmatmul.mubr.f32.gmra.mrb[0].mxu0 %v184
  %v1682 = vpop.f32.mrb[0].mxu0
  %v1683 = vadd.f32 %v936, %v1682
  %v1684 = vpop.f32.mrb[0].mxu0
  %1685 = vmatprep.mubr.f32.mxu0 %v190
  %1686 = vmatmul.mubr.f32.gmra.mrb[0].mxu0 %v189
  %v1687 = vpop.f32.mrb[0].mxu0
  %v1688 = vadd.f32 %v936, %v1687
  %v1689 = vpop.f32.mrb[0].mxu0
  %1690 = vmatprep.mubr.f32.mxu0 %v195
  %1691 = vmatmul.mubr.f32.gmra.mrb[0].mxu0 %v194
  %v1692 = vpop.f32.mrb[0].mxu0
  %v1693 = vadd.f32 %v936, %v1692
  %v1694 = vpop.f32.mrb[0].mxu0
  %1695 = vmatprep.mubr.f32.mxu0 %v200
  %1696 = vmatmul.mubr.f32.gmra.mrb[0].mxu0 %v199
  %v1697 = vpop.f32.mrb[0].mxu0
  %v1698 = vadd.f32 %v936, %v1697
  %v1699 = vpop.f32.mrb[0].mxu0
  %1700 = vmatprep.mubr.f32.mxu0 %v205
  %1701 = vmatmul.mubr.f32.gmra.mrb[0].mxu0 %v204
  %v1702 = vpop.f32.mrb[0].mxu0
  %v1703 = vadd.f32 %v936, %v1702
  %v1704 = vpop.f32.mrb[0].mxu0
  %1705 = vmatprep.mubr.f32.mxu0 %v210
  %1706 = vmatmul.mubr.f32.gmra.mrb[0].mxu0 %v209
  %v1707 = vpop.f32.mrb[0].mxu0
  %v1708 = vadd.f32 %v936, %v1707
  %v1709 = vpop.f32.mrb[0].mxu0
  %1710 = vmatprep.mubr.f32.mxu0 %v215
  %1711 = vmatmul.mubr.f32.gmra.mrb[0].mxu0 %v214
  %v1712 = vpop.f32.mrb[0].mxu0
  %v1713 = vadd.f32 %v936, %v1712
  %v1714 = vpop.f32.mrb[0].mxu0
  %1715 = vmatprep.mubr.f32.mxu0 %v220
  %1716 = vmatmul.mubr.f32.gmra.mrb[0].mxu0 %v219
  %v1717 = vpop.f32.mrb[0].mxu0
  %v1718 = vadd.f32 %v936, %v1717
  %v1719 = vpop.f32.mrb[0].mxu0
  %1720 = vmatprep.mubr.f32.mxu0 %v225
  %1721 = vmatmul.mubr.f32.gmra.mrb[0].mxu0 %v224
  %v1722 = vpop.f32.mrb[0].mxu0
  %v1723 = vadd.f32 %v936, %v1722
  %v1724 = vpop.f32.mrb[0].mxu0
  %1725 = vmatprep.mubr.f32.mxu0 %v230
  %1726 = vmatmul.mubr.f32.gmra.mrb[0].mxu0 %v229
  %v1727 = vpop.f32.mrb[0].mxu0
  %v1728 = vadd.f32 %v936, %v1727
  %v1729 = vpop.f32.mrb[0].mxu0
  %1730 = vmatprep.mubr.f32.mxu0 %v235
  %1731 = vmatmul.mubr.f32.gmra.mrb[0].mxu0 %v234
  %v1732 = vpop.f32.mrb[0].mxu0
  %v1733 = vadd.f32 %v936, %v1732
  %v1734 = vpop.f32.mrb[0].mxu0
  %1735 = vmatprep.mubr.f32.mxu0 %v240
  %1736 = vmatmul.mubr.f32.gmra.mrb[0].mxu0 %v239
  %v1737 = vpop.f32.mrb[0].mxu0
  %v1738 = vadd.f32 %v936, %v1737
  %v1739 = vpop.f32.mrb[0].mxu0
  %1740 = vmatprep.mubr.f32.mxu0 %v245
  %1741 = vmatmul.mubr.f32.gmra.mrb[0].mxu0 %v244
  %v1742 = vpop.f32.mrb[0].mxu0
  %v1743 = vadd.f32 %v936, %v1742
  %v1744 = vpop.f32.mrb[0].mxu0
  %1745 = vmatprep.mubr.f32.mxu0 %v250
  %1746 = vmatmul.mubr.f32.gmra.mrb[0].mxu0 %v249
  %v1747 = vpop.f32.mrb[0].mxu0
  %v1748 = vadd.f32 %v936, %v1747
  %v1749 = vpop.f32.mrb[0].mxu0
  %1750 = vmatprep.mubr.f32.mxu0 %v255
  %1751 = vmatmul.mubr.f32.gmra.mrb[0].mxu0 %v254
  %v1752 = vpop.f32.mrb[0].mxu0
  %v1753 = vadd.f32 %v936, %v1752
  %v1754 = vpop.f32.mrb[0].mxu0
  %1755 = vmatprep.mubr.f32.mxu0 %v260
  %1756 = vmatmul.mubr.f32.gmra.mrb[0].mxu0 %v259
  %v1757 = vpop.f32.mrb[0].mxu0
  %v1758 = vadd.f32 %v936, %v1757
  %v1759 = vpop.f32.mrb[0].mxu0
  %1760 = vmatprep.mubr.f32.mxu0 %v265
  %1761 = vmatmul.mubr.f32.gmra.mrb[0].mxu0 %v264
  %v1762 = vpop.f32.mrb[0].mxu0
  %v1763 = vadd.f32 %v936, %v1762
  %v1764 = vpop.f32.mrb[0].mxu0
  %1765 = vmatprep.mubr.f32.mxu0 %v270
  %1766 = vmatmul.mubr.f32.gmra.mrb[0].mxu0 %v269
  %v1767 = vpop.f32.mrb[0].mxu0
  %v1768 = vadd.f32 %v936, %v1767
  %v1769 = vpop.f32.mrb[0].mxu0
  %1770 = vmatprep.mubr.f32.mxu0 %v275
  %1771 = vmatmul.mubr.f32.gmra.mrb[0].mxu0 %v274
  %v1772 = vpop.f32.mrb[0].mxu0
  %v1773 = vadd.f32 %v936, %v1772
  %v1774 = vpop.f32.mrb[0].mxu0
  %1775 = vmatprep.mubr.f32.mxu0 %v280
  %1776 = vmatmul.mubr.f32.gmra.mrb[0].mxu0 %v279
  %v1777 = vpop.f32.mrb[0].mxu0
  %v1778 = vadd.f32 %v936, %v1777
  %v1779 = vpop.f32.mrb[0].mxu0
  %1780 = vmatprep.mubr.f32.mxu0 %v285
  %1781 = vmatmul.mubr.f32.gmra.mrb[0].mxu0 %v284
  %v1782 = vpop.f32.mrb[0].mxu0
  %v1783 = vadd.f32 %v936, %v1782
  %v1784 = vpop.f32.mrb[0].mxu0
  %1785 = vmatprep.mubr.f32.mxu0 %v290
  %1786 = vmatmul.mubr.f32.gmra.mrb[0].mxu0 %v289
  %v1787 = vpop.f32.mrb[0].mxu0
  %v1788 = vadd.f32 %v936, %v1787
  %v1789 = vpop.f32.mrb[0].mxu0
  %1790 = vmatprep.mubr.f32.mxu0 %v295
  %1791 = vmatmul.mubr.f32.gmra.mrb[0].mxu0 %v294
  %v1792 = vpop.f32.mrb[0].mxu0
  %v1793 = vadd.f32 %v936, %v1792
  %v1794 = vpop.f32.mrb[0].mxu0
  %1795 = vmatprep.mubr.f32.mxu0 %v300
  %1796 = vmatmul.mubr.f32.gmra.mrb[0].mxu0 %v299
  %v1797 = vpop.f32.mrb[0].mxu0
  %v1798 = vadd.f32 %v936, %v1797
  %v1799 = vpop.f32.mrb[0].mxu0
  %1800 = vmatprep.mubr.f32.mxu0 %v305
  %1801 = vmatmul.mubr.f32.gmra.mrb[0].mxu0 %v304
  %v1802 = vpop.f32.mrb[0].mxu0
  %v1803 = vadd.f32 %v936, %v1802
  %v1804 = vpop.f32.mrb[0].mxu0
  %1805 = vmatprep.mubr.f32.mxu0 %v310
  %1806 = vmatmul.mubr.f32.gmra.mrb[0].mxu0 %v309
  %v1807 = vpop.f32.mrb[0].mxu0
  %v1808 = vadd.f32 %v936, %v1807
  %v1809 = vpop.f32.mrb[0].mxu0
  %1810 = vmatprep.mubr.f32.mxu0 %v315
  %1811 = vmatmul.mubr.f32.gmra.mrb[0].mxu0 %v314
  %v1812 = vpop.f32.mrb[0].mxu0
  %v1813 = vadd.f32 %v936, %v1812
  %v1814 = vpop.f32.mrb[0].mxu0
  %1815 = vmatprep.mubr.f32.mxu0 %v320
  %1816 = vmatmul.mubr.f32.gmra.mrb[0].mxu0 %v319
  %v1817 = vpop.f32.mrb[0].mxu0
  %v1818 = vadd.f32 %v936, %v1817
  %v1819 = vpop.f32.mrb[0].mxu0
  %1820 = vmatprep.mubr.f32.mxu0 %v325
  %1821 = vmatmul.mubr.f32.gmra.mrb[0].mxu0 %v324
  %v1822 = vpop.f32.mrb[0].mxu0
  %v1823 = vadd.f32 %v936, %v1822
  %v1824 = vpop.f32.mrb[0].mxu0
  %1825 = vmatprep.mubr.f32.mxu0 %v330
  %1826 = vmatmul.mubr.f32.gmra.mrb[0].mxu0 %v329
  %v1827 = vpop.f32.mrb[0].mxu0
  %v1828 = vadd.f32 %v936, %v1827
  %v1829 = vpop.f32.mrb[0].mxu0
  %1830 = vmatprep.mubr.f32.mxu0 %v335
  %1831 = vmatmul.mubr.f32.gmra.mrb[0].mxu0 %v334
  %v1832 = vpop.f32.mrb[0].mxu0
  %v1833 = vadd.f32 %v936, %v1832
  %v1834 = vpop.f32.mrb[0].mxu0
  %1835 = vmatprep.mubr.f32.mxu0 %v340
  %1836 = vmatmul.mubr.f32.gmra.mrb[0].mxu0 %v339
  %v1837 = vpop.f32.mrb[0].mxu0
  %v1838 = vadd.f32 %v936, %v1837
  %v1839 = vpop.f32.mrb[0].mxu0
  %1840 = vmatprep.mubr.f32.mxu0 %v345
  %1841 = vmatmul.mubr.f32.gmra.mrb[0].mxu0 %v344
  %v1842 = vpop.f32.mrb[0].mxu0
  %v1843 = vadd.f32 %v936, %v1842
  %v1844 = vpop.f32.mrb[0].mxu0
  %1845 = vmatprep.mubr.f32.mxu0 %v350
  %1846 = vmatmul.mubr.f32.gmra.mrb[0].mxu0 %v349
  %v1847 = vpop.f32.mrb[0].mxu0
  %v1848 = vadd.f32 %v936, %v1847
  %v1849 = vpop.f32.mrb[0].mxu0
  %1850 = vmatprep.mubr.f32.mxu0 %v355
  %1851 = vmatmul.mubr.f32.gmra.mrb[0].mxu0 %v354
  %v1852 = vpop.f32.mrb[0].mxu0
  %v1853 = vadd.f32 %v936, %v1852
  %v1854 = vpop.f32.mrb[0].mxu0
  %1855 = vmatprep.mubr.f32.mxu0 %v360
  %1856 = vmatmul.mubr.f32.gmra.mrb[0].mxu0 %v359
  %v1857 = vpop.f32.mrb[0].mxu0
  %v1858 = vadd.f32 %v936, %v1857
  %v1859 = vpop.f32.mrb[0].mxu0
  %1860 = vmatprep.mubr.f32.mxu0 %v365
  %1861 = vmatmul.mubr.f32.gmra.mrb[0].mxu0 %v364
  %v1862 = vpop.f32.mrb[0].mxu0
  %v1863 = vadd.f32 %v936, %v1862
  %v1864 = vpop.f32.mrb[0].mxu0
  %1865 = vmatprep.mubr.f32.mxu0 %v370
  %1866 = vmatmul.mubr.f32.gmra.mrb[0].mxu0 %v369
  %v1867 = vpop.f32.mrb[0].mxu0
  %v1868 = vadd.f32 %v936, %v1867
  %v1869 = vpop.f32.mrb[0].mxu0
  %1870 = vmatprep.mubr.f32.mxu0 %v375
  %1871 = vmatmul.mubr.f32.gmra.mrb[0].mxu0 %v374
  %v1872 = vpop.f32.mrb[0].mxu0
  %v1873 = vadd.f32 %v936, %v1872
  %v1874 = vpop.f32.mrb[0].mxu0
  %1875 = vmatprep.mubr.f32.mxu0 %v380
  %1876 = vmatmul.mubr.f32.gmra.mrb[0].mxu0 %v379
  %v1877 = vpop.f32.mrb[0].mxu0
  %v1878 = vadd.f32 %v936, %v1877
  %v1879 = vpop.f32.mrb[0].mxu0
  %1880 = vmatprep.mubr.f32.mxu0 %v385
  %1881 = vmatmul.mubr.f32.gmra.mrb[0].mxu0 %v384
  %v1882 = vpop.f32.mrb[0].mxu0
  %v1883 = vadd.f32 %v936, %v1882
  %v1884 = vpop.f32.mrb[0].mxu0
  %1885 = vmatprep.mubr.f32.mxu0 %v390
  %1886 = vmatmul.mubr.f32.gmra.mrb[0].mxu0 %v389
  %v1887 = vpop.f32.mrb[0].mxu0
  %v1888 = vadd.f32 %v936, %v1887
  %v1889 = vpop.f32.mrb[0].mxu0
  %1890 = vmatprep.mubr.f32.mxu0 %v395
  %1891 = vmatmul.mubr.f32.gmra.mrb[0].mxu0 %v394
  %v1892 = vpop.f32.mrb[0].mxu0
  %v1893 = vadd.f32 %v936, %v1892
  %v1894 = vpop.f32.mrb[0].mxu0
  %1895 = vmatprep.mubr.f32.mxu0 %v400
  %1896 = vmatmul.mubr.f32.gmra.mrb[0].mxu0 %v399
  %v1897 = vpop.f32.mrb[0].mxu0
  %v1898 = vadd.f32 %v936, %v1897
  %v1899 = vpop.f32.mrb[0].mxu0
  %1900 = vmatprep.mubr.f32.mxu0 %v405
  %1901 = vmatmul.mubr.f32.gmra.mrb[0].mxu0 %v404
  %v1902 = vpop.f32.mrb[0].mxu0
  %v1903 = vadd.f32 %v936, %v1902
  %v1904 = vpop.f32.mrb[0].mxu0
  %1905 = vmatprep.mubr.f32.mxu0 %v410
  %1906 = vmatmul.mubr.f32.gmra.mrb[0].mxu0 %v409
  %v1907 = vpop.f32.mrb[0].mxu0
  %v1908 = vadd.f32 %v936, %v1907
  %v1909 = vpop.f32.mrb[0].mxu0
  %1910 = vmatprep.mubr.f32.mxu0 %v415
  %1911 = vmatmul.mubr.f32.gmra.mrb[0].mxu0 %v414
  %v1912 = vpop.f32.mrb[0].mxu0
  %v1913 = vadd.f32 %v936, %v1912
  %v1914 = vpop.f32.mrb[0].mxu0
  %1915 = vmatprep.mubr.f32.mxu0 %v420
  %1916 = vmatmul.mubr.f32.gmra.mrb[0].mxu0 %v419
  %v1917 = vpop.f32.mrb[0].mxu0
  %v1918 = vadd.f32 %v936, %v1917
  %v1919 = vpop.f32.mrb[0].mxu0
  %1920 = vmatprep.mubr.f32.mxu0 %v425
  %1921 = vmatmul.mubr.f32.gmra.mrb[0].mxu0 %v424
  %v1922 = vpop.f32.mrb[0].mxu0
  %v1923 = vadd.f32 %v936, %v1922
  %v1924 = vpop.f32.mrb[0].mxu0
  %1925 = vmatprep.mubr.f32.mxu0 %v430
  %1926 = vmatmul.mubr.f32.gmra.mrb[0].mxu0 %v429
  %v1927 = vpop.f32.mrb[0].mxu0
  %v1928 = vadd.f32 %v936, %v1927
  %v1929 = vpop.f32.mrb[0].mxu0
  %1930 = vmatprep.mubr.f32.mxu0 %v435
  %1931 = vmatmul.mubr.f32.gmra.mrb[0].mxu0 %v434
  %v1932 = vpop.f32.mrb[0].mxu0
  %v1933 = vadd.f32 %v936, %v1932
  %v1934 = vpop.f32.mrb[0].mxu0
  %1935 = vmatprep.mubr.f32.mxu0 %v440
  %1936 = vmatmul.mubr.f32.gmra.mrb[0].mxu0 %v439
  %v1937 = vpop.f32.mrb[0].mxu0
  %v1938 = vadd.f32 %v936, %v1937
  %v1939 = vpop.f32.mrb[0].mxu0
  %1940 = vmatprep.mubr.f32.mxu0 %v445
  %1941 = vmatmul.mubr.f32.gmra.mrb[0].mxu0 %v444
  %v1942 = vpop.f32.mrb[0].mxu0
  %v1943 = vadd.f32 %v936, %v1942
  %v1944 = vpop.f32.mrb[0].mxu0
  %1945 = vmatprep.mubr.f32.mxu0 %v450
  %1946 = vmatmul.mubr.f32.gmra.mrb[0].mxu0 %v449
  %v1947 = vpop.f32.mrb[0].mxu0
  %v1948 = vadd.f32 %v936, %v1947
  %v1949 = vpop.f32.mrb[0].mxu0
  %1950 = vmatprep.mubr.f32.mxu0 %v455
  %1951 = vmatmul.mubr.f32.gmra.mrb[0].mxu0 %v454
  %v1952 = vpop.f32.mrb[0].mxu0
  %v1953 = vadd.f32 %v936, %v1952
  %v1954 = vpop.f32.mrb[0].mxu0
  %1955 = vmatprep.mubr.f32.mxu0 %v460
  %1956 = vmatmul.mubr.f32.gmra.mrb[0].mxu0 %v459
  %v1957 = vpop.f32.mrb[0].mxu0
  %v1958 = vadd.f32 %v936, %v1957
  %v1959 = vpop.f32.mrb[0].mxu0
  %1960 = vmatprep.mubr.f32.mxu0 %v465
  %1961 = vmatmul.mubr.f32.gmra.mrb[0].mxu0 %v464
  %v1962 = vpop.f32.mrb[0].mxu0
  %v1963 = vadd.f32 %v936, %v1962
  %v1964 = vpop.f32.mrb[0].mxu0
  %1965 = vmatprep.mubr.f32.mxu0 %v470
  %1966 = vmatmul.mubr.f32.gmra.mrb[0].mxu0 %v469
  %v1967 = vpop.f32.mrb[0].mxu0
  %v1968 = vadd.f32 %v936, %v1967
  %v1969 = vpop.f32.mrb[0].mxu0
  %1970 = vmatprep.mubr.f32.mxu0 %v475
  %1971 = vmatmul.mubr.f32.gmra.mrb[0].mxu0 %v474
  %v1972 = vpop.f32.mrb[0].mxu0
  %v1973 = vadd.f32 %v936, %v1972
  %v1974 = vpop.f32.mrb[0].mxu0
  %1975 = vmatprep.mubr.f32.mxu0 %v480
  %1976 = vmatmul.mubr.f32.gmra.mrb[0].mxu0 %v479
  %v1977 = vpop.f32.mrb[0].mxu0
  %v1978 = vadd.f32 %v936, %v1977
  %v1979 = vpop.f32.mrb[0].mxu0
  %1980 = vmatprep.mubr.f32.mxu0 %v485
  %1981 = vmatmul.mubr.f32.gmra.mrb[0].mxu0 %v484
  %v1982 = vpop.f32.mrb[0].mxu0
  %v1983 = vadd.f32 %v936, %v1982
  %v1984 = vpop.f32.mrb[0].mxu0
  %1985 = vmatprep.mubr.f32.mxu0 %v490
  %1986 = vmatmul.mubr.f32.gmra.mrb[0].mxu0 %v489
  %v1987 = vpop.f32.mrb[0].mxu0
  %v1988 = vadd.f32 %v936, %v1987
  %v1989 = vpop.f32.mrb[0].mxu0
  %1990 = vmatprep.mubr.f32.mxu0 %v495
  %1991 = vmatmul.mubr.f32.gmra.mrb[0].mxu0 %v494
  %v1992 = vpop.f32.mrb[0].mxu0
  %v1993 = vadd.f32 %v936, %v1992
  %v1994 = vpop.f32.mrb[0].mxu0
  %1995 = vmatprep.mubr.f32.mxu0 %v500
  %1996 = vmatmul.mubr.f32.gmra.mrb[0].mxu0 %v499
  %v1997 = vpop.f32.mrb[0].mxu0
  %v1998 = vadd.f32 %v936, %v1997
  %v1999 = vpop.f32.mrb[0].mxu0
  %2000 = vmatprep.mubr.f32.mxu0 %v505
  %2001 = vmatmul.mubr.f32.gmra.mrb[0].mxu0 %v504
  %v2002 = vpop.f32.mrb[0].mxu0
  %v2003 = vadd.f32 %v936, %v2002
  %v2004 = vpop.f32.mrb[0].mxu0
  %2005 = vmatprep.mubr.f32.mxu0 %v510
  %2006 = vmatmul.mubr.f32.gmra.mrb[0].mxu0 %v509
  %v2007 = vpop.f32.mrb[0].mxu0
  %v2008 = vadd.f32 %v936, %v2007
  %v2009 = vpop.f32.mrb[0].mxu0
  %2010 = vmatprep.mubr.f32.mxu0 %v515
  %2011 = vmatmul.mubr.f32.gmra.mrb[0].mxu0 %v514
  %v2012 = vpop.f32.mrb[0].mxu0
  %v2013 = vadd.f32 %v936, %v2012
  %v2014 = vpop.f32.mrb[0].mxu0
  %2015 = vmatprep.mubr.f32.mxu0 %v520
  %2016 = vmatmul.mubr.f32.gmra.mrb[0].mxu0 %v519
  %v2017 = vpop.f32.mrb[0].mxu0
  %v2018 = vadd.f32 %v936, %v2017
  %v2019 = vpop.f32.mrb[0].mxu0
  %2020 = vmatprep.mubr.f32.mxu0 %v525
  %2021 = vmatmul.mubr.f32.gmra.mrb[0].mxu0 %v524
  %v2022 = vpop.f32.mrb[0].mxu0
  %v2023 = vadd.f32 %v936, %v2022
  %v2024 = vpop.f32.mrb[0].mxu0
  %2025 = vmatprep.mubr.f32.mxu0 %v530
  %2026 = vmatmul.mubr.f32.gmra.mrb[0].mxu0 %v529
  %v2027 = vpop.f32.mrb[0].mxu0
  %v2028 = vadd.f32 %v936, %v2027
  %v2029 = vpop.f32.mrb[0].mxu0
  %2030 = vmatprep.mubr.f32.mxu0 %v535
  %2031 = vmatmul.mubr.f32.gmra.mrb[0].mxu0 %v534
  %v2032 = vpop.f32.mrb[0].mxu0
  %v2033 = vadd.f32 %v936, %v2032
  %v2034 = vpop.f32.mrb[0].mxu0
  %2035 = vmatprep.mubr.f32.mxu0 %v540
  %2036 = vmatmul.mubr.f32.gmra.mrb[0].mxu0 %v539
  %v2037 = vpop.f32.mrb[0].mxu0
  %v2038 = vadd.f32 %v936, %v2037
  %v2039 = vpop.f32.mrb[0].mxu0
  %2040 = vmatprep.mubr.f32.mxu0 %v545
  %2041 = vmatmul.mubr.f32.gmra.mrb[0].mxu0 %v544
  %v2042 = vpop.f32.mrb[0].mxu0
  %v2043 = vadd.f32 %v936, %v2042
  %v2044 = vpop.f32.mrb[0].mxu0
  %2045 = vmatprep.mubr.f32.mxu0 %v550
  %2046 = vmatmul.mubr.f32.gmra.mrb[0].mxu0 %v549
  %v2047 = vpop.f32.mrb[0].mxu0
  %v2048 = vadd.f32 %v936, %v2047
  %v2049 = vpop.f32.mrb[0].mxu0
  %2050 = vmatprep.mubr.f32.mxu0 %v555
  %2051 = vmatmul.mubr.f32.gmra.mrb[0].mxu0 %v554
  %v2052 = vpop.f32.mrb[0].mxu0
  %v2053 = vadd.f32 %v936, %v2052
  %v2054 = vpop.f32.mrb[0].mxu0
  %2055 = vmatprep.mubr.f32.mxu0 %v560
  %2056 = vmatmul.mubr.f32.gmra.mrb[0].mxu0 %v559
  %v2057 = vpop.f32.mrb[0].mxu0
  %v2058 = vadd.f32 %v936, %v2057
  %v2059 = vpop.f32.mrb[0].mxu0
  %2060 = vmatprep.mubr.f32.mxu0 %v565
  %2061 = vmatmul.mubr.f32.gmra.mrb[0].mxu0 %v564
  %v2062 = vpop.f32.mrb[0].mxu0
  %v2063 = vadd.f32 %v936, %v2062
  %v2064 = vpop.f32.mrb[0].mxu0
  %2065 = vmatprep.mubr.f32.mxu0 %v570
  %2066 = vmatmul.mubr.f32.gmra.mrb[0].mxu0 %v569
  %v2067 = vpop.f32.mrb[0].mxu0
  %v2068 = vadd.f32 %v936, %v2067
  %v2069 = vpop.f32.mrb[0].mxu0
  %2070 = vmatprep.mubr.f32.mxu0 %v575
  %2071 = vmatmul.mubr.f32.gmra.mrb[0].mxu0 %v574
  %v2072 = vpop.f32.mrb[0].mxu0
  %v2073 = vadd.f32 %v936, %v2072
  %v2074 = vpop.f32.mrb[0].mxu0
  %2075 = vmatprep.mubr.f32.mxu0 %v580
  %2076 = vmatmul.mubr.f32.gmra.mrb[0].mxu0 %v579
  %v2077 = vpop.f32.mrb[0].mxu0
  %v2078 = vadd.f32 %v936, %v2077
  %v2079 = vpop.f32.mrb[0].mxu0
  %2080 = vmatprep.mubr.f32.mxu0 %v585
  %2081 = vmatmul.mubr.f32.gmra.mrb[0].mxu0 %v584
  %v2082 = vpop.f32.mrb[0].mxu0
  %v2083 = vadd.f32 %v936, %v2082
  %v2084 = vpop.f32.mrb[0].mxu0
  %2085 = vmatprep.mubr.f32.mxu0 %v590
  %2086 = vmatmul.mubr.f32.gmra.mrb[0].mxu0 %v589
  %v2087 = vpop.f32.mrb[0].mxu0
  %v2088 = vadd.f32 %v936, %v2087
  %v2089 = vpop.f32.mrb[0].mxu0
  %2090 = vmatprep.mubr.f32.mxu0 %v595
  %2091 = vmatmul.mubr.f32.gmra.mrb[0].mxu0 %v594
  %v2092 = vpop.f32.mrb[0].mxu0
  %v2093 = vadd.f32 %v936, %v2092
  %v2094 = vpop.f32.mrb[0].mxu0
  %2095 = vmatprep.mubr.f32.mxu0 %v600
  %2096 = vmatmul.mubr.f32.gmra.mrb[0].mxu0 %v599
  %v2097 = vpop.f32.mrb[0].mxu0
  %v2098 = vadd.f32 %v936, %v2097
  %v2099 = vpop.f32.mrb[0].mxu0
  %2100 = vmatprep.mubr.f32.mxu0 %v605
  %2101 = vmatmul.mubr.f32.gmra.mrb[0].mxu0 %v604
  %v2102 = vpop.f32.mrb[0].mxu0
  %v2103 = vadd.f32 %v936, %v2102
  %v2104 = vpop.f32.mrb[0].mxu0
  %2105 = vmatprep.mubr.f32.mxu0 %v610
  %2106 = vmatmul.mubr.f32.gmra.mrb[0].mxu0 %v609
  %v2107 = vpop.f32.mrb[0].mxu0
  %v2108 = vadd.f32 %v936, %v2107
  %v2109 = vpop.f32.mrb[0].mxu0
  %2110 = vmatprep.mubr.f32.mxu0 %v615
  %2111 = vmatmul.mubr.f32.gmra.mrb[0].mxu0 %v614
  %v2112 = vpop.f32.mrb[0].mxu0
  %v2113 = vadd.f32 %v936, %v2112
  %v2114 = vpop.f32.mrb[0].mxu0
  %2115 = vmatprep.mubr.f32.mxu0 %v620
  %2116 = vmatmul.mubr.f32.gmra.mrb[0].mxu0 %v619
  %v2117 = vpop.f32.mrb[0].mxu0
  %v2118 = vadd.f32 %v936, %v2117
  %v2119 = vpop.f32.mrb[0].mxu0
  %2120 = vmatprep.mubr.f32.mxu0 %v625
  %2121 = vmatmul.mubr.f32.gmra.mrb[0].mxu0 %v624
  %v2122 = vpop.f32.mrb[0].mxu0
  %v2123 = vadd.f32 %v936, %v2122
  %v2124 = vpop.f32.mrb[0].mxu0
  %2125 = vmatprep.mubr.f32.mxu0 %v630
  %2126 = vmatmul.mubr.f32.gmra.mrb[0].mxu0 %v629
  %v2127 = vpop.f32.mrb[0].mxu0
  %v2128 = vadd.f32 %v936, %v2127
  %v2129 = vpop.f32.mrb[0].mxu0
  %2130 = vmatprep.mubr.f32.mxu0 %v635
  %2131 = vmatmul.mubr.f32.gmra.mrb[0].mxu0 %v634
  %v2132 = vpop.f32.mrb[0].mxu0
  %v2133 = vadd.f32 %v936, %v2132
  %v2134 = vpop.f32.mrb[0].mxu0
  %2135 = vmatprep.mubr.f32.mxu0 %v640
  %2136 = vmatmul.mubr.f32.gmra.mrb[0].mxu0 %v639
  %v2137 = vpop.f32.mrb[0].mxu0
  %v2138 = vadd.f32 %v936, %v2137
  %v2139 = vpop.f32.mrb[0].mxu0
  %2140 = vmatprep.mubr.f32.mxu0 %v645
  %2141 = vmatmul.mubr.f32.gmra.mrb[0].mxu0 %v644
  %v2142 = vpop.f32.mrb[0].mxu0
  %v2143 = vadd.f32 %v936, %v2142
  %v2144 = vpop.f32.mrb[0].mxu0
  %2145 = vmatprep.mubr.f32.mxu0 %v650
  %2146 = vmatmul.mubr.f32.gmra.mrb[0].mxu0 %v649
  %v2147 = vpop.f32.mrb[0].mxu0
  %v2148 = vadd.f32 %v936, %v2147
  %v2149 = vpop.f32.mrb[0].mxu0
  %2150 = vmatprep.mubr.f32.mxu0 %v655
  %2151 = vmatmul.mubr.f32.gmra.mrb[0].mxu0 %v654
  %v2152 = vpop.f32.mrb[0].mxu0
  %v2153 = vadd.f32 %v936, %v2152
  %v2154 = vpop.f32.mrb[0].mxu0
  %2155 = vmatprep.mubr.f32.mxu0 %v660
  %2156 = vmatmul.mubr.f32.gmra.mrb[0].mxu0 %v659
  %v2157 = vpop.f32.mrb[0].mxu0
  %v2158 = vadd.f32 %v936, %v2157
  %v2159 = vpop.f32.mrb[0].mxu0
  %2160 = vmatprep.mubr.f32.mxu0 %v665
  %2161 = vmatmul.mubr.f32.gmra.mrb[0].mxu0 %v664
  %v2162 = vpop.f32.mrb[0].mxu0
  %v2163 = vadd.f32 %v936, %v2162
  %v2164 = vpop.f32.mrb[0].mxu0
  %2165 = vmatprep.mubr.f32.mxu0 %v670
  %2166 = vmatmul.mubr.f32.gmra.mrb[0].mxu0 %v669
  %v2167 = vpop.f32.mrb[0].mxu0
  %v2168 = vadd.f32 %v936, %v2167
  %v2169 = vpop.f32.mrb[0].mxu0
  %2170 = vmatprep.mubr.f32.mxu0 %v675
  %2171 = vmatmul.mubr.f32.gmra.mrb[0].mxu0 %v674
  %v2172 = vpop.f32.mrb[0].mxu0
  %v2173 = vadd.f32 %v936, %v2172
  %v2174 = vpop.f32.mrb[0].mxu0
  %2175 = vmatprep.mubr.f32.mxu0 %v680
  %2176 = vmatmul.mubr.f32.gmra.mrb[0].mxu0 %v679
  %v2177 = vpop.f32.mrb[0].mxu0
  %v2178 = vadd.f32 %v936, %v2177
  %v2179 = vpop.f32.mrb[0].mxu0
  %2180 = vmatprep.mubr.f32.mxu0 %v685
  %2181 = vmatmul.mubr.f32.gmra.mrb[0].mxu0 %v684
  %v2182 = vpop.f32.mrb[0].mxu0
  %v2183 = vadd.f32 %v936, %v2182
  %v2184 = vpop.f32.mrb[0].mxu0
  %2185 = vmatprep.mubr.f32.mxu0 %v690
  %2186 = vmatmul.mubr.f32.gmra.mrb[0].mxu0 %v689
  %v2187 = vpop.f32.mrb[0].mxu0
  %v2188 = vadd.f32 %v936, %v2187
  %v2189 = vpop.f32.mrb[0].mxu0
  %2190 = vmatprep.mubr.f32.mxu0 %v695
  %2191 = vmatmul.mubr.f32.gmra.mrb[0].mxu0 %v694
  %v2192 = vpop.f32.mrb[0].mxu0
  %v2193 = vadd.f32 %v936, %v2192
  %v2194 = vpop.f32.mrb[0].mxu0
  %2195 = vmatprep.mubr.f32.mxu0 %v700
  %2196 = vmatmul.mubr.f32.gmra.mrb[0].mxu0 %v699
  %v2197 = vpop.f32.mrb[0].mxu0
  %v2198 = vadd.f32 %v936, %v2197
  %v2199 = vpop.f32.mrb[0].mxu0
  %2200 = vmatprep.mubr.f32.mxu0 %v705
  %2201 = vmatmul.mubr.f32.gmra.mrb[0].mxu0 %v704
  %v2202 = vpop.f32.mrb[0].mxu0
  %v2203 = vadd.f32 %v936, %v2202
  %v2204 = vpop.f32.mrb[0].mxu0
  %2205 = vmatprep.mubr.f32.mxu0 %v710
  %2206 = vmatmul.mubr.f32.gmra.mrb[0].mxu0 %v709
  %v2207 = vpop.f32.mrb[0].mxu0
  %v2208 = vadd.f32 %v936, %v2207
  %v2209 = vpop.f32.mrb[0].mxu0
  %2210 = vmatprep.mubr.f32.mxu0 %v715
  %2211 = vmatmul.mubr.f32.gmra.mrb[0].mxu0 %v714
  %v2212 = vpop.f32.mrb[0].mxu0
  %v2213 = vadd.f32 %v936, %v2212
  %v2214 = vpop.f32.mrb[0].mxu0
  %2215 = vmatprep.mubr.f32.mxu0 %v720
  %2216 = vmatmul.mubr.f32.gmra.mrb[0].mxu0 %v719
  %v2217 = vpop.f32.mrb[0].mxu0
  %v2218 = vadd.f32 %v936, %v2217
  %v2219 = vpop.f32.mrb[0].mxu0
  %2220 = vmatprep.mubr.f32.mxu0 %v725
  %2221 = vmatmul.mubr.f32.gmra.mrb[0].mxu0 %v724
  %v2222 = vpop.f32.mrb[0].mxu0
  %v2223 = vadd.f32 %v936, %v2222
  %v2224 = vpop.f32.mrb[0].mxu0
  %2225 = vmatprep.mubr.f32.mxu0 %v730
  %2226 = vmatmul.mubr.f32.gmra.mrb[0].mxu0 %v729
  %v2227 = vpop.f32.mrb[0].mxu0
  %v2228 = vadd.f32 %v936, %v2227
  %v2229 = vpop.f32.mrb[0].mxu0
  %2230 = vmatprep.mubr.f32.mxu0 %v735
  %2231 = vmatmul.mubr.f32.gmra.mrb[0].mxu0 %v734
  %v2232 = vpop.f32.mrb[0].mxu0
  %v2233 = vadd.f32 %v936, %v2232
  %v2234 = vpop.f32.mrb[0].mxu0
  %2235 = vmatprep.mubr.f32.mxu0 %v740
  %2236 = vmatmul.mubr.f32.gmra.mrb[0].mxu0 %v739
  %v2237 = vpop.f32.mrb[0].mxu0
  %v2238 = vadd.f32 %v936, %v2237
  %v2239 = vpop.f32.mrb[0].mxu0
  %2240 = vmatprep.mubr.f32.mxu0 %v745
  %2241 = vmatmul.mubr.f32.gmra.mrb[0].mxu0 %v744
  %v2242 = vpop.f32.mrb[0].mxu0
  %v2243 = vadd.f32 %v936, %v2242
  %v2244 = vpop.f32.mrb[0].mxu0
  %2245 = vmatprep.mubr.f32.mxu0 %v750
  %2246 = vmatmul.mubr.f32.gmra.mrb[0].mxu0 %v749
  %v2247 = vpop.f32.mrb[0].mxu0
  %v2248 = vadd.f32 %v936, %v2247
  %v2249 = vpop.f32.mrb[0].mxu0
  %2250 = vmatprep.mubr.f32.mxu0 %v755
  %2251 = vmatmul.mubr.f32.gmra.mrb[0].mxu0 %v754
  %v2252 = vpop.f32.mrb[0].mxu0
  %v2253 = vadd.f32 %v936, %v2252
  %v2254 = vpop.f32.mrb[0].mxu0
  %2255 = vmatprep.mubr.f32.mxu0 %v760
  %2256 = vmatmul.mubr.f32.gmra.mrb[0].mxu0 %v759
  %v2257 = vpop.f32.mrb[0].mxu0
  %v2258 = vadd.f32 %v936, %v2257
  %v2259 = vpop.f32.mrb[0].mxu0
  %2260 = vmatprep.mubr.f32.mxu0 %v765
  %2261 = vmatmul.mubr.f32.gmra.mrb[0].mxu0 %v764
  %v2262 = vpop.f32.mrb[0].mxu0
  %v2263 = vadd.f32 %v936, %v2262
  %v2264 = vpop.f32.mrb[0].mxu0
  %2265 = vmatprep.mubr.f32.mxu0 %v770
  %2266 = vmatmul.mubr.f32.gmra.mrb[0].mxu0 %v769
  %v2267 = vpop.f32.mrb[0].mxu0
  %v2268 = vadd.f32 %v936, %v2267
  %v2269 = vpop.f32.mrb[0].mxu0
  %2270 = vmatprep.mubr.f32.mxu0 %v775
  %2271 = vmatmul.mubr.f32.gmra.mrb[0].mxu0 %v774
  %v2272 = vpop.f32.mrb[0].mxu0
  %v2273 = vadd.f32 %v936, %v2272
  %v2274 = vpop.f32.mrb[0].mxu0
  %2275 = vmatprep.mubr.f32.mxu0 %v780
  %2276 = vmatmul.mubr.f32.gmra.mrb[0].mxu0 %v779
  %v2277 = vpop.f32.mrb[0].mxu0
  %v2278 = vadd.f32 %v936, %v2277
  %v2279 = vpop.f32.mrb[0].mxu0
  %2280 = vmatprep.mubr.f32.mxu0 %v785
  %2281 = vmatmul.mubr.f32.gmra.mrb[0].mxu0 %v784
  %v2282 = vpop.f32.mrb[0].mxu0
  %v2283 = vadd.f32 %v936, %v2282
  %v2284 = vpop.f32.mrb[0].mxu0
  %2285 = vmatprep.mubr.f32.mxu0 %v790
  %2286 = vmatmul.mubr.f32.gmra.mrb[0].mxu0 %v789
  %v2287 = vpop.f32.mrb[0].mxu0
  %v2288 = vadd.f32 %v936, %v2287
  %v2289 = vpop.f32.mrb[0].mxu0
  %2290 = vmatprep.mubr.f32.mxu0 %v795
  %2291 = vmatmul.mubr.f32.gmra.mrb[0].mxu0 %v794
  %v2292 = vpop.f32.mrb[0].mxu0
  %v2293 = vadd.f32 %v936, %v2292
  %v2294 = vpop.f32.mrb[0].mxu0
  %2295 = vmatprep.mubr.f32.mxu0 %v800
  %2296 = vmatmul.mubr.f32.gmra.mrb[0].mxu0 %v799
  %v2297 = vpop.f32.mrb[0].mxu0
  %v2298 = vadd.f32 %v936, %v2297
  %v2299 = vpop.f32.mrb[0].mxu0
  %2300 = vmatprep.mubr.f32.mxu0 %v805
  %2301 = vmatmul.mubr.f32.gmra.mrb[0].mxu0 %v804
  %v2302 = vpop.f32.mrb[0].mxu0
  %v2303 = vadd.f32 %v936, %v2302
  %v2304 = vpop.f32.mrb[0].mxu0
  %2305 = vmatprep.mubr.f32.mxu0 %v810
  %2306 = vmatmul.mubr.f32.gmra.mrb[0].mxu0 %v809
  %v2307 = vpop.f32.mrb[0].mxu0
  %v2308 = vadd.f32 %v936, %v2307
  %v2309 = vpop.f32.mrb[0].mxu0
  %2310 = vmatprep.mubr.f32.mxu0 %v815
  %2311 = vmatmul.mubr.f32.gmra.mrb[0].mxu0 %v814
  %v2312 = vpop.f32.mrb[0].mxu0
  %v2313 = vadd.f32 %v936, %v2312
  %v2314 = vpop.f32.mrb[0].mxu0
  %2315 = vmatprep.mubr.f32.mxu0 %v820
  %2316 = vmatmul.mubr.f32.gmra.mrb[0].mxu0 %v819
  %v2317 = vpop.f32.mrb[0].mxu0
  %v2318 = vadd.f32 %v936, %v2317
  %v2319 = vpop.f32.mrb[0].mxu0
  %2320 = vmatprep.mubr.f32.mxu0 %v825
  %2321 = vmatmul.mubr.f32.gmra.mrb[0].mxu0 %v824
  %v2322 = vpop.f32.mrb[0].mxu0
  %v2323 = vadd.f32 %v936, %v2322
  %v2324 = vpop.f32.mrb[0].mxu0
  %2325 = vmatprep.mubr.f32.mxu0 %v830
  %2326 = vmatmul.mubr.f32.gmra.mrb[0].mxu0 %v829
  %v2327 = vpop.f32.mrb[0].mxu0
  %v2328 = vadd.f32 %v936, %v2327
  %v2329 = vpop.f32.mrb[0].mxu0
  %2330 = vmatprep.mubr.f32.mxu0 %v835
  %2331 = vmatmul.mubr.f32.gmra.mrb[0].mxu0 %v834
  %v2332 = vpop.f32.mrb[0].mxu0
  %v2333 = vadd.f32 %v936, %v2332
  %v2334 = vpop.f32.mrb[0].mxu0
  %2335 = vmatprep.mubr.f32.mxu0 %v840
  %2336 = vmatmul.mubr.f32.gmra.mrb[0].mxu0 %v839
  %v2337 = vpop.f32.mrb[0].mxu0
  %v2338 = vadd.f32 %v936, %v2337
  %v2339 = vpop.f32.mrb[0].mxu0
  %2340 = vmatprep.mubr.f32.mxu0 %v845
  %2341 = vmatmul.mubr.f32.gmra.mrb[0].mxu0 %v844
  %v2342 = vpop.f32.mrb[0].mxu0
  %v2343 = vadd.f32 %v936, %v2342
  %v2344 = vpop.f32.mrb[0].mxu0
  %2345 = vmatprep.mubr.f32.mxu0 %v850
  %2346 = vmatmul.mubr.f32.gmra.mrb[0].mxu0 %v849
  %v2347 = vpop.f32.mrb[0].mxu0
  %v2348 = vadd.f32 %v936, %v2347
  %v2349 = vpop.f32.mrb[0].mxu0
  %2350 = vmatprep.mubr.f32.mxu0 %v855
  %2351 = vmatmul.mubr.f32.gmra.mrb[0].mxu0 %v854
  %v2352 = vpop.f32.mrb[0].mxu0
  %v2353 = vadd.f32 %v936, %v2352
  %v2354 = vpop.f32.mrb[0].mxu0
  %2355 = vdwg.mxu0
  %2356 = vmatprep.subr.mxu0 0.0
  %2357 = vmatpush1.msra.mxu0 %v891
  %2358 = vmatprep.subr.mxu0 0.0
  %2359 = vmatpush1.msra.mxu0 %v892
  %2360 = vmatprep.subr.mxu0 0.0
  %2361 = vmatpush1.msra.mxu0 %v893
  %2362 = vmatprep.subr.mxu0 0.0
  %2363 = vmatpush1.msra.mxu0 %v894
  %2364 = vmatprep.subr.mxu0 0.0
  %2365 = vmatpush1.msra.mxu0 %v895
  %2366 = vmatprep.subr.mxu0 0.0
  %2367 = vmatpush1.msra.mxu0 %v896
  %2368 = vmatprep.subr.mxu0 0.0
  %2369 = vmatpush1.msra.mxu0 %v897
  %2370 = vmatprep.subr.mxu0 0.0
  %2371 = vmatpush1.msra.mxu0 %v898
  %2372 = vmatprep.subr.mxu0 0.0
  %2373 = vmatpush1.msra.mxu0 %v899
  %2374 = vmatprep.subr.mxu0 0.0
  %2375 = vmatpush1.msra.mxu0 %v900
  %2376 = vmatprep.subr.mxu0 0.0
  %2377 = vmatpush1.msra.mxu0 %v901
  %2378 = vmatprep.subr.mxu0 0.0
  %2379 = vmatpush1.msra.mxu0 %v902
  %2380 = vmatprep.subr.mxu0 0.0
  %2381 = vmatpush1.msra.mxu0 %v903
  %2382 = vmatprep.subr.mxu0 0.0
  %2383 = vmatpush1.msra.mxu0 %v904
  %2384 = vmatprep.subr.mxu0 0.0
  %2385 = vmatpush1.msra.mxu0 %v905
  %2386 = vmatprep.subr.mxu0 0.0
  %2387 = vmatpush1.msra.mxu0 %v906
  %2388 = vmatprep.subr.mxu0 0.0
  %2389 = vmatpush1.msra.mxu0 %v907
  %2390 = vmatprep.subr.mxu0 0.0
  %2391 = vmatpush1.msra.mxu0 %v908
  %2392 = vmatprep.subr.mxu0 0.0
  %2393 = vmatpush1.msra.mxu0 %v909
  %2394 = vmatprep.subr.mxu0 0.0
  %2395 = vmatpush1.msra.mxu0 %v910
  %2396 = vmatprep.subr.mxu0 0.0
  %2397 = vmatpush1.msra.mxu0 %v911
  %2398 = vmatprep.subr.mxu0 0.0
  %2399 = vmatpush1.msra.mxu0 %v912
  %2400 = vmatprep.subr.mxu0 0.0
  %2401 = vmatpush1.msra.mxu0 %v913
  %2402 = vmatprep.subr.mxu0 0.0
  %2403 = vmatpush1.msra.mxu0 %v914
  %2404 = vmatprep.subr.mxu0 0.0
  %2405 = vmatpush1.msra.mxu0 %v915
  %2406 = vmatprep.subr.mxu0 0.0
  %2407 = vmatpush1.msra.mxu0 %v916
  %2408 = vmatprep.subr.mxu0 0.0
  %2409 = vmatpush1.msra.mxu0 %v917
  %2410 = vmatprep.subr.mxu0 0.0
  %2411 = vmatpush1.msra.mxu0 %v918
  %2412 = vmatprep.subr.mxu0 0.0
  %2413 = vmatpush1.msra.mxu0 %v919
  %2414 = vmatprep.subr.mxu0 0.0
  %2415 = vmatpush1.msra.mxu0 %v920
  %2416 = vmatprep.subr.mxu0 0.0
  %2417 = vmatpush1.msra.mxu0 %v921
  %2418 = vmatprep.subr.mxu0 0.0
  %2419 = vmatpush1.msra.mxu0 %v922
  %2420 = vmatprep.mubr.f32.mxu0 %v17
  %2421 = vmatmul.mubr.f32.gmra.mrb[0].mxu0 %v16
  %v2422 = vpop.f32.mrb[0].mxu0
  %v2423 = vadd.f32 %v1513, %v2422
  %v2424 = vpop.f32.mrb[0].mxu0
  %2425 = vmatprep.mubr.f32.mxu0 %v22
  %2426 = vmatmul.mubr.f32.gmra.mrb[0].mxu0 %v21
  %v2427 = vpop.f32.mrb[0].mxu0
  %v2428 = vadd.f32 %v1518, %v2427
  %v2429 = vpop.f32.mrb[0].mxu0
  %2430 = vmatprep.mubr.f32.mxu0 %v27
  %2431 = vmatmul.mubr.f32.gmra.mrb[0].mxu0 %v26
  %v2432 = vpop.f32.mrb[0].mxu0
  %v2433 = vadd.f32 %v1523, %v2432
  %v2434 = vpop.f32.mrb[0].mxu0
  %2435 = vmatprep.mubr.f32.mxu0 %v32
  %2436 = vmatmul.mubr.f32.gmra.mrb[0].mxu0 %v31
  %v2437 = vpop.f32.mrb[0].mxu0
  %v2438 = vadd.f32 %v1528, %v2437
  %v2439 = vpop.f32.mrb[0].mxu0
  %2440 = vmatprep.mubr.f32.mxu0 %v37
  %2441 = vmatmul.mubr.f32.gmra.mrb[0].mxu0 %v36
  %v2442 = vpop.f32.mrb[0].mxu0
  %v2443 = vadd.f32 %v1533, %v2442
  %v2444 = vpop.f32.mrb[0].mxu0
  %2445 = vmatprep.mubr.f32.mxu0 %v42
  %2446 = vmatmul.mubr.f32.gmra.mrb[0].mxu0 %v41
  %v2447 = vpop.f32.mrb[0].mxu0
  %v2448 = vadd.f32 %v1538, %v2447
  %v2449 = vpop.f32.mrb[0].mxu0
  %2450 = vmatprep.mubr.f32.mxu0 %v47
  %2451 = vmatmul.mubr.f32.gmra.mrb[0].mxu0 %v46
  %v2452 = vpop.f32.mrb[0].mxu0
  %v2453 = vadd.f32 %v1543, %v2452
  %v2454 = vpop.f32.mrb[0].mxu0
  %2455 = vmatprep.mubr.f32.mxu0 %v52
  %2456 = vmatmul.mubr.f32.gmra.mrb[0].mxu0 %v51
  %v2457 = vpop.f32.mrb[0].mxu0
  %v2458 = vadd.f32 %v1548, %v2457
  %v2459 = vpop.f32.mrb[0].mxu0
  %2460 = vmatprep.mubr.f32.mxu0 %v57
  %2461 = vmatmul.mubr.f32.gmra.mrb[0].mxu0 %v56
  %v2462 = vpop.f32.mrb[0].mxu0
  %v2463 = vadd.f32 %v1553, %v2462
  %v2464 = vpop.f32.mrb[0].mxu0
  %2465 = vmatprep.mubr.f32.mxu0 %v62
  %2466 = vmatmul.mubr.f32.gmra.mrb[0].mxu0 %v61
  %v2467 = vpop.f32.mrb[0].mxu0
  %v2468 = vadd.f32 %v1558, %v2467
  %v2469 = vpop.f32.mrb[0].mxu0
  %2470 = vmatprep.mubr.f32.mxu0 %v67
  %2471 = vmatmul.mubr.f32.gmra.mrb[0].mxu0 %v66
  %v2472 = vpop.f32.mrb[0].mxu0
  %v2473 = vadd.f32 %v1563, %v2472
  %v2474 = vpop.f32.mrb[0].mxu0
  %2475 = vmatprep.mubr.f32.mxu0 %v72
  %2476 = vmatmul.mubr.f32.gmra.mrb[0].mxu0 %v71
  %v2477 = vpop.f32.mrb[0].mxu0
  %v2478 = vadd.f32 %v1568, %v2477
  %v2479 = vpop.f32.mrb[0].mxu0
  %2480 = vmatprep.mubr.f32.mxu0 %v77
  %2481 = vmatmul.mubr.f32.gmra.mrb[0].mxu0 %v76
  %v2482 = vpop.f32.mrb[0].mxu0
  %v2483 = vadd.f32 %v1573, %v2482
  %v2484 = vpop.f32.mrb[0].mxu0
  %2485 = vmatprep.mubr.f32.mxu0 %v82
  %2486 = vmatmul.mubr.f32.gmra.mrb[0].mxu0 %v81
  %v2487 = vpop.f32.mrb[0].mxu0
  %v2488 = vadd.f32 %v1578, %v2487
  %v2489 = vpop.f32.mrb[0].mxu0
  %2490 = vmatprep.mubr.f32.mxu0 %v87
  %2491 = vmatmul.mubr.f32.gmra.mrb[0].mxu0 %v86
  %v2492 = vpop.f32.mrb[0].mxu0
  %v2493 = vadd.f32 %v1583, %v2492
  %v2494 = vpop.f32.mrb[0].mxu0
  %2495 = vmatprep.mubr.f32.mxu0 %v92
  %2496 = vmatmul.mubr.f32.gmra.mrb[0].mxu0 %v91
  %v2497 = vpop.f32.mrb[0].mxu0
  %v2498 = vadd.f32 %v1588, %v2497
  %v2499 = vpop.f32.mrb[0].mxu0
  %2500 = vmatprep.mubr.f32.mxu0 %v97
  %2501 = vmatmul.mubr.f32.gmra.mrb[0].mxu0 %v96
  %v2502 = vpop.f32.mrb[0].mxu0
  %v2503 = vadd.f32 %v1593, %v2502
  %v2504 = vpop.f32.mrb[0].mxu0
  %2505 = vmatprep.mubr.f32.mxu0 %v102
  %2506 = vmatmul.mubr.f32.gmra.mrb[0].mxu0 %v101
  %v2507 = vpop.f32.mrb[0].mxu0
  %v2508 = vadd.f32 %v1598, %v2507
  %v2509 = vpop.f32.mrb[0].mxu0
  %2510 = vmatprep.mubr.f32.mxu0 %v107
  %2511 = vmatmul.mubr.f32.gmra.mrb[0].mxu0 %v106
  %v2512 = vpop.f32.mrb[0].mxu0
  %v2513 = vadd.f32 %v1603, %v2512
  %v2514 = vpop.f32.mrb[0].mxu0
  %2515 = vmatprep.mubr.f32.mxu0 %v112
  %2516 = vmatmul.mubr.f32.gmra.mrb[0].mxu0 %v111
  %v2517 = vpop.f32.mrb[0].mxu0
  %v2518 = vadd.f32 %v1608, %v2517
  %v2519 = vpop.f32.mrb[0].mxu0
  %2520 = vmatprep.mubr.f32.mxu0 %v117
  %2521 = vmatmul.mubr.f32.gmra.mrb[0].mxu0 %v116
  %v2522 = vpop.f32.mrb[0].mxu0
  %v2523 = vadd.f32 %v1613, %v2522
  %v2524 = vpop.f32.mrb[0].mxu0
  %2525 = vmatprep.mubr.f32.mxu0 %v122
  %2526 = vmatmul.mubr.f32.gmra.mrb[0].mxu0 %v121
  %v2527 = vpop.f32.mrb[0].mxu0
  %v2528 = vadd.f32 %v1618, %v2527
  %v2529 = vpop.f32.mrb[0].mxu0
  %2530 = vmatprep.mubr.f32.mxu0 %v127
  %2531 = vmatmul.mubr.f32.gmra.mrb[0].mxu0 %v126
  %v2532 = vpop.f32.mrb[0].mxu0
  %v2533 = vadd.f32 %v1623, %v2532
  %v2534 = vpop.f32.mrb[0].mxu0
  %2535 = vmatprep.mubr.f32.mxu0 %v132
  %2536 = vmatmul.mubr.f32.gmra.mrb[0].mxu0 %v131
  %v2537 = vpop.f32.mrb[0].mxu0
  %v2538 = vadd.f32 %v1628, %v2537
  %v2539 = vpop.f32.mrb[0].mxu0
  %2540 = vmatprep.mubr.f32.mxu0 %v137
  %2541 = vmatmul.mubr.f32.gmra.mrb[0].mxu0 %v136
  %v2542 = vpop.f32.mrb[0].mxu0
  %v2543 = vadd.f32 %v1633, %v2542
  %v2544 = vpop.f32.mrb[0].mxu0
  %2545 = vmatprep.mubr.f32.mxu0 %v142
  %2546 = vmatmul.mubr.f32.gmra.mrb[0].mxu0 %v141
  %v2547 = vpop.f32.mrb[0].mxu0
  %v2548 = vadd.f32 %v1638, %v2547
  %v2549 = vpop.f32.mrb[0].mxu0
  %2550 = vmatprep.mubr.f32.mxu0 %v147
  %2551 = vmatmul.mubr.f32.gmra.mrb[0].mxu0 %v146
  %v2552 = vpop.f32.mrb[0].mxu0
  %v2553 = vadd.f32 %v1643, %v2552
  %v2554 = vpop.f32.mrb[0].mxu0
  %2555 = vmatprep.mubr.f32.mxu0 %v152
  %2556 = vmatmul.mubr.f32.gmra.mrb[0].mxu0 %v151
  %v2557 = vpop.f32.mrb[0].mxu0
  %v2558 = vadd.f32 %v1648, %v2557
  %v2559 = vpop.f32.mrb[0].mxu0
  %2560 = vmatprep.mubr.f32.mxu0 %v157
  %2561 = vmatmul.mubr.f32.gmra.mrb[0].mxu0 %v156
  %v2562 = vpop.f32.mrb[0].mxu0
  %v2563 = vadd.f32 %v1653, %v2562
  %v2564 = vpop.f32.mrb[0].mxu0
  %2565 = vmatprep.mubr.f32.mxu0 %v162
  %2566 = vmatmul.mubr.f32.gmra.mrb[0].mxu0 %v161
  %v2567 = vpop.f32.mrb[0].mxu0
  %v2568 = vadd.f32 %v1658, %v2567
  %v2569 = vpop.f32.mrb[0].mxu0
  %2570 = vmatprep.mubr.f32.mxu0 %v167
  %2571 = vmatmul.mubr.f32.gmra.mrb[0].mxu0 %v166
  %v2572 = vpop.f32.mrb[0].mxu0
  %v2573 = vadd.f32 %v1663, %v2572
  %v2574 = vpop.f32.mrb[0].mxu0
  %2575 = vmatprep.mubr.f32.mxu0 %v172
  %2576 = vmatmul.mubr.f32.gmra.mrb[0].mxu0 %v171
  %v2577 = vpop.f32.mrb[0].mxu0
  %v2578 = vadd.f32 %v1668, %v2577
  %v2579 = vpop.f32.mrb[0].mxu0
  %2580 = vmatprep.mubr.f32.mxu0 %v177
  %2581 = vmatmul.mubr.f32.gmra.mrb[0].mxu0 %v176
  %v2582 = vpop.f32.mrb[0].mxu0
  %v2583 = vadd.f32 %v1673, %v2582
  %v2584 = vpop.f32.mrb[0].mxu0
  %2585 = vmatprep.mubr.f32.mxu0 %v182
  %2586 = vmatmul.mubr.f32.gmra.mrb[0].mxu0 %v181
  %v2587 = vpop.f32.mrb[0].mxu0
  %v2588 = vadd.f32 %v1678, %v2587
  %v2589 = vpop.f32.mrb[0].mxu0
  %2590 = vmatprep.mubr.f32.mxu0 %v187
  %2591 = vmatmul.mubr.f32.gmra.mrb[0].mxu0 %v186
  %v2592 = vpop.f32.mrb[0].mxu0
  %v2593 = vadd.f32 %v1683, %v2592
  %v2594 = vpop.f32.mrb[0].mxu0
  %2595 = vmatprep.mubr.f32.mxu0 %v192
  %2596 = vmatmul.mubr.f32.gmra.mrb[0].mxu0 %v191
  %v2597 = vpop.f32.mrb[0].mxu0
  %v2598 = vadd.f32 %v1688, %v2597
  %v2599 = vpop.f32.mrb[0].mxu0
  %2600 = vmatprep.mubr.f32.mxu0 %v197
  %2601 = vmatmul.mubr.f32.gmra.mrb[0].mxu0 %v196
  %v2602 = vpop.f32.mrb[0].mxu0
  %v2603 = vadd.f32 %v1693, %v2602
  %v2604 = vpop.f32.mrb[0].mxu0
  %2605 = vmatprep.mubr.f32.mxu0 %v202
  %2606 = vmatmul.mubr.f32.gmra.mrb[0].mxu0 %v201
  %v2607 = vpop.f32.mrb[0].mxu0
  %v2608 = vadd.f32 %v1698, %v2607
  %v2609 = vpop.f32.mrb[0].mxu0
  %2610 = vmatprep.mubr.f32.mxu0 %v207
  %2611 = vmatmul.mubr.f32.gmra.mrb[0].mxu0 %v206
  %v2612 = vpop.f32.mrb[0].mxu0
  %v2613 = vadd.f32 %v1703, %v2612
  %v2614 = vpop.f32.mrb[0].mxu0
  %2615 = vmatprep.mubr.f32.mxu0 %v212
  %2616 = vmatmul.mubr.f32.gmra.mrb[0].mxu0 %v211
  %v2617 = vpop.f32.mrb[0].mxu0
  %v2618 = vadd.f32 %v1708, %v2617
  %v2619 = vpop.f32.mrb[0].mxu0
  %2620 = vmatprep.mubr.f32.mxu0 %v217
  %2621 = vmatmul.mubr.f32.gmra.mrb[0].mxu0 %v216
  %v2622 = vpop.f32.mrb[0].mxu0
  %v2623 = vadd.f32 %v1713, %v2622
  %v2624 = vpop.f32.mrb[0].mxu0
  %2625 = vmatprep.mubr.f32.mxu0 %v222
  %2626 = vmatmul.mubr.f32.gmra.mrb[0].mxu0 %v221
  %v2627 = vpop.f32.mrb[0].mxu0
  %v2628 = vadd.f32 %v1718, %v2627
  %v2629 = vpop.f32.mrb[0].mxu0
  %2630 = vmatprep.mubr.f32.mxu0 %v227
  %2631 = vmatmul.mubr.f32.gmra.mrb[0].mxu0 %v226
  %v2632 = vpop.f32.mrb[0].mxu0
  %v2633 = vadd.f32 %v1723, %v2632
  %v2634 = vpop.f32.mrb[0].mxu0
  %2635 = vmatprep.mubr.f32.mxu0 %v232
  %2636 = vmatmul.mubr.f32.gmra.mrb[0].mxu0 %v231
  %v2637 = vpop.f32.mrb[0].mxu0
  %v2638 = vadd.f32 %v1728, %v2637
  %v2639 = vpop.f32.mrb[0].mxu0
  %2640 = vmatprep.mubr.f32.mxu0 %v237
  %2641 = vmatmul.mubr.f32.gmra.mrb[0].mxu0 %v236
  %v2642 = vpop.f32.mrb[0].mxu0
  %v2643 = vadd.f32 %v1733, %v2642
  %v2644 = vpop.f32.mrb[0].mxu0
  %2645 = vmatprep.mubr.f32.mxu0 %v242
  %2646 = vmatmul.mubr.f32.gmra.mrb[0].mxu0 %v241
  %v2647 = vpop.f32.mrb[0].mxu0
  %v2648 = vadd.f32 %v1738, %v2647
  %v2649 = vpop.f32.mrb[0].mxu0
  %2650 = vmatprep.mubr.f32.mxu0 %v247
  %2651 = vmatmul.mubr.f32.gmra.mrb[0].mxu0 %v246
  %v2652 = vpop.f32.mrb[0].mxu0
  %v2653 = vadd.f32 %v1743, %v2652
  %v2654 = vpop.f32.mrb[0].mxu0
  %2655 = vmatprep.mubr.f32.mxu0 %v252
  %2656 = vmatmul.mubr.f32.gmra.mrb[0].mxu0 %v251
  %v2657 = vpop.f32.mrb[0].mxu0
  %v2658 = vadd.f32 %v1748, %v2657
  %v2659 = vpop.f32.mrb[0].mxu0
  %2660 = vmatprep.mubr.f32.mxu0 %v257
  %2661 = vmatmul.mubr.f32.gmra.mrb[0].mxu0 %v256
  %v2662 = vpop.f32.mrb[0].mxu0
  %v2663 = vadd.f32 %v1753, %v2662
  %v2664 = vpop.f32.mrb[0].mxu0
  %2665 = vmatprep.mubr.f32.mxu0 %v262
  %2666 = vmatmul.mubr.f32.gmra.mrb[0].mxu0 %v261
  %v2667 = vpop.f32.mrb[0].mxu0
  %v2668 = vadd.f32 %v1758, %v2667
  %v2669 = vpop.f32.mrb[0].mxu0
  %2670 = vmatprep.mubr.f32.mxu0 %v267
  %2671 = vmatmul.mubr.f32.gmra.mrb[0].mxu0 %v266
  %v2672 = vpop.f32.mrb[0].mxu0
  %v2673 = vadd.f32 %v1763, %v2672
  %v2674 = vpop.f32.mrb[0].mxu0
  %2675 = vmatprep.mubr.f32.mxu0 %v272
  %2676 = vmatmul.mubr.f32.gmra.mrb[0].mxu0 %v271
  %v2677 = vpop.f32.mrb[0].mxu0
  %v2678 = vadd.f32 %v1768, %v2677
  %v2679 = vpop.f32.mrb[0].mxu0
  %2680 = vmatprep.mubr.f32.mxu0 %v277
  %2681 = vmatmul.mubr.f32.gmra.mrb[0].mxu0 %v276
  %v2682 = vpop.f32.mrb[0].mxu0
  %v2683 = vadd.f32 %v1773, %v2682
  %v2684 = vpop.f32.mrb[0].mxu0
  %2685 = vmatprep.mubr.f32.mxu0 %v282
  %2686 = vmatmul.mubr.f32.gmra.mrb[0].mxu0 %v281
  %v2687 = vpop.f32.mrb[0].mxu0
  %v2688 = vadd.f32 %v1778, %v2687
  %v2689 = vpop.f32.mrb[0].mxu0
  %2690 = vmatprep.mubr.f32.mxu0 %v287
  %2691 = vmatmul.mubr.f32.gmra.mrb[0].mxu0 %v286
  %v2692 = vpop.f32.mrb[0].mxu0
  %v2693 = vadd.f32 %v1783, %v2692
  %v2694 = vpop.f32.mrb[0].mxu0
  %2695 = vmatprep.mubr.f32.mxu0 %v292
  %2696 = vmatmul.mubr.f32.gmra.mrb[0].mxu0 %v291
  %v2697 = vpop.f32.mrb[0].mxu0
  %v2698 = vadd.f32 %v1788, %v2697
  %v2699 = vpop.f32.mrb[0].mxu0
  %2700 = vmatprep.mubr.f32.mxu0 %v297
  %2701 = vmatmul.mubr.f32.gmra.mrb[0].mxu0 %v296
  %v2702 = vpop.f32.mrb[0].mxu0
  %v2703 = vadd.f32 %v1793, %v2702
  %v2704 = vpop.f32.mrb[0].mxu0
  %2705 = vmatprep.mubr.f32.mxu0 %v302
  %2706 = vmatmul.mubr.f32.gmra.mrb[0].mxu0 %v301
  %v2707 = vpop.f32.mrb[0].mxu0
  %v2708 = vadd.f32 %v1798, %v2707
  %v2709 = vpop.f32.mrb[0].mxu0
  %2710 = vmatprep.mubr.f32.mxu0 %v307
  %2711 = vmatmul.mubr.f32.gmra.mrb[0].mxu0 %v306
  %v2712 = vpop.f32.mrb[0].mxu0
  %v2713 = vadd.f32 %v1803, %v2712
  %v2714 = vpop.f32.mrb[0].mxu0
  %2715 = vmatprep.mubr.f32.mxu0 %v312
  %2716 = vmatmul.mubr.f32.gmra.mrb[0].mxu0 %v311
  %v2717 = vpop.f32.mrb[0].mxu0
  %v2718 = vadd.f32 %v1808, %v2717
  %v2719 = vpop.f32.mrb[0].mxu0
  %2720 = vmatprep.mubr.f32.mxu0 %v317
  %2721 = vmatmul.mubr.f32.gmra.mrb[0].mxu0 %v316
  %v2722 = vpop.f32.mrb[0].mxu0
  %v2723 = vadd.f32 %v1813, %v2722
  %v2724 = vpop.f32.mrb[0].mxu0
  %2725 = vmatprep.mubr.f32.mxu0 %v322
  %2726 = vmatmul.mubr.f32.gmra.mrb[0].mxu0 %v321
  %v2727 = vpop.f32.mrb[0].mxu0
  %v2728 = vadd.f32 %v1818, %v2727
  %v2729 = vpop.f32.mrb[0].mxu0
  %2730 = vmatprep.mubr.f32.mxu0 %v327
  %2731 = vmatmul.mubr.f32.gmra.mrb[0].mxu0 %v326
  %v2732 = vpop.f32.mrb[0].mxu0
  %v2733 = vadd.f32 %v1823, %v2732
  %v2734 = vpop.f32.mrb[0].mxu0
  %2735 = vmatprep.mubr.f32.mxu0 %v332
  %2736 = vmatmul.mubr.f32.gmra.mrb[0].mxu0 %v331
  %v2737 = vpop.f32.mrb[0].mxu0
  %v2738 = vadd.f32 %v1828, %v2737
  %v2739 = vpop.f32.mrb[0].mxu0
  %2740 = vmatprep.mubr.f32.mxu0 %v337
  %2741 = vmatmul.mubr.f32.gmra.mrb[0].mxu0 %v336
  %v2742 = vpop.f32.mrb[0].mxu0
  %v2743 = vadd.f32 %v1833, %v2742
  %v2744 = vpop.f32.mrb[0].mxu0
  %2745 = vmatprep.mubr.f32.mxu0 %v342
  %2746 = vmatmul.mubr.f32.gmra.mrb[0].mxu0 %v341
  %v2747 = vpop.f32.mrb[0].mxu0
  %v2748 = vadd.f32 %v1838, %v2747
  %v2749 = vpop.f32.mrb[0].mxu0
  %2750 = vmatprep.mubr.f32.mxu0 %v347
  %2751 = vmatmul.mubr.f32.gmra.mrb[0].mxu0 %v346
  %v2752 = vpop.f32.mrb[0].mxu0
  %v2753 = vadd.f32 %v1843, %v2752
  %v2754 = vpop.f32.mrb[0].mxu0
  %2755 = vmatprep.mubr.f32.mxu0 %v352
  %2756 = vmatmul.mubr.f32.gmra.mrb[0].mxu0 %v351
  %v2757 = vpop.f32.mrb[0].mxu0
  %v2758 = vadd.f32 %v1848, %v2757
  %v2759 = vpop.f32.mrb[0].mxu0
  %2760 = vmatprep.mubr.f32.mxu0 %v357
  %2761 = vmatmul.mubr.f32.gmra.mrb[0].mxu0 %v356
  %v2762 = vpop.f32.mrb[0].mxu0
  %v2763 = vadd.f32 %v1853, %v2762
  %v2764 = vpop.f32.mrb[0].mxu0
  %2765 = vmatprep.mubr.f32.mxu0 %v362
  %2766 = vmatmul.mubr.f32.gmra.mrb[0].mxu0 %v361
  %v2767 = vpop.f32.mrb[0].mxu0
  %v2768 = vadd.f32 %v1858, %v2767
  %v2769 = vpop.f32.mrb[0].mxu0
  %2770 = vmatprep.mubr.f32.mxu0 %v367
  %2771 = vmatmul.mubr.f32.gmra.mrb[0].mxu0 %v366
  %v2772 = vpop.f32.mrb[0].mxu0
  %v2773 = vadd.f32 %v1863, %v2772
  %v2774 = vpop.f32.mrb[0].mxu0
  %2775 = vmatprep.mubr.f32.mxu0 %v372
  %2776 = vmatmul.mubr.f32.gmra.mrb[0].mxu0 %v371
  %v2777 = vpop.f32.mrb[0].mxu0
  %v2778 = vadd.f32 %v1868, %v2777
  %v2779 = vpop.f32.mrb[0].mxu0
  %2780 = vmatprep.mubr.f32.mxu0 %v377
  %2781 = vmatmul.mubr.f32.gmra.mrb[0].mxu0 %v376
  %v2782 = vpop.f32.mrb[0].mxu0
  %v2783 = vadd.f32 %v1873, %v2782
  %v2784 = vpop.f32.mrb[0].mxu0
  %2785 = vmatprep.mubr.f32.mxu0 %v382
  %2786 = vmatmul.mubr.f32.gmra.mrb[0].mxu0 %v381
  %v2787 = vpop.f32.mrb[0].mxu0
  %v2788 = vadd.f32 %v1878, %v2787
  %v2789 = vpop.f32.mrb[0].mxu0
  %2790 = vmatprep.mubr.f32.mxu0 %v387
  %2791 = vmatmul.mubr.f32.gmra.mrb[0].mxu0 %v386
  %v2792 = vpop.f32.mrb[0].mxu0
  %v2793 = vadd.f32 %v1883, %v2792
  %v2794 = vpop.f32.mrb[0].mxu0
  %2795 = vmatprep.mubr.f32.mxu0 %v392
  %2796 = vmatmul.mubr.f32.gmra.mrb[0].mxu0 %v391
  %v2797 = vpop.f32.mrb[0].mxu0
  %v2798 = vadd.f32 %v1888, %v2797
  %v2799 = vpop.f32.mrb[0].mxu0
  %2800 = vmatprep.mubr.f32.mxu0 %v397
  %2801 = vmatmul.mubr.f32.gmra.mrb[0].mxu0 %v396
  %v2802 = vpop.f32.mrb[0].mxu0
  %v2803 = vadd.f32 %v1893, %v2802
  %v2804 = vpop.f32.mrb[0].mxu0
  %2805 = vmatprep.mubr.f32.mxu0 %v402
  %2806 = vmatmul.mubr.f32.gmra.mrb[0].mxu0 %v401
  %v2807 = vpop.f32.mrb[0].mxu0
  %v2808 = vadd.f32 %v1898, %v2807
  %v2809 = vpop.f32.mrb[0].mxu0
  %2810 = vmatprep.mubr.f32.mxu0 %v407
  %2811 = vmatmul.mubr.f32.gmra.mrb[0].mxu0 %v406
  %v2812 = vpop.f32.mrb[0].mxu0
  %v2813 = vadd.f32 %v1903, %v2812
  %v2814 = vpop.f32.mrb[0].mxu0
  %2815 = vmatprep.mubr.f32.mxu0 %v412
  %2816 = vmatmul.mubr.f32.gmra.mrb[0].mxu0 %v411
  %v2817 = vpop.f32.mrb[0].mxu0
  %v2818 = vadd.f32 %v1908, %v2817
  %v2819 = vpop.f32.mrb[0].mxu0
  %2820 = vmatprep.mubr.f32.mxu0 %v417
  %2821 = vmatmul.mubr.f32.gmra.mrb[0].mxu0 %v416
  %v2822 = vpop.f32.mrb[0].mxu0
  %v2823 = vadd.f32 %v1913, %v2822
  %v2824 = vpop.f32.mrb[0].mxu0
  %2825 = vmatprep.mubr.f32.mxu0 %v422
  %2826 = vmatmul.mubr.f32.gmra.mrb[0].mxu0 %v421
  %v2827 = vpop.f32.mrb[0].mxu0
  %v2828 = vadd.f32 %v1918, %v2827
  %v2829 = vpop.f32.mrb[0].mxu0
  %2830 = vmatprep.mubr.f32.mxu0 %v427
  %2831 = vmatmul.mubr.f32.gmra.mrb[0].mxu0 %v426
  %v2832 = vpop.f32.mrb[0].mxu0
  %v2833 = vadd.f32 %v1923, %v2832
  %v2834 = vpop.f32.mrb[0].mxu0
  %2835 = vmatprep.mubr.f32.mxu0 %v432
  %2836 = vmatmul.mubr.f32.gmra.mrb[0].mxu0 %v431
  %v2837 = vpop.f32.mrb[0].mxu0
  %v2838 = vadd.f32 %v1928, %v2837
  %v2839 = vpop.f32.mrb[0].mxu0
  %2840 = vmatprep.mubr.f32.mxu0 %v437
  %2841 = vmatmul.mubr.f32.gmra.mrb[0].mxu0 %v436
  %v2842 = vpop.f32.mrb[0].mxu0
  %v2843 = vadd.f32 %v1933, %v2842
  %v2844 = vpop.f32.mrb[0].mxu0
  %2845 = vmatprep.mubr.f32.mxu0 %v442
  %2846 = vmatmul.mubr.f32.gmra.mrb[0].mxu0 %v441
  %v2847 = vpop.f32.mrb[0].mxu0
  %v2848 = vadd.f32 %v1938, %v2847
  %v2849 = vpop.f32.mrb[0].mxu0
  %2850 = vmatprep.mubr.f32.mxu0 %v447
  %2851 = vmatmul.mubr.f32.gmra.mrb[0].mxu0 %v446
  %v2852 = vpop.f32.mrb[0].mxu0
  %v2853 = vadd.f32 %v1943, %v2852
  %v2854 = vpop.f32.mrb[0].mxu0
  %2855 = vmatprep.mubr.f32.mxu0 %v452
  %2856 = vmatmul.mubr.f32.gmra.mrb[0].mxu0 %v451
  %v2857 = vpop.f32.mrb[0].mxu0
  %v2858 = vadd.f32 %v1948, %v2857
  %v2859 = vpop.f32.mrb[0].mxu0
  %2860 = vmatprep.mubr.f32.mxu0 %v457
  %2861 = vmatmul.mubr.f32.gmra.mrb[0].mxu0 %v456
  %v2862 = vpop.f32.mrb[0].mxu0
  %v2863 = vadd.f32 %v1953, %v2862
  %v2864 = vpop.f32.mrb[0].mxu0
  %2865 = vmatprep.mubr.f32.mxu0 %v462
  %2866 = vmatmul.mubr.f32.gmra.mrb[0].mxu0 %v461
  %v2867 = vpop.f32.mrb[0].mxu0
  %v2868 = vadd.f32 %v1958, %v2867
  %v2869 = vpop.f32.mrb[0].mxu0
  %2870 = vmatprep.mubr.f32.mxu0 %v467
  %2871 = vmatmul.mubr.f32.gmra.mrb[0].mxu0 %v466
  %v2872 = vpop.f32.mrb[0].mxu0
  %v2873 = vadd.f32 %v1963, %v2872
  %v2874 = vpop.f32.mrb[0].mxu0
  %2875 = vmatprep.mubr.f32.mxu0 %v472
  %2876 = vmatmul.mubr.f32.gmra.mrb[0].mxu0 %v471
  %v2877 = vpop.f32.mrb[0].mxu0
  %v2878 = vadd.f32 %v1968, %v2877
  %v2879 = vpop.f32.mrb[0].mxu0
  %2880 = vmatprep.mubr.f32.mxu0 %v477
  %2881 = vmatmul.mubr.f32.gmra.mrb[0].mxu0 %v476
  %v2882 = vpop.f32.mrb[0].mxu0
  %v2883 = vadd.f32 %v1973, %v2882
  %v2884 = vpop.f32.mrb[0].mxu0
  %2885 = vmatprep.mubr.f32.mxu0 %v482
  %2886 = vmatmul.mubr.f32.gmra.mrb[0].mxu0 %v481
  %v2887 = vpop.f32.mrb[0].mxu0
  %v2888 = vadd.f32 %v1978, %v2887
  %v2889 = vpop.f32.mrb[0].mxu0
  %2890 = vmatprep.mubr.f32.mxu0 %v487
  %2891 = vmatmul.mubr.f32.gmra.mrb[0].mxu0 %v486
  %v2892 = vpop.f32.mrb[0].mxu0
  %v2893 = vadd.f32 %v1983, %v2892
  %v2894 = vpop.f32.mrb[0].mxu0
  %2895 = vmatprep.mubr.f32.mxu0 %v492
  %2896 = vmatmul.mubr.f32.gmra.mrb[0].mxu0 %v491
  %v2897 = vpop.f32.mrb[0].mxu0
  %v2898 = vadd.f32 %v1988, %v2897
  %v2899 = vpop.f32.mrb[0].mxu0
  %2900 = vmatprep.mubr.f32.mxu0 %v497
  %2901 = vmatmul.mubr.f32.gmra.mrb[0].mxu0 %v496
  %v2902 = vpop.f32.mrb[0].mxu0
  %v2903 = vadd.f32 %v1993, %v2902
  %v2904 = vpop.f32.mrb[0].mxu0
  %2905 = vmatprep.mubr.f32.mxu0 %v502
  %2906 = vmatmul.mubr.f32.gmra.mrb[0].mxu0 %v501
  %v2907 = vpop.f32.mrb[0].mxu0
  %v2908 = vadd.f32 %v1998, %v2907
  %v2909 = vpop.f32.mrb[0].mxu0
  %2910 = vmatprep.mubr.f32.mxu0 %v507
  %2911 = vmatmul.mubr.f32.gmra.mrb[0].mxu0 %v506
  %v2912 = vpop.f32.mrb[0].mxu0
  %v2913 = vadd.f32 %v2003, %v2912
  %v2914 = vpop.f32.mrb[0].mxu0
  %2915 = vmatprep.mubr.f32.mxu0 %v512
  %2916 = vmatmul.mubr.f32.gmra.mrb[0].mxu0 %v511
  %v2917 = vpop.f32.mrb[0].mxu0
  %v2918 = vadd.f32 %v2008, %v2917
  %v2919 = vpop.f32.mrb[0].mxu0
  %2920 = vmatprep.mubr.f32.mxu0 %v517
  %2921 = vmatmul.mubr.f32.gmra.mrb[0].mxu0 %v516
  %v2922 = vpop.f32.mrb[0].mxu0
  %v2923 = vadd.f32 %v2013, %v2922
  %v2924 = vpop.f32.mrb[0].mxu0
  %2925 = vmatprep.mubr.f32.mxu0 %v522
  %2926 = vmatmul.mubr.f32.gmra.mrb[0].mxu0 %v521
  %v2927 = vpop.f32.mrb[0].mxu0
  %v2928 = vadd.f32 %v2018, %v2927
  %v2929 = vpop.f32.mrb[0].mxu0
  %2930 = vmatprep.mubr.f32.mxu0 %v527
  %2931 = vmatmul.mubr.f32.gmra.mrb[0].mxu0 %v526
  %v2932 = vpop.f32.mrb[0].mxu0
  %v2933 = vadd.f32 %v2023, %v2932
  %v2934 = vpop.f32.mrb[0].mxu0
  %2935 = vmatprep.mubr.f32.mxu0 %v532
  %2936 = vmatmul.mubr.f32.gmra.mrb[0].mxu0 %v531
  %v2937 = vpop.f32.mrb[0].mxu0
  %v2938 = vadd.f32 %v2028, %v2937
  %v2939 = vpop.f32.mrb[0].mxu0
  %2940 = vmatprep.mubr.f32.mxu0 %v537
  %2941 = vmatmul.mubr.f32.gmra.mrb[0].mxu0 %v536
  %v2942 = vpop.f32.mrb[0].mxu0
  %v2943 = vadd.f32 %v2033, %v2942
  %v2944 = vpop.f32.mrb[0].mxu0
  %2945 = vmatprep.mubr.f32.mxu0 %v542
  %2946 = vmatmul.mubr.f32.gmra.mrb[0].mxu0 %v541
  %v2947 = vpop.f32.mrb[0].mxu0
  %v2948 = vadd.f32 %v2038, %v2947
  %v2949 = vpop.f32.mrb[0].mxu0
  %2950 = vmatprep.mubr.f32.mxu0 %v547
  %2951 = vmatmul.mubr.f32.gmra.mrb[0].mxu0 %v546
  %v2952 = vpop.f32.mrb[0].mxu0
  %v2953 = vadd.f32 %v2043, %v2952
  %v2954 = vpop.f32.mrb[0].mxu0
  %2955 = vmatprep.mubr.f32.mxu0 %v552
  %2956 = vmatmul.mubr.f32.gmra.mrb[0].mxu0 %v551
  %v2957 = vpop.f32.mrb[0].mxu0
  %v2958 = vadd.f32 %v2048, %v2957
  %v2959 = vpop.f32.mrb[0].mxu0
  %2960 = vmatprep.mubr.f32.mxu0 %v557
  %2961 = vmatmul.mubr.f32.gmra.mrb[0].mxu0 %v556
  %v2962 = vpop.f32.mrb[0].mxu0
  %v2963 = vadd.f32 %v2053, %v2962
  %v2964 = vpop.f32.mrb[0].mxu0
  %2965 = vmatprep.mubr.f32.mxu0 %v562
  %2966 = vmatmul.mubr.f32.gmra.mrb[0].mxu0 %v561
  %v2967 = vpop.f32.mrb[0].mxu0
  %v2968 = vadd.f32 %v2058, %v2967
  %v2969 = vpop.f32.mrb[0].mxu0
  %2970 = vmatprep.mubr.f32.mxu0 %v567
  %2971 = vmatmul.mubr.f32.gmra.mrb[0].mxu0 %v566
  %v2972 = vpop.f32.mrb[0].mxu0
  %v2973 = vadd.f32 %v2063, %v2972
  %v2974 = vpop.f32.mrb[0].mxu0
  %2975 = vmatprep.mubr.f32.mxu0 %v572
  %2976 = vmatmul.mubr.f32.gmra.mrb[0].mxu0 %v571
  %v2977 = vpop.f32.mrb[0].mxu0
  %v2978 = vadd.f32 %v2068, %v2977
  %v2979 = vpop.f32.mrb[0].mxu0
  %2980 = vmatprep.mubr.f32.mxu0 %v577
  %2981 = vmatmul.mubr.f32.gmra.mrb[0].mxu0 %v576
  %v2982 = vpop.f32.mrb[0].mxu0
  %v2983 = vadd.f32 %v2073, %v2982
  %v2984 = vpop.f32.mrb[0].mxu0
  %2985 = vmatprep.mubr.f32.mxu0 %v582
  %2986 = vmatmul.mubr.f32.gmra.mrb[0].mxu0 %v581
  %v2987 = vpop.f32.mrb[0].mxu0
  %v2988 = vadd.f32 %v2078, %v2987
  %v2989 = vpop.f32.mrb[0].mxu0
  %2990 = vmatprep.mubr.f32.mxu0 %v587
  %2991 = vmatmul.mubr.f32.gmra.mrb[0].mxu0 %v586
  %v2992 = vpop.f32.mrb[0].mxu0
  %v2993 = vadd.f32 %v2083, %v2992
  %v2994 = vpop.f32.mrb[0].mxu0
  %2995 = vmatprep.mubr.f32.mxu0 %v592
  %2996 = vmatmul.mubr.f32.gmra.mrb[0].mxu0 %v591
  %v2997 = vpop.f32.mrb[0].mxu0
  %v2998 = vadd.f32 %v2088, %v2997
  %v2999 = vpop.f32.mrb[0].mxu0
  %3000 = vmatprep.mubr.f32.mxu0 %v597
  %3001 = vmatmul.mubr.f32.gmra.mrb[0].mxu0 %v596
  %v3002 = vpop.f32.mrb[0].mxu0
  %v3003 = vadd.f32 %v2093, %v3002
  %v3004 = vpop.f32.mrb[0].mxu0
  %3005 = vmatprep.mubr.f32.mxu0 %v602
  %3006 = vmatmul.mubr.f32.gmra.mrb[0].mxu0 %v601
  %v3007 = vpop.f32.mrb[0].mxu0
  %v3008 = vadd.f32 %v2098, %v3007
  %v3009 = vpop.f32.mrb[0].mxu0
  %3010 = vmatprep.mubr.f32.mxu0 %v607
  %3011 = vmatmul.mubr.f32.gmra.mrb[0].mxu0 %v606
  %v3012 = vpop.f32.mrb[0].mxu0
  %v3013 = vadd.f32 %v2103, %v3012
  %v3014 = vpop.f32.mrb[0].mxu0
  %3015 = vmatprep.mubr.f32.mxu0 %v612
  %3016 = vmatmul.mubr.f32.gmra.mrb[0].mxu0 %v611
  %v3017 = vpop.f32.mrb[0].mxu0
  %v3018 = vadd.f32 %v2108, %v3017
  %v3019 = vpop.f32.mrb[0].mxu0
  %3020 = vmatprep.mubr.f32.mxu0 %v617
  %3021 = vmatmul.mubr.f32.gmra.mrb[0].mxu0 %v616
  %v3022 = vpop.f32.mrb[0].mxu0
  %v3023 = vadd.f32 %v2113, %v3022
  %v3024 = vpop.f32.mrb[0].mxu0
  %3025 = vmatprep.mubr.f32.mxu0 %v622
  %3026 = vmatmul.mubr.f32.gmra.mrb[0].mxu0 %v621
  %v3027 = vpop.f32.mrb[0].mxu0
  %v3028 = vadd.f32 %v2118, %v3027
  %v3029 = vpop.f32.mrb[0].mxu0
  %3030 = vmatprep.mubr.f32.mxu0 %v627
  %3031 = vmatmul.mubr.f32.gmra.mrb[0].mxu0 %v626
  %v3032 = vpop.f32.mrb[0].mxu0
  %v3033 = vadd.f32 %v2123, %v3032
  %v3034 = vpop.f32.mrb[0].mxu0
  %3035 = vmatprep.mubr.f32.mxu0 %v632
  %3036 = vmatmul.mubr.f32.gmra.mrb[0].mxu0 %v631
  %v3037 = vpop.f32.mrb[0].mxu0
  %v3038 = vadd.f32 %v2128, %v3037
  %v3039 = vpop.f32.mrb[0].mxu0
  %3040 = vmatprep.mubr.f32.mxu0 %v637
  %3041 = vmatmul.mubr.f32.gmra.mrb[0].mxu0 %v636
  %v3042 = vpop.f32.mrb[0].mxu0
  %v3043 = vadd.f32 %v2133, %v3042
  %v3044 = vpop.f32.mrb[0].mxu0
  %3045 = vmatprep.mubr.f32.mxu0 %v642
  %3046 = vmatmul.mubr.f32.gmra.mrb[0].mxu0 %v641
  %v3047 = vpop.f32.mrb[0].mxu0
  %v3048 = vadd.f32 %v2138, %v3047
  %v3049 = vpop.f32.mrb[0].mxu0
  %3050 = vmatprep.mubr.f32.mxu0 %v647
  %3051 = vmatmul.mubr.f32.gmra.mrb[0].mxu0 %v646
  %v3052 = vpop.f32.mrb[0].mxu0
  %v3053 = vadd.f32 %v2143, %v3052
  %v3054 = vpop.f32.mrb[0].mxu0
  %3055 = vmatprep.mubr.f32.mxu0 %v652
  %3056 = vmatmul.mubr.f32.gmra.mrb[0].mxu0 %v651
  %v3057 = vpop.f32.mrb[0].mxu0
  %v3058 = vadd.f32 %v2148, %v3057
  %v3059 = vpop.f32.mrb[0].mxu0
  %3060 = vmatprep.mubr.f32.mxu0 %v657
  %3061 = vmatmul.mubr.f32.gmra.mrb[0].mxu0 %v656
  %v3062 = vpop.f32.mrb[0].mxu0
  %v3063 = vadd.f32 %v2153, %v3062
  %v3064 = vpop.f32.mrb[0].mxu0
  %3065 = vmatprep.mubr.f32.mxu0 %v662
  %3066 = vmatmul.mubr.f32.gmra.mrb[0].mxu0 %v661
  %v3067 = vpop.f32.mrb[0].mxu0
  %v3068 = vadd.f32 %v2158, %v3067
  %v3069 = vpop.f32.mrb[0].mxu0
  %3070 = vmatprep.mubr.f32.mxu0 %v667
  %3071 = vmatmul.mubr.f32.gmra.mrb[0].mxu0 %v666
  %v3072 = vpop.f32.mrb[0].mxu0
  %v3073 = vadd.f32 %v2163, %v3072
  %v3074 = vpop.f32.mrb[0].mxu0
  %3075 = vmatprep.mubr.f32.mxu0 %v672
  %3076 = vmatmul.mubr.f32.gmra.mrb[0].mxu0 %v671
  %v3077 = vpop.f32.mrb[0].mxu0
  %v3078 = vadd.f32 %v2168, %v3077
  %v3079 = vpop.f32.mrb[0].mxu0
  %3080 = vmatprep.mubr.f32.mxu0 %v677
  %3081 = vmatmul.mubr.f32.gmra.mrb[0].mxu0 %v676
  %v3082 = vpop.f32.mrb[0].mxu0
  %v3083 = vadd.f32 %v2173, %v3082
  %v3084 = vpop.f32.mrb[0].mxu0
  %3085 = vmatprep.mubr.f32.mxu0 %v682
  %3086 = vmatmul.mubr.f32.gmra.mrb[0].mxu0 %v681
  %v3087 = vpop.f32.mrb[0].mxu0
  %v3088 = vadd.f32 %v2178, %v3087
  %v3089 = vpop.f32.mrb[0].mxu0
  %3090 = vmatprep.mubr.f32.mxu0 %v687
  %3091 = vmatmul.mubr.f32.gmra.mrb[0].mxu0 %v686
  %v3092 = vpop.f32.mrb[0].mxu0
  %v3093 = vadd.f32 %v2183, %v3092
  %v3094 = vpop.f32.mrb[0].mxu0
  %3095 = vmatprep.mubr.f32.mxu0 %v692
  %3096 = vmatmul.mubr.f32.gmra.mrb[0].mxu0 %v691
  %v3097 = vpop.f32.mrb[0].mxu0
  %v3098 = vadd.f32 %v2188, %v3097
  %v3099 = vpop.f32.mrb[0].mxu0
  %3100 = vmatprep.mubr.f32.mxu0 %v697
  %3101 = vmatmul.mubr.f32.gmra.mrb[0].mxu0 %v696
  %v3102 = vpop.f32.mrb[0].mxu0
  %v3103 = vadd.f32 %v2193, %v3102
  %v3104 = vpop.f32.mrb[0].mxu0
  %3105 = vmatprep.mubr.f32.mxu0 %v702
  %3106 = vmatmul.mubr.f32.gmra.mrb[0].mxu0 %v701
  %v3107 = vpop.f32.mrb[0].mxu0
  %v3108 = vadd.f32 %v2198, %v3107
  %v3109 = vpop.f32.mrb[0].mxu0
  %3110 = vmatprep.mubr.f32.mxu0 %v707
  %3111 = vmatmul.mubr.f32.gmra.mrb[0].mxu0 %v706
  %v3112 = vpop.f32.mrb[0].mxu0
  %v3113 = vadd.f32 %v2203, %v3112
  %v3114 = vpop.f32.mrb[0].mxu0
  %3115 = vmatprep.mubr.f32.mxu0 %v712
  %3116 = vmatmul.mubr.f32.gmra.mrb[0].mxu0 %v711
  %v3117 = vpop.f32.mrb[0].mxu0
  %v3118 = vadd.f32 %v2208, %v3117
  %v3119 = vpop.f32.mrb[0].mxu0
  %3120 = vmatprep.mubr.f32.mxu0 %v717
  %3121 = vmatmul.mubr.f32.gmra.mrb[0].mxu0 %v716
  %v3122 = vpop.f32.mrb[0].mxu0
  %v3123 = vadd.f32 %v2213, %v3122
  %v3124 = vpop.f32.mrb[0].mxu0
  %3125 = vmatprep.mubr.f32.mxu0 %v722
  %3126 = vmatmul.mubr.f32.gmra.mrb[0].mxu0 %v721
  %v3127 = vpop.f32.mrb[0].mxu0
  %v3128 = vadd.f32 %v2218, %v3127
  %v3129 = vpop.f32.mrb[0].mxu0
  %3130 = vmatprep.mubr.f32.mxu0 %v727
  %3131 = vmatmul.mubr.f32.gmra.mrb[0].mxu0 %v726
  %v3132 = vpop.f32.mrb[0].mxu0
  %v3133 = vadd.f32 %v2223, %v3132
  %v3134 = vpop.f32.mrb[0].mxu0
  %3135 = vmatprep.mubr.f32.mxu0 %v732
  %3136 = vmatmul.mubr.f32.gmra.mrb[0].mxu0 %v731
  %v3137 = vpop.f32.mrb[0].mxu0
  %v3138 = vadd.f32 %v2228, %v3137
  %v3139 = vpop.f32.mrb[0].mxu0
  %3140 = vmatprep.mubr.f32.mxu0 %v737
  %3141 = vmatmul.mubr.f32.gmra.mrb[0].mxu0 %v736
  %v3142 = vpop.f32.mrb[0].mxu0
  %v3143 = vadd.f32 %v2233, %v3142
  %v3144 = vpop.f32.mrb[0].mxu0
  %3145 = vmatprep.mubr.f32.mxu0 %v742
  %3146 = vmatmul.mubr.f32.gmra.mrb[0].mxu0 %v741
  %v3147 = vpop.f32.mrb[0].mxu0
  %v3148 = vadd.f32 %v2238, %v3147
  %v3149 = vpop.f32.mrb[0].mxu0
  %3150 = vmatprep.mubr.f32.mxu0 %v747
  %3151 = vmatmul.mubr.f32.gmra.mrb[0].mxu0 %v746
  %v3152 = vpop.f32.mrb[0].mxu0
  %v3153 = vadd.f32 %v2243, %v3152
  %v3154 = vpop.f32.mrb[0].mxu0
  %3155 = vmatprep.mubr.f32.mxu0 %v752
  %3156 = vmatmul.mubr.f32.gmra.mrb[0].mxu0 %v751
  %v3157 = vpop.f32.mrb[0].mxu0
  %v3158 = vadd.f32 %v2248, %v3157
  %v3159 = vpop.f32.mrb[0].mxu0
  %3160 = vmatprep.mubr.f32.mxu0 %v757
  %3161 = vmatmul.mubr.f32.gmra.mrb[0].mxu0 %v756
  %v3162 = vpop.f32.mrb[0].mxu0
  %v3163 = vadd.f32 %v2253, %v3162
  %v3164 = vpop.f32.mrb[0].mxu0
  %3165 = vmatprep.mubr.f32.mxu0 %v762
  %3166 = vmatmul.mubr.f32.gmra.mrb[0].mxu0 %v761
  %v3167 = vpop.f32.mrb[0].mxu0
  %v3168 = vadd.f32 %v2258, %v3167
  %v3169 = vpop.f32.mrb[0].mxu0
  %3170 = vmatprep.mubr.f32.mxu0 %v767
  %3171 = vmatmul.mubr.f32.gmra.mrb[0].mxu0 %v766
  %v3172 = vpop.f32.mrb[0].mxu0
  %v3173 = vadd.f32 %v2263, %v3172
  %v3174 = vpop.f32.mrb[0].mxu0
  %3175 = vmatprep.mubr.f32.mxu0 %v772
  %3176 = vmatmul.mubr.f32.gmra.mrb[0].mxu0 %v771
  %v3177 = vpop.f32.mrb[0].mxu0
  %v3178 = vadd.f32 %v2268, %v3177
  %v3179 = vpop.f32.mrb[0].mxu0
  %3180 = vmatprep.mubr.f32.mxu0 %v777
  %3181 = vmatmul.mubr.f32.gmra.mrb[0].mxu0 %v776
  %v3182 = vpop.f32.mrb[0].mxu0
  %v3183 = vadd.f32 %v2273, %v3182
  %v3184 = vpop.f32.mrb[0].mxu0
  %3185 = vmatprep.mubr.f32.mxu0 %v782
  %3186 = vmatmul.mubr.f32.gmra.mrb[0].mxu0 %v781
  %v3187 = vpop.f32.mrb[0].mxu0
  %v3188 = vadd.f32 %v2278, %v3187
  %v3189 = vpop.f32.mrb[0].mxu0
  %3190 = vmatprep.mubr.f32.mxu0 %v787
  %3191 = vmatmul.mubr.f32.gmra.mrb[0].mxu0 %v786
  %v3192 = vpop.f32.mrb[0].mxu0
  %v3193 = vadd.f32 %v2283, %v3192
  %v3194 = vpop.f32.mrb[0].mxu0
  %3195 = vmatprep.mubr.f32.mxu0 %v792
  %3196 = vmatmul.mubr.f32.gmra.mrb[0].mxu0 %v791
  %v3197 = vpop.f32.mrb[0].mxu0
  %v3198 = vadd.f32 %v2288, %v3197
  %v3199 = vpop.f32.mrb[0].mxu0
  %3200 = vmatprep.mubr.f32.mxu0 %v797
  %3201 = vmatmul.mubr.f32.gmra.mrb[0].mxu0 %v796
  %v3202 = vpop.f32.mrb[0].mxu0
  %v3203 = vadd.f32 %v2293, %v3202
  %v3204 = vpop.f32.mrb[0].mxu0
  %3205 = vmatprep.mubr.f32.mxu0 %v802
  %3206 = vmatmul.mubr.f32.gmra.mrb[0].mxu0 %v801
  %v3207 = vpop.f32.mrb[0].mxu0
  %v3208 = vadd.f32 %v2298, %v3207
  %v3209 = vpop.f32.mrb[0].mxu0
  %3210 = vmatprep.mubr.f32.mxu0 %v807
  %3211 = vmatmul.mubr.f32.gmra.mrb[0].mxu0 %v806
  %v3212 = vpop.f32.mrb[0].mxu0
  %v3213 = vadd.f32 %v2303, %v3212
  %v3214 = vpop.f32.mrb[0].mxu0
  %3215 = vmatprep.mubr.f32.mxu0 %v812
  %3216 = vmatmul.mubr.f32.gmra.mrb[0].mxu0 %v811
  %v3217 = vpop.f32.mrb[0].mxu0
  %v3218 = vadd.f32 %v2308, %v3217
  %v3219 = vpop.f32.mrb[0].mxu0
  %3220 = vmatprep.mubr.f32.mxu0 %v817
  %3221 = vmatmul.mubr.f32.gmra.mrb[0].mxu0 %v816
  %v3222 = vpop.f32.mrb[0].mxu0
  %v3223 = vadd.f32 %v2313, %v3222
  %v3224 = vpop.f32.mrb[0].mxu0
  %3225 = vmatprep.mubr.f32.mxu0 %v822
  %3226 = vmatmul.mubr.f32.gmra.mrb[0].mxu0 %v821
  %v3227 = vpop.f32.mrb[0].mxu0
  %v3228 = vadd.f32 %v2318, %v3227
  %v3229 = vpop.f32.mrb[0].mxu0
  %3230 = vmatprep.mubr.f32.mxu0 %v827
  %3231 = vmatmul.mubr.f32.gmra.mrb[0].mxu0 %v826
  %v3232 = vpop.f32.mrb[0].mxu0
  %v3233 = vadd.f32 %v2323, %v3232
  %v3234 = vpop.f32.mrb[0].mxu0
  %3235 = vmatprep.mubr.f32.mxu0 %v832
  %3236 = vmatmul.mubr.f32.gmra.mrb[0].mxu0 %v831
  %v3237 = vpop.f32.mrb[0].mxu0
  %v3238 = vadd.f32 %v2328, %v3237
  %v3239 = vpop.f32.mrb[0].mxu0
  %3240 = vmatprep.mubr.f32.mxu0 %v837
  %3241 = vmatmul.mubr.f32.gmra.mrb[0].mxu0 %v836
  %v3242 = vpop.f32.mrb[0].mxu0
  %v3243 = vadd.f32 %v2333, %v3242
  %v3244 = vpop.f32.mrb[0].mxu0
  %3245 = vmatprep.mubr.f32.mxu0 %v842
  %3246 = vmatmul.mubr.f32.gmra.mrb[0].mxu0 %v841
  %v3247 = vpop.f32.mrb[0].mxu0
  %v3248 = vadd.f32 %v2338, %v3247
  %v3249 = vpop.f32.mrb[0].mxu0
  %3250 = vmatprep.mubr.f32.mxu0 %v847
  %3251 = vmatmul.mubr.f32.gmra.mrb[0].mxu0 %v846
  %v3252 = vpop.f32.mrb[0].mxu0
  %v3253 = vadd.f32 %v2343, %v3252
  %v3254 = vpop.f32.mrb[0].mxu0
  %3255 = vmatprep.mubr.f32.mxu0 %v852
  %3256 = vmatmul.mubr.f32.gmra.mrb[0].mxu0 %v851
  %v3257 = vpop.f32.mrb[0].mxu0
  %v3258 = vadd.f32 %v2348, %v3257
  %v3259 = vpop.f32.mrb[0].mxu0
  %3260 = vmatprep.mubr.f32.mxu0 %v857
  %3261 = vmatmul.mubr.f32.gmra.mrb[0].mxu0 %v856
  %v3262 = vpop.f32.mrb[0].mxu0
  %v3263 = vadd.f32 %v2353, %v3262
  %v3264 = vpop.f32.mrb[0].mxu0
  %3265 = vdwg.mxu0
  %3266 = vmatprep.subr.mxu0 0.0
  %3267 = vmatpush1.msra.mxu0 %v923
  %3268 = vmatprep.subr.mxu0 0.0
  %3269 = vmatpush1.msra.mxu0 %v924
  %3270 = vmatprep.subr.mxu0 0.0
  %3271 = vmatpush1.msra.mxu0 %v925
  %3272 = vmatprep.subr.mxu0 0.0
  %3273 = vmatpush1.msra.mxu0 %v926
  %3274 = vmatprep.subr.mxu0 0.0
  %3275 = vmatpush1.msra.mxu0 %v927
  %3276 = vmatprep.subr.mxu0 0.0
  %3277 = vmatpush1.msra.mxu0 %v928
  %3278 = vmatprep.subr.mxu0 0.0
  %3279 = vmatpush1.msra.mxu0 %v929
  %3280 = vmatprep.subr.mxu0 0.0
  %3281 = vmatpush1.msra.mxu0 %v930
  %3282 = vmatprep.subr.mxu0 0.0
  %3283 = vmatpush1.msra.mxu0 0.0
  %3284 = vmatprep.subr.mxu0 0.0
  %3285 = vmatpush1.msra.mxu0 0.0
  %3286 = vmatprep.subr.mxu0 0.0
  %3287 = vmatpush1.msra.mxu0 0.0
  %3288 = vmatprep.subr.mxu0 0.0
  %3289 = vmatpush1.msra.mxu0 0.0
  %3290 = vmatprep.subr.mxu0 0.0
  %3291 = vmatpush1.msra.mxu0 0.0
  %3292 = vmatprep.subr.mxu0 0.0
  %3293 = vmatpush1.msra.mxu0 0.0
  %3294 = vmatprep.subr.mxu0 0.0
  %3295 = vmatpush1.msra.mxu0 0.0
  %3296 = vmatprep.subr.mxu0 0.0
  %3297 = vmatpush1.msra.mxu0 0.0
  %3298 = vmatprep.subr.mxu0 0.0
  %3299 = vmatpush1.msra.mxu0 0.0
  %3300 = vmatprep.subr.mxu0 0.0
  %3301 = vmatpush1.msra.mxu0 0.0
  %3302 = vmatprep.subr.mxu0 0.0
  %3303 = vmatpush1.msra.mxu0 0.0
  %3304 = vmatprep.subr.mxu0 0.0
  %3305 = vmatpush1.msra.mxu0 0.0
  %3306 = vmatprep.subr.mxu0 0.0
  %3307 = vmatpush1.msra.mxu0 0.0
  %3308 = vmatprep.subr.mxu0 0.0
  %3309 = vmatpush1.msra.mxu0 0.0
  %3310 = vmatprep.subr.mxu0 0.0
  %3311 = vmatpush1.msra.mxu0 0.0
  %3312 = vmatprep.subr.mxu0 0.0
  %3313 = vmatpush1.msra.mxu0 0.0
  %3314 = vmatprep.subr.mxu0 0.0
  %3315 = vmatpush1.msra.mxu0 0.0
  %3316 = vmatprep.subr.mxu0 0.0
  %3317 = vmatpush1.msra.mxu0 0.0
  %3318 = vmatprep.subr.mxu0 0.0
  %3319 = vmatpush1.msra.mxu0 0.0
  %3320 = vmatprep.subr.mxu0 0.0
  %3321 = vmatpush1.msra.mxu0 0.0
  %3322 = vmatprep.subr.mxu0 0.0
  %3323 = vmatpush1.msra.mxu0 0.0
  %3324 = vmatprep.subr.mxu0 0.0
  %3325 = vmatpush1.msra.mxu0 0.0
  %3326 = vmatprep.subr.mxu0 0.0
  %3327 = vmatpush1.msra.mxu0 0.0
  %3328 = vmatprep.subr.mxu0 0.0
  %3329 = vmatpush1.msra.mxu0 0.0
  %3330 = vmatprep.mubr.f32.mxu0 0.0
  %3331 = vmatmul.mubr.f32.gmra.mrb[0].mxu0 %v940
  %v3332 = vpop.f32.mrb[0].mxu0
  %v3333 = vadd.f32 %v2423, %v3332
  %v3334 = vpop.f32.mrb[0].mxu0
  %3335 = vmatprep.mubr.f32.mxu0 0.0
  %3336 = vmatmul.mubr.f32.gmra.mrb[0].mxu0 %v943
  %v3337 = vpop.f32.mrb[0].mxu0
  %v3338 = vadd.f32 %v2428, %v3337
  %v3339 = vpop.f32.mrb[0].mxu0
  %3340 = vmatprep.mubr.f32.mxu0 0.0
  %3341 = vmatmul.mubr.f32.gmra.mrb[0].mxu0 %v946
  %v3342 = vpop.f32.mrb[0].mxu0
  %v3343 = vadd.f32 %v2433, %v3342
  %v3344 = vpop.f32.mrb[0].mxu0
  %3345 = vmatprep.mubr.f32.mxu0 0.0
  %3346 = vmatmul.mubr.f32.gmra.mrb[0].mxu0 %v949
  %v3347 = vpop.f32.mrb[0].mxu0
  %v3348 = vadd.f32 %v2438, %v3347
  %v3349 = vpop.f32.mrb[0].mxu0
  %3350 = vmatprep.mubr.f32.mxu0 0.0
  %3351 = vmatmul.mubr.f32.gmra.mrb[0].mxu0 %v952
  %v3352 = vpop.f32.mrb[0].mxu0
  %v3353 = vadd.f32 %v2443, %v3352
  %v3354 = vpop.f32.mrb[0].mxu0
  %3355 = vmatprep.mubr.f32.mxu0 0.0
  %3356 = vmatmul.mubr.f32.gmra.mrb[0].mxu0 %v955
  %v3357 = vpop.f32.mrb[0].mxu0
  %v3358 = vadd.f32 %v2448, %v3357
  %v3359 = vpop.f32.mrb[0].mxu0
  %3360 = vmatprep.mubr.f32.mxu0 0.0
  %3361 = vmatmul.mubr.f32.gmra.mrb[0].mxu0 %v958
  %v3362 = vpop.f32.mrb[0].mxu0
  %v3363 = vadd.f32 %v2453, %v3362
  %v3364 = vpop.f32.mrb[0].mxu0
  %3365 = vmatprep.mubr.f32.mxu0 0.0
  %3366 = vmatmul.mubr.f32.gmra.mrb[0].mxu0 %v961
  %v3367 = vpop.f32.mrb[0].mxu0
  %v3368 = vadd.f32 %v2458, %v3367
  %v3369 = vpop.f32.mrb[0].mxu0
  %3370 = vmatprep.mubr.f32.mxu0 0.0
  %3371 = vmatmul.mubr.f32.gmra.mrb[0].mxu0 %v964
  %v3372 = vpop.f32.mrb[0].mxu0
  %v3373 = vadd.f32 %v2463, %v3372
  %v3374 = vpop.f32.mrb[0].mxu0
  %3375 = vmatprep.mubr.f32.mxu0 0.0
  %3376 = vmatmul.mubr.f32.gmra.mrb[0].mxu0 %v967
  %v3377 = vpop.f32.mrb[0].mxu0
  %v3378 = vadd.f32 %v2468, %v3377
  %v3379 = vpop.f32.mrb[0].mxu0
  %3380 = vmatprep.mubr.f32.mxu0 0.0
  %3381 = vmatmul.mubr.f32.gmra.mrb[0].mxu0 %v970
  %v3382 = vpop.f32.mrb[0].mxu0
  %v3383 = vadd.f32 %v2473, %v3382
  %v3384 = vpop.f32.mrb[0].mxu0
  %3385 = vmatprep.mubr.f32.mxu0 0.0
  %3386 = vmatmul.mubr.f32.gmra.mrb[0].mxu0 %v973
  %v3387 = vpop.f32.mrb[0].mxu0
  %v3388 = vadd.f32 %v2478, %v3387
  %v3389 = vpop.f32.mrb[0].mxu0
  %3390 = vmatprep.mubr.f32.mxu0 0.0
  %3391 = vmatmul.mubr.f32.gmra.mrb[0].mxu0 %v976
  %v3392 = vpop.f32.mrb[0].mxu0
  %v3393 = vadd.f32 %v2483, %v3392
  %v3394 = vpop.f32.mrb[0].mxu0
  %3395 = vmatprep.mubr.f32.mxu0 0.0
  %3396 = vmatmul.mubr.f32.gmra.mrb[0].mxu0 %v979
  %v3397 = vpop.f32.mrb[0].mxu0
  %v3398 = vadd.f32 %v2488, %v3397
  %v3399 = vpop.f32.mrb[0].mxu0
  %3400 = vmatprep.mubr.f32.mxu0 0.0
  %3401 = vmatmul.mubr.f32.gmra.mrb[0].mxu0 %v982
  %v3402 = vpop.f32.mrb[0].mxu0
  %v3403 = vadd.f32 %v2493, %v3402
  %v3404 = vpop.f32.mrb[0].mxu0
  %3405 = vmatprep.mubr.f32.mxu0 0.0
  %3406 = vmatmul.mubr.f32.gmra.mrb[0].mxu0 %v985
  %v3407 = vpop.f32.mrb[0].mxu0
  %v3408 = vadd.f32 %v2498, %v3407
  %v3409 = vpop.f32.mrb[0].mxu0
  %3410 = vmatprep.mubr.f32.mxu0 0.0
  %3411 = vmatmul.mubr.f32.gmra.mrb[0].mxu0 %v988
  %v3412 = vpop.f32.mrb[0].mxu0
  %v3413 = vadd.f32 %v2503, %v3412
  %v3414 = vpop.f32.mrb[0].mxu0
  %3415 = vmatprep.mubr.f32.mxu0 0.0
  %3416 = vmatmul.mubr.f32.gmra.mrb[0].mxu0 %v991
  %v3417 = vpop.f32.mrb[0].mxu0
  %v3418 = vadd.f32 %v2508, %v3417
  %v3419 = vpop.f32.mrb[0].mxu0
  %3420 = vmatprep.mubr.f32.mxu0 0.0
  %3421 = vmatmul.mubr.f32.gmra.mrb[0].mxu0 %v994
  %v3422 = vpop.f32.mrb[0].mxu0
  %v3423 = vadd.f32 %v2513, %v3422
  %v3424 = vpop.f32.mrb[0].mxu0
  %3425 = vmatprep.mubr.f32.mxu0 0.0
  %3426 = vmatmul.mubr.f32.gmra.mrb[0].mxu0 %v997
  %v3427 = vpop.f32.mrb[0].mxu0
  %v3428 = vadd.f32 %v2518, %v3427
  %v3429 = vpop.f32.mrb[0].mxu0
  %3430 = vmatprep.mubr.f32.mxu0 0.0
  %3431 = vmatmul.mubr.f32.gmra.mrb[0].mxu0 %v1000
  %v3432 = vpop.f32.mrb[0].mxu0
  %v3433 = vadd.f32 %v2523, %v3432
  %v3434 = vpop.f32.mrb[0].mxu0
  %3435 = vmatprep.mubr.f32.mxu0 0.0
  %3436 = vmatmul.mubr.f32.gmra.mrb[0].mxu0 %v1003
  %v3437 = vpop.f32.mrb[0].mxu0
  %v3438 = vadd.f32 %v2528, %v3437
  %v3439 = vpop.f32.mrb[0].mxu0
  %3440 = vmatprep.mubr.f32.mxu0 0.0
  %3441 = vmatmul.mubr.f32.gmra.mrb[0].mxu0 %v1006
  %v3442 = vpop.f32.mrb[0].mxu0
  %v3443 = vadd.f32 %v2533, %v3442
  %v3444 = vpop.f32.mrb[0].mxu0
  %3445 = vmatprep.mubr.f32.mxu0 0.0
  %3446 = vmatmul.mubr.f32.gmra.mrb[0].mxu0 %v1009
  %v3447 = vpop.f32.mrb[0].mxu0
  %v3448 = vadd.f32 %v2538, %v3447
  %v3449 = vpop.f32.mrb[0].mxu0
  %3450 = vmatprep.mubr.f32.mxu0 0.0
  %3451 = vmatmul.mubr.f32.gmra.mrb[0].mxu0 %v1012
  %v3452 = vpop.f32.mrb[0].mxu0
  %v3453 = vadd.f32 %v2543, %v3452
  %v3454 = vpop.f32.mrb[0].mxu0
  %3455 = vmatprep.mubr.f32.mxu0 0.0
  %3456 = vmatmul.mubr.f32.gmra.mrb[0].mxu0 %v1015
  %v3457 = vpop.f32.mrb[0].mxu0
  %v3458 = vadd.f32 %v2548, %v3457
  %v3459 = vpop.f32.mrb[0].mxu0
  %3460 = vmatprep.mubr.f32.mxu0 0.0
  %3461 = vmatmul.mubr.f32.gmra.mrb[0].mxu0 %v1018
  %v3462 = vpop.f32.mrb[0].mxu0
  %v3463 = vadd.f32 %v2553, %v3462
  %v3464 = vpop.f32.mrb[0].mxu0
  %3465 = vmatprep.mubr.f32.mxu0 0.0
  %3466 = vmatmul.mubr.f32.gmra.mrb[0].mxu0 %v1021
  %v3467 = vpop.f32.mrb[0].mxu0
  %v3468 = vadd.f32 %v2558, %v3467
  %v3469 = vpop.f32.mrb[0].mxu0
  %3470 = vmatprep.mubr.f32.mxu0 0.0
  %3471 = vmatmul.mubr.f32.gmra.mrb[0].mxu0 %v1024
  %v3472 = vpop.f32.mrb[0].mxu0
  %v3473 = vadd.f32 %v2563, %v3472
  %v3474 = vpop.f32.mrb[0].mxu0
  %3475 = vmatprep.mubr.f32.mxu0 0.0
  %3476 = vmatmul.mubr.f32.gmra.mrb[0].mxu0 %v1027
  %v3477 = vpop.f32.mrb[0].mxu0
  %v3478 = vadd.f32 %v2568, %v3477
  %v3479 = vpop.f32.mrb[0].mxu0
  %3480 = vmatprep.mubr.f32.mxu0 0.0
  %3481 = vmatmul.mubr.f32.gmra.mrb[0].mxu0 %v1030
  %v3482 = vpop.f32.mrb[0].mxu0
  %v3483 = vadd.f32 %v2573, %v3482
  %v3484 = vpop.f32.mrb[0].mxu0
  %3485 = vmatprep.mubr.f32.mxu0 0.0
  %3486 = vmatmul.mubr.f32.gmra.mrb[0].mxu0 %v1033
  %v3487 = vpop.f32.mrb[0].mxu0
  %v3488 = vadd.f32 %v2578, %v3487
  %v3489 = vpop.f32.mrb[0].mxu0
  %3490 = vmatprep.mubr.f32.mxu0 0.0
  %3491 = vmatmul.mubr.f32.gmra.mrb[0].mxu0 %v1036
  %v3492 = vpop.f32.mrb[0].mxu0
  %v3493 = vadd.f32 %v2583, %v3492
  %v3494 = vpop.f32.mrb[0].mxu0
  %3495 = vmatprep.mubr.f32.mxu0 0.0
  %3496 = vmatmul.mubr.f32.gmra.mrb[0].mxu0 %v1039
  %v3497 = vpop.f32.mrb[0].mxu0
  %v3498 = vadd.f32 %v2588, %v3497
  %v3499 = vpop.f32.mrb[0].mxu0
  %3500 = vmatprep.mubr.f32.mxu0 0.0
  %3501 = vmatmul.mubr.f32.gmra.mrb[0].mxu0 %v1042
  %v3502 = vpop.f32.mrb[0].mxu0
  %v3503 = vadd.f32 %v2593, %v3502
  %v3504 = vpop.f32.mrb[0].mxu0
  %3505 = vmatprep.mubr.f32.mxu0 0.0
  %3506 = vmatmul.mubr.f32.gmra.mrb[0].mxu0 %v1045
  %v3507 = vpop.f32.mrb[0].mxu0
  %v3508 = vadd.f32 %v2598, %v3507
  %v3509 = vpop.f32.mrb[0].mxu0
  %3510 = vmatprep.mubr.f32.mxu0 0.0
  %3511 = vmatmul.mubr.f32.gmra.mrb[0].mxu0 %v1048
  %v3512 = vpop.f32.mrb[0].mxu0
  %v3513 = vadd.f32 %v2603, %v3512
  %v3514 = vpop.f32.mrb[0].mxu0
  %3515 = vmatprep.mubr.f32.mxu0 0.0
  %3516 = vmatmul.mubr.f32.gmra.mrb[0].mxu0 %v1051
  %v3517 = vpop.f32.mrb[0].mxu0
  %v3518 = vadd.f32 %v2608, %v3517
  %v3519 = vpop.f32.mrb[0].mxu0
  %3520 = vmatprep.mubr.f32.mxu0 0.0
  %3521 = vmatmul.mubr.f32.gmra.mrb[0].mxu0 %v1054
  %v3522 = vpop.f32.mrb[0].mxu0
  %v3523 = vadd.f32 %v2613, %v3522
  %v3524 = vpop.f32.mrb[0].mxu0
  %3525 = vmatprep.mubr.f32.mxu0 0.0
  %3526 = vmatmul.mubr.f32.gmra.mrb[0].mxu0 %v1057
  %v3527 = vpop.f32.mrb[0].mxu0
  %v3528 = vadd.f32 %v2618, %v3527
  %v3529 = vpop.f32.mrb[0].mxu0
  %3530 = vmatprep.mubr.f32.mxu0 0.0
  %3531 = vmatmul.mubr.f32.gmra.mrb[0].mxu0 %v1060
  %v3532 = vpop.f32.mrb[0].mxu0
  %v3533 = vadd.f32 %v2623, %v3532
  %v3534 = vpop.f32.mrb[0].mxu0
  %3535 = vmatprep.mubr.f32.mxu0 0.0
  %3536 = vmatmul.mubr.f32.gmra.mrb[0].mxu0 %v1063
  %v3537 = vpop.f32.mrb[0].mxu0
  %v3538 = vadd.f32 %v2628, %v3537
  %v3539 = vpop.f32.mrb[0].mxu0
  %3540 = vmatprep.mubr.f32.mxu0 0.0
  %3541 = vmatmul.mubr.f32.gmra.mrb[0].mxu0 %v1066
  %v3542 = vpop.f32.mrb[0].mxu0
  %v3543 = vadd.f32 %v2633, %v3542
  %v3544 = vpop.f32.mrb[0].mxu0
  %3545 = vmatprep.mubr.f32.mxu0 0.0
  %3546 = vmatmul.mubr.f32.gmra.mrb[0].mxu0 %v1069
  %v3547 = vpop.f32.mrb[0].mxu0
  %v3548 = vadd.f32 %v2638, %v3547
  %v3549 = vpop.f32.mrb[0].mxu0
  %3550 = vmatprep.mubr.f32.mxu0 0.0
  %3551 = vmatmul.mubr.f32.gmra.mrb[0].mxu0 %v1072
  %v3552 = vpop.f32.mrb[0].mxu0
  %v3553 = vadd.f32 %v2643, %v3552
  %v3554 = vpop.f32.mrb[0].mxu0
  %3555 = vmatprep.mubr.f32.mxu0 0.0
  %3556 = vmatmul.mubr.f32.gmra.mrb[0].mxu0 %v1075
  %v3557 = vpop.f32.mrb[0].mxu0
  %v3558 = vadd.f32 %v2648, %v3557
  %v3559 = vpop.f32.mrb[0].mxu0
  %3560 = vmatprep.mubr.f32.mxu0 0.0
  %3561 = vmatmul.mubr.f32.gmra.mrb[0].mxu0 %v1078
  %v3562 = vpop.f32.mrb[0].mxu0
  %v3563 = vadd.f32 %v2653, %v3562
  %v3564 = vpop.f32.mrb[0].mxu0
  %3565 = vmatprep.mubr.f32.mxu0 0.0
  %3566 = vmatmul.mubr.f32.gmra.mrb[0].mxu0 %v1081
  %v3567 = vpop.f32.mrb[0].mxu0
  %v3568 = vadd.f32 %v2658, %v3567
  %v3569 = vpop.f32.mrb[0].mxu0
  %3570 = vmatprep.mubr.f32.mxu0 0.0
  %3571 = vmatmul.mubr.f32.gmra.mrb[0].mxu0 %v1084
  %v3572 = vpop.f32.mrb[0].mxu0
  %v3573 = vadd.f32 %v2663, %v3572
  %v3574 = vpop.f32.mrb[0].mxu0
  %3575 = vmatprep.mubr.f32.mxu0 0.0
  %3576 = vmatmul.mubr.f32.gmra.mrb[0].mxu0 %v1087
  %v3577 = vpop.f32.mrb[0].mxu0
  %v3578 = vadd.f32 %v2668, %v3577
  %v3579 = vpop.f32.mrb[0].mxu0
  %3580 = vmatprep.mubr.f32.mxu0 0.0
  %3581 = vmatmul.mubr.f32.gmra.mrb[0].mxu0 %v1090
  %v3582 = vpop.f32.mrb[0].mxu0
  %v3583 = vadd.f32 %v2673, %v3582
  %v3584 = vpop.f32.mrb[0].mxu0
  %3585 = vmatprep.mubr.f32.mxu0 0.0
  %3586 = vmatmul.mubr.f32.gmra.mrb[0].mxu0 %v1093
  %v3587 = vpop.f32.mrb[0].mxu0
  %v3588 = vadd.f32 %v2678, %v3587
  %v3589 = vpop.f32.mrb[0].mxu0
  %3590 = vmatprep.mubr.f32.mxu0 0.0
  %3591 = vmatmul.mubr.f32.gmra.mrb[0].mxu0 %v1096
  %v3592 = vpop.f32.mrb[0].mxu0
  %v3593 = vadd.f32 %v2683, %v3592
  %v3594 = vpop.f32.mrb[0].mxu0
  %3595 = vmatprep.mubr.f32.mxu0 0.0
  %3596 = vmatmul.mubr.f32.gmra.mrb[0].mxu0 %v1099
  %v3597 = vpop.f32.mrb[0].mxu0
  %v3598 = vadd.f32 %v2688, %v3597
  %v3599 = vpop.f32.mrb[0].mxu0
  %3600 = vmatprep.mubr.f32.mxu0 0.0
  %3601 = vmatmul.mubr.f32.gmra.mrb[0].mxu0 %v1102
  %v3602 = vpop.f32.mrb[0].mxu0
  %v3603 = vadd.f32 %v2693, %v3602
  %v3604 = vpop.f32.mrb[0].mxu0
  %3605 = vmatprep.mubr.f32.mxu0 0.0
  %3606 = vmatmul.mubr.f32.gmra.mrb[0].mxu0 %v1105
  %v3607 = vpop.f32.mrb[0].mxu0
  %v3608 = vadd.f32 %v2698, %v3607
  %v3609 = vpop.f32.mrb[0].mxu0
  %3610 = vmatprep.mubr.f32.mxu0 0.0
  %3611 = vmatmul.mubr.f32.gmra.mrb[0].mxu0 %v1108
  %v3612 = vpop.f32.mrb[0].mxu0
  %v3613 = vadd.f32 %v2703, %v3612
  %v3614 = vpop.f32.mrb[0].mxu0
  %3615 = vmatprep.mubr.f32.mxu0 0.0
  %3616 = vmatmul.mubr.f32.gmra.mrb[0].mxu0 %v1111
  %v3617 = vpop.f32.mrb[0].mxu0
  %v3618 = vadd.f32 %v2708, %v3617
  %v3619 = vpop.f32.mrb[0].mxu0
  %3620 = vmatprep.mubr.f32.mxu0 0.0
  %3621 = vmatmul.mubr.f32.gmra.mrb[0].mxu0 %v1114
  %v3622 = vpop.f32.mrb[0].mxu0
  %v3623 = vadd.f32 %v2713, %v3622
  %v3624 = vpop.f32.mrb[0].mxu0
  %3625 = vmatprep.mubr.f32.mxu0 0.0
  %3626 = vmatmul.mubr.f32.gmra.mrb[0].mxu0 %v1117
  %v3627 = vpop.f32.mrb[0].mxu0
  %v3628 = vadd.f32 %v2718, %v3627
  %v3629 = vpop.f32.mrb[0].mxu0
  %3630 = vmatprep.mubr.f32.mxu0 0.0
  %3631 = vmatmul.mubr.f32.gmra.mrb[0].mxu0 %v1120
  %v3632 = vpop.f32.mrb[0].mxu0
  %v3633 = vadd.f32 %v2723, %v3632
  %v3634 = vpop.f32.mrb[0].mxu0
  %3635 = vmatprep.mubr.f32.mxu0 0.0
  %3636 = vmatmul.mubr.f32.gmra.mrb[0].mxu0 %v1123
  %v3637 = vpop.f32.mrb[0].mxu0
  %v3638 = vadd.f32 %v2728, %v3637
  %v3639 = vpop.f32.mrb[0].mxu0
  %3640 = vmatprep.mubr.f32.mxu0 0.0
  %3641 = vmatmul.mubr.f32.gmra.mrb[0].mxu0 %v1126
  %v3642 = vpop.f32.mrb[0].mxu0
  %v3643 = vadd.f32 %v2733, %v3642
  %v3644 = vpop.f32.mrb[0].mxu0
  %3645 = vmatprep.mubr.f32.mxu0 0.0
  %3646 = vmatmul.mubr.f32.gmra.mrb[0].mxu0 %v1129
  %v3647 = vpop.f32.mrb[0].mxu0
  %v3648 = vadd.f32 %v2738, %v3647
  %v3649 = vpop.f32.mrb[0].mxu0
  %3650 = vmatprep.mubr.f32.mxu0 0.0
  %3651 = vmatmul.mubr.f32.gmra.mrb[0].mxu0 %v1132
  %v3652 = vpop.f32.mrb[0].mxu0
  %v3653 = vadd.f32 %v2743, %v3652
  %v3654 = vpop.f32.mrb[0].mxu0
  %3655 = vmatprep.mubr.f32.mxu0 0.0
  %3656 = vmatmul.mubr.f32.gmra.mrb[0].mxu0 %v1135
  %v3657 = vpop.f32.mrb[0].mxu0
  %v3658 = vadd.f32 %v2748, %v3657
  %v3659 = vpop.f32.mrb[0].mxu0
  %3660 = vmatprep.mubr.f32.mxu0 0.0
  %3661 = vmatmul.mubr.f32.gmra.mrb[0].mxu0 %v1138
  %v3662 = vpop.f32.mrb[0].mxu0
  %v3663 = vadd.f32 %v2753, %v3662
  %v3664 = vpop.f32.mrb[0].mxu0
  %3665 = vmatprep.mubr.f32.mxu0 0.0
  %3666 = vmatmul.mubr.f32.gmra.mrb[0].mxu0 %v1141
  %v3667 = vpop.f32.mrb[0].mxu0
  %v3668 = vadd.f32 %v2758, %v3667
  %v3669 = vpop.f32.mrb[0].mxu0
  %3670 = vmatprep.mubr.f32.mxu0 0.0
  %3671 = vmatmul.mubr.f32.gmra.mrb[0].mxu0 %v1144
  %v3672 = vpop.f32.mrb[0].mxu0
  %v3673 = vadd.f32 %v2763, %v3672
  %v3674 = vpop.f32.mrb[0].mxu0
  %3675 = vmatprep.mubr.f32.mxu0 0.0
  %3676 = vmatmul.mubr.f32.gmra.mrb[0].mxu0 %v1147
  %v3677 = vpop.f32.mrb[0].mxu0
  %v3678 = vadd.f32 %v2768, %v3677
  %v3679 = vpop.f32.mrb[0].mxu0
  %3680 = vmatprep.mubr.f32.mxu0 0.0
  %3681 = vmatmul.mubr.f32.gmra.mrb[0].mxu0 %v1150
  %v3682 = vpop.f32.mrb[0].mxu0
  %v3683 = vadd.f32 %v2773, %v3682
  %v3684 = vpop.f32.mrb[0].mxu0
  %3685 = vmatprep.mubr.f32.mxu0 0.0
  %3686 = vmatmul.mubr.f32.gmra.mrb[0].mxu0 %v1153
  %v3687 = vpop.f32.mrb[0].mxu0
  %v3688 = vadd.f32 %v2778, %v3687
  %v3689 = vpop.f32.mrb[0].mxu0
  %3690 = vmatprep.mubr.f32.mxu0 0.0
  %3691 = vmatmul.mubr.f32.gmra.mrb[0].mxu0 %v1156
  %v3692 = vpop.f32.mrb[0].mxu0
  %v3693 = vadd.f32 %v2783, %v3692
  %v3694 = vpop.f32.mrb[0].mxu0
  %3695 = vmatprep.mubr.f32.mxu0 0.0
  %3696 = vmatmul.mubr.f32.gmra.mrb[0].mxu0 %v1159
  %v3697 = vpop.f32.mrb[0].mxu0
  %v3698 = vadd.f32 %v2788, %v3697
  %v3699 = vpop.f32.mrb[0].mxu0
  %3700 = vmatprep.mubr.f32.mxu0 0.0
  %3701 = vmatmul.mubr.f32.gmra.mrb[0].mxu0 %v1162
  %v3702 = vpop.f32.mrb[0].mxu0
  %v3703 = vadd.f32 %v2793, %v3702
  %v3704 = vpop.f32.mrb[0].mxu0
  %3705 = vmatprep.mubr.f32.mxu0 0.0
  %3706 = vmatmul.mubr.f32.gmra.mrb[0].mxu0 %v1165
  %v3707 = vpop.f32.mrb[0].mxu0
  %v3708 = vadd.f32 %v2798, %v3707
  %v3709 = vpop.f32.mrb[0].mxu0
  %3710 = vmatprep.mubr.f32.mxu0 0.0
  %3711 = vmatmul.mubr.f32.gmra.mrb[0].mxu0 %v1168
  %v3712 = vpop.f32.mrb[0].mxu0
  %v3713 = vadd.f32 %v2803, %v3712
  %v3714 = vpop.f32.mrb[0].mxu0
  %3715 = vmatprep.mubr.f32.mxu0 0.0
  %3716 = vmatmul.mubr.f32.gmra.mrb[0].mxu0 %v1171
  %v3717 = vpop.f32.mrb[0].mxu0
  %v3718 = vadd.f32 %v2808, %v3717
  %v3719 = vpop.f32.mrb[0].mxu0
  %3720 = vmatprep.mubr.f32.mxu0 0.0
  %3721 = vmatmul.mubr.f32.gmra.mrb[0].mxu0 %v1174
  %v3722 = vpop.f32.mrb[0].mxu0
  %v3723 = vadd.f32 %v2813, %v3722
  %v3724 = vpop.f32.mrb[0].mxu0
  %3725 = vmatprep.mubr.f32.mxu0 0.0
  %3726 = vmatmul.mubr.f32.gmra.mrb[0].mxu0 %v1177
  %v3727 = vpop.f32.mrb[0].mxu0
  %v3728 = vadd.f32 %v2818, %v3727
  %v3729 = vpop.f32.mrb[0].mxu0
  %3730 = vmatprep.mubr.f32.mxu0 0.0
  %3731 = vmatmul.mubr.f32.gmra.mrb[0].mxu0 %v1180
  %v3732 = vpop.f32.mrb[0].mxu0
  %v3733 = vadd.f32 %v2823, %v3732
  %v3734 = vpop.f32.mrb[0].mxu0
  %3735 = vmatprep.mubr.f32.mxu0 0.0
  %3736 = vmatmul.mubr.f32.gmra.mrb[0].mxu0 %v1183
  %v3737 = vpop.f32.mrb[0].mxu0
  %v3738 = vadd.f32 %v2828, %v3737
  %v3739 = vpop.f32.mrb[0].mxu0
  %3740 = vmatprep.mubr.f32.mxu0 0.0
  %3741 = vmatmul.mubr.f32.gmra.mrb[0].mxu0 %v1186
  %v3742 = vpop.f32.mrb[0].mxu0
  %v3743 = vadd.f32 %v2833, %v3742
  %v3744 = vpop.f32.mrb[0].mxu0
  %3745 = vmatprep.mubr.f32.mxu0 0.0
  %3746 = vmatmul.mubr.f32.gmra.mrb[0].mxu0 %v1189
  %v3747 = vpop.f32.mrb[0].mxu0
  %v3748 = vadd.f32 %v2838, %v3747
  %v3749 = vpop.f32.mrb[0].mxu0
  %3750 = vmatprep.mubr.f32.mxu0 0.0
  %3751 = vmatmul.mubr.f32.gmra.mrb[0].mxu0 %v1192
  %v3752 = vpop.f32.mrb[0].mxu0
  %v3753 = vadd.f32 %v2843, %v3752
  %v3754 = vpop.f32.mrb[0].mxu0
  %3755 = vmatprep.mubr.f32.mxu0 0.0
  %3756 = vmatmul.mubr.f32.gmra.mrb[0].mxu0 %v1195
  %v3757 = vpop.f32.mrb[0].mxu0
  %v3758 = vadd.f32 %v2848, %v3757
  %v3759 = vpop.f32.mrb[0].mxu0
  %3760 = vmatprep.mubr.f32.mxu0 0.0
  %3761 = vmatmul.mubr.f32.gmra.mrb[0].mxu0 %v1198
  %v3762 = vpop.f32.mrb[0].mxu0
  %v3763 = vadd.f32 %v2853, %v3762
  %v3764 = vpop.f32.mrb[0].mxu0
  %3765 = vmatprep.mubr.f32.mxu0 0.0
  %3766 = vmatmul.mubr.f32.gmra.mrb[0].mxu0 %v1201
  %v3767 = vpop.f32.mrb[0].mxu0
  %v3768 = vadd.f32 %v2858, %v3767
  %v3769 = vpop.f32.mrb[0].mxu0
  %3770 = vmatprep.mubr.f32.mxu0 0.0
  %3771 = vmatmul.mubr.f32.gmra.mrb[0].mxu0 %v1204
  %v3772 = vpop.f32.mrb[0].mxu0
  %v3773 = vadd.f32 %v2863, %v3772
  %v3774 = vpop.f32.mrb[0].mxu0
  %3775 = vmatprep.mubr.f32.mxu0 0.0
  %3776 = vmatmul.mubr.f32.gmra.mrb[0].mxu0 %v1207
  %v3777 = vpop.f32.mrb[0].mxu0
  %v3778 = vadd.f32 %v2868, %v3777
  %v3779 = vpop.f32.mrb[0].mxu0
  %3780 = vmatprep.mubr.f32.mxu0 0.0
  %3781 = vmatmul.mubr.f32.gmra.mrb[0].mxu0 %v1210
  %v3782 = vpop.f32.mrb[0].mxu0
  %v3783 = vadd.f32 %v2873, %v3782
  %v3784 = vpop.f32.mrb[0].mxu0
  %3785 = vmatprep.mubr.f32.mxu0 0.0
  %3786 = vmatmul.mubr.f32.gmra.mrb[0].mxu0 %v1213
  %v3787 = vpop.f32.mrb[0].mxu0
  %v3788 = vadd.f32 %v2878, %v3787
  %v3789 = vpop.f32.mrb[0].mxu0
  %3790 = vmatprep.mubr.f32.mxu0 0.0
  %3791 = vmatmul.mubr.f32.gmra.mrb[0].mxu0 %v1216
  %v3792 = vpop.f32.mrb[0].mxu0
  %v3793 = vadd.f32 %v2883, %v3792
  %v3794 = vpop.f32.mrb[0].mxu0
  %3795 = vmatprep.mubr.f32.mxu0 0.0
  %3796 = vmatmul.mubr.f32.gmra.mrb[0].mxu0 %v1219
  %v3797 = vpop.f32.mrb[0].mxu0
  %v3798 = vadd.f32 %v2888, %v3797
  %v3799 = vpop.f32.mrb[0].mxu0
  %3800 = vmatprep.mubr.f32.mxu0 0.0
  %3801 = vmatmul.mubr.f32.gmra.mrb[0].mxu0 %v1222
  %v3802 = vpop.f32.mrb[0].mxu0
  %v3803 = vadd.f32 %v2893, %v3802
  %v3804 = vpop.f32.mrb[0].mxu0
  %3805 = vmatprep.mubr.f32.mxu0 0.0
  %3806 = vmatmul.mubr.f32.gmra.mrb[0].mxu0 %v1225
  %v3807 = vpop.f32.mrb[0].mxu0
  %v3808 = vadd.f32 %v2898, %v3807
  %v3809 = vpop.f32.mrb[0].mxu0
  %3810 = vmatprep.mubr.f32.mxu0 0.0
  %3811 = vmatmul.mubr.f32.gmra.mrb[0].mxu0 %v1228
  %v3812 = vpop.f32.mrb[0].mxu0
  %v3813 = vadd.f32 %v2903, %v3812
  %v3814 = vpop.f32.mrb[0].mxu0
  %3815 = vmatprep.mubr.f32.mxu0 0.0
  %3816 = vmatmul.mubr.f32.gmra.mrb[0].mxu0 %v1231
  %v3817 = vpop.f32.mrb[0].mxu0
  %v3818 = vadd.f32 %v2908, %v3817
  %v3819 = vpop.f32.mrb[0].mxu0
  %3820 = vmatprep.mubr.f32.mxu0 0.0
  %3821 = vmatmul.mubr.f32.gmra.mrb[0].mxu0 %v1234
  %v3822 = vpop.f32.mrb[0].mxu0
  %v3823 = vadd.f32 %v2913, %v3822
  %v3824 = vpop.f32.mrb[0].mxu0
  %3825 = vmatprep.mubr.f32.mxu0 0.0
  %3826 = vmatmul.mubr.f32.gmra.mrb[0].mxu0 %v1237
  %v3827 = vpop.f32.mrb[0].mxu0
  %v3828 = vadd.f32 %v2918, %v3827
  %v3829 = vpop.f32.mrb[0].mxu0
  %3830 = vmatprep.mubr.f32.mxu0 0.0
  %3831 = vmatmul.mubr.f32.gmra.mrb[0].mxu0 %v1240
  %v3832 = vpop.f32.mrb[0].mxu0
  %v3833 = vadd.f32 %v2923, %v3832
  %v3834 = vpop.f32.mrb[0].mxu0
  %3835 = vmatprep.mubr.f32.mxu0 0.0
  %3836 = vmatmul.mubr.f32.gmra.mrb[0].mxu0 %v1243
  %v3837 = vpop.f32.mrb[0].mxu0
  %v3838 = vadd.f32 %v2928, %v3837
  %v3839 = vpop.f32.mrb[0].mxu0
  %3840 = vmatprep.mubr.f32.mxu0 0.0
  %3841 = vmatmul.mubr.f32.gmra.mrb[0].mxu0 %v1246
  %v3842 = vpop.f32.mrb[0].mxu0
  %v3843 = vadd.f32 %v2933, %v3842
  %v3844 = vpop.f32.mrb[0].mxu0
  %3845 = vmatprep.mubr.f32.mxu0 0.0
  %3846 = vmatmul.mubr.f32.gmra.mrb[0].mxu0 %v1249
  %v3847 = vpop.f32.mrb[0].mxu0
  %v3848 = vadd.f32 %v2938, %v3847
  %v3849 = vpop.f32.mrb[0].mxu0
  %3850 = vmatprep.mubr.f32.mxu0 0.0
  %3851 = vmatmul.mubr.f32.gmra.mrb[0].mxu0 %v1252
  %v3852 = vpop.f32.mrb[0].mxu0
  %v3853 = vadd.f32 %v2943, %v3852
  %v3854 = vpop.f32.mrb[0].mxu0
  %3855 = vmatprep.mubr.f32.mxu0 0.0
  %3856 = vmatmul.mubr.f32.gmra.mrb[0].mxu0 %v1255
  %v3857 = vpop.f32.mrb[0].mxu0
  %v3858 = vadd.f32 %v2948, %v3857
  %v3859 = vpop.f32.mrb[0].mxu0
  %3860 = vmatprep.mubr.f32.mxu0 0.0
  %3861 = vmatmul.mubr.f32.gmra.mrb[0].mxu0 %v1258
  %v3862 = vpop.f32.mrb[0].mxu0
  %v3863 = vadd.f32 %v2953, %v3862
  %v3864 = vpop.f32.mrb[0].mxu0
  %3865 = vmatprep.mubr.f32.mxu0 0.0
  %3866 = vmatmul.mubr.f32.gmra.mrb[0].mxu0 %v1261
  %v3867 = vpop.f32.mrb[0].mxu0
  %v3868 = vadd.f32 %v2958, %v3867
  %v3869 = vpop.f32.mrb[0].mxu0
  %3870 = vmatprep.mubr.f32.mxu0 0.0
  %3871 = vmatmul.mubr.f32.gmra.mrb[0].mxu0 %v1264
  %v3872 = vpop.f32.mrb[0].mxu0
  %v3873 = vadd.f32 %v2963, %v3872
  %v3874 = vpop.f32.mrb[0].mxu0
  %3875 = vmatprep.mubr.f32.mxu0 0.0
  %3876 = vmatmul.mubr.f32.gmra.mrb[0].mxu0 %v1267
  %v3877 = vpop.f32.mrb[0].mxu0
  %v3878 = vadd.f32 %v2968, %v3877
  %v3879 = vpop.f32.mrb[0].mxu0
  %3880 = vmatprep.mubr.f32.mxu0 0.0
  %3881 = vmatmul.mubr.f32.gmra.mrb[0].mxu0 %v1270
  %v3882 = vpop.f32.mrb[0].mxu0
  %v3883 = vadd.f32 %v2973, %v3882
  %v3884 = vpop.f32.mrb[0].mxu0
  %3885 = vmatprep.mubr.f32.mxu0 0.0
  %3886 = vmatmul.mubr.f32.gmra.mrb[0].mxu0 %v1273
  %v3887 = vpop.f32.mrb[0].mxu0
  %v3888 = vadd.f32 %v2978, %v3887
  %v3889 = vpop.f32.mrb[0].mxu0
  %3890 = vmatprep.mubr.f32.mxu0 0.0
  %3891 = vmatmul.mubr.f32.gmra.mrb[0].mxu0 %v1276
  %v3892 = vpop.f32.mrb[0].mxu0
  %v3893 = vadd.f32 %v2983, %v3892
  %v3894 = vpop.f32.mrb[0].mxu0
  %3895 = vmatprep.mubr.f32.mxu0 0.0
  %3896 = vmatmul.mubr.f32.gmra.mrb[0].mxu0 %v1279
  %v3897 = vpop.f32.mrb[0].mxu0
  %v3898 = vadd.f32 %v2988, %v3897
  %v3899 = vpop.f32.mrb[0].mxu0
  %3900 = vmatprep.mubr.f32.mxu0 0.0
  %3901 = vmatmul.mubr.f32.gmra.mrb[0].mxu0 %v1282
  %v3902 = vpop.f32.mrb[0].mxu0
  %v3903 = vadd.f32 %v2993, %v3902
  %v3904 = vpop.f32.mrb[0].mxu0
  %3905 = vmatprep.mubr.f32.mxu0 0.0
  %3906 = vmatmul.mubr.f32.gmra.mrb[0].mxu0 %v1285
  %v3907 = vpop.f32.mrb[0].mxu0
  %v3908 = vadd.f32 %v2998, %v3907
  %v3909 = vpop.f32.mrb[0].mxu0
  %3910 = vmatprep.mubr.f32.mxu0 0.0
  %3911 = vmatmul.mubr.f32.gmra.mrb[0].mxu0 %v1288
  %v3912 = vpop.f32.mrb[0].mxu0
  %v3913 = vadd.f32 %v3003, %v3912
  %v3914 = vpop.f32.mrb[0].mxu0
  %3915 = vmatprep.mubr.f32.mxu0 0.0
  %3916 = vmatmul.mubr.f32.gmra.mrb[0].mxu0 %v1291
  %v3917 = vpop.f32.mrb[0].mxu0
  %v3918 = vadd.f32 %v3008, %v3917
  %v3919 = vpop.f32.mrb[0].mxu0
  %3920 = vmatprep.mubr.f32.mxu0 0.0
  %3921 = vmatmul.mubr.f32.gmra.mrb[0].mxu0 %v1294
  %v3922 = vpop.f32.mrb[0].mxu0
  %v3923 = vadd.f32 %v3013, %v3922
  %v3924 = vpop.f32.mrb[0].mxu0
  %3925 = vmatprep.mubr.f32.mxu0 0.0
  %3926 = vmatmul.mubr.f32.gmra.mrb[0].mxu0 %v1297
  %v3927 = vpop.f32.mrb[0].mxu0
  %v3928 = vadd.f32 %v3018, %v3927
  %v3929 = vpop.f32.mrb[0].mxu0
  %3930 = vmatprep.mubr.f32.mxu0 0.0
  %3931 = vmatmul.mubr.f32.gmra.mrb[0].mxu0 %v1300
  %v3932 = vpop.f32.mrb[0].mxu0
  %v3933 = vadd.f32 %v3023, %v3932
  %v3934 = vpop.f32.mrb[0].mxu0
  %3935 = vmatprep.mubr.f32.mxu0 0.0
  %3936 = vmatmul.mubr.f32.gmra.mrb[0].mxu0 %v1303
  %v3937 = vpop.f32.mrb[0].mxu0
  %v3938 = vadd.f32 %v3028, %v3937
  %v3939 = vpop.f32.mrb[0].mxu0
  %3940 = vmatprep.mubr.f32.mxu0 0.0
  %3941 = vmatmul.mubr.f32.gmra.mrb[0].mxu0 %v1306
  %v3942 = vpop.f32.mrb[0].mxu0
  %v3943 = vadd.f32 %v3033, %v3942
  %v3944 = vpop.f32.mrb[0].mxu0
  %3945 = vmatprep.mubr.f32.mxu0 0.0
  %3946 = vmatmul.mubr.f32.gmra.mrb[0].mxu0 %v1309
  %v3947 = vpop.f32.mrb[0].mxu0
  %v3948 = vadd.f32 %v3038, %v3947
  %v3949 = vpop.f32.mrb[0].mxu0
  %3950 = vmatprep.mubr.f32.mxu0 0.0
  %3951 = vmatmul.mubr.f32.gmra.mrb[0].mxu0 %v1312
  %v3952 = vpop.f32.mrb[0].mxu0
  %v3953 = vadd.f32 %v3043, %v3952
  %v3954 = vpop.f32.mrb[0].mxu0
  %3955 = vmatprep.mubr.f32.mxu0 0.0
  %3956 = vmatmul.mubr.f32.gmra.mrb[0].mxu0 %v1315
  %v3957 = vpop.f32.mrb[0].mxu0
  %v3958 = vadd.f32 %v3048, %v3957
  %v3959 = vpop.f32.mrb[0].mxu0
  %3960 = vmatprep.mubr.f32.mxu0 0.0
  %3961 = vmatmul.mubr.f32.gmra.mrb[0].mxu0 %v1318
  %v3962 = vpop.f32.mrb[0].mxu0
  %v3963 = vadd.f32 %v3053, %v3962
  %v3964 = vpop.f32.mrb[0].mxu0
  %3965 = vmatprep.mubr.f32.mxu0 0.0
  %3966 = vmatmul.mubr.f32.gmra.mrb[0].mxu0 %v1321
  %v3967 = vpop.f32.mrb[0].mxu0
  %v3968 = vadd.f32 %v3058, %v3967
  %v3969 = vpop.f32.mrb[0].mxu0
  %3970 = vmatprep.mubr.f32.mxu0 0.0
  %3971 = vmatmul.mubr.f32.gmra.mrb[0].mxu0 %v1324
  %v3972 = vpop.f32.mrb[0].mxu0
  %v3973 = vadd.f32 %v3063, %v3972
  %v3974 = vpop.f32.mrb[0].mxu0
  %3975 = vmatprep.mubr.f32.mxu0 0.0
  %3976 = vmatmul.mubr.f32.gmra.mrb[0].mxu0 %v1327
  %v3977 = vpop.f32.mrb[0].mxu0
  %v3978 = vadd.f32 %v3068, %v3977
  %v3979 = vpop.f32.mrb[0].mxu0
  %3980 = vmatprep.mubr.f32.mxu0 0.0
  %3981 = vmatmul.mubr.f32.gmra.mrb[0].mxu0 %v1330
  %v3982 = vpop.f32.mrb[0].mxu0
  %v3983 = vadd.f32 %v3073, %v3982
  %v3984 = vpop.f32.mrb[0].mxu0
  %3985 = vmatprep.mubr.f32.mxu0 0.0
  %3986 = vmatmul.mubr.f32.gmra.mrb[0].mxu0 %v1333
  %v3987 = vpop.f32.mrb[0].mxu0
  %v3988 = vadd.f32 %v3078, %v3987
  %v3989 = vpop.f32.mrb[0].mxu0
  %3990 = vmatprep.mubr.f32.mxu0 0.0
  %3991 = vmatmul.mubr.f32.gmra.mrb[0].mxu0 %v1336
  %v3992 = vpop.f32.mrb[0].mxu0
  %v3993 = vadd.f32 %v3083, %v3992
  %v3994 = vpop.f32.mrb[0].mxu0
  %3995 = vmatprep.mubr.f32.mxu0 0.0
  %3996 = vmatmul.mubr.f32.gmra.mrb[0].mxu0 %v1339
  %v3997 = vpop.f32.mrb[0].mxu0
  %v3998 = vadd.f32 %v3088, %v3997
  %v3999 = vpop.f32.mrb[0].mxu0
  %4000 = vmatprep.mubr.f32.mxu0 0.0
  %4001 = vmatmul.mubr.f32.gmra.mrb[0].mxu0 %v1342
  %v4002 = vpop.f32.mrb[0].mxu0
  %v4003 = vadd.f32 %v3093, %v4002
  %v4004 = vpop.f32.mrb[0].mxu0
  %4005 = vmatprep.mubr.f32.mxu0 0.0
  %4006 = vmatmul.mubr.f32.gmra.mrb[0].mxu0 %v1345
  %v4007 = vpop.f32.mrb[0].mxu0
  %v4008 = vadd.f32 %v3098, %v4007
  %v4009 = vpop.f32.mrb[0].mxu0
  %4010 = vmatprep.mubr.f32.mxu0 0.0
  %4011 = vmatmul.mubr.f32.gmra.mrb[0].mxu0 %v1348
  %v4012 = vpop.f32.mrb[0].mxu0
  %v4013 = vadd.f32 %v3103, %v4012
  %v4014 = vpop.f32.mrb[0].mxu0
  %4015 = vmatprep.mubr.f32.mxu0 0.0
  %4016 = vmatmul.mubr.f32.gmra.mrb[0].mxu0 %v1351
  %v4017 = vpop.f32.mrb[0].mxu0
  %v4018 = vadd.f32 %v3108, %v4017
  %v4019 = vpop.f32.mrb[0].mxu0
  %4020 = vmatprep.mubr.f32.mxu0 0.0
  %4021 = vmatmul.mubr.f32.gmra.mrb[0].mxu0 %v1354
  %v4022 = vpop.f32.mrb[0].mxu0
  %v4023 = vadd.f32 %v3113, %v4022
  %v4024 = vpop.f32.mrb[0].mxu0
  %4025 = vmatprep.mubr.f32.mxu0 0.0
  %4026 = vmatmul.mubr.f32.gmra.mrb[0].mxu0 %v1357
  %v4027 = vpop.f32.mrb[0].mxu0
  %v4028 = vadd.f32 %v3118, %v4027
  %v4029 = vpop.f32.mrb[0].mxu0
  %4030 = vmatprep.mubr.f32.mxu0 0.0
  %4031 = vmatmul.mubr.f32.gmra.mrb[0].mxu0 %v1360
  %v4032 = vpop.f32.mrb[0].mxu0
  %v4033 = vadd.f32 %v3123, %v4032
  %v4034 = vpop.f32.mrb[0].mxu0
  %4035 = vmatprep.mubr.f32.mxu0 0.0
  %4036 = vmatmul.mubr.f32.gmra.mrb[0].mxu0 %v1363
  %v4037 = vpop.f32.mrb[0].mxu0
  %v4038 = vadd.f32 %v3128, %v4037
  %v4039 = vpop.f32.mrb[0].mxu0
  %4040 = vmatprep.mubr.f32.mxu0 0.0
  %4041 = vmatmul.mubr.f32.gmra.mrb[0].mxu0 %v1366
  %v4042 = vpop.f32.mrb[0].mxu0
  %v4043 = vadd.f32 %v3133, %v4042
  %v4044 = vpop.f32.mrb[0].mxu0
  %4045 = vmatprep.mubr.f32.mxu0 0.0
  %4046 = vmatmul.mubr.f32.gmra.mrb[0].mxu0 %v1369
  %v4047 = vpop.f32.mrb[0].mxu0
  %v4048 = vadd.f32 %v3138, %v4047
  %v4049 = vpop.f32.mrb[0].mxu0
  %4050 = vmatprep.mubr.f32.mxu0 0.0
  %4051 = vmatmul.mubr.f32.gmra.mrb[0].mxu0 %v1372
  %v4052 = vpop.f32.mrb[0].mxu0
  %v4053 = vadd.f32 %v3143, %v4052
  %v4054 = vpop.f32.mrb[0].mxu0
  %4055 = vmatprep.mubr.f32.mxu0 0.0
  %4056 = vmatmul.mubr.f32.gmra.mrb[0].mxu0 %v1375
  %v4057 = vpop.f32.mrb[0].mxu0
  %v4058 = vadd.f32 %v3148, %v4057
  %v4059 = vpop.f32.mrb[0].mxu0
  %4060 = vmatprep.mubr.f32.mxu0 0.0
  %4061 = vmatmul.mubr.f32.gmra.mrb[0].mxu0 %v1378
  %v4062 = vpop.f32.mrb[0].mxu0
  %v4063 = vadd.f32 %v3153, %v4062
  %v4064 = vpop.f32.mrb[0].mxu0
  %4065 = vmatprep.mubr.f32.mxu0 0.0
  %4066 = vmatmul.mubr.f32.gmra.mrb[0].mxu0 %v1381
  %v4067 = vpop.f32.mrb[0].mxu0
  %v4068 = vadd.f32 %v3158, %v4067
  %v4069 = vpop.f32.mrb[0].mxu0
  %4070 = vmatprep.mubr.f32.mxu0 0.0
  %4071 = vmatmul.mubr.f32.gmra.mrb[0].mxu0 %v1384
  %v4072 = vpop.f32.mrb[0].mxu0
  %v4073 = vadd.f32 %v3163, %v4072
  %v4074 = vpop.f32.mrb[0].mxu0
  %4075 = vmatprep.mubr.f32.mxu0 0.0
  %4076 = vmatmul.mubr.f32.gmra.mrb[0].mxu0 %v1387
  %v4077 = vpop.f32.mrb[0].mxu0
  %v4078 = vadd.f32 %v3168, %v4077
  %v4079 = vpop.f32.mrb[0].mxu0
  %4080 = vmatprep.mubr.f32.mxu0 0.0
  %4081 = vmatmul.mubr.f32.gmra.mrb[0].mxu0 %v1390
  %v4082 = vpop.f32.mrb[0].mxu0
  %v4083 = vadd.f32 %v3173, %v4082
  %v4084 = vpop.f32.mrb[0].mxu0
  %4085 = vmatprep.mubr.f32.mxu0 0.0
  %4086 = vmatmul.mubr.f32.gmra.mrb[0].mxu0 %v1393
  %v4087 = vpop.f32.mrb[0].mxu0
  %v4088 = vadd.f32 %v3178, %v4087
  %v4089 = vpop.f32.mrb[0].mxu0
  %4090 = vmatprep.mubr.f32.mxu0 0.0
  %4091 = vmatmul.mubr.f32.gmra.mrb[0].mxu0 %v1396
  %v4092 = vpop.f32.mrb[0].mxu0
  %v4093 = vadd.f32 %v3183, %v4092
  %v4094 = vpop.f32.mrb[0].mxu0
  %4095 = vmatprep.mubr.f32.mxu0 0.0
  %4096 = vmatmul.mubr.f32.gmra.mrb[0].mxu0 %v1399
  %v4097 = vpop.f32.mrb[0].mxu0
  %v4098 = vadd.f32 %v3188, %v4097
  %v4099 = vpop.f32.mrb[0].mxu0
  %4100 = vmatprep.mubr.f32.mxu0 0.0
  %4101 = vmatmul.mubr.f32.gmra.mrb[0].mxu0 %v1402
  %v4102 = vpop.f32.mrb[0].mxu0
  %v4103 = vadd.f32 %v3193, %v4102
  %v4104 = vpop.f32.mrb[0].mxu0
  %4105 = vmatprep.mubr.f32.mxu0 0.0
  %4106 = vmatmul.mubr.f32.gmra.mrb[0].mxu0 %v1405
  %v4107 = vpop.f32.mrb[0].mxu0
  %v4108 = vadd.f32 %v3198, %v4107
  %v4109 = vpop.f32.mrb[0].mxu0
  %4110 = vmatprep.mubr.f32.mxu0 0.0
  %4111 = vmatmul.mubr.f32.gmra.mrb[0].mxu0 %v1408
  %v4112 = vpop.f32.mrb[0].mxu0
  %v4113 = vadd.f32 %v3203, %v4112
  %v4114 = vpop.f32.mrb[0].mxu0
  %4115 = vmatprep.mubr.f32.mxu0 0.0
  %4116 = vmatmul.mubr.f32.gmra.mrb[0].mxu0 %v1411
  %v4117 = vpop.f32.mrb[0].mxu0
  %v4118 = vadd.f32 %v3208, %v4117
  %v4119 = vpop.f32.mrb[0].mxu0
  %4120 = vmatprep.mubr.f32.mxu0 0.0
  %4121 = vmatmul.mubr.f32.gmra.mrb[0].mxu0 %v1414
  %v4122 = vpop.f32.mrb[0].mxu0
  %v4123 = vadd.f32 %v3213, %v4122
  %v4124 = vpop.f32.mrb[0].mxu0
  %4125 = vmatprep.mubr.f32.mxu0 0.0
  %4126 = vmatmul.mubr.f32.gmra.mrb[0].mxu0 %v1417
  %v4127 = vpop.f32.mrb[0].mxu0
  %v4128 = vadd.f32 %v3218, %v4127
  %v4129 = vpop.f32.mrb[0].mxu0
  %4130 = vmatprep.mubr.f32.mxu0 0.0
  %4131 = vmatmul.mubr.f32.gmra.mrb[0].mxu0 %v1420
  %v4132 = vpop.f32.mrb[0].mxu0
  %v4133 = vadd.f32 %v3223, %v4132
  %v4134 = vpop.f32.mrb[0].mxu0
  %4135 = vmatprep.mubr.f32.mxu0 0.0
  %4136 = vmatmul.mubr.f32.gmra.mrb[0].mxu0 %v1423
  %v4137 = vpop.f32.mrb[0].mxu0
  %v4138 = vadd.f32 %v3228, %v4137
  %v4139 = vpop.f32.mrb[0].mxu0
  %4140 = vmatprep.mubr.f32.mxu0 0.0
  %4141 = vmatmul.mubr.f32.gmra.mrb[0].mxu0 %v1426
  %v4142 = vpop.f32.mrb[0].mxu0
  %v4143 = vadd.f32 %v3233, %v4142
  %v4144 = vpop.f32.mrb[0].mxu0
  %4145 = vmatprep.mubr.f32.mxu0 0.0
  %4146 = vmatmul.mubr.f32.gmra.mrb[0].mxu0 %v1429
  %v4147 = vpop.f32.mrb[0].mxu0
  %v4148 = vadd.f32 %v3238, %v4147
  %v4149 = vpop.f32.mrb[0].mxu0
  %4150 = vmatprep.mubr.f32.mxu0 0.0
  %4151 = vmatmul.mubr.f32.gmra.mrb[0].mxu0 %v1432
  %v4152 = vpop.f32.mrb[0].mxu0
  %v4153 = vadd.f32 %v3243, %v4152
  %v4154 = vpop.f32.mrb[0].mxu0
  %4155 = vmatprep.mubr.f32.mxu0 0.0
  %4156 = vmatmul.mubr.f32.gmra.mrb[0].mxu0 %v1435
  %v4157 = vpop.f32.mrb[0].mxu0
  %v4158 = vadd.f32 %v3248, %v4157
  %v4159 = vpop.f32.mrb[0].mxu0
  %4160 = vmatprep.mubr.f32.mxu0 0.0
  %4161 = vmatmul.mubr.f32.gmra.mrb[0].mxu0 %v1438
  %v4162 = vpop.f32.mrb[0].mxu0
  %v4163 = vadd.f32 %v3253, %v4162
  %v4164 = vpop.f32.mrb[0].mxu0
  %4165 = vmatprep.mubr.f32.mxu0 0.0
  %4166 = vmatmul.mubr.f32.gmra.mrb[0].mxu0 %v1441
  %v4167 = vpop.f32.mrb[0].mxu0
  %v4168 = vadd.f32 %v3258, %v4167
  %v4169 = vpop.f32.mrb[0].mxu0
  %4170 = vmatprep.mubr.f32.mxu0 0.0
  %4171 = vmatmul.mubr.f32.gmra.mrb[0].mxu0 %v1444
  %v4172 = vpop.f32.mrb[0].mxu0
  %v4173 = vadd.f32 %v3263, %v4172
  %v4174 = vpop.f32.mrb[0].mxu0
  %4175 = vdwg.mxu0
  %v4176 = vmax.f32 %v3333, 0.0
  %v4177 = vmax.f32 %v3338, 0.0
  %v4178 = vmax.f32 %v3343, 0.0
  %v4179 = vmax.f32 %v3348, 0.0
  %v4180 = vmax.f32 %v3353, 0.0
  %v4181 = vmax.f32 %v3358, 0.0
  %v4182 = vmax.f32 %v3363, 0.0
  %v4183 = vmax.f32 %v3368, 0.0
  %v4184 = vmax.f32 %v3373, 0.0
  %v4185 = vmax.f32 %v3378, 0.0
  %v4186 = vmax.f32 %v3383, 0.0
  %v4187 = vmax.f32 %v3388, 0.0
  %v4188 = vmax.f32 %v3393, 0.0
  %v4189 = vmax.f32 %v3398, 0.0
  %v4190 = vmax.f32 %v3403, 0.0
  %v4191 = vmax.f32 %v3408, 0.0
  %v4192 = vmax.f32 %v3413, 0.0
  %v4193 = vmax.f32 %v3418, 0.0
  %v4194 = vmax.f32 %v3423, 0.0
  %v4195 = vmax.f32 %v3428, 0.0
  %v4196 = vmax.f32 %v3433, 0.0
  %v4197 = vmax.f32 %v3438, 0.0
  %v4198 = vmax.f32 %v3443, 0.0
  %v4199 = vmax.f32 %v3448, 0.0
  %v4200 = vmax.f32 %v3453, 0.0
  %v4201 = vmax.f32 %v3458, 0.0
  %v4202 = vmax.f32 %v3463, 0.0
  %v4203 = vmax.f32 %v3468, 0.0
  %v4204 = vmax.f32 %v3473, 0.0
  %v4205 = vmax.f32 %v3478, 0.0
  %v4206 = vmax.f32 %v3483, 0.0
  %v4207 = vmax.f32 %v3488, 0.0
  %v4208 = vmax.f32 %v3493, 0.0
  %v4209 = vmax.f32 %v3498, 0.0
  %v4210 = vmax.f32 %v3503, 0.0
  %v4211 = vmax.f32 %v3508, 0.0
  %v4212 = vmax.f32 %v3513, 0.0
  %v4213 = vmax.f32 %v3518, 0.0
  %v4214 = vmax.f32 %v3523, 0.0
  %v4215 = vmax.f32 %v3528, 0.0
  %v4216 = vmax.f32 %v3533, 0.0
  %v4217 = vmax.f32 %v3538, 0.0
  %v4218 = vmax.f32 %v3543, 0.0
  %v4219 = vmax.f32 %v3548, 0.0
  %v4220 = vmax.f32 %v3553, 0.0
  %v4221 = vmax.f32 %v3558, 0.0
  %v4222 = vmax.f32 %v3563, 0.0
  %v4223 = vmax.f32 %v3568, 0.0
  %v4224 = vmax.f32 %v3573, 0.0
  %v4225 = vmax.f32 %v3578, 0.0
  %v4226 = vmax.f32 %v3583, 0.0
  %v4227 = vmax.f32 %v3588, 0.0
  %v4228 = vmax.f32 %v3593, 0.0
  %v4229 = vmax.f32 %v3598, 0.0
  %v4230 = vmax.f32 %v3603, 0.0
  %v4231 = vmax.f32 %v3608, 0.0
  %v4232 = vmax.f32 %v3613, 0.0
  %v4233 = vmax.f32 %v3618, 0.0
  %v4234 = vmax.f32 %v3623, 0.0
  %v4235 = vmax.f32 %v3628, 0.0
  %v4236 = vmax.f32 %v3633, 0.0
  %v4237 = vmax.f32 %v3638, 0.0
  %v4238 = vmax.f32 %v3643, 0.0
  %v4239 = vmax.f32 %v3648, 0.0
  %v4240 = vmax.f32 %v3653, 0.0
  %v4241 = vmax.f32 %v3658, 0.0
  %v4242 = vmax.f32 %v3663, 0.0
  %v4243 = vmax.f32 %v3668, 0.0
  %v4244 = vmax.f32 %v3673, 0.0
  %v4245 = vmax.f32 %v3678, 0.0
  %v4246 = vmax.f32 %v3683, 0.0
  %v4247 = vmax.f32 %v3688, 0.0
  %v4248 = vmax.f32 %v3693, 0.0
  %v4249 = vmax.f32 %v3698, 0.0
  %v4250 = vmax.f32 %v3703, 0.0
  %v4251 = vmax.f32 %v3708, 0.0
  %v4252 = vmax.f32 %v3713, 0.0
  %v4253 = vmax.f32 %v3718, 0.0
  %v4254 = vmax.f32 %v3723, 0.0
  %v4255 = vmax.f32 %v3728, 0.0
  %v4256 = vmax.f32 %v3733, 0.0
  %v4257 = vmax.f32 %v3738, 0.0
  %v4258 = vmax.f32 %v3743, 0.0
  %v4259 = vmax.f32 %v3748, 0.0
  %v4260 = vmax.f32 %v3753, 0.0
  %v4261 = vmax.f32 %v3758, 0.0
  %v4262 = vmax.f32 %v3763, 0.0
  %v4263 = vmax.f32 %v3768, 0.0
  %v4264 = vmax.f32 %v3773, 0.0
  %v4265 = vmax.f32 %v3778, 0.0
  %v4266 = vmax.f32 %v3783, 0.0
  %v4267 = vmax.f32 %v3788, 0.0
  %v4268 = vmax.f32 %v3793, 0.0
  %v4269 = vmax.f32 %v3798, 0.0
  %v4270 = vmax.f32 %v3803, 0.0
  %v4271 = vmax.f32 %v3808, 0.0
  %v4272 = vmax.f32 %v3813, 0.0
  %v4273 = vmax.f32 %v3818, 0.0
  %v4274 = vmax.f32 %v3823, 0.0
  %v4275 = vmax.f32 %v3828, 0.0
  %v4276 = vmax.f32 %v3833, 0.0
  %v4277 = vmax.f32 %v3838, 0.0
  %v4278 = vmax.f32 %v3843, 0.0
  %v4279 = vmax.f32 %v3848, 0.0
  %v4280 = vmax.f32 %v3853, 0.0
  %v4281 = vmax.f32 %v3858, 0.0
  %v4282 = vmax.f32 %v3863, 0.0
  %v4283 = vmax.f32 %v3868, 0.0
  %v4284 = vmax.f32 %v3873, 0.0
  %v4285 = vmax.f32 %v3878, 0.0
  %v4286 = vmax.f32 %v3883, 0.0
  %v4287 = vmax.f32 %v3888, 0.0
  %v4288 = vmax.f32 %v3893, 0.0
  %v4289 = vmax.f32 %v3898, 0.0
  %v4290 = vmax.f32 %v3903, 0.0
  %v4291 = vmax.f32 %v3908, 0.0
  %v4292 = vmax.f32 %v3913, 0.0
  %v4293 = vmax.f32 %v3918, 0.0
  %v4294 = vmax.f32 %v3923, 0.0
  %v4295 = vmax.f32 %v3928, 0.0
  %v4296 = vmax.f32 %v3933, 0.0
  %v4297 = vmax.f32 %v3938, 0.0
  %v4298 = vmax.f32 %v3943, 0.0
  %v4299 = vmax.f32 %v3948, 0.0
  %v4300 = vmax.f32 %v3953, 0.0
  %v4301 = vmax.f32 %v3958, 0.0
  %v4302 = vmax.f32 %v3963, 0.0
  %v4303 = vmax.f32 %v3968, 0.0
  %v4304 = vmax.f32 %v3973, 0.0
  %v4305 = vmax.f32 %v3978, 0.0
  %v4306 = vmax.f32 %v3983, 0.0
  %v4307 = vmax.f32 %v3988, 0.0
  %v4308 = vmax.f32 %v3993, 0.0
  %v4309 = vmax.f32 %v3998, 0.0
  %v4310 = vmax.f32 %v4003, 0.0
  %v4311 = vmax.f32 %v4008, 0.0
  %v4312 = vmax.f32 %v4013, 0.0
  %v4313 = vmax.f32 %v4018, 0.0
  %v4314 = vmax.f32 %v4023, 0.0
  %v4315 = vmax.f32 %v4028, 0.0
  %v4316 = vmax.f32 %v4033, 0.0
  %v4317 = vmax.f32 %v4038, 0.0
  %v4318 = vmax.f32 %v4043, 0.0
  %v4319 = vmax.f32 %v4048, 0.0
  %v4320 = vmax.f32 %v4053, 0.0
  %v4321 = vmax.f32 %v4058, 0.0
  %v4322 = vmax.f32 %v4063, 0.0
  %v4323 = vmax.f32 %v4068, 0.0
  %v4324 = vmax.f32 %v4073, 0.0
  %v4325 = vmax.f32 %v4078, 0.0
  %v4326 = vmax.f32 %v4083, 0.0
  %v4327 = vmax.f32 %v4088, 0.0
  %v4328 = vmax.f32 %v4093, 0.0
  %v4329 = vmax.f32 %v4098, 0.0
  %v4330 = vmax.f32 %v4103, 0.0
  %v4331 = vmax.f32 %v4108, 0.0
  %v4332 = vmax.f32 %v4113, 0.0
  %v4333 = vmax.f32 %v4118, 0.0
  %v4334 = vmax.f32 %v4123, 0.0
  %v4335 = vmax.f32 %v4128, 0.0
  %v4336 = vmax.f32 %v4133, 0.0
  %v4337 = vmax.f32 %v4138, 0.0
  %v4338 = vmax.f32 %v4143, 0.0
  %v4339 = vmax.f32 %v4148, 0.0
  %v4340 = vmax.f32 %v4153, 0.0
  %v4341 = vmax.f32 %v4158, 0.0
  %v4342 = vmax.f32 %v4163, 0.0
  %v4343 = vmax.f32 %v4168, 0.0
  %v4344 = vmax.f32 %v4173, 0.0
  %4514 = vrot.lane.b32.xlu0 %v4176, 96
  %v4515 = vpop.permute.xlu0 %4514
  %4516 = vrot.lane.b32.xlu0 %v4177, 96
  %v4517 = vpop.permute.xlu0 %4516
  %4518 = vrot.lane.b32.xlu0 %v4178, 96
  %v4519 = vpop.permute.xlu0 %4518
  %4520 = vrot.lane.b32.xlu0 %v4179, 96
  %v4521 = vpop.permute.xlu0 %4520
  %4522 = vrot.lane.b32.xlu0 %v4180, 96
  %v4523 = vpop.permute.xlu0 %4522
  %4524 = vrot.lane.b32.xlu0 %v4181, 96
  %v4525 = vpop.permute.xlu0 %4524
  %4526 = vrot.lane.b32.xlu0 %v4182, 96
  %v4527 = vpop.permute.xlu0 %4526
  %4528 = vrot.lane.b32.xlu0 %v4183, 96
  %v4529 = vpop.permute.xlu0 %4528
  %4530 = vrot.lane.b32.xlu0 %v4184, 96
  %v4531 = vpop.permute.xlu0 %4530
  %4532 = vrot.lane.b32.xlu0 %v4185, 96
  %v4533 = vpop.permute.xlu0 %4532
  %4534 = vrot.lane.b32.xlu0 %v4186, 96
  %v4535 = vpop.permute.xlu0 %4534
  %4536 = vrot.lane.b32.xlu0 %v4187, 96
  %v4537 = vpop.permute.xlu0 %4536
  %4538 = vrot.lane.b32.xlu0 %v4188, 96
  %v4539 = vpop.permute.xlu0 %4538
  %4540 = vrot.lane.b32.xlu0 %v4189, 96
  %v4541 = vpop.permute.xlu0 %4540
  %4542 = vrot.lane.b32.xlu0 %v4190, 96
  %v4543 = vpop.permute.xlu0 %4542
  %4544 = vrot.lane.b32.xlu0 %v4191, 96
  %v4545 = vpop.permute.xlu0 %4544
  %4546 = vrot.lane.b32.xlu0 %v4192, 96
  %v4547 = vpop.permute.xlu0 %4546
  %4548 = vrot.lane.b32.xlu0 %v4193, 96
  %v4549 = vpop.permute.xlu0 %4548
  %4550 = vrot.lane.b32.xlu0 %v4194, 96
  %v4551 = vpop.permute.xlu0 %4550
  %4552 = vrot.lane.b32.xlu0 %v4195, 96
  %v4553 = vpop.permute.xlu0 %4552
  %4554 = vrot.lane.b32.xlu0 %v4196, 96
  %v4555 = vpop.permute.xlu0 %4554
  %4556 = vrot.lane.b32.xlu0 %v4197, 96
  %v4557 = vpop.permute.xlu0 %4556
  %4558 = vrot.lane.b32.xlu0 %v4198, 96
  %v4559 = vpop.permute.xlu0 %4558
  %4560 = vrot.lane.b32.xlu0 %v4199, 96
  %v4561 = vpop.permute.xlu0 %4560
  %4562 = vrot.lane.b32.xlu0 %v4200, 96
  %v4563 = vpop.permute.xlu0 %4562
  %4564 = vrot.lane.b32.xlu0 %v4201, 96
  %v4565 = vpop.permute.xlu0 %4564
  %4566 = vrot.lane.b32.xlu0 %v4202, 96
  %v4567 = vpop.permute.xlu0 %4566
  %4568 = vrot.lane.b32.xlu0 %v4203, 96
  %v4569 = vpop.permute.xlu0 %4568
  %4570 = vrot.lane.b32.xlu0 %v4204, 96
  %v4571 = vpop.permute.xlu0 %4570
  %4572 = vrot.lane.b32.xlu0 %v4205, 96
  %v4573 = vpop.permute.xlu0 %4572
  %4574 = vrot.lane.b32.xlu0 %v4206, 96
  %v4575 = vpop.permute.xlu0 %4574
  %4576 = vrot.lane.b32.xlu0 %v4207, 96
  %v4577 = vpop.permute.xlu0 %4576
  %4578 = vrot.lane.b32.xlu0 %v4208, 96
  %v4579 = vpop.permute.xlu0 %4578
  %4580 = vrot.lane.b32.xlu0 %v4209, 96
  %v4581 = vpop.permute.xlu0 %4580
  %4582 = vrot.lane.b32.xlu0 %v4210, 96
  %v4583 = vpop.permute.xlu0 %4582
  %4584 = vrot.lane.b32.xlu0 %v4211, 96
  %v4585 = vpop.permute.xlu0 %4584
  %4586 = vrot.lane.b32.xlu0 %v4212, 96
  %v4587 = vpop.permute.xlu0 %4586
  %4588 = vrot.lane.b32.xlu0 %v4213, 96
  %v4589 = vpop.permute.xlu0 %4588
  %4590 = vrot.lane.b32.xlu0 %v4214, 96
  %v4591 = vpop.permute.xlu0 %4590
  %4592 = vrot.lane.b32.xlu0 %v4215, 96
  %v4593 = vpop.permute.xlu0 %4592
  %4594 = vrot.lane.b32.xlu0 %v4216, 96
  %v4595 = vpop.permute.xlu0 %4594
  %4596 = vrot.lane.b32.xlu0 %v4217, 96
  %v4597 = vpop.permute.xlu0 %4596
  %4598 = vrot.lane.b32.xlu0 %v4218, 96
  %v4599 = vpop.permute.xlu0 %4598
  %4600 = vrot.lane.b32.xlu0 %v4219, 96
  %v4601 = vpop.permute.xlu0 %4600
  %4602 = vrot.lane.b32.xlu0 %v4220, 96
  %v4603 = vpop.permute.xlu0 %4602
  %4604 = vrot.lane.b32.xlu0 %v4221, 96
  %v4605 = vpop.permute.xlu0 %4604
  %4606 = vrot.lane.b32.xlu0 %v4222, 96
  %v4607 = vpop.permute.xlu0 %4606
  %4608 = vrot.lane.b32.xlu0 %v4223, 96
  %v4609 = vpop.permute.xlu0 %4608
  %4610 = vrot.lane.b32.xlu0 %v4224, 96
  %v4611 = vpop.permute.xlu0 %4610
  %4612 = vrot.lane.b32.xlu0 %v4225, 96
  %v4613 = vpop.permute.xlu0 %4612
  %4614 = vrot.lane.b32.xlu0 %v4226, 96
  %v4615 = vpop.permute.xlu0 %4614
  %4616 = vrot.lane.b32.xlu0 %v4227, 96
  %v4617 = vpop.permute.xlu0 %4616
  %4618 = vrot.lane.b32.xlu0 %v4228, 96
  %v4619 = vpop.permute.xlu0 %4618
  %4620 = vrot.lane.b32.xlu0 %v4229, 96
  %v4621 = vpop.permute.xlu0 %4620
  %4622 = vrot.lane.b32.xlu0 %v4230, 96
  %v4623 = vpop.permute.xlu0 %4622
  %4624 = vrot.lane.b32.xlu0 %v4231, 96
  %v4625 = vpop.permute.xlu0 %4624
  %4626 = vrot.lane.b32.xlu0 %v4232, 96
  %v4627 = vpop.permute.xlu0 %4626
  %4628 = vrot.lane.b32.xlu0 %v4233, 96
  %v4629 = vpop.permute.xlu0 %4628
  %4630 = vrot.lane.b32.xlu0 %v4234, 96
  %v4631 = vpop.permute.xlu0 %4630
  %4632 = vrot.lane.b32.xlu0 %v4235, 96
  %v4633 = vpop.permute.xlu0 %4632
  %4634 = vrot.lane.b32.xlu0 %v4236, 96
  %v4635 = vpop.permute.xlu0 %4634
  %4636 = vrot.lane.b32.xlu0 %v4237, 96
  %v4637 = vpop.permute.xlu0 %4636
  %4638 = vrot.lane.b32.xlu0 %v4238, 96
  %v4639 = vpop.permute.xlu0 %4638
  %4640 = vrot.lane.b32.xlu0 %v4239, 96
  %v4641 = vpop.permute.xlu0 %4640
  %4642 = vrot.lane.b32.xlu0 %v4240, 96
  %v4643 = vpop.permute.xlu0 %4642
  %4644 = vrot.lane.b32.xlu0 %v4241, 96
  %v4645 = vpop.permute.xlu0 %4644
  %4646 = vrot.lane.b32.xlu0 %v4242, 96
  %v4647 = vpop.permute.xlu0 %4646
  %4648 = vrot.lane.b32.xlu0 %v4243, 96
  %v4649 = vpop.permute.xlu0 %4648
  %4650 = vrot.lane.b32.xlu0 %v4244, 96
  %v4651 = vpop.permute.xlu0 %4650
  %4652 = vrot.lane.b32.xlu0 %v4245, 96
  %v4653 = vpop.permute.xlu0 %4652
  %4654 = vrot.lane.b32.xlu0 %v4246, 96
  %v4655 = vpop.permute.xlu0 %4654
  %4656 = vrot.lane.b32.xlu0 %v4247, 96
  %v4657 = vpop.permute.xlu0 %4656
  %4658 = vrot.lane.b32.xlu0 %v4248, 96
  %v4659 = vpop.permute.xlu0 %4658
  %4660 = vrot.lane.b32.xlu0 %v4249, 96
  %v4661 = vpop.permute.xlu0 %4660
  %4662 = vrot.lane.b32.xlu0 %v4250, 96
  %v4663 = vpop.permute.xlu0 %4662
  %4664 = vrot.lane.b32.xlu0 %v4251, 96
  %v4665 = vpop.permute.xlu0 %4664
  %4666 = vrot.lane.b32.xlu0 %v4252, 96
  %v4667 = vpop.permute.xlu0 %4666
  %4668 = vrot.lane.b32.xlu0 %v4253, 96
  %v4669 = vpop.permute.xlu0 %4668
  %4670 = vrot.lane.b32.xlu0 %v4254, 96
  %v4671 = vpop.permute.xlu0 %4670
  %4672 = vrot.lane.b32.xlu0 %v4255, 96
  %v4673 = vpop.permute.xlu0 %4672
  %4674 = vrot.lane.b32.xlu0 %v4256, 96
  %v4675 = vpop.permute.xlu0 %4674
  %4676 = vrot.lane.b32.xlu0 %v4257, 96
  %v4677 = vpop.permute.xlu0 %4676
  %4678 = vrot.lane.b32.xlu0 %v4258, 96
  %v4679 = vpop.permute.xlu0 %4678
  %4680 = vrot.lane.b32.xlu0 %v4259, 96
  %v4681 = vpop.permute.xlu0 %4680
  %4682 = vrot.lane.b32.xlu0 %v4260, 96
  %v4683 = vpop.permute.xlu0 %4682
  %4684 = vrot.lane.b32.xlu0 %v4261, 96
  %v4685 = vpop.permute.xlu0 %4684
  %4686 = vrot.lane.b32.xlu0 %v4262, 96
  %v4687 = vpop.permute.xlu0 %4686
  %4688 = vrot.lane.b32.xlu0 %v4263, 96
  %v4689 = vpop.permute.xlu0 %4688
  %4690 = vrot.lane.b32.xlu0 %v4264, 96
  %v4691 = vpop.permute.xlu0 %4690
  %4692 = vrot.lane.b32.xlu0 %v4265, 96
  %v4693 = vpop.permute.xlu0 %4692
  %4694 = vrot.lane.b32.xlu0 %v4266, 96
  %v4695 = vpop.permute.xlu0 %4694
  %4696 = vrot.lane.b32.xlu0 %v4267, 96
  %v4697 = vpop.permute.xlu0 %4696
  %4698 = vrot.lane.b32.xlu0 %v4268, 96
  %v4699 = vpop.permute.xlu0 %4698
  %4700 = vrot.lane.b32.xlu0 %v4269, 96
  %v4701 = vpop.permute.xlu0 %4700
  %4702 = vrot.lane.b32.xlu0 %v4270, 96
  %v4703 = vpop.permute.xlu0 %4702
  %4704 = vrot.lane.b32.xlu0 %v4271, 96
  %v4705 = vpop.permute.xlu0 %4704
  %4706 = vrot.lane.b32.xlu0 %v4272, 96
  %v4707 = vpop.permute.xlu0 %4706
  %4708 = vrot.lane.b32.xlu0 %v4273, 96
  %v4709 = vpop.permute.xlu0 %4708
  %4710 = vrot.lane.b32.xlu0 %v4274, 96
  %v4711 = vpop.permute.xlu0 %4710
  %4712 = vrot.lane.b32.xlu0 %v4275, 96
  %v4713 = vpop.permute.xlu0 %4712
  %4714 = vrot.lane.b32.xlu0 %v4276, 96
  %v4715 = vpop.permute.xlu0 %4714
  %4716 = vrot.lane.b32.xlu0 %v4277, 96
  %v4717 = vpop.permute.xlu0 %4716
  %4718 = vrot.lane.b32.xlu0 %v4278, 96
  %v4719 = vpop.permute.xlu0 %4718
  %4720 = vrot.lane.b32.xlu0 %v4279, 96
  %v4721 = vpop.permute.xlu0 %4720
  %4722 = vrot.lane.b32.xlu0 %v4280, 96
  %v4723 = vpop.permute.xlu0 %4722
  %4724 = vrot.lane.b32.xlu0 %v4281, 96
  %v4725 = vpop.permute.xlu0 %4724
  %4726 = vrot.lane.b32.xlu0 %v4282, 96
  %v4727 = vpop.permute.xlu0 %4726
  %4728 = vrot.lane.b32.xlu0 %v4283, 96
  %v4729 = vpop.permute.xlu0 %4728
  %4730 = vrot.lane.b32.xlu0 %v4284, 96
  %v4731 = vpop.permute.xlu0 %4730
  %4732 = vrot.lane.b32.xlu0 %v4285, 96
  %v4733 = vpop.permute.xlu0 %4732
  %4734 = vrot.lane.b32.xlu0 %v4286, 96
  %v4735 = vpop.permute.xlu0 %4734
  %4736 = vrot.lane.b32.xlu0 %v4287, 96
  %v4737 = vpop.permute.xlu0 %4736
  %4738 = vrot.lane.b32.xlu0 %v4288, 96
  %v4739 = vpop.permute.xlu0 %4738
  %4740 = vrot.lane.b32.xlu0 %v4289, 96
  %v4741 = vpop.permute.xlu0 %4740
  %4742 = vrot.lane.b32.xlu0 %v4290, 96
  %v4743 = vpop.permute.xlu0 %4742
  %4744 = vrot.lane.b32.xlu0 %v4291, 96
  %v4745 = vpop.permute.xlu0 %4744
  %4746 = vrot.lane.b32.xlu0 %v4292, 96
  %v4747 = vpop.permute.xlu0 %4746
  %4748 = vrot.lane.b32.xlu0 %v4293, 96
  %v4749 = vpop.permute.xlu0 %4748
  %4750 = vrot.lane.b32.xlu0 %v4294, 96
  %v4751 = vpop.permute.xlu0 %4750
  %4752 = vrot.lane.b32.xlu0 %v4295, 96
  %v4753 = vpop.permute.xlu0 %4752
  %4754 = vrot.lane.b32.xlu0 %v4296, 96
  %v4755 = vpop.permute.xlu0 %4754
  %4756 = vrot.lane.b32.xlu0 %v4297, 96
  %v4757 = vpop.permute.xlu0 %4756
  %4758 = vrot.lane.b32.xlu0 %v4298, 96
  %v4759 = vpop.permute.xlu0 %4758
  %4760 = vrot.lane.b32.xlu0 %v4299, 96
  %v4761 = vpop.permute.xlu0 %4760
  %4762 = vrot.lane.b32.xlu0 %v4300, 96
  %v4763 = vpop.permute.xlu0 %4762
  %4764 = vrot.lane.b32.xlu0 %v4301, 96
  %v4765 = vpop.permute.xlu0 %4764
  %4766 = vrot.lane.b32.xlu0 %v4302, 96
  %v4767 = vpop.permute.xlu0 %4766
  %4768 = vrot.lane.b32.xlu0 %v4303, 96
  %v4769 = vpop.permute.xlu0 %4768
  %4770 = vrot.lane.b32.xlu0 %v4304, 96
  %v4771 = vpop.permute.xlu0 %4770
  %4772 = vrot.lane.b32.xlu0 %v4305, 96
  %v4773 = vpop.permute.xlu0 %4772
  %4774 = vrot.lane.b32.xlu0 %v4306, 96
  %v4775 = vpop.permute.xlu0 %4774
  %4776 = vrot.lane.b32.xlu0 %v4307, 96
  %v4777 = vpop.permute.xlu0 %4776
  %4778 = vrot.lane.b32.xlu0 %v4308, 96
  %v4779 = vpop.permute.xlu0 %4778
  %4780 = vrot.lane.b32.xlu0 %v4309, 96
  %v4781 = vpop.permute.xlu0 %4780
  %4782 = vrot.lane.b32.xlu0 %v4310, 96
  %v4783 = vpop.permute.xlu0 %4782
  %4784 = vrot.lane.b32.xlu0 %v4311, 96
  %v4785 = vpop.permute.xlu0 %4784
  %4786 = vrot.lane.b32.xlu0 %v4312, 96
  %v4787 = vpop.permute.xlu0 %4786
  %4788 = vrot.lane.b32.xlu0 %v4313, 96
  %v4789 = vpop.permute.xlu0 %4788
  %4790 = vrot.lane.b32.xlu0 %v4314, 96
  %v4791 = vpop.permute.xlu0 %4790
  %4792 = vrot.lane.b32.xlu0 %v4315, 96
  %v4793 = vpop.permute.xlu0 %4792
  %4794 = vrot.lane.b32.xlu0 %v4316, 96
  %v4795 = vpop.permute.xlu0 %4794
  %4796 = vrot.lane.b32.xlu0 %v4317, 96
  %v4797 = vpop.permute.xlu0 %4796
  %4798 = vrot.lane.b32.xlu0 %v4318, 96
  %v4799 = vpop.permute.xlu0 %4798
  %4800 = vrot.lane.b32.xlu0 %v4319, 96
  %v4801 = vpop.permute.xlu0 %4800
  %4802 = vrot.lane.b32.xlu0 %v4320, 96
  %v4803 = vpop.permute.xlu0 %4802
  %4804 = vrot.lane.b32.xlu0 %v4321, 96
  %v4805 = vpop.permute.xlu0 %4804
  %4806 = vrot.lane.b32.xlu0 %v4322, 96
  %v4807 = vpop.permute.xlu0 %4806
  %4808 = vrot.lane.b32.xlu0 %v4323, 96
  %v4809 = vpop.permute.xlu0 %4808
  %4810 = vrot.lane.b32.xlu0 %v4324, 96
  %v4811 = vpop.permute.xlu0 %4810
  %4812 = vrot.lane.b32.xlu0 %v4325, 96
  %v4813 = vpop.permute.xlu0 %4812
  %4814 = vrot.lane.b32.xlu0 %v4326, 96
  %v4815 = vpop.permute.xlu0 %4814
  %4816 = vrot.lane.b32.xlu0 %v4327, 96
  %v4817 = vpop.permute.xlu0 %4816
  %4818 = vrot.lane.b32.xlu0 %v4328, 96
  %v4819 = vpop.permute.xlu0 %4818
  %4820 = vrot.lane.b32.xlu0 %v4329, 96
  %v4821 = vpop.permute.xlu0 %4820
  %4822 = vrot.lane.b32.xlu0 %v4330, 96
  %v4823 = vpop.permute.xlu0 %4822
  %4824 = vrot.lane.b32.xlu0 %v4331, 96
  %v4825 = vpop.permute.xlu0 %4824
  %4826 = vrot.lane.b32.xlu0 %v4332, 96
  %v4827 = vpop.permute.xlu0 %4826
  %4828 = vrot.lane.b32.xlu0 %v4333, 96
  %v4829 = vpop.permute.xlu0 %4828
  %4830 = vrot.lane.b32.xlu0 %v4334, 96
  %v4831 = vpop.permute.xlu0 %4830
  %4832 = vrot.lane.b32.xlu0 %v4335, 96
  %v4833 = vpop.permute.xlu0 %4832
  %4834 = vrot.lane.b32.xlu0 %v4336, 96
  %v4835 = vpop.permute.xlu0 %4834
  %4836 = vrot.lane.b32.xlu0 %v4337, 96
  %v4837 = vpop.permute.xlu0 %4836
  %4838 = vrot.lane.b32.xlu0 %v4338, 96
  %v4839 = vpop.permute.xlu0 %4838
  %4840 = vrot.lane.b32.xlu0 %v4339, 96
  %v4841 = vpop.permute.xlu0 %4840
  %4842 = vrot.lane.b32.xlu0 %v4340, 96
  %v4843 = vpop.permute.xlu0 %4842
  %4844 = vrot.lane.b32.xlu0 %v4341, 96
  %v4845 = vpop.permute.xlu0 %4844
  %4846 = vrot.lane.b32.xlu0 %v4342, 96
  %v4847 = vpop.permute.xlu0 %4846
  %4848 = vrot.lane.b32.xlu0 %v4343, 96
  %v4849 = vpop.permute.xlu0 %4848
  %4850 = vrot.lane.b32.xlu0 %v4344, 96
  %v4851 = vpop.permute.xlu0 %4850
  %v5021 = vmax.f32 %v4176, %v4515
  %v5022 = vmax.f32 %v4177, %v4517
  %v5023 = vmax.f32 %v4178, %v4519
  %v5024 = vmax.f32 %v4179, %v4521
  %v5025 = vmax.f32 %v4180, %v4523
  %v5026 = vmax.f32 %v4181, %v4525
  %v5027 = vmax.f32 %v4182, %v4527
  %v5028 = vmax.f32 %v4183, %v4529
  %v5029 = vmax.f32 %v4184, %v4531
  %v5030 = vmax.f32 %v4185, %v4533
  %v5031 = vmax.f32 %v4186, %v4535
  %v5032 = vmax.f32 %v4187, %v4537
  %v5033 = vmax.f32 %v4188, %v4539
  %v5034 = vmax.f32 %v4189, %v4541
  %v5035 = vmax.f32 %v4190, %v4543
  %v5036 = vmax.f32 %v4191, %v4545
  %v5037 = vmax.f32 %v4192, %v4547
  %v5038 = vmax.f32 %v4193, %v4549
  %v5039 = vmax.f32 %v4194, %v4551
  %v5040 = vmax.f32 %v4195, %v4553
  %v5041 = vmax.f32 %v4196, %v4555
  %v5042 = vmax.f32 %v4197, %v4557
  %v5043 = vmax.f32 %v4198, %v4559
  %v5044 = vmax.f32 %v4199, %v4561
  %v5045 = vmax.f32 %v4200, %v4563
  %v5046 = vmax.f32 %v4201, %v4565
  %v5047 = vmax.f32 %v4202, %v4567
  %v5048 = vmax.f32 %v4203, %v4569
  %v5049 = vmax.f32 %v4204, %v4571
  %v5050 = vmax.f32 %v4205, %v4573
  %v5051 = vmax.f32 %v4206, %v4575
  %v5052 = vmax.f32 %v4207, %v4577
  %v5053 = vmax.f32 %v4208, %v4579
  %v5054 = vmax.f32 %v4209, %v4581
  %v5055 = vmax.f32 %v4210, %v4583
  %v5056 = vmax.f32 %v4211, %v4585
  %v5057 = vmax.f32 %v4212, %v4587
  %v5058 = vmax.f32 %v4213, %v4589
  %v5059 = vmax.f32 %v4214, %v4591
  %v5060 = vmax.f32 %v4215, %v4593
  %v5061 = vmax.f32 %v4216, %v4595
  %v5062 = vmax.f32 %v4217, %v4597
  %v5063 = vmax.f32 %v4218, %v4599
  %v5064 = vmax.f32 %v4219, %v4601
  %v5065 = vmax.f32 %v4220, %v4603
  %v5066 = vmax.f32 %v4221, %v4605
  %v5067 = vmax.f32 %v4222, %v4607
  %v5068 = vmax.f32 %v4223, %v4609
  %v5069 = vmax.f32 %v4224, %v4611
  %v5070 = vmax.f32 %v4225, %v4613
  %v5071 = vmax.f32 %v4226, %v4615
  %v5072 = vmax.f32 %v4227, %v4617
  %v5073 = vmax.f32 %v4228, %v4619
  %v5074 = vmax.f32 %v4229, %v4621
  %v5075 = vmax.f32 %v4230, %v4623
  %v5076 = vmax.f32 %v4231, %v4625
  %v5077 = vmax.f32 %v4232, %v4627
  %v5078 = vmax.f32 %v4233, %v4629
  %v5079 = vmax.f32 %v4234, %v4631
  %v5080 = vmax.f32 %v4235, %v4633
  %v5081 = vmax.f32 %v4236, %v4635
  %v5082 = vmax.f32 %v4237, %v4637
  %v5083 = vmax.f32 %v4238, %v4639
  %v5084 = vmax.f32 %v4239, %v4641
  %v5085 = vmax.f32 %v4240, %v4643
  %v5086 = vmax.f32 %v4241, %v4645
  %v5087 = vmax.f32 %v4242, %v4647
  %v5088 = vmax.f32 %v4243, %v4649
  %v5089 = vmax.f32 %v4244, %v4651
  %v5090 = vmax.f32 %v4245, %v4653
  %v5091 = vmax.f32 %v4246, %v4655
  %v5092 = vmax.f32 %v4247, %v4657
  %v5093 = vmax.f32 %v4248, %v4659
  %v5094 = vmax.f32 %v4249, %v4661
  %v5095 = vmax.f32 %v4250, %v4663
  %v5096 = vmax.f32 %v4251, %v4665
  %v5097 = vmax.f32 %v4252, %v4667
  %v5098 = vmax.f32 %v4253, %v4669
  %v5099 = vmax.f32 %v4254, %v4671
  %v5100 = vmax.f32 %v4255, %v4673
  %v5101 = vmax.f32 %v4256, %v4675
  %v5102 = vmax.f32 %v4257, %v4677
  %v5103 = vmax.f32 %v4258, %v4679
  %v5104 = vmax.f32 %v4259, %v4681
  %v5105 = vmax.f32 %v4260, %v4683
  %v5106 = vmax.f32 %v4261, %v4685
  %v5107 = vmax.f32 %v4262, %v4687
  %v5108 = vmax.f32 %v4263, %v4689
  %v5109 = vmax.f32 %v4264, %v4691
  %v5110 = vmax.f32 %v4265, %v4693
  %v5111 = vmax.f32 %v4266, %v4695
  %v5112 = vmax.f32 %v4267, %v4697
  %v5113 = vmax.f32 %v4268, %v4699
  %v5114 = vmax.f32 %v4269, %v4701
  %v5115 = vmax.f32 %v4270, %v4703
  %v5116 = vmax.f32 %v4271, %v4705
  %v5117 = vmax.f32 %v4272, %v4707
  %v5118 = vmax.f32 %v4273, %v4709
  %v5119 = vmax.f32 %v4274, %v4711
  %v5120 = vmax.f32 %v4275, %v4713
  %v5121 = vmax.f32 %v4276, %v4715
  %v5122 = vmax.f32 %v4277, %v4717
  %v5123 = vmax.f32 %v4278, %v4719
  %v5124 = vmax.f32 %v4279, %v4721
  %v5125 = vmax.f32 %v4280, %v4723
  %v5126 = vmax.f32 %v4281, %v4725
  %v5127 = vmax.f32 %v4282, %v4727
  %v5128 = vmax.f32 %v4283, %v4729
  %v5129 = vmax.f32 %v4284, %v4731
  %v5130 = vmax.f32 %v4285, %v4733
  %v5131 = vmax.f32 %v4286, %v4735
  %v5132 = vmax.f32 %v4287, %v4737
  %v5133 = vmax.f32 %v4288, %v4739
  %v5134 = vmax.f32 %v4289, %v4741
  %v5135 = vmax.f32 %v4290, %v4743
  %v5136 = vmax.f32 %v4291, %v4745
  %v5137 = vmax.f32 %v4292, %v4747
  %v5138 = vmax.f32 %v4293, %v4749
  %v5139 = vmax.f32 %v4294, %v4751
  %v5140 = vmax.f32 %v4295, %v4753
  %v5141 = vmax.f32 %v4296, %v4755
  %v5142 = vmax.f32 %v4297, %v4757
  %v5143 = vmax.f32 %v4298, %v4759
  %v5144 = vmax.f32 %v4299, %v4761
  %v5145 = vmax.f32 %v4300, %v4763
  %v5146 = vmax.f32 %v4301, %v4765
  %v5147 = vmax.f32 %v4302, %v4767
  %v5148 = vmax.f32 %v4303, %v4769
  %v5149 = vmax.f32 %v4304, %v4771
  %v5150 = vmax.f32 %v4305, %v4773
  %v5151 = vmax.f32 %v4306, %v4775
  %v5152 = vmax.f32 %v4307, %v4777
  %v5153 = vmax.f32 %v4308, %v4779
  %v5154 = vmax.f32 %v4309, %v4781
  %v5155 = vmax.f32 %v4310, %v4783
  %v5156 = vmax.f32 %v4311, %v4785
  %v5157 = vmax.f32 %v4312, %v4787
  %v5158 = vmax.f32 %v4313, %v4789
  %v5159 = vmax.f32 %v4314, %v4791
  %v5160 = vmax.f32 %v4315, %v4793
  %v5161 = vmax.f32 %v4316, %v4795
  %v5162 = vmax.f32 %v4317, %v4797
  %v5163 = vmax.f32 %v4318, %v4799
  %v5164 = vmax.f32 %v4319, %v4801
  %v5165 = vmax.f32 %v4320, %v4803
  %v5166 = vmax.f32 %v4321, %v4805
  %v5167 = vmax.f32 %v4322, %v4807
  %v5168 = vmax.f32 %v4323, %v4809
  %v5169 = vmax.f32 %v4324, %v4811
  %v5170 = vmax.f32 %v4325, %v4813
  %v5171 = vmax.f32 %v4326, %v4815
  %v5172 = vmax.f32 %v4327, %v4817
  %v5173 = vmax.f32 %v4328, %v4819
  %v5174 = vmax.f32 %v4329, %v4821
  %v5175 = vmax.f32 %v4330, %v4823
  %v5176 = vmax.f32 %v4331, %v4825
  %v5177 = vmax.f32 %v4332, %v4827
  %v5178 = vmax.f32 %v4333, %v4829
  %v5179 = vmax.f32 %v4334, %v4831
  %v5180 = vmax.f32 %v4335, %v4833
  %v5181 = vmax.f32 %v4336, %v4835
  %v5182 = vmax.f32 %v4337, %v4837
  %v5183 = vmax.f32 %v4338, %v4839
  %v5184 = vmax.f32 %v4339, %v4841
  %v5185 = vmax.f32 %v4340, %v4843
  %v5186 = vmax.f32 %v4341, %v4845
  %v5187 = vmax.f32 %v4342, %v4847
  %v5188 = vmax.f32 %v4343, %v4849
  %v5189 = vmax.f32 %v4344, %v4851
  %5359 = vrot.lane.b32.xlu0 %v5021, 64
  %v5360 = vpop.permute.xlu0 %5359
  %5361 = vrot.lane.b32.xlu0 %v5022, 64
  %v5362 = vpop.permute.xlu0 %5361
  %5363 = vrot.lane.b32.xlu0 %v5023, 64
  %v5364 = vpop.permute.xlu0 %5363
  %5365 = vrot.lane.b32.xlu0 %v5024, 64
  %v5366 = vpop.permute.xlu0 %5365
  %5367 = vrot.lane.b32.xlu0 %v5025, 64
  %v5368 = vpop.permute.xlu0 %5367
  %5369 = vrot.lane.b32.xlu0 %v5026, 64
  %v5370 = vpop.permute.xlu0 %5369
  %5371 = vrot.lane.b32.xlu0 %v5027, 64
  %v5372 = vpop.permute.xlu0 %5371
  %5373 = vrot.lane.b32.xlu0 %v5028, 64
  %v5374 = vpop.permute.xlu0 %5373
  %5375 = vrot.lane.b32.xlu0 %v5029, 64
  %v5376 = vpop.permute.xlu0 %5375
  %5377 = vrot.lane.b32.xlu0 %v5030, 64
  %v5378 = vpop.permute.xlu0 %5377
  %5379 = vrot.lane.b32.xlu0 %v5031, 64
  %v5380 = vpop.permute.xlu0 %5379
  %5381 = vrot.lane.b32.xlu0 %v5032, 64
  %v5382 = vpop.permute.xlu0 %5381
  %5383 = vrot.lane.b32.xlu0 %v5033, 64
  %v5384 = vpop.permute.xlu0 %5383
  %5385 = vrot.lane.b32.xlu0 %v5034, 64
  %v5386 = vpop.permute.xlu0 %5385
  %5387 = vrot.lane.b32.xlu0 %v5035, 64
  %v5388 = vpop.permute.xlu0 %5387
  %5389 = vrot.lane.b32.xlu0 %v5036, 64
  %v5390 = vpop.permute.xlu0 %5389
  %5391 = vrot.lane.b32.xlu0 %v5037, 64
  %v5392 = vpop.permute.xlu0 %5391
  %5393 = vrot.lane.b32.xlu0 %v5038, 64
  %v5394 = vpop.permute.xlu0 %5393
  %5395 = vrot.lane.b32.xlu0 %v5039, 64
  %v5396 = vpop.permute.xlu0 %5395
  %5397 = vrot.lane.b32.xlu0 %v5040, 64
  %v5398 = vpop.permute.xlu0 %5397
  %5399 = vrot.lane.b32.xlu0 %v5041, 64
  %v5400 = vpop.permute.xlu0 %5399
  %5401 = vrot.lane.b32.xlu0 %v5042, 64
  %v5402 = vpop.permute.xlu0 %5401
  %5403 = vrot.lane.b32.xlu0 %v5043, 64
  %v5404 = vpop.permute.xlu0 %5403
  %5405 = vrot.lane.b32.xlu0 %v5044, 64
  %v5406 = vpop.permute.xlu0 %5405
  %5407 = vrot.lane.b32.xlu0 %v5045, 64
  %v5408 = vpop.permute.xlu0 %5407
  %5409 = vrot.lane.b32.xlu0 %v5046, 64
  %v5410 = vpop.permute.xlu0 %5409
  %5411 = vrot.lane.b32.xlu0 %v5047, 64
  %v5412 = vpop.permute.xlu0 %5411
  %5413 = vrot.lane.b32.xlu0 %v5048, 64
  %v5414 = vpop.permute.xlu0 %5413
  %5415 = vrot.lane.b32.xlu0 %v5049, 64
  %v5416 = vpop.permute.xlu0 %5415
  %5417 = vrot.lane.b32.xlu0 %v5050, 64
  %v5418 = vpop.permute.xlu0 %5417
  %5419 = vrot.lane.b32.xlu0 %v5051, 64
  %v5420 = vpop.permute.xlu0 %5419
  %5421 = vrot.lane.b32.xlu0 %v5052, 64
  %v5422 = vpop.permute.xlu0 %5421
  %5423 = vrot.lane.b32.xlu0 %v5053, 64
  %v5424 = vpop.permute.xlu0 %5423
  %5425 = vrot.lane.b32.xlu0 %v5054, 64
  %v5426 = vpop.permute.xlu0 %5425
  %5427 = vrot.lane.b32.xlu0 %v5055, 64
  %v5428 = vpop.permute.xlu0 %5427
  %5429 = vrot.lane.b32.xlu0 %v5056, 64
  %v5430 = vpop.permute.xlu0 %5429
  %5431 = vrot.lane.b32.xlu0 %v5057, 64
  %v5432 = vpop.permute.xlu0 %5431
  %5433 = vrot.lane.b32.xlu0 %v5058, 64
  %v5434 = vpop.permute.xlu0 %5433
  %5435 = vrot.lane.b32.xlu0 %v5059, 64
  %v5436 = vpop.permute.xlu0 %5435
  %5437 = vrot.lane.b32.xlu0 %v5060, 64
  %v5438 = vpop.permute.xlu0 %5437
  %5439 = vrot.lane.b32.xlu0 %v5061, 64
  %v5440 = vpop.permute.xlu0 %5439
  %5441 = vrot.lane.b32.xlu0 %v5062, 64
  %v5442 = vpop.permute.xlu0 %5441
  %5443 = vrot.lane.b32.xlu0 %v5063, 64
  %v5444 = vpop.permute.xlu0 %5443
  %5445 = vrot.lane.b32.xlu0 %v5064, 64
  %v5446 = vpop.permute.xlu0 %5445
  %5447 = vrot.lane.b32.xlu0 %v5065, 64
  %v5448 = vpop.permute.xlu0 %5447
  %5449 = vrot.lane.b32.xlu0 %v5066, 64
  %v5450 = vpop.permute.xlu0 %5449
  %5451 = vrot.lane.b32.xlu0 %v5067, 64
  %v5452 = vpop.permute.xlu0 %5451
  %5453 = vrot.lane.b32.xlu0 %v5068, 64
  %v5454 = vpop.permute.xlu0 %5453
  %5455 = vrot.lane.b32.xlu0 %v5069, 64
  %v5456 = vpop.permute.xlu0 %5455
  %5457 = vrot.lane.b32.xlu0 %v5070, 64
  %v5458 = vpop.permute.xlu0 %5457
  %5459 = vrot.lane.b32.xlu0 %v5071, 64
  %v5460 = vpop.permute.xlu0 %5459
  %5461 = vrot.lane.b32.xlu0 %v5072, 64
  %v5462 = vpop.permute.xlu0 %5461
  %5463 = vrot.lane.b32.xlu0 %v5073, 64
  %v5464 = vpop.permute.xlu0 %5463
  %5465 = vrot.lane.b32.xlu0 %v5074, 64
  %v5466 = vpop.permute.xlu0 %5465
  %5467 = vrot.lane.b32.xlu0 %v5075, 64
  %v5468 = vpop.permute.xlu0 %5467
  %5469 = vrot.lane.b32.xlu0 %v5076, 64
  %v5470 = vpop.permute.xlu0 %5469
  %5471 = vrot.lane.b32.xlu0 %v5077, 64
  %v5472 = vpop.permute.xlu0 %5471
  %5473 = vrot.lane.b32.xlu0 %v5078, 64
  %v5474 = vpop.permute.xlu0 %5473
  %5475 = vrot.lane.b32.xlu0 %v5079, 64
  %v5476 = vpop.permute.xlu0 %5475
  %5477 = vrot.lane.b32.xlu0 %v5080, 64
  %v5478 = vpop.permute.xlu0 %5477
  %5479 = vrot.lane.b32.xlu0 %v5081, 64
  %v5480 = vpop.permute.xlu0 %5479
  %5481 = vrot.lane.b32.xlu0 %v5082, 64
  %v5482 = vpop.permute.xlu0 %5481
  %5483 = vrot.lane.b32.xlu0 %v5083, 64
  %v5484 = vpop.permute.xlu0 %5483
  %5485 = vrot.lane.b32.xlu0 %v5084, 64
  %v5486 = vpop.permute.xlu0 %5485
  %5487 = vrot.lane.b32.xlu0 %v5085, 64
  %v5488 = vpop.permute.xlu0 %5487
  %5489 = vrot.lane.b32.xlu0 %v5086, 64
  %v5490 = vpop.permute.xlu0 %5489
  %5491 = vrot.lane.b32.xlu0 %v5087, 64
  %v5492 = vpop.permute.xlu0 %5491
  %5493 = vrot.lane.b32.xlu0 %v5088, 64
  %v5494 = vpop.permute.xlu0 %5493
  %5495 = vrot.lane.b32.xlu0 %v5089, 64
  %v5496 = vpop.permute.xlu0 %5495
  %5497 = vrot.lane.b32.xlu0 %v5090, 64
  %v5498 = vpop.permute.xlu0 %5497
  %5499 = vrot.lane.b32.xlu0 %v5091, 64
  %v5500 = vpop.permute.xlu0 %5499
  %5501 = vrot.lane.b32.xlu0 %v5092, 64
  %v5502 = vpop.permute.xlu0 %5501
  %5503 = vrot.lane.b32.xlu0 %v5093, 64
  %v5504 = vpop.permute.xlu0 %5503
  %5505 = vrot.lane.b32.xlu0 %v5094, 64
  %v5506 = vpop.permute.xlu0 %5505
  %5507 = vrot.lane.b32.xlu0 %v5095, 64
  %v5508 = vpop.permute.xlu0 %5507
  %5509 = vrot.lane.b32.xlu0 %v5096, 64
  %v5510 = vpop.permute.xlu0 %5509
  %5511 = vrot.lane.b32.xlu0 %v5097, 64
  %v5512 = vpop.permute.xlu0 %5511
  %5513 = vrot.lane.b32.xlu0 %v5098, 64
  %v5514 = vpop.permute.xlu0 %5513
  %5515 = vrot.lane.b32.xlu0 %v5099, 64
  %v5516 = vpop.permute.xlu0 %5515
  %5517 = vrot.lane.b32.xlu0 %v5100, 64
  %v5518 = vpop.permute.xlu0 %5517
  %5519 = vrot.lane.b32.xlu0 %v5101, 64
  %v5520 = vpop.permute.xlu0 %5519
  %5521 = vrot.lane.b32.xlu0 %v5102, 64
  %v5522 = vpop.permute.xlu0 %5521
  %5523 = vrot.lane.b32.xlu0 %v5103, 64
  %v5524 = vpop.permute.xlu0 %5523
  %5525 = vrot.lane.b32.xlu0 %v5104, 64
  %v5526 = vpop.permute.xlu0 %5525
  %5527 = vrot.lane.b32.xlu0 %v5105, 64
  %v5528 = vpop.permute.xlu0 %5527
  %5529 = vrot.lane.b32.xlu0 %v5106, 64
  %v5530 = vpop.permute.xlu0 %5529
  %5531 = vrot.lane.b32.xlu0 %v5107, 64
  %v5532 = vpop.permute.xlu0 %5531
  %5533 = vrot.lane.b32.xlu0 %v5108, 64
  %v5534 = vpop.permute.xlu0 %5533
  %5535 = vrot.lane.b32.xlu0 %v5109, 64
  %v5536 = vpop.permute.xlu0 %5535
  %5537 = vrot.lane.b32.xlu0 %v5110, 64
  %v5538 = vpop.permute.xlu0 %5537
  %5539 = vrot.lane.b32.xlu0 %v5111, 64
  %v5540 = vpop.permute.xlu0 %5539
  %5541 = vrot.lane.b32.xlu0 %v5112, 64
  %v5542 = vpop.permute.xlu0 %5541
  %5543 = vrot.lane.b32.xlu0 %v5113, 64
  %v5544 = vpop.permute.xlu0 %5543
  %5545 = vrot.lane.b32.xlu0 %v5114, 64
  %v5546 = vpop.permute.xlu0 %5545
  %5547 = vrot.lane.b32.xlu0 %v5115, 64
  %v5548 = vpop.permute.xlu0 %5547
  %5549 = vrot.lane.b32.xlu0 %v5116, 64
  %v5550 = vpop.permute.xlu0 %5549
  %5551 = vrot.lane.b32.xlu0 %v5117, 64
  %v5552 = vpop.permute.xlu0 %5551
  %5553 = vrot.lane.b32.xlu0 %v5118, 64
  %v5554 = vpop.permute.xlu0 %5553
  %5555 = vrot.lane.b32.xlu0 %v5119, 64
  %v5556 = vpop.permute.xlu0 %5555
  %5557 = vrot.lane.b32.xlu0 %v5120, 64
  %v5558 = vpop.permute.xlu0 %5557
  %5559 = vrot.lane.b32.xlu0 %v5121, 64
  %v5560 = vpop.permute.xlu0 %5559
  %5561 = vrot.lane.b32.xlu0 %v5122, 64
  %v5562 = vpop.permute.xlu0 %5561
  %5563 = vrot.lane.b32.xlu0 %v5123, 64
  %v5564 = vpop.permute.xlu0 %5563
  %5565 = vrot.lane.b32.xlu0 %v5124, 64
  %v5566 = vpop.permute.xlu0 %5565
  %5567 = vrot.lane.b32.xlu0 %v5125, 64
  %v5568 = vpop.permute.xlu0 %5567
  %5569 = vrot.lane.b32.xlu0 %v5126, 64
  %v5570 = vpop.permute.xlu0 %5569
  %5571 = vrot.lane.b32.xlu0 %v5127, 64
  %v5572 = vpop.permute.xlu0 %5571
  %5573 = vrot.lane.b32.xlu0 %v5128, 64
  %v5574 = vpop.permute.xlu0 %5573
  %5575 = vrot.lane.b32.xlu0 %v5129, 64
  %v5576 = vpop.permute.xlu0 %5575
  %5577 = vrot.lane.b32.xlu0 %v5130, 64
  %v5578 = vpop.permute.xlu0 %5577
  %5579 = vrot.lane.b32.xlu0 %v5131, 64
  %v5580 = vpop.permute.xlu0 %5579
  %5581 = vrot.lane.b32.xlu0 %v5132, 64
  %v5582 = vpop.permute.xlu0 %5581
  %5583 = vrot.lane.b32.xlu0 %v5133, 64
  %v5584 = vpop.permute.xlu0 %5583
  %5585 = vrot.lane.b32.xlu0 %v5134, 64
  %v5586 = vpop.permute.xlu0 %5585
  %5587 = vrot.lane.b32.xlu0 %v5135, 64
  %v5588 = vpop.permute.xlu0 %5587
  %5589 = vrot.lane.b32.xlu0 %v5136, 64
  %v5590 = vpop.permute.xlu0 %5589
  %5591 = vrot.lane.b32.xlu0 %v5137, 64
  %v5592 = vpop.permute.xlu0 %5591
  %5593 = vrot.lane.b32.xlu0 %v5138, 64
  %v5594 = vpop.permute.xlu0 %5593
  %5595 = vrot.lane.b32.xlu0 %v5139, 64
  %v5596 = vpop.permute.xlu0 %5595
  %5597 = vrot.lane.b32.xlu0 %v5140, 64
  %v5598 = vpop.permute.xlu0 %5597
  %5599 = vrot.lane.b32.xlu0 %v5141, 64
  %v5600 = vpop.permute.xlu0 %5599
  %5601 = vrot.lane.b32.xlu0 %v5142, 64
  %v5602 = vpop.permute.xlu0 %5601
  %5603 = vrot.lane.b32.xlu0 %v5143, 64
  %v5604 = vpop.permute.xlu0 %5603
  %5605 = vrot.lane.b32.xlu0 %v5144, 64
  %v5606 = vpop.permute.xlu0 %5605
  %5607 = vrot.lane.b32.xlu0 %v5145, 64
  %v5608 = vpop.permute.xlu0 %5607
  %5609 = vrot.lane.b32.xlu0 %v5146, 64
  %v5610 = vpop.permute.xlu0 %5609
  %5611 = vrot.lane.b32.xlu0 %v5147, 64
  %v5612 = vpop.permute.xlu0 %5611
  %5613 = vrot.lane.b32.xlu0 %v5148, 64
  %v5614 = vpop.permute.xlu0 %5613
  %5615 = vrot.lane.b32.xlu0 %v5149, 64
  %v5616 = vpop.permute.xlu0 %5615
  %5617 = vrot.lane.b32.xlu0 %v5150, 64
  %v5618 = vpop.permute.xlu0 %5617
  %5619 = vrot.lane.b32.xlu0 %v5151, 64
  %v5620 = vpop.permute.xlu0 %5619
  %5621 = vrot.lane.b32.xlu0 %v5152, 64
  %v5622 = vpop.permute.xlu0 %5621
  %5623 = vrot.lane.b32.xlu0 %v5153, 64
  %v5624 = vpop.permute.xlu0 %5623
  %5625 = vrot.lane.b32.xlu0 %v5154, 64
  %v5626 = vpop.permute.xlu0 %5625
  %5627 = vrot.lane.b32.xlu0 %v5155, 64
  %v5628 = vpop.permute.xlu0 %5627
  %5629 = vrot.lane.b32.xlu0 %v5156, 64
  %v5630 = vpop.permute.xlu0 %5629
  %5631 = vrot.lane.b32.xlu0 %v5157, 64
  %v5632 = vpop.permute.xlu0 %5631
  %5633 = vrot.lane.b32.xlu0 %v5158, 64
  %v5634 = vpop.permute.xlu0 %5633
  %5635 = vrot.lane.b32.xlu0 %v5159, 64
  %v5636 = vpop.permute.xlu0 %5635
  %5637 = vrot.lane.b32.xlu0 %v5160, 64
  %v5638 = vpop.permute.xlu0 %5637
  %5639 = vrot.lane.b32.xlu0 %v5161, 64
  %v5640 = vpop.permute.xlu0 %5639
  %5641 = vrot.lane.b32.xlu0 %v5162, 64
  %v5642 = vpop.permute.xlu0 %5641
  %5643 = vrot.lane.b32.xlu0 %v5163, 64
  %v5644 = vpop.permute.xlu0 %5643
  %5645 = vrot.lane.b32.xlu0 %v5164, 64
  %v5646 = vpop.permute.xlu0 %5645
  %5647 = vrot.lane.b32.xlu0 %v5165, 64
  %v5648 = vpop.permute.xlu0 %5647
  %5649 = vrot.lane.b32.xlu0 %v5166, 64
  %v5650 = vpop.permute.xlu0 %5649
  %5651 = vrot.lane.b32.xlu0 %v5167, 64
  %v5652 = vpop.permute.xlu0 %5651
  %5653 = vrot.lane.b32.xlu0 %v5168, 64
  %v5654 = vpop.permute.xlu0 %5653
  %5655 = vrot.lane.b32.xlu0 %v5169, 64
  %v5656 = vpop.permute.xlu0 %5655
  %5657 = vrot.lane.b32.xlu0 %v5170, 64
  %v5658 = vpop.permute.xlu0 %5657
  %5659 = vrot.lane.b32.xlu0 %v5171, 64
  %v5660 = vpop.permute.xlu0 %5659
  %5661 = vrot.lane.b32.xlu0 %v5172, 64
  %v5662 = vpop.permute.xlu0 %5661
  %5663 = vrot.lane.b32.xlu0 %v5173, 64
  %v5664 = vpop.permute.xlu0 %5663
  %5665 = vrot.lane.b32.xlu0 %v5174, 64
  %v5666 = vpop.permute.xlu0 %5665
  %5667 = vrot.lane.b32.xlu0 %v5175, 64
  %v5668 = vpop.permute.xlu0 %5667
  %5669 = vrot.lane.b32.xlu0 %v5176, 64
  %v5670 = vpop.permute.xlu0 %5669
  %5671 = vrot.lane.b32.xlu0 %v5177, 64
  %v5672 = vpop.permute.xlu0 %5671
  %5673 = vrot.lane.b32.xlu0 %v5178, 64
  %v5674 = vpop.permute.xlu0 %5673
  %5675 = vrot.lane.b32.xlu0 %v5179, 64
  %v5676 = vpop.permute.xlu0 %5675
  %5677 = vrot.lane.b32.xlu0 %v5180, 64
  %v5678 = vpop.permute.xlu0 %5677
  %5679 = vrot.lane.b32.xlu0 %v5181, 64
  %v5680 = vpop.permute.xlu0 %5679
  %5681 = vrot.lane.b32.xlu0 %v5182, 64
  %v5682 = vpop.permute.xlu0 %5681
  %5683 = vrot.lane.b32.xlu0 %v5183, 64
  %v5684 = vpop.permute.xlu0 %5683
  %5685 = vrot.lane.b32.xlu0 %v5184, 64
  %v5686 = vpop.permute.xlu0 %5685
  %5687 = vrot.lane.b32.xlu0 %v5185, 64
  %v5688 = vpop.permute.xlu0 %5687
  %5689 = vrot.lane.b32.xlu0 %v5186, 64
  %v5690 = vpop.permute.xlu0 %5689
  %5691 = vrot.lane.b32.xlu0 %v5187, 64
  %v5692 = vpop.permute.xlu0 %5691
  %5693 = vrot.lane.b32.xlu0 %v5188, 64
  %v5694 = vpop.permute.xlu0 %5693
  %5695 = vrot.lane.b32.xlu0 %v5189, 64
  %v5696 = vpop.permute.xlu0 %5695
  %v5866 = vmax.f32 %v5021, %v5360
  %v5867 = vmax.f32 %v5022, %v5362
  %v5868 = vmax.f32 %v5023, %v5364
  %v5869 = vmax.f32 %v5024, %v5366
  %v5870 = vmax.f32 %v5025, %v5368
  %v5871 = vmax.f32 %v5026, %v5370
  %v5872 = vmax.f32 %v5027, %v5372
  %v5873 = vmax.f32 %v5028, %v5374
  %v5874 = vmax.f32 %v5029, %v5376
  %v5875 = vmax.f32 %v5030, %v5378
  %v5876 = vmax.f32 %v5031, %v5380
  %v5877 = vmax.f32 %v5032, %v5382
  %v5878 = vmax.f32 %v5033, %v5384
  %v5879 = vmax.f32 %v5034, %v5386
  %v5880 = vmax.f32 %v5035, %v5388
  %v5881 = vmax.f32 %v5036, %v5390
  %v5882 = vmax.f32 %v5037, %v5392
  %v5883 = vmax.f32 %v5038, %v5394
  %v5884 = vmax.f32 %v5039, %v5396
  %v5885 = vmax.f32 %v5040, %v5398
  %v5886 = vmax.f32 %v5041, %v5400
  %v5887 = vmax.f32 %v5042, %v5402
  %v5888 = vmax.f32 %v5043, %v5404
  %v5889 = vmax.f32 %v5044, %v5406
  %v5890 = vmax.f32 %v5045, %v5408
  %v5891 = vmax.f32 %v5046, %v5410
  %v5892 = vmax.f32 %v5047, %v5412
  %v5893 = vmax.f32 %v5048, %v5414
  %v5894 = vmax.f32 %v5049, %v5416
  %v5895 = vmax.f32 %v5050, %v5418
  %v5896 = vmax.f32 %v5051, %v5420
  %v5897 = vmax.f32 %v5052, %v5422
  %v5898 = vmax.f32 %v5053, %v5424
  %v5899 = vmax.f32 %v5054, %v5426
  %v5900 = vmax.f32 %v5055, %v5428
  %v5901 = vmax.f32 %v5056, %v5430
  %v5902 = vmax.f32 %v5057, %v5432
  %v5903 = vmax.f32 %v5058, %v5434
  %v5904 = vmax.f32 %v5059, %v5436
  %v5905 = vmax.f32 %v5060, %v5438
  %v5906 = vmax.f32 %v5061, %v5440
  %v5907 = vmax.f32 %v5062, %v5442
  %v5908 = vmax.f32 %v5063, %v5444
  %v5909 = vmax.f32 %v5064, %v5446
  %v5910 = vmax.f32 %v5065, %v5448
  %v5911 = vmax.f32 %v5066, %v5450
  %v5912 = vmax.f32 %v5067, %v5452
  %v5913 = vmax.f32 %v5068, %v5454
  %v5914 = vmax.f32 %v5069, %v5456
  %v5915 = vmax.f32 %v5070, %v5458
  %v5916 = vmax.f32 %v5071, %v5460
  %v5917 = vmax.f32 %v5072, %v5462
  %v5918 = vmax.f32 %v5073, %v5464
  %v5919 = vmax.f32 %v5074, %v5466
  %v5920 = vmax.f32 %v5075, %v5468
  %v5921 = vmax.f32 %v5076, %v5470
  %v5922 = vmax.f32 %v5077, %v5472
  %v5923 = vmax.f32 %v5078, %v5474
  %v5924 = vmax.f32 %v5079, %v5476
  %v5925 = vmax.f32 %v5080, %v5478
  %v5926 = vmax.f32 %v5081, %v5480
  %v5927 = vmax.f32 %v5082, %v5482
  %v5928 = vmax.f32 %v5083, %v5484
  %v5929 = vmax.f32 %v5084, %v5486
  %v5930 = vmax.f32 %v5085, %v5488
  %v5931 = vmax.f32 %v5086, %v5490
  %v5932 = vmax.f32 %v5087, %v5492
  %v5933 = vmax.f32 %v5088, %v5494
  %v5934 = vmax.f32 %v5089, %v5496
  %v5935 = vmax.f32 %v5090, %v5498
  %v5936 = vmax.f32 %v5091, %v5500
  %v5937 = vmax.f32 %v5092, %v5502
  %v5938 = vmax.f32 %v5093, %v5504
  %v5939 = vmax.f32 %v5094, %v5506
  %v5940 = vmax.f32 %v5095, %v5508
  %v5941 = vmax.f32 %v5096, %v5510
  %v5942 = vmax.f32 %v5097, %v5512
  %v5943 = vmax.f32 %v5098, %v5514
  %v5944 = vmax.f32 %v5099, %v5516
  %v5945 = vmax.f32 %v5100, %v5518
  %v5946 = vmax.f32 %v5101, %v5520
  %v5947 = vmax.f32 %v5102, %v5522
  %v5948 = vmax.f32 %v5103, %v5524
  %v5949 = vmax.f32 %v5104, %v5526
  %v5950 = vmax.f32 %v5105, %v5528
  %v5951 = vmax.f32 %v5106, %v5530
  %v5952 = vmax.f32 %v5107, %v5532
  %v5953 = vmax.f32 %v5108, %v5534
  %v5954 = vmax.f32 %v5109, %v5536
  %v5955 = vmax.f32 %v5110, %v5538
  %v5956 = vmax.f32 %v5111, %v5540
  %v5957 = vmax.f32 %v5112, %v5542
  %v5958 = vmax.f32 %v5113, %v5544
  %v5959 = vmax.f32 %v5114, %v5546
  %v5960 = vmax.f32 %v5115, %v5548
  %v5961 = vmax.f32 %v5116, %v5550
  %v5962 = vmax.f32 %v5117, %v5552
  %v5963 = vmax.f32 %v5118, %v5554
  %v5964 = vmax.f32 %v5119, %v5556
  %v5965 = vmax.f32 %v5120, %v5558
  %v5966 = vmax.f32 %v5121, %v5560
  %v5967 = vmax.f32 %v5122, %v5562
  %v5968 = vmax.f32 %v5123, %v5564
  %v5969 = vmax.f32 %v5124, %v5566
  %v5970 = vmax.f32 %v5125, %v5568
  %v5971 = vmax.f32 %v5126, %v5570
  %v5972 = vmax.f32 %v5127, %v5572
  %v5973 = vmax.f32 %v5128, %v5574
  %v5974 = vmax.f32 %v5129, %v5576
  %v5975 = vmax.f32 %v5130, %v5578
  %v5976 = vmax.f32 %v5131, %v5580
  %v5977 = vmax.f32 %v5132, %v5582
  %v5978 = vmax.f32 %v5133, %v5584
  %v5979 = vmax.f32 %v5134, %v5586
  %v5980 = vmax.f32 %v5135, %v5588
  %v5981 = vmax.f32 %v5136, %v5590
  %v5982 = vmax.f32 %v5137, %v5592
  %v5983 = vmax.f32 %v5138, %v5594
  %v5984 = vmax.f32 %v5139, %v5596
  %v5985 = vmax.f32 %v5140, %v5598
  %v5986 = vmax.f32 %v5141, %v5600
  %v5987 = vmax.f32 %v5142, %v5602
  %v5988 = vmax.f32 %v5143, %v5604
  %v5989 = vmax.f32 %v5144, %v5606
  %v5990 = vmax.f32 %v5145, %v5608
  %v5991 = vmax.f32 %v5146, %v5610
  %v5992 = vmax.f32 %v5147, %v5612
  %v5993 = vmax.f32 %v5148, %v5614
  %v5994 = vmax.f32 %v5149, %v5616
  %v5995 = vmax.f32 %v5150, %v5618
  %v5996 = vmax.f32 %v5151, %v5620
  %v5997 = vmax.f32 %v5152, %v5622
  %v5998 = vmax.f32 %v5153, %v5624
  %v5999 = vmax.f32 %v5154, %v5626
  %v6000 = vmax.f32 %v5155, %v5628
  %v6001 = vmax.f32 %v5156, %v5630
  %v6002 = vmax.f32 %v5157, %v5632
  %v6003 = vmax.f32 %v5158, %v5634
  %v6004 = vmax.f32 %v5159, %v5636
  %v6005 = vmax.f32 %v5160, %v5638
  %v6006 = vmax.f32 %v5161, %v5640
  %v6007 = vmax.f32 %v5162, %v5642
  %v6008 = vmax.f32 %v5163, %v5644
  %v6009 = vmax.f32 %v5164, %v5646
  %v6010 = vmax.f32 %v5165, %v5648
  %v6011 = vmax.f32 %v5166, %v5650
  %v6012 = vmax.f32 %v5167, %v5652
  %v6013 = vmax.f32 %v5168, %v5654
  %v6014 = vmax.f32 %v5169, %v5656
  %v6015 = vmax.f32 %v5170, %v5658
  %v6016 = vmax.f32 %v5171, %v5660
  %v6017 = vmax.f32 %v5172, %v5662
  %v6018 = vmax.f32 %v5173, %v5664
  %v6019 = vmax.f32 %v5174, %v5666
  %v6020 = vmax.f32 %v5175, %v5668
  %v6021 = vmax.f32 %v5176, %v5670
  %v6022 = vmax.f32 %v5177, %v5672
  %v6023 = vmax.f32 %v5178, %v5674
  %v6024 = vmax.f32 %v5179, %v5676
  %v6025 = vmax.f32 %v5180, %v5678
  %v6026 = vmax.f32 %v5181, %v5680
  %v6027 = vmax.f32 %v5182, %v5682
  %v6028 = vmax.f32 %v5183, %v5684
  %v6029 = vmax.f32 %v5184, %v5686
  %v6030 = vmax.f32 %v5185, %v5688
  %v6031 = vmax.f32 %v5186, %v5690
  %v6032 = vmax.f32 %v5187, %v5692
  %v6033 = vmax.f32 %v5188, %v5694
  %v6034 = vmax.f32 %v5189, %v5696
  %vm6035 = vcmask 261120
  %6036 = vst.msk [vmem:[%s3] sm:$0xff] %vm6035, %v5866
  %6037 = vst.msk [vmem:[%s3 + $0x8] sm:$0xff] %vm6035, %v5867
  %6038 = vst.msk [vmem:[%s3 + $0x10] sm:$0xff] %vm6035, %v5868
  %6039 = vst.msk [vmem:[%s3 + $0x18] sm:$0xff] %vm6035, %v5869
  %6040 = vst.msk [vmem:[%s3 + $0x20] sm:$0xff] %vm6035, %v5870
  %6041 = vst.msk [vmem:[%s3 + $0x28] sm:$0xff] %vm6035, %v5871
  %6042 = vst.msk [vmem:[%s3 + $0x30] sm:$0xff] %vm6035, %v5872
  %6043 = vst.msk [vmem:[%s3 + $0x38] sm:$0xff] %vm6035, %v5873
  %6044 = vst.msk [vmem:[%s3 + $0x40] sm:$0xff] %vm6035, %v5874
  %6045 = vst.msk [vmem:[%s3 + $0x48] sm:$0xff] %vm6035, %v5875
  %6046 = vst.msk [vmem:[%s3 + $0x50] sm:$0xff] %vm6035, %v5876
  %6047 = vst.msk [vmem:[%s3 + $0x58] sm:$0xff] %vm6035, %v5877
  %6048 = vst.msk [vmem:[%s3 + $0x60] sm:$0xff] %vm6035, %v5878
  %6049 = vst.msk [vmem:[%s3 + $0x68] sm:$0xff] %vm6035, %v5879
  %6050 = vst.msk [vmem:[%s3 + $0x70] sm:$0xff] %vm6035, %v5880
  %6051 = vst.msk [vmem:[%s3 + $0x78] sm:$0xff] %vm6035, %v5881
  %6052 = vst.msk [vmem:[%s3 + $0x80] sm:$0xff] %vm6035, %v5882
  %6053 = vst.msk [vmem:[%s3 + $0x88] sm:$0xff] %vm6035, %v5883
  %6054 = vst.msk [vmem:[%s3 + $0x90] sm:$0xff] %vm6035, %v5884
  %6055 = vst.msk [vmem:[%s3 + $0x98] sm:$0xff] %vm6035, %v5885
  %6056 = vst.msk [vmem:[%s3 + $0xa0] sm:$0xff] %vm6035, %v5886
  %6057 = vst.msk [vmem:[%s3 + $0xa8] sm:$0xff] %vm6035, %v5887
  %6058 = vst.msk [vmem:[%s3 + $0xb0] sm:$0xff] %vm6035, %v5888
  %6059 = vst.msk [vmem:[%s3 + $0xb8] sm:$0xff] %vm6035, %v5889
  %6060 = vst.msk [vmem:[%s3 + $0xc0] sm:$0xff] %vm6035, %v5890
  %6061 = vst.msk [vmem:[%s3 + $0xc8] sm:$0xff] %vm6035, %v5891
  %6062 = vst.msk [vmem:[%s3 + $0xd0] sm:$0xff] %vm6035, %v5892
  %6063 = vst.msk [vmem:[%s3 + $0xd8] sm:$0xff] %vm6035, %v5893
  %6064 = vst.msk [vmem:[%s3 + $0xe0] sm:$0xff] %vm6035, %v5894
  %6065 = vst.msk [vmem:[%s3 + $0xe8] sm:$0xff] %vm6035, %v5895
  %6066 = vst.msk [vmem:[%s3 + $0xf0] sm:$0xff] %vm6035, %v5896
  %6067 = vst.msk [vmem:[%s3 + $0xf8] sm:$0xff] %vm6035, %v5897
  %6068 = vst.msk [vmem:[%s3 + $0x100] sm:$0xff] %vm6035, %v5898
  %6069 = vst.msk [vmem:[%s3 + $0x108] sm:$0xff] %vm6035, %v5899
  %6070 = vst.msk [vmem:[%s3 + $0x110] sm:$0xff] %vm6035, %v5900
  %6071 = vst.msk [vmem:[%s3 + $0x118] sm:$0xff] %vm6035, %v5901
  %6072 = vst.msk [vmem:[%s3 + $0x120] sm:$0xff] %vm6035, %v5902
  %6073 = vst.msk [vmem:[%s3 + $0x128] sm:$0xff] %vm6035, %v5903
  %6074 = vst.msk [vmem:[%s3 + $0x130] sm:$0xff] %vm6035, %v5904
  %6075 = vst.msk [vmem:[%s3 + $0x138] sm:$0xff] %vm6035, %v5905
  %6076 = vst.msk [vmem:[%s3 + $0x140] sm:$0xff] %vm6035, %v5906
  %6077 = vst.msk [vmem:[%s3 + $0x148] sm:$0xff] %vm6035, %v5907
  %6078 = vst.msk [vmem:[%s3 + $0x150] sm:$0xff] %vm6035, %v5908
  %6079 = vst.msk [vmem:[%s3 + $0x158] sm:$0xff] %vm6035, %v5909
  %6080 = vst.msk [vmem:[%s3 + $0x160] sm:$0xff] %vm6035, %v5910
  %6081 = vst.msk [vmem:[%s3 + $0x168] sm:$0xff] %vm6035, %v5911
  %6082 = vst.msk [vmem:[%s3 + $0x170] sm:$0xff] %vm6035, %v5912
  %6083 = vst.msk [vmem:[%s3 + $0x178] sm:$0xff] %vm6035, %v5913
  %6084 = vst.msk [vmem:[%s3 + $0x180] sm:$0xff] %vm6035, %v5914
  %6085 = vst.msk [vmem:[%s3 + $0x188] sm:$0xff] %vm6035, %v5915
  %6086 = vst.msk [vmem:[%s3 + $0x190] sm:$0xff] %vm6035, %v5916
  %6087 = vst.msk [vmem:[%s3 + $0x198] sm:$0xff] %vm6035, %v5917
  %6088 = vst.msk [vmem:[%s3 + $0x1a0] sm:$0xff] %vm6035, %v5918
  %6089 = vst.msk [vmem:[%s3 + $0x1a8] sm:$0xff] %vm6035, %v5919
  %6090 = vst.msk [vmem:[%s3 + $0x1b0] sm:$0xff] %vm6035, %v5920
  %6091 = vst.msk [vmem:[%s3 + $0x1b8] sm:$0xff] %vm6035, %v5921
  %6092 = vst.msk [vmem:[%s3 + $0x1c0] sm:$0xff] %vm6035, %v5922
  %6093 = vst.msk [vmem:[%s3 + $0x1c8] sm:$0xff] %vm6035, %v5923
  %6094 = vst.msk [vmem:[%s3 + $0x1d0] sm:$0xff] %vm6035, %v5924
  %6095 = vst.msk [vmem:[%s3 + $0x1d8] sm:$0xff] %vm6035, %v5925
  %6096 = vst.msk [vmem:[%s3 + $0x1e0] sm:$0xff] %vm6035, %v5926
  %6097 = vst.msk [vmem:[%s3 + $0x1e8] sm:$0xff] %vm6035, %v5927
  %6098 = vst.msk [vmem:[%s3 + $0x1f0] sm:$0xff] %vm6035, %v5928
  %6099 = vst.msk [vmem:[%s3 + $0x1f8] sm:$0xff] %vm6035, %v5929
  %6100 = vst.msk [vmem:[%s3 + $0x200] sm:$0xff] %vm6035, %v5930
  %6101 = vst.msk [vmem:[%s3 + $0x208] sm:$0xff] %vm6035, %v5931
  %6102 = vst.msk [vmem:[%s3 + $0x210] sm:$0xff] %vm6035, %v5932
  %6103 = vst.msk [vmem:[%s3 + $0x218] sm:$0xff] %vm6035, %v5933
  %6104 = vst.msk [vmem:[%s3 + $0x220] sm:$0xff] %vm6035, %v5934
  %6105 = vst.msk [vmem:[%s3 + $0x228] sm:$0xff] %vm6035, %v5935
  %6106 = vst.msk [vmem:[%s3 + $0x230] sm:$0xff] %vm6035, %v5936
  %6107 = vst.msk [vmem:[%s3 + $0x238] sm:$0xff] %vm6035, %v5937
  %6108 = vst.msk [vmem:[%s3 + $0x240] sm:$0xff] %vm6035, %v5938
  %6109 = vst.msk [vmem:[%s3 + $0x248] sm:$0xff] %vm6035, %v5939
  %6110 = vst.msk [vmem:[%s3 + $0x250] sm:$0xff] %vm6035, %v5940
  %6111 = vst.msk [vmem:[%s3 + $0x258] sm:$0xff] %vm6035, %v5941
  %6112 = vst.msk [vmem:[%s3 + $0x260] sm:$0xff] %vm6035, %v5942
  %6113 = vst.msk [vmem:[%s3 + $0x268] sm:$0xff] %vm6035, %v5943
  %6114 = vst.msk [vmem:[%s3 + $0x270] sm:$0xff] %vm6035, %v5944
  %6115 = vst.msk [vmem:[%s3 + $0x278] sm:$0xff] %vm6035, %v5945
  %6116 = vst.msk [vmem:[%s3 + $0x280] sm:$0xff] %vm6035, %v5946
  %6117 = vst.msk [vmem:[%s3 + $0x288] sm:$0xff] %vm6035, %v5947
  %6118 = vst.msk [vmem:[%s3 + $0x290] sm:$0xff] %vm6035, %v5948
  %6119 = vst.msk [vmem:[%s3 + $0x298] sm:$0xff] %vm6035, %v5949
  %6120 = vst.msk [vmem:[%s3 + $0x2a0] sm:$0xff] %vm6035, %v5950
  %6121 = vst.msk [vmem:[%s3 + $0x2a8] sm:$0xff] %vm6035, %v5951
  %6122 = vst.msk [vmem:[%s3 + $0x2b0] sm:$0xff] %vm6035, %v5952
  %6123 = vst.msk [vmem:[%s3 + $0x2b8] sm:$0xff] %vm6035, %v5953
  %6124 = vst.msk [vmem:[%s3 + $0x2c0] sm:$0xff] %vm6035, %v5954
  %6125 = vst.msk [vmem:[%s3 + $0x2c8] sm:$0xff] %vm6035, %v5955
  %6126 = vst.msk [vmem:[%s3 + $0x2d0] sm:$0xff] %vm6035, %v5956
  %6127 = vst.msk [vmem:[%s3 + $0x2d8] sm:$0xff] %vm6035, %v5957
  %6128 = vst.msk [vmem:[%s3 + $0x2e0] sm:$0xff] %vm6035, %v5958
  %6129 = vst.msk [vmem:[%s3 + $0x2e8] sm:$0xff] %vm6035, %v5959
  %6130 = vst.msk [vmem:[%s3 + $0x2f0] sm:$0xff] %vm6035, %v5960
  %6131 = vst.msk [vmem:[%s3 + $0x2f8] sm:$0xff] %vm6035, %v5961
  %6132 = vst.msk [vmem:[%s3 + $0x300] sm:$0xff] %vm6035, %v5962
  %6133 = vst.msk [vmem:[%s3 + $0x308] sm:$0xff] %vm6035, %v5963
  %6134 = vst.msk [vmem:[%s3 + $0x310] sm:$0xff] %vm6035, %v5964
  %6135 = vst.msk [vmem:[%s3 + $0x318] sm:$0xff] %vm6035, %v5965
  %6136 = vst.msk [vmem:[%s3 + $0x320] sm:$0xff] %vm6035, %v5966
  %6137 = vst.msk [vmem:[%s3 + $0x328] sm:$0xff] %vm6035, %v5967
  %6138 = vst.msk [vmem:[%s3 + $0x330] sm:$0xff] %vm6035, %v5968
  %6139 = vst.msk [vmem:[%s3 + $0x338] sm:$0xff] %vm6035, %v5969
  %6140 = vst.msk [vmem:[%s3 + $0x340] sm:$0xff] %vm6035, %v5970
  %6141 = vst.msk [vmem:[%s3 + $0x348] sm:$0xff] %vm6035, %v5971
  %6142 = vst.msk [vmem:[%s3 + $0x350] sm:$0xff] %vm6035, %v5972
  %6143 = vst.msk [vmem:[%s3 + $0x358] sm:$0xff] %vm6035, %v5973
  %6144 = vst.msk [vmem:[%s3 + $0x360] sm:$0xff] %vm6035, %v5974
  %6145 = vst.msk [vmem:[%s3 + $0x368] sm:$0xff] %vm6035, %v5975
  %6146 = vst.msk [vmem:[%s3 + $0x370] sm:$0xff] %vm6035, %v5976
  %6147 = vst.msk [vmem:[%s3 + $0x378] sm:$0xff] %vm6035, %v5977
  %6148 = vst.msk [vmem:[%s3 + $0x380] sm:$0xff] %vm6035, %v5978
  %6149 = vst.msk [vmem:[%s3 + $0x388] sm:$0xff] %vm6035, %v5979
  %6150 = vst.msk [vmem:[%s3 + $0x390] sm:$0xff] %vm6035, %v5980
  %6151 = vst.msk [vmem:[%s3 + $0x398] sm:$0xff] %vm6035, %v5981
  %6152 = vst.msk [vmem:[%s3 + $0x3a0] sm:$0xff] %vm6035, %v5982
  %6153 = vst.msk [vmem:[%s3 + $0x3a8] sm:$0xff] %vm6035, %v5983
  %6154 = vst.msk [vmem:[%s3 + $0x3b0] sm:$0xff] %vm6035, %v5984
  %6155 = vst.msk [vmem:[%s3 + $0x3b8] sm:$0xff] %vm6035, %v5985
  %6156 = vst.msk [vmem:[%s3 + $0x3c0] sm:$0xff] %vm6035, %v5986
  %6157 = vst.msk [vmem:[%s3 + $0x3c8] sm:$0xff] %vm6035, %v5987
  %6158 = vst.msk [vmem:[%s3 + $0x3d0] sm:$0xff] %vm6035, %v5988
  %6159 = vst.msk [vmem:[%s3 + $0x3d8] sm:$0xff] %vm6035, %v5989
  %6160 = vst.msk [vmem:[%s3 + $0x3e0] sm:$0xff] %vm6035, %v5990
  %6161 = vst.msk [vmem:[%s3 + $0x3e8] sm:$0xff] %vm6035, %v5991
  %6162 = vst.msk [vmem:[%s3 + $0x3f0] sm:$0xff] %vm6035, %v5992
  %6163 = vst.msk [vmem:[%s3 + $0x3f8] sm:$0xff] %vm6035, %v5993
  %6164 = vst.msk [vmem:[%s3 + $0x400] sm:$0xff] %vm6035, %v5994
  %6165 = vst.msk [vmem:[%s3 + $0x408] sm:$0xff] %vm6035, %v5995
  %6166 = vst.msk [vmem:[%s3 + $0x410] sm:$0xff] %vm6035, %v5996
  %6167 = vst.msk [vmem:[%s3 + $0x418] sm:$0xff] %vm6035, %v5997
  %6168 = vst.msk [vmem:[%s3 + $0x420] sm:$0xff] %vm6035, %v5998
  %6169 = vst.msk [vmem:[%s3 + $0x428] sm:$0xff] %vm6035, %v5999
  %6170 = vst.msk [vmem:[%s3 + $0x430] sm:$0xff] %vm6035, %v6000
  %6171 = vst.msk [vmem:[%s3 + $0x438] sm:$0xff] %vm6035, %v6001
  %6172 = vst.msk [vmem:[%s3 + $0x440] sm:$0xff] %vm6035, %v6002
  %6173 = vst.msk [vmem:[%s3 + $0x448] sm:$0xff] %vm6035, %v6003
  %6174 = vst.msk [vmem:[%s3 + $0x450] sm:$0xff] %vm6035, %v6004
  %6175 = vst.msk [vmem:[%s3 + $0x458] sm:$0xff] %vm6035, %v6005
  %6176 = vst.msk [vmem:[%s3 + $0x460] sm:$0xff] %vm6035, %v6006
  %6177 = vst.msk [vmem:[%s3 + $0x468] sm:$0xff] %vm6035, %v6007
  %6178 = vst.msk [vmem:[%s3 + $0x470] sm:$0xff] %vm6035, %v6008
  %6179 = vst.msk [vmem:[%s3 + $0x478] sm:$0xff] %vm6035, %v6009
  %6180 = vst.msk [vmem:[%s3 + $0x480] sm:$0xff] %vm6035, %v6010
  %6181 = vst.msk [vmem:[%s3 + $0x488] sm:$0xff] %vm6035, %v6011
  %6182 = vst.msk [vmem:[%s3 + $0x490] sm:$0xff] %vm6035, %v6012
  %6183 = vst.msk [vmem:[%s3 + $0x498] sm:$0xff] %vm6035, %v6013
  %6184 = vst.msk [vmem:[%s3 + $0x4a0] sm:$0xff] %vm6035, %v6014
  %6185 = vst.msk [vmem:[%s3 + $0x4a8] sm:$0xff] %vm6035, %v6015
  %6186 = vst.msk [vmem:[%s3 + $0x4b0] sm:$0xff] %vm6035, %v6016
  %6187 = vst.msk [vmem:[%s3 + $0x4b8] sm:$0xff] %vm6035, %v6017
  %6188 = vst.msk [vmem:[%s3 + $0x4c0] sm:$0xff] %vm6035, %v6018
  %6189 = vst.msk [vmem:[%s3 + $0x4c8] sm:$0xff] %vm6035, %v6019
  %6190 = vst.msk [vmem:[%s3 + $0x4d0] sm:$0xff] %vm6035, %v6020
  %6191 = vst.msk [vmem:[%s3 + $0x4d8] sm:$0xff] %vm6035, %v6021
  %6192 = vst.msk [vmem:[%s3 + $0x4e0] sm:$0xff] %vm6035, %v6022
  %6193 = vst.msk [vmem:[%s3 + $0x4e8] sm:$0xff] %vm6035, %v6023
  %6194 = vst.msk [vmem:[%s3 + $0x4f0] sm:$0xff] %vm6035, %v6024
  %6195 = vst.msk [vmem:[%s3 + $0x4f8] sm:$0xff] %vm6035, %v6025
  %6196 = vst.msk [vmem:[%s3 + $0x500] sm:$0xff] %vm6035, %v6026
  %6197 = vst.msk [vmem:[%s3 + $0x508] sm:$0xff] %vm6035, %v6027
  %6198 = vst.msk [vmem:[%s3 + $0x510] sm:$0xff] %vm6035, %v6028
  %6199 = vst.msk [vmem:[%s3 + $0x518] sm:$0xff] %vm6035, %v6029
  %6200 = vst.msk [vmem:[%s3 + $0x520] sm:$0xff] %vm6035, %v6030
  %6201 = vst.msk [vmem:[%s3 + $0x528] sm:$0xff] %vm6035, %v6031
  %6202 = vst.msk [vmem:[%s3 + $0x530] sm:$0xff] %vm6035, %v6032
  %6203 = vst.msk [vmem:[%s3 + $0x538] sm:$0xff] %vm6035, %v6033
  %6204 = vst.msk [vmem:[%s3 + $0x540] sm:$0xff] %vm6035, %v6034
  // Predicated region
  $region14: #{dqn_forward.2} parent=0 // pred_check
    _
  $region15: #{dqn_forward.2} parent=0 // pred_check_branch
    %6206 = sbr.rel (0) target = $region17
  $region16: #{dqn_forward.2} parent=0 // pred_region
    _
  $region17: #{dqn_forward.2} parent=0 // pred_fallthru
    _
  // Predicated region
  $region18: #{dqn_forward.2} parent=0 // pred_check
    _
  $region19: #{dqn_forward.2} parent=0 // pred_check_branch
    %6208 = sbr.rel (0) target = $region21
  $region20: #{dqn_forward.2} parent=0 // pred_region
    _
  $region21: #{dqn_forward.2} parent=0 // pred_fallthru
    _

// kernel: dqn_forward.3
$region0: #{dqn_forward.3}
  #allocation0 [shape = 'u32[]', space=smem, size = 0x4, offset = 0x4, fixed_abs, tag = 'smem constant byte address 0x4 - core index']
  #allocation1 [shape = 'u32[144,128]{1,0:T(1,128)}', space=vmem, size = 0x12000, scoped, tag = 'internal scratch']
  %s0 = inlined_call_operand.vmem [shape: f32[9,8,800], index: 0, kind: input, shape index: {}]
  %s1 = inlined_call_operand.vmem [shape: f32[800,256], index: 1, kind: input, shape index: {}]
  %s2 = inlined_call_operand.vmem [shape: f32[1,256], index: 2, kind: input, shape index: {}]
  %s3 = inlined_call_operand.vmem [shape: f32[9,64,128], index: 3, kind: input, shape index: {}]
  %s4 = inlined_call_operand.vmem [shape: f32[1,128], index: 4, kind: input, shape index: {}]
  %s5 = inlined_call_operand.vmem [shape: f32[128,4], index: 5, kind: input, shape index: {}]
  %s6 = inlined_call_operand.vmem [shape: f32[1,4], index: 6, kind: input, shape index: {}]
  %s7 = inlined_call_operand.vmem [shape: f32[8,4], index: 7, kind: output, shape index: {}]
  %s8 = sld [smem:[#allocation0]]
  $region38: #{dqn_forward.3} parent=0
    _
  %s10 = ssub.s32 1, %s8
  %s11 = scalar_select 0, %s10, %s8
  // Predicated region
  $region2: #{dqn_forward.3} parent=0 // pred_check
    _
  $region3: #{dqn_forward.3} parent=0 // pred_check_branch
    %13 = sbr.rel (0) target = $region5
  $region4: #{dqn_forward.3} parent=0 // pred_region
    _
  $region5: #{dqn_forward.3} parent=0 // pred_fallthru
    _
  // Predicated region
  $region6: #{dqn_forward.3} parent=0 // pred_check
    _
  $region7: #{dqn_forward.3} parent=0 // pred_check_branch
    %15 = sbr.rel (0) target = $region9
  $region8: #{dqn_forward.3} parent=0 // pred_region
    _
  $region9: #{dqn_forward.3} parent=0 // pred_fallthru
    _
  // Predicated region
  $region10: #{dqn_forward.3} parent=0 // pred_check
    _
  $region11: #{dqn_forward.3} parent=0 // pred_check_branch
    %17 = sbr.rel (0) target = $region13
  $region12: #{dqn_forward.3} parent=0 // pred_region
    _
  $region13: #{dqn_forward.3} parent=0 // pred_fallthru
    _
  // Predicated region
  $region14: #{dqn_forward.3} parent=0 // pred_check
    _
  $region15: #{dqn_forward.3} parent=0 // pred_check_branch
    %19 = sbr.rel (0) target = $region17
  $region16: #{dqn_forward.3} parent=0 // pred_region
    _
  $region17: #{dqn_forward.3} parent=0 // pred_fallthru
    _
  // Predicated region
  $region18: #{dqn_forward.3} parent=0 // pred_check
    _
  $region19: #{dqn_forward.3} parent=0 // pred_check_branch
    %21 = sbr.rel (0) target = $region21
  $region20: #{dqn_forward.3} parent=0 // pred_region
    _
  $region21: #{dqn_forward.3} parent=0 // pred_fallthru
    _
  // Predicated region
  $region22: #{dqn_forward.3} parent=0 // pred_check
    _
  $region23: #{dqn_forward.3} parent=0 // pred_check_branch
    %23 = sbr.rel (0) target = $region25
  $region24: #{dqn_forward.3} parent=0 // pred_region
    _
  $region25: #{dqn_forward.3} parent=0 // pred_fallthru
    _
  // Predicated region
  $region26: #{dqn_forward.3} parent=0 // pred_check
    _
  $region27: #{dqn_forward.3} parent=0 // pred_check_branch
    %25 = sbr.rel (0) target = $region29
  $region28: #{dqn_forward.3} parent=0 // pred_region
    _
  $region29: #{dqn_forward.3} parent=0 // pred_fallthru
    _
  %v26 = vld [vmem:[%s0] sm:$0xff]
  %v27 = vld [vmem:[%s0 + $0x8] sm:$0xff]
  %v28 = vld [vmem:[%s0 + $0x10] sm:$0xff]
  %v29 = vld [vmem:[%s0 + $0x18] sm:$0xff]
  %v30 = vld [vmem:[%s0 + $0x20] sm:$0xff]
  %v31 = vld [vmem:[%s0 + $0x28] sm:$0xff]
  %v32 = vld [vmem:[%s0 + $0x30] sm:$0xff]
  %v33 = vld [vmem:[%s1] sm:$0xff]
  %v34 = vld [vmem:[%s1 + $0x8] sm:$0xff]
  %v35 = vld [vmem:[%s1 + $0x10] sm:$0xff]
  %v36 = vld [vmem:[%s1 + $0x18] sm:$0xff]
  %v37 = vld [vmem:[%s1 + $0x20] sm:$0xff]
  %v38 = vld [vmem:[%s1 + $0x28] sm:$0xff]
  %v39 = vld [vmem:[%s1 + $0x30] sm:$0xff]
  %v40 = vld [vmem:[%s1 + $0x38] sm:$0xff]
  %v41 = vld [vmem:[%s1 + $0x40] sm:$0xff]
  %v42 = vld [vmem:[%s1 + $0x48] sm:$0xff]
  %v43 = vld [vmem:[%s1 + $0x50] sm:$0xff]
  %v44 = vld [vmem:[%s1 + $0x58] sm:$0xff]
  %v45 = vld [vmem:[%s1 + $0x60] sm:$0xff]
  %v46 = vld [vmem:[%s1 + $0x68] sm:$0xff]
  %v47 = vld [vmem:[%s1 + $0x70] sm:$0xff]
  %v48 = vld [vmem:[%s1 + $0x78] sm:$0xff]
  %v49 = vld [vmem:[%s1 + $0x80] sm:$0xff]
  %v50 = vld [vmem:[%s1 + $0x88] sm:$0xff]
  %v51 = vld [vmem:[%s1 + $0x90] sm:$0xff]
  %v52 = vld [vmem:[%s1 + $0x98] sm:$0xff]
  %v53 = vld [vmem:[%s1 + $0xa0] sm:$0xff]
  %v54 = vld [vmem:[%s1 + $0xa8] sm:$0xff]
  %v55 = vld [vmem:[%s1 + $0xb0] sm:$0xff]
  %v56 = vld [vmem:[%s1 + $0xb8] sm:$0xff]
  %v57 = vld [vmem:[%s1 + $0xc0] sm:$0xff]
  %v58 = vld [vmem:[%s1 + $0xc8] sm:$0xff]
  %v59 = vld [vmem:[%s1 + $0xd0] sm:$0xff]
  %v60 = vld [vmem:[%s1 + $0xd8] sm:$0xff]
  %v61 = vld [vmem:[%s1 + $0xe0] sm:$0xff]
  %v62 = vld [vmem:[%s1 + $0xe8] sm:$0xff]
  %v63 = vld [vmem:[%s1 + $0xf0] sm:$0xff]
  %v64 = vld [vmem:[%s1 + $0xf8] sm:$0xff]
  %v65 = vld [vmem:[%s1 + $0x100] sm:$0xff]
  %v66 = vld [vmem:[%s1 + $0x108] sm:$0xff]
  %v67 = vld [vmem:[%s1 + $0x110] sm:$0xff]
  %v68 = vld [vmem:[%s1 + $0x118] sm:$0xff]
  %v69 = vld [vmem:[%s1 + $0x120] sm:$0xff]
  %v70 = vld [vmem:[%s1 + $0x128] sm:$0xff]
  %v71 = vld [vmem:[%s1 + $0x130] sm:$0xff]
  %v72 = vld [vmem:[%s1 + $0x138] sm:$0xff]
  %v73 = vld [vmem:[%s1 + $0x140] sm:$0xff]
  %v74 = vld [vmem:[%s1 + $0x148] sm:$0xff]
  %v75 = vld [vmem:[%s1 + $0x150] sm:$0xff]
  %v76 = vld [vmem:[%s1 + $0x158] sm:$0xff]
  %v77 = vld [vmem:[%s1 + $0x160] sm:$0xff]
  %v78 = vld [vmem:[%s1 + $0x168] sm:$0xff]
  %v79 = vld [vmem:[%s1 + $0x170] sm:$0xff]
  %v80 = vld [vmem:[%s1 + $0x178] sm:$0xff]
  %v81 = vld [vmem:[%s1 + $0x180] sm:$0xff]
  %v82 = vld [vmem:[%s1 + $0x188] sm:$0xff]
  %v83 = vld [vmem:[%s1 + $0x190] sm:$0xff]
  %v84 = vld [vmem:[%s1 + $0x198] sm:$0xff]
  %v85 = vld [vmem:[%s1 + $0x1a0] sm:$0xff]
  %v86 = vld [vmem:[%s1 + $0x1a8] sm:$0xff]
  %v87 = vld [vmem:[%s1 + $0x1b0] sm:$0xff]
  %v88 = vld [vmem:[%s1 + $0x1b8] sm:$0xff]
  %v89 = vld [vmem:[%s1 + $0x1c0] sm:$0xff]
  %v90 = vld [vmem:[%s1 + $0x1c8] sm:$0xff]
  %v91 = vld [vmem:[%s1 + $0x1d0] sm:$0xff]
  %v92 = vld [vmem:[%s1 + $0x1d8] sm:$0xff]
  %v93 = vld [vmem:[%s1 + $0x1e0] sm:$0xff]
  %v94 = vld [vmem:[%s1 + $0x1e8] sm:$0xff]
  %v95 = vld [vmem:[%s1 + $0x1f0] sm:$0xff]
  %v96 = vld [vmem:[%s1 + $0x1f8] sm:$0xff]
  %v97 = vld [vmem:[%s1 + $0x200] sm:$0xff]
  %v98 = vld [vmem:[%s1 + $0x208] sm:$0xff]
  %v99 = vld [vmem:[%s1 + $0x210] sm:$0xff]
  %v100 = vld [vmem:[%s1 + $0x218] sm:$0xff]
  %v101 = vld [vmem:[%s1 + $0x220] sm:$0xff]
  %v102 = vld [vmem:[%s1 + $0x228] sm:$0xff]
  %v103 = vld [vmem:[%s1 + $0x230] sm:$0xff]
  %v104 = vld [vmem:[%s1 + $0x238] sm:$0xff]
  %v105 = vld [vmem:[%s1 + $0x240] sm:$0xff]
  %v106 = vld [vmem:[%s1 + $0x248] sm:$0xff]
  %v107 = vld [vmem:[%s1 + $0x250] sm:$0xff]
  %v108 = vld [vmem:[%s1 + $0x258] sm:$0xff]
  %v109 = vld [vmem:[%s1 + $0x260] sm:$0xff]
  %v110 = vld [vmem:[%s1 + $0x268] sm:$0xff]
  %v111 = vld [vmem:[%s1 + $0x270] sm:$0xff]
  %v112 = vld [vmem:[%s1 + $0x278] sm:$0xff]
  %v113 = vld [vmem:[%s1 + $0x280] sm:$0xff]
  %v114 = vld [vmem:[%s1 + $0x288] sm:$0xff]
  %v115 = vld [vmem:[%s1 + $0x290] sm:$0xff]
  %v116 = vld [vmem:[%s1 + $0x298] sm:$0xff]
  %v117 = vld [vmem:[%s1 + $0x2a0] sm:$0xff]
  %v118 = vld [vmem:[%s1 + $0x2a8] sm:$0xff]
  %v119 = vld [vmem:[%s1 + $0x2b0] sm:$0xff]
  %v120 = vld [vmem:[%s1 + $0x2b8] sm:$0xff]
  %v121 = vld [vmem:[%s1 + $0x2c0] sm:$0xff]
  %v122 = vld [vmem:[%s1 + $0x2c8] sm:$0xff]
  %v123 = vld [vmem:[%s1 + $0x2d0] sm:$0xff]
  %v124 = vld [vmem:[%s1 + $0x2d8] sm:$0xff]
  %v125 = vld [vmem:[%s1 + $0x2e0] sm:$0xff]
  %v126 = vld [vmem:[%s1 + $0x2e8] sm:$0xff]
  %v127 = vld [vmem:[%s1 + $0x2f0] sm:$0xff]
  %v128 = vld [vmem:[%s1 + $0x2f8] sm:$0xff]
  %v129 = vld [vmem:[%s1 + $0x300] sm:$0xff]
  %v130 = vld [vmem:[%s1 + $0x308] sm:$0xff]
  %v131 = vld [vmem:[%s1 + $0x310] sm:$0xff]
  %v132 = vld [vmem:[%s1 + $0x318] sm:$0xff]
  %v133 = vld [vmem:[%s1 + $0x320] sm:$0xff]
  %v134 = vld [vmem:[%s1 + $0x328] sm:$0xff]
  %v135 = vld [vmem:[%s1 + $0x330] sm:$0xff]
  %v136 = vld [vmem:[%s1 + $0x338] sm:$0xff]
  %v137 = vld [vmem:[%s1 + $0x340] sm:$0xff]
  %v138 = vld [vmem:[%s1 + $0x348] sm:$0xff]
  %v139 = vld [vmem:[%s1 + $0x350] sm:$0xff]
  %v140 = vld [vmem:[%s1 + $0x358] sm:$0xff]
  %v141 = vld [vmem:[%s1 + $0x360] sm:$0xff]
  %v142 = vld [vmem:[%s1 + $0x368] sm:$0xff]
  %v143 = vld [vmem:[%s1 + $0x370] sm:$0xff]
  %v144 = vld [vmem:[%s1 + $0x378] sm:$0xff]
  %v145 = vld [vmem:[%s1 + $0x380] sm:$0xff]
  %v146 = vld [vmem:[%s1 + $0x388] sm:$0xff]
  %v147 = vld [vmem:[%s1 + $0x390] sm:$0xff]
  %v148 = vld [vmem:[%s1 + $0x398] sm:$0xff]
  %v149 = vld [vmem:[%s1 + $0x3a0] sm:$0xff]
  %v150 = vld [vmem:[%s1 + $0x3a8] sm:$0xff]
  %v151 = vld [vmem:[%s1 + $0x3b0] sm:$0xff]
  %v152 = vld [vmem:[%s1 + $0x3b8] sm:$0xff]
  %v153 = vld [vmem:[%s1 + $0x3c0] sm:$0xff]
  %v154 = vld [vmem:[%s1 + $0x3c8] sm:$0xff]
  %v155 = vld [vmem:[%s1 + $0x3d0] sm:$0xff]
  %v156 = vld [vmem:[%s1 + $0x3d8] sm:$0xff]
  %v157 = vld [vmem:[%s1 + $0x3e0] sm:$0xff]
  %v158 = vld [vmem:[%s1 + $0x3e8] sm:$0xff]
  %v159 = vld [vmem:[%s1 + $0x3f0] sm:$0xff]
  %v160 = vld [vmem:[%s1 + $0x3f8] sm:$0xff]
  %v161 = vld [vmem:[%s1 + $0x400] sm:$0xff]
  %v162 = vld [vmem:[%s1 + $0x408] sm:$0xff]
  %v163 = vld [vmem:[%s1 + $0x410] sm:$0xff]
  %v164 = vld [vmem:[%s1 + $0x418] sm:$0xff]
  %v165 = vld [vmem:[%s1 + $0x420] sm:$0xff]
  %v166 = vld [vmem:[%s1 + $0x428] sm:$0xff]
  %v167 = vld [vmem:[%s1 + $0x430] sm:$0xff]
  %v168 = vld [vmem:[%s1 + $0x438] sm:$0xff]
  %v169 = vld [vmem:[%s1 + $0x440] sm:$0xff]
  %v170 = vld [vmem:[%s1 + $0x448] sm:$0xff]
  %v171 = vld [vmem:[%s1 + $0x450] sm:$0xff]
  %v172 = vld [vmem:[%s1 + $0x458] sm:$0xff]
  %v173 = vld [vmem:[%s1 + $0x460] sm:$0xff]
  %v174 = vld [vmem:[%s1 + $0x468] sm:$0xff]
  %v175 = vld [vmem:[%s1 + $0x470] sm:$0xff]
  %v176 = vld [vmem:[%s1 + $0x478] sm:$0xff]
  %v177 = vld [vmem:[%s1 + $0x480] sm:$0xff]
  %v178 = vld [vmem:[%s1 + $0x488] sm:$0xff]
  %v179 = vld [vmem:[%s1 + $0x490] sm:$0xff]
  %v180 = vld [vmem:[%s1 + $0x498] sm:$0xff]
  %v181 = vld [vmem:[%s1 + $0x4a0] sm:$0xff]
  %v182 = vld [vmem:[%s1 + $0x4a8] sm:$0xff]
  %v183 = vld [vmem:[%s1 + $0x4b0] sm:$0xff]
  %v184 = vld [vmem:[%s1 + $0x4b8] sm:$0xff]
  %v185 = vld [vmem:[%s1 + $0x4c0] sm:$0xff]
  %v186 = vld [vmem:[%s1 + $0x4c8] sm:$0xff]
  %v187 = vld [vmem:[%s1 + $0x4d0] sm:$0xff]
  %v188 = vld [vmem:[%s1 + $0x4d8] sm:$0xff]
  %v189 = vld [vmem:[%s1 + $0x4e0] sm:$0xff]
  %v190 = vld [vmem:[%s1 + $0x4e8] sm:$0xff]
  %v191 = vld [vmem:[%s1 + $0x4f0] sm:$0xff]
  %v192 = vld [vmem:[%s1 + $0x4f8] sm:$0xff]
  %v193 = vld [vmem:[%s1 + $0x500] sm:$0xff]
  %v194 = vld [vmem:[%s1 + $0x508] sm:$0xff]
  %v195 = vld [vmem:[%s1 + $0x510] sm:$0xff]
  %v196 = vld [vmem:[%s1 + $0x518] sm:$0xff]
  %v197 = vld [vmem:[%s1 + $0x520] sm:$0xff]
  %v198 = vld [vmem:[%s1 + $0x528] sm:$0xff]
  %v199 = vld [vmem:[%s1 + $0x530] sm:$0xff]
  %v200 = vld [vmem:[%s1 + $0x538] sm:$0xff]
  %v201 = vld [vmem:[%s1 + $0x540] sm:$0xff]
  %v202 = vld [vmem:[%s1 + $0x548] sm:$0xff]
  %v203 = vld [vmem:[%s1 + $0x550] sm:$0xff]
  %v204 = vld [vmem:[%s1 + $0x558] sm:$0xff]
  %v205 = vld [vmem:[%s1 + $0x560] sm:$0xff]
  %v206 = vld [vmem:[%s1 + $0x568] sm:$0xff]
  %v207 = vld [vmem:[%s1 + $0x570] sm:$0xff]
  %v208 = vld [vmem:[%s1 + $0x578] sm:$0xff]
  %v209 = vld [vmem:[%s1 + $0x580] sm:$0xff]
  %v210 = vld [vmem:[%s1 + $0x588] sm:$0xff]
  %v211 = vld [vmem:[%s1 + $0x590] sm:$0xff]
  %v212 = vld [vmem:[%s1 + $0x598] sm:$0xff]
  %v213 = vld [vmem:[%s1 + $0x5a0] sm:$0xff]
  %v214 = vld [vmem:[%s1 + $0x5a8] sm:$0xff]
  %v215 = vld [vmem:[%s1 + $0x5b0] sm:$0xff]
  %v216 = vld [vmem:[%s1 + $0x5b8] sm:$0xff]
  %v217 = vld [vmem:[%s1 + $0x5c0] sm:$0xff]
  %v218 = vld [vmem:[%s1 + $0x5c8] sm:$0xff]
  %v219 = vld [vmem:[%s1 + $0x5d0] sm:$0xff]
  %v220 = vld [vmem:[%s1 + $0x5d8] sm:$0xff]
  %v221 = vld [vmem:[%s1 + $0x5e0] sm:$0xff]
  %v222 = vld [vmem:[%s1 + $0x5e8] sm:$0xff]
  %v223 = vld [vmem:[%s1 + $0x5f0] sm:$0xff]
  %v224 = vld [vmem:[%s1 + $0x5f8] sm:$0xff]
  %v225 = vld [vmem:[%s1 + $0x600] sm:$0xff]
  %v226 = vld [vmem:[%s1 + $0x608] sm:$0xff]
  %v227 = vld [vmem:[%s1 + $0x610] sm:$0xff]
  %v228 = vld [vmem:[%s1 + $0x618] sm:$0xff]
  %v229 = vld [vmem:[%s1 + $0x620] sm:$0xff]
  %v230 = vld [vmem:[%s1 + $0x628] sm:$0xff]
  %v231 = vld [vmem:[%s1 + $0x630] sm:$0xff]
  %v232 = vld [vmem:[%s1 + $0x638] sm:$0xff]
  %v233 = vld [vmem:[%s2] sm:$0x3]
  %v235 = vlaneseq
  %v236 = vshrl.u32 %v235, 7
  %v237 = vsub.s32 0, %v236
  %v238 = vrot.slane %v233, %v237
  %v239 = vlaneseq
  %v240 = vshrl.u32 %v239, 7
  %v241 = vsub.s32 1, %v240
  %v242 = vrot.slane %v233, %v241
  %vm245 = vcmask 261120
  %v247 = vsel %vm245, %v32, 0
  %249 = vmatprep.subr.mxu0 %v34
  %250 = vmatpush1.msra.mxu0 %v33
  %251 = vmatprep.subr.mxu0 %v36
  %252 = vmatpush1.msra.mxu0 %v35
  %253 = vmatprep.subr.mxu0 %v38
  %254 = vmatpush1.msra.mxu0 %v37
  %255 = vmatprep.subr.mxu0 %v40
  %256 = vmatpush1.msra.mxu0 %v39
  %257 = vmatprep.subr.mxu0 %v42
  %258 = vmatpush1.msra.mxu0 %v41
  %259 = vmatprep.subr.mxu0 %v44
  %260 = vmatpush1.msra.mxu0 %v43
  %261 = vmatprep.subr.mxu0 %v46
  %262 = vmatpush1.msra.mxu0 %v45
  %263 = vmatprep.subr.mxu0 %v48
  %264 = vmatpush1.msra.mxu0 %v47
  %265 = vmatprep.subr.mxu0 %v50
  %266 = vmatpush1.msra.mxu0 %v49
  %267 = vmatprep.subr.mxu0 %v52
  %268 = vmatpush1.msra.mxu0 %v51
  %269 = vmatprep.subr.mxu0 %v54
  %270 = vmatpush1.msra.mxu0 %v53
  %271 = vmatprep.subr.mxu0 %v56
  %272 = vmatpush1.msra.mxu0 %v55
  %273 = vmatprep.subr.mxu0 %v58
  %274 = vmatpush1.msra.mxu0 %v57
  %275 = vmatprep.subr.mxu0 %v60
  %276 = vmatpush1.msra.mxu0 %v59
  %277 = vmatprep.subr.mxu0 %v62
  %278 = vmatpush1.msra.mxu0 %v61
  %279 = vmatprep.subr.mxu0 %v64
  %280 = vmatpush1.msra.mxu0 %v63
  %281 = vmatprep.subr.mxu0 %v66
  %282 = vmatpush1.msra.mxu0 %v65
  %283 = vmatprep.subr.mxu0 %v68
  %284 = vmatpush1.msra.mxu0 %v67
  %285 = vmatprep.subr.mxu0 %v70
  %286 = vmatpush1.msra.mxu0 %v69
  %287 = vmatprep.subr.mxu0 %v72
  %288 = vmatpush1.msra.mxu0 %v71
  %289 = vmatprep.subr.mxu0 %v74
  %290 = vmatpush1.msra.mxu0 %v73
  %291 = vmatprep.subr.mxu0 %v76
  %292 = vmatpush1.msra.mxu0 %v75
  %293 = vmatprep.subr.mxu0 %v78
  %294 = vmatpush1.msra.mxu0 %v77
  %295 = vmatprep.subr.mxu0 %v80
  %296 = vmatpush1.msra.mxu0 %v79
  %297 = vmatprep.subr.mxu0 %v82
  %298 = vmatpush1.msra.mxu0 %v81
  %299 = vmatprep.subr.mxu0 %v84
  %300 = vmatpush1.msra.mxu0 %v83
  %301 = vmatprep.subr.mxu0 %v86
  %302 = vmatpush1.msra.mxu0 %v85
  %303 = vmatprep.subr.mxu0 %v88
  %304 = vmatpush1.msra.mxu0 %v87
  %305 = vmatprep.subr.mxu0 %v90
  %306 = vmatpush1.msra.mxu0 %v89
  %307 = vmatprep.subr.mxu0 %v92
  %308 = vmatpush1.msra.mxu0 %v91
  %309 = vmatprep.subr.mxu0 %v94
  %310 = vmatpush1.msra.mxu0 %v93
  %311 = vmatprep.subr.mxu0 %v96
  %312 = vmatpush1.msra.mxu0 %v95
  %313 = vmatprep.mubr.f32.mxu0 %v27
  %314 = vmatmul.mubr.f32.gmra.mrb[0].mxu0 %v26
  %v315 = vpop.f32.mrb[0].mxu0
  %v316 = vadd.f32 %v238, %v315
  %v317 = vpop.f32.mrb[0].mxu0
  %v318 = vadd.f32 %v242, %v317
  %319 = vdwg.mxu0
  %320 = vmatprep.subr.mxu0 %v98
  %321 = vmatpush1.msra.mxu0 %v97
  %322 = vmatprep.subr.mxu0 %v100
  %323 = vmatpush1.msra.mxu0 %v99
  %324 = vmatprep.subr.mxu0 %v102
  %325 = vmatpush1.msra.mxu0 %v101
  %326 = vmatprep.subr.mxu0 %v104
  %327 = vmatpush1.msra.mxu0 %v103
  %328 = vmatprep.subr.mxu0 %v106
  %329 = vmatpush1.msra.mxu0 %v105
  %330 = vmatprep.subr.mxu0 %v108
  %331 = vmatpush1.msra.mxu0 %v107
  %332 = vmatprep.subr.mxu0 %v110
  %333 = vmatpush1.msra.mxu0 %v109
  %334 = vmatprep.subr.mxu0 %v112
  %335 = vmatpush1.msra.mxu0 %v111
  %336 = vmatprep.subr.mxu0 %v114
  %337 = vmatpush1.msra.mxu0 %v113
  %338 = vmatprep.subr.mxu0 %v116
  %339 = vmatpush1.msra.mxu0 %v115
  %340 = vmatprep.subr.mxu0 %v118
  %341 = vmatpush1.msra.mxu0 %v117
  %342 = vmatprep.subr.mxu0 %v120
  %343 = vmatpush1.msra.mxu0 %v119
  %344 = vmatprep.subr.mxu0 %v122
  %345 = vmatpush1.msra.mxu0 %v121
  %346 = vmatprep.subr.mxu0 %v124
  %347 = vmatpush1.msra.mxu0 %v123
  %348 = vmatprep.subr.mxu0 %v126
  %349 = vmatpush1.msra.mxu0 %v125
  %350 = vmatprep.subr.mxu0 %v128
  %351 = vmatpush1.msra.mxu0 %v127
  %352 = vmatprep.subr.mxu0 %v130
  %353 = vmatpush1.msra.mxu0 %v129
  %354 = vmatprep.subr.mxu0 %v132
  %355 = vmatpush1.msra.mxu0 %v131
  %356 = vmatprep.subr.mxu0 %v134
  %357 = vmatpush1.msra.mxu0 %v133
  %358 = vmatprep.subr.mxu0 %v136
  %359 = vmatpush1.msra.mxu0 %v135
  %360 = vmatprep.subr.mxu0 %v138
  %361 = vmatpush1.msra.mxu0 %v137
  %362 = vmatprep.subr.mxu0 %v140
  %363 = vmatpush1.msra.mxu0 %v139
  %364 = vmatprep.subr.mxu0 %v142
  %365 = vmatpush1.msra.mxu0 %v141
  %366 = vmatprep.subr.mxu0 %v144
  %367 = vmatpush1.msra.mxu0 %v143
  %368 = vmatprep.subr.mxu0 %v146
  %369 = vmatpush1.msra.mxu0 %v145
  %370 = vmatprep.subr.mxu0 %v148
  %371 = vmatpush1.msra.mxu0 %v147
  %372 = vmatprep.subr.mxu0 %v150
  %373 = vmatpush1.msra.mxu0 %v149
  %374 = vmatprep.subr.mxu0 %v152
  %375 = vmatpush1.msra.mxu0 %v151
  %376 = vmatprep.subr.mxu0 %v154
  %377 = vmatpush1.msra.mxu0 %v153
  %378 = vmatprep.subr.mxu0 %v156
  %379 = vmatpush1.msra.mxu0 %v155
  %380 = vmatprep.subr.mxu0 %v158
  %381 = vmatpush1.msra.mxu0 %v157
  %382 = vmatprep.subr.mxu0 %v160
  %383 = vmatpush1.msra.mxu0 %v159
  %384 = vmatprep.mubr.f32.mxu0 %v29
  %385 = vmatmul.mubr.f32.gmra.mrb[0].mxu0 %v28
  %v386 = vpop.f32.mrb[0].mxu0
  %v387 = vadd.f32 %v316, %v386
  %v388 = vpop.f32.mrb[0].mxu0
  %v389 = vadd.f32 %v318, %v388
  %390 = vdwg.mxu0
  %391 = vmatprep.subr.mxu0 %v162
  %392 = vmatpush1.msra.mxu0 %v161
  %393 = vmatprep.subr.mxu0 %v164
  %394 = vmatpush1.msra.mxu0 %v163
  %395 = vmatprep.subr.mxu0 %v166
  %396 = vmatpush1.msra.mxu0 %v165
  %397 = vmatprep.subr.mxu0 %v168
  %398 = vmatpush1.msra.mxu0 %v167
  %399 = vmatprep.subr.mxu0 %v170
  %400 = vmatpush1.msra.mxu0 %v169
  %401 = vmatprep.subr.mxu0 %v172
  %402 = vmatpush1.msra.mxu0 %v171
  %403 = vmatprep.subr.mxu0 %v174
  %404 = vmatpush1.msra.mxu0 %v173
  %405 = vmatprep.subr.mxu0 %v176
  %406 = vmatpush1.msra.mxu0 %v175
  %407 = vmatprep.subr.mxu0 %v178
  %408 = vmatpush1.msra.mxu0 %v177
  %409 = vmatprep.subr.mxu0 %v180
  %410 = vmatpush1.msra.mxu0 %v179
  %411 = vmatprep.subr.mxu0 %v182
  %412 = vmatpush1.msra.mxu0 %v181
  %413 = vmatprep.subr.mxu0 %v184
  %414 = vmatpush1.msra.mxu0 %v183
  %415 = vmatprep.subr.mxu0 %v186
  %416 = vmatpush1.msra.mxu0 %v185
  %417 = vmatprep.subr.mxu0 %v188
  %418 = vmatpush1.msra.mxu0 %v187
  %419 = vmatprep.subr.mxu0 %v190
  %420 = vmatpush1.msra.mxu0 %v189
  %421 = vmatprep.subr.mxu0 %v192
  %422 = vmatpush1.msra.mxu0 %v191
  %423 = vmatprep.subr.mxu0 %v194
  %424 = vmatpush1.msra.mxu0 %v193
  %425 = vmatprep.subr.mxu0 %v196
  %426 = vmatpush1.msra.mxu0 %v195
  %427 = vmatprep.subr.mxu0 %v198
  %428 = vmatpush1.msra.mxu0 %v197
  %429 = vmatprep.subr.mxu0 %v200
  %430 = vmatpush1.msra.mxu0 %v199
  %431 = vmatprep.subr.mxu0 %v202
  %432 = vmatpush1.msra.mxu0 %v201
  %433 = vmatprep.subr.mxu0 %v204
  %434 = vmatpush1.msra.mxu0 %v203
  %435 = vmatprep.subr.mxu0 %v206
  %436 = vmatpush1.msra.mxu0 %v205
  %437 = vmatprep.subr.mxu0 %v208
  %438 = vmatpush1.msra.mxu0 %v207
  %439 = vmatprep.subr.mxu0 %v210
  %440 = vmatpush1.msra.mxu0 %v209
  %441 = vmatprep.subr.mxu0 %v212
  %442 = vmatpush1.msra.mxu0 %v211
  %443 = vmatprep.subr.mxu0 %v214
  %444 = vmatpush1.msra.mxu0 %v213
  %445 = vmatprep.subr.mxu0 %v216
  %446 = vmatpush1.msra.mxu0 %v215
  %447 = vmatprep.subr.mxu0 %v218
  %448 = vmatpush1.msra.mxu0 %v217
  %449 = vmatprep.subr.mxu0 %v220
  %450 = vmatpush1.msra.mxu0 %v219
  %451 = vmatprep.subr.mxu0 %v222
  %452 = vmatpush1.msra.mxu0 %v221
  %453 = vmatprep.subr.mxu0 %v224
  %454 = vmatpush1.msra.mxu0 %v223
  %455 = vmatprep.mubr.f32.mxu0 %v31
  %456 = vmatmul.mubr.f32.gmra.mrb[0].mxu0 %v30
  %v457 = vpop.f32.mrb[0].mxu0
  %v458 = vadd.f32 %v387, %v457
  %v459 = vpop.f32.mrb[0].mxu0
  %v460 = vadd.f32 %v389, %v459
  %461 = vdwg.mxu0
  %462 = vmatprep.subr.mxu0 %v226
  %463 = vmatpush1.msra.mxu0 %v225
  %464 = vmatprep.subr.mxu0 %v228
  %465 = vmatpush1.msra.mxu0 %v227
  %466 = vmatprep.subr.mxu0 %v230
  %467 = vmatpush1.msra.mxu0 %v229
  %468 = vmatprep.subr.mxu0 %v232
  %469 = vmatpush1.msra.mxu0 %v231
  %470 = vmatprep.subr.mxu0 0.0
  %471 = vmatpush1.msra.mxu0 0.0
  %472 = vmatprep.subr.mxu0 0.0
  %473 = vmatpush1.msra.mxu0 0.0
  %474 = vmatprep.subr.mxu0 0.0
  %475 = vmatpush1.msra.mxu0 0.0
  %476 = vmatprep.subr.mxu0 0.0
  %477 = vmatpush1.msra.mxu0 0.0
  %478 = vmatprep.subr.mxu0 0.0
  %479 = vmatpush1.msra.mxu0 0.0
  %480 = vmatprep.subr.mxu0 0.0
  %481 = vmatpush1.msra.mxu0 0.0
  %482 = vmatprep.subr.mxu0 0.0
  %483 = vmatpush1.msra.mxu0 0.0
  %484 = vmatprep.subr.mxu0 0.0
  %485 = vmatpush1.msra.mxu0 0.0
  %486 = vmatprep.subr.mxu0 0.0
  %487 = vmatpush1.msra.mxu0 0.0
  %488 = vmatprep.subr.mxu0 0.0
  %489 = vmatpush1.msra.mxu0 0.0
  %490 = vmatprep.subr.mxu0 0.0
  %491 = vmatpush1.msra.mxu0 0.0
  %492 = vmatprep.subr.mxu0 0.0
  %493 = vmatpush1.msra.mxu0 0.0
  %494 = vmatprep.subr.mxu0 0.0
  %495 = vmatpush1.msra.mxu0 0.0
  %496 = vmatprep.subr.mxu0 0.0
  %497 = vmatpush1.msra.mxu0 0.0
  %498 = vmatprep.subr.mxu0 0.0
  %499 = vmatpush1.msra.mxu0 0.0
  %500 = vmatprep.subr.mxu0 0.0
  %501 = vmatpush1.msra.mxu0 0.0
  %502 = vmatprep.subr.mxu0 0.0
  %503 = vmatpush1.msra.mxu0 0.0
  %504 = vmatprep.subr.mxu0 0.0
  %505 = vmatpush1.msra.mxu0 0.0
  %506 = vmatprep.subr.mxu0 0.0
  %507 = vmatpush1.msra.mxu0 0.0
  %508 = vmatprep.subr.mxu0 0.0
  %509 = vmatpush1.msra.mxu0 0.0
  %510 = vmatprep.subr.mxu0 0.0
  %511 = vmatpush1.msra.mxu0 0.0
  %512 = vmatprep.subr.mxu0 0.0
  %513 = vmatpush1.msra.mxu0 0.0
  %514 = vmatprep.subr.mxu0 0.0
  %515 = vmatpush1.msra.mxu0 0.0
  %516 = vmatprep.subr.mxu0 0.0
  %517 = vmatpush1.msra.mxu0 0.0
  %518 = vmatprep.subr.mxu0 0.0
  %519 = vmatpush1.msra.mxu0 0.0
  %520 = vmatprep.subr.mxu0 0.0
  %521 = vmatpush1.msra.mxu0 0.0
  %522 = vmatprep.subr.mxu0 0.0
  %523 = vmatpush1.msra.mxu0 0.0
  %524 = vmatprep.subr.mxu0 0.0
  %525 = vmatpush1.msra.mxu0 0.0
  %526 = vmatprep.mubr.f32.mxu0 0.0
  %527 = vmatmul.mubr.f32.gmra.mrb[0].mxu0 %v247
  %v528 = vpop.f32.mrb[0].mxu0
  %v529 = vadd.f32 %v458, %v528
  %v530 = vpop.f32.mrb[0].mxu0
  %v531 = vadd.f32 %v460, %v530
  %532 = vdwg.mxu0
  %v533 = vmax.f32 %v529, 0.0
  %v534 = vmax.f32 %v531, 0.0
  %536 = vrot.lane.b32.xlu0 %v533, 64
  %v537 = vpop.permute.xlu0 %536
  %v539 = vmax.f32 %v533, %v537
  %541 = vrot.lane.b32.xlu0 %v534, 64
  %v542 = vpop.permute.xlu0 %541
  %v544 = vmax.f32 %v534, %v542
  %v545 = vmax.f32 %v539, %v544
  %v546 = vld [vmem:[%s3] sm:$0xff]
  %v547 = vld [vmem:[%s3 + $0x8] sm:$0xff]
  %v548 = vld [vmem:[%s3 + $0x10] sm:$0xff]
  %v549 = vld [vmem:[%s3 + $0x18] sm:$0xff]
  %v550 = vld [vmem:[%s3 + $0x20] sm:$0xff]
  %v551 = vld [vmem:[%s3 + $0x28] sm:$0xff]
  %v552 = vld [vmem:[%s3 + $0x30] sm:$0xff]
  %v553 = vld [vmem:[%s3 + $0x38] sm:$0xff]
  %s554 = scalar_lea.vmem %s0, 56
  %v555 = vld [vmem:[%s554] sm:$0xff]
  %v556 = vld [vmem:[%s554 + $0x8] sm:$0xff]
  %v557 = vld [vmem:[%s554 + $0x10] sm:$0xff]
  %v558 = vld [vmem:[%s554 + $0x18] sm:$0xff]
  %v559 = vld [vmem:[%s554 + $0x20] sm:$0xff]
  %v560 = vld [vmem:[%s554 + $0x28] sm:$0xff]
  %v561 = vld [vmem:[%s554 + $0x30] sm:$0xff]
  %v563 = vsel %vm245, %v561, 0
  %565 = vmatprep.subr.mxu0 %v34
  %566 = vmatpush1.msra.mxu0 %v33
  %567 = vmatprep.subr.mxu0 %v36
  %568 = vmatpush1.msra.mxu0 %v35
  %569 = vmatprep.subr.mxu0 %v38
  %570 = vmatpush1.msra.mxu0 %v37
  %571 = vmatprep.subr.mxu0 %v40
  %572 = vmatpush1.msra.mxu0 %v39
  %573 = vmatprep.subr.mxu0 %v42
  %574 = vmatpush1.msra.mxu0 %v41
  %575 = vmatprep.subr.mxu0 %v44
  %576 = vmatpush1.msra.mxu0 %v43
  %577 = vmatprep.subr.mxu0 %v46
  %578 = vmatpush1.msra.mxu0 %v45
  %579 = vmatprep.subr.mxu0 %v48
  %580 = vmatpush1.msra.mxu0 %v47
  %581 = vmatprep.subr.mxu0 %v50
  %582 = vmatpush1.msra.mxu0 %v49
  %583 = vmatprep.subr.mxu0 %v52
  %584 = vmatpush1.msra.mxu0 %v51
  %585 = vmatprep.subr.mxu0 %v54
  %586 = vmatpush1.msra.mxu0 %v53
  %587 = vmatprep.subr.mxu0 %v56
  %588 = vmatpush1.msra.mxu0 %v55
  %589 = vmatprep.subr.mxu0 %v58
  %590 = vmatpush1.msra.mxu0 %v57
  %591 = vmatprep.subr.mxu0 %v60
  %592 = vmatpush1.msra.mxu0 %v59
  %593 = vmatprep.subr.mxu0 %v62
  %594 = vmatpush1.msra.mxu0 %v61
  %595 = vmatprep.subr.mxu0 %v64
  %596 = vmatpush1.msra.mxu0 %v63
  %597 = vmatprep.subr.mxu0 %v66
  %598 = vmatpush1.msra.mxu0 %v65
  %599 = vmatprep.subr.mxu0 %v68
  %600 = vmatpush1.msra.mxu0 %v67
  %601 = vmatprep.subr.mxu0 %v70
  %602 = vmatpush1.msra.mxu0 %v69
  %603 = vmatprep.subr.mxu0 %v72
  %604 = vmatpush1.msra.mxu0 %v71
  %605 = vmatprep.subr.mxu0 %v74
  %606 = vmatpush1.msra.mxu0 %v73
  %607 = vmatprep.subr.mxu0 %v76
  %608 = vmatpush1.msra.mxu0 %v75
  %609 = vmatprep.subr.mxu0 %v78
  %610 = vmatpush1.msra.mxu0 %v77
  %611 = vmatprep.subr.mxu0 %v80
  %612 = vmatpush1.msra.mxu0 %v79
  %613 = vmatprep.subr.mxu0 %v82
  %614 = vmatpush1.msra.mxu0 %v81
  %615 = vmatprep.subr.mxu0 %v84
  %616 = vmatpush1.msra.mxu0 %v83
  %617 = vmatprep.subr.mxu0 %v86
  %618 = vmatpush1.msra.mxu0 %v85
  %619 = vmatprep.subr.mxu0 %v88
  %620 = vmatpush1.msra.mxu0 %v87
  %621 = vmatprep.subr.mxu0 %v90
  %622 = vmatpush1.msra.mxu0 %v89
  %623 = vmatprep.subr.mxu0 %v92
  %624 = vmatpush1.msra.mxu0 %v91
  %625 = vmatprep.subr.mxu0 %v94
  %626 = vmatpush1.msra.mxu0 %v93
  %627 = vmatprep.subr.mxu0 %v96
  %628 = vmatpush1.msra.mxu0 %v95
  %629 = vmatprep.mubr.f32.mxu0 %v556
  %630 = vmatmul.mubr.f32.gmra.mrb[0].mxu0 %v555
  %v631 = vpop.f32.mrb[0].mxu0
  %v632 = vadd.f32 %v238, %v631
  %v633 = vpop.f32.mrb[0].mxu0
  %v634 = vadd.f32 %v242, %v633
  %635 = vdwg.mxu0
  %636 = vmatprep.subr.mxu0 %v98
  %637 = vmatpush1.msra.mxu0 %v97
  %638 = vmatprep.subr.mxu0 %v100
  %639 = vmatpush1.msra.mxu0 %v99
  %640 = vmatprep.subr.mxu0 %v102
  %641 = vmatpush1.msra.mxu0 %v101
  %642 = vmatprep.subr.mxu0 %v104
  %643 = vmatpush1.msra.mxu0 %v103
  %644 = vmatprep.subr.mxu0 %v106
  %645 = vmatpush1.msra.mxu0 %v105
  %646 = vmatprep.subr.mxu0 %v108
  %647 = vmatpush1.msra.mxu0 %v107
  %648 = vmatprep.subr.mxu0 %v110
  %649 = vmatpush1.msra.mxu0 %v109
  %650 = vmatprep.subr.mxu0 %v112
  %651 = vmatpush1.msra.mxu0 %v111
  %652 = vmatprep.subr.mxu0 %v114
  %653 = vmatpush1.msra.mxu0 %v113
  %654 = vmatprep.subr.mxu0 %v116
  %655 = vmatpush1.msra.mxu0 %v115
  %656 = vmatprep.subr.mxu0 %v118
  %657 = vmatpush1.msra.mxu0 %v117
  %658 = vmatprep.subr.mxu0 %v120
  %659 = vmatpush1.msra.mxu0 %v119
  %660 = vmatprep.subr.mxu0 %v122
  %661 = vmatpush1.msra.mxu0 %v121
  %662 = vmatprep.subr.mxu0 %v124
  %663 = vmatpush1.msra.mxu0 %v123
  %664 = vmatprep.subr.mxu0 %v126
  %665 = vmatpush1.msra.mxu0 %v125
  %666 = vmatprep.subr.mxu0 %v128
  %667 = vmatpush1.msra.mxu0 %v127
  %668 = vmatprep.subr.mxu0 %v130
  %669 = vmatpush1.msra.mxu0 %v129
  %670 = vmatprep.subr.mxu0 %v132
  %671 = vmatpush1.msra.mxu0 %v131
  %672 = vmatprep.subr.mxu0 %v134
  %673 = vmatpush1.msra.mxu0 %v133
  %674 = vmatprep.subr.mxu0 %v136
  %675 = vmatpush1.msra.mxu0 %v135
  %676 = vmatprep.subr.mxu0 %v138
  %677 = vmatpush1.msra.mxu0 %v137
  %678 = vmatprep.subr.mxu0 %v140
  %679 = vmatpush1.msra.mxu0 %v139
  %680 = vmatprep.subr.mxu0 %v142
  %681 = vmatpush1.msra.mxu0 %v141
  %682 = vmatprep.subr.mxu0 %v144
  %683 = vmatpush1.msra.mxu0 %v143
  %684 = vmatprep.subr.mxu0 %v146
  %685 = vmatpush1.msra.mxu0 %v145
  %686 = vmatprep.subr.mxu0 %v148
  %687 = vmatpush1.msra.mxu0 %v147
  %688 = vmatprep.subr.mxu0 %v150
  %689 = vmatpush1.msra.mxu0 %v149
  %690 = vmatprep.subr.mxu0 %v152
  %691 = vmatpush1.msra.mxu0 %v151
  %692 = vmatprep.subr.mxu0 %v154
  %693 = vmatpush1.msra.mxu0 %v153
  %694 = vmatprep.subr.mxu0 %v156
  %695 = vmatpush1.msra.mxu0 %v155
  %696 = vmatprep.subr.mxu0 %v158
  %697 = vmatpush1.msra.mxu0 %v157
  %698 = vmatprep.subr.mxu0 %v160
  %699 = vmatpush1.msra.mxu0 %v159
  %700 = vmatprep.mubr.f32.mxu0 %v558
  %701 = vmatmul.mubr.f32.gmra.mrb[0].mxu0 %v557
  %v702 = vpop.f32.mrb[0].mxu0
  %v703 = vadd.f32 %v632, %v702
  %v704 = vpop.f32.mrb[0].mxu0
  %v705 = vadd.f32 %v634, %v704
  %706 = vdwg.mxu0
  %707 = vmatprep.subr.mxu0 %v162
  %708 = vmatpush1.msra.mxu0 %v161
  %709 = vmatprep.subr.mxu0 %v164
  %710 = vmatpush1.msra.mxu0 %v163
  %711 = vmatprep.subr.mxu0 %v166
  %712 = vmatpush1.msra.mxu0 %v165
  %713 = vmatprep.subr.mxu0 %v168
  %714 = vmatpush1.msra.mxu0 %v167
  %715 = vmatprep.subr.mxu0 %v170
  %716 = vmatpush1.msra.mxu0 %v169
  %717 = vmatprep.subr.mxu0 %v172
  %718 = vmatpush1.msra.mxu0 %v171
  %719 = vmatprep.subr.mxu0 %v174
  %720 = vmatpush1.msra.mxu0 %v173
  %721 = vmatprep.subr.mxu0 %v176
  %722 = vmatpush1.msra.mxu0 %v175
  %723 = vmatprep.subr.mxu0 %v178
  %724 = vmatpush1.msra.mxu0 %v177
  %725 = vmatprep.subr.mxu0 %v180
  %726 = vmatpush1.msra.mxu0 %v179
  %727 = vmatprep.subr.mxu0 %v182
  %728 = vmatpush1.msra.mxu0 %v181
  %729 = vmatprep.subr.mxu0 %v184
  %730 = vmatpush1.msra.mxu0 %v183
  %731 = vmatprep.subr.mxu0 %v186
  %732 = vmatpush1.msra.mxu0 %v185
  %733 = vmatprep.subr.mxu0 %v188
  %734 = vmatpush1.msra.mxu0 %v187
  %735 = vmatprep.subr.mxu0 %v190
  %736 = vmatpush1.msra.mxu0 %v189
  %737 = vmatprep.subr.mxu0 %v192
  %738 = vmatpush1.msra.mxu0 %v191
  %739 = vmatprep.subr.mxu0 %v194
  %740 = vmatpush1.msra.mxu0 %v193
  %741 = vmatprep.subr.mxu0 %v196
  %742 = vmatpush1.msra.mxu0 %v195
  %743 = vmatprep.subr.mxu0 %v198
  %744 = vmatpush1.msra.mxu0 %v197
  %745 = vmatprep.subr.mxu0 %v200
  %746 = vmatpush1.msra.mxu0 %v199
  %747 = vmatprep.subr.mxu0 %v202
  %748 = vmatpush1.msra.mxu0 %v201
  %749 = vmatprep.subr.mxu0 %v204
  %750 = vmatpush1.msra.mxu0 %v203
  %751 = vmatprep.subr.mxu0 %v206
  %752 = vmatpush1.msra.mxu0 %v205
  %753 = vmatprep.subr.mxu0 %v208
  %754 = vmatpush1.msra.mxu0 %v207
  %755 = vmatprep.subr.mxu0 %v210
  %756 = vmatpush1.msra.mxu0 %v209
  %757 = vmatprep.subr.mxu0 %v212
  %758 = vmatpush1.msra.mxu0 %v211
  %759 = vmatprep.subr.mxu0 %v214
  %760 = vmatpush1.msra.mxu0 %v213
  %761 = vmatprep.subr.mxu0 %v216
  %762 = vmatpush1.msra.mxu0 %v215
  %763 = vmatprep.subr.mxu0 %v218
  %764 = vmatpush1.msra.mxu0 %v217
  %765 = vmatprep.subr.mxu0 %v220
  %766 = vmatpush1.msra.mxu0 %v219
  %767 = vmatprep.subr.mxu0 %v222
  %768 = vmatpush1.msra.mxu0 %v221
  %769 = vmatprep.subr.mxu0 %v224
  %770 = vmatpush1.msra.mxu0 %v223
  %771 = vmatprep.mubr.f32.mxu0 %v560
  %772 = vmatmul.mubr.f32.gmra.mrb[0].mxu0 %v559
  %v773 = vpop.f32.mrb[0].mxu0
  %v774 = vadd.f32 %v703, %v773
  %v775 = vpop.f32.mrb[0].mxu0
  %v776 = vadd.f32 %v705, %v775
  %777 = vdwg.mxu0
  %778 = vmatprep.subr.mxu0 %v226
  %779 = vmatpush1.msra.mxu0 %v225
  %780 = vmatprep.subr.mxu0 %v228
  %781 = vmatpush1.msra.mxu0 %v227
  %782 = vmatprep.subr.mxu0 %v230
  %783 = vmatpush1.msra.mxu0 %v229
  %784 = vmatprep.subr.mxu0 %v232
  %785 = vmatpush1.msra.mxu0 %v231
  %786 = vmatprep.subr.mxu0 0.0
  %787 = vmatpush1.msra.mxu0 0.0
  %788 = vmatprep.subr.mxu0 0.0
  %789 = vmatpush1.msra.mxu0 0.0
  %790 = vmatprep.subr.mxu0 0.0
  %791 = vmatpush1.msra.mxu0 0.0
  %792 = vmatprep.subr.mxu0 0.0
  %793 = vmatpush1.msra.mxu0 0.0
  %794 = vmatprep.subr.mxu0 0.0
  %795 = vmatpush1.msra.mxu0 0.0
  %796 = vmatprep.subr.mxu0 0.0
  %797 = vmatpush1.msra.mxu0 0.0
  %798 = vmatprep.subr.mxu0 0.0
  %799 = vmatpush1.msra.mxu0 0.0
  %800 = vmatprep.subr.mxu0 0.0
  %801 = vmatpush1.msra.mxu0 0.0
  %802 = vmatprep.subr.mxu0 0.0
  %803 = vmatpush1.msra.mxu0 0.0
  %804 = vmatprep.subr.mxu0 0.0
  %805 = vmatpush1.msra.mxu0 0.0
  %806 = vmatprep.subr.mxu0 0.0
  %807 = vmatpush1.msra.mxu0 0.0
  %808 = vmatprep.subr.mxu0 0.0
  %809 = vmatpush1.msra.mxu0 0.0
  %810 = vmatprep.subr.mxu0 0.0
  %811 = vmatpush1.msra.mxu0 0.0
  %812 = vmatprep.subr.mxu0 0.0
  %813 = vmatpush1.msra.mxu0 0.0
  %814 = vmatprep.subr.mxu0 0.0
  %815 = vmatpush1.msra.mxu0 0.0
  %816 = vmatprep.subr.mxu0 0.0
  %817 = vmatpush1.msra.mxu0 0.0
  %818 = vmatprep.subr.mxu0 0.0
  %819 = vmatpush1.msra.mxu0 0.0
  %820 = vmatprep.subr.mxu0 0.0
  %821 = vmatpush1.msra.mxu0 0.0
  %822 = vmatprep.subr.mxu0 0.0
  %823 = vmatpush1.msra.mxu0 0.0
  %824 = vmatprep.subr.mxu0 0.0
  %825 = vmatpush1.msra.mxu0 0.0
  %826 = vmatprep.subr.mxu0 0.0
  %827 = vmatpush1.msra.mxu0 0.0
  %828 = vmatprep.subr.mxu0 0.0
  %829 = vmatpush1.msra.mxu0 0.0
  %830 = vmatprep.subr.mxu0 0.0
  %831 = vmatpush1.msra.mxu0 0.0
  %832 = vmatprep.subr.mxu0 0.0
  %833 = vmatpush1.msra.mxu0 0.0
  %834 = vmatprep.subr.mxu0 0.0
  %835 = vmatpush1.msra.mxu0 0.0
  %836 = vmatprep.subr.mxu0 0.0
  %837 = vmatpush1.msra.mxu0 0.0
  %838 = vmatprep.subr.mxu0 0.0
  %839 = vmatpush1.msra.mxu0 0.0
  %840 = vmatprep.subr.mxu0 0.0
  %841 = vmatpush1.msra.mxu0 0.0
  %842 = vmatprep.mubr.f32.mxu0 0.0
  %843 = vmatmul.mubr.f32.gmra.mrb[0].mxu0 %v563
  %v844 = vpop.f32.mrb[0].mxu0
  %v845 = vadd.f32 %v774, %v844
  %v846 = vpop.f32.mrb[0].mxu0
  %v847 = vadd.f32 %v776, %v846
  %848 = vdwg.mxu0
  %v849 = vmax.f32 %v845, 0.0
  %v850 = vmax.f32 %v847, 0.0
  %852 = vrot.lane.b32.xlu0 %v849, 64
  %v853 = vpop.permute.xlu0 %852
  %v855 = vmax.f32 %v849, %v853
  %857 = vrot.lane.b32.xlu0 %v850, 64
  %v858 = vpop.permute.xlu0 %857
  %v860 = vmax.f32 %v850, %v858
  %v861 = vmax.f32 %v855, %v860
  %s862 = scalar_lea.vmem %s3, 64
  %v863 = vld [vmem:[%s862] sm:$0xff]
  %v864 = vld [vmem:[%s862 + $0x8] sm:$0xff]
  %v865 = vld [vmem:[%s862 + $0x10] sm:$0xff]
  %v866 = vld [vmem:[%s862 + $0x18] sm:$0xff]
  %v867 = vld [vmem:[%s862 + $0x20] sm:$0xff]
  %v868 = vld [vmem:[%s862 + $0x28] sm:$0xff]
  %v869 = vld [vmem:[%s862 + $0x30] sm:$0xff]
  %v870 = vld [vmem:[%s862 + $0x38] sm:$0xff]
  %vm871 = vcmask 523264
  %v873 = vsel %vm871, %v861, 0
  %875 = vmatprep.subr.mxu0 0.0
  %876 = vmatpush1.msra.mxu0 %v863
  %877 = vmatprep.subr.mxu0 0.0
  %878 = vmatpush1.msra.mxu0 %v864
  %879 = vmatprep.subr.mxu0 0.0
  %880 = vmatpush1.msra.mxu0 %v865
  %881 = vmatprep.subr.mxu0 0.0
  %882 = vmatpush1.msra.mxu0 %v866
  %883 = vmatprep.subr.mxu0 0.0
  %884 = vmatpush1.msra.mxu0 %v867
  %885 = vmatprep.subr.mxu0 0.0
  %886 = vmatpush1.msra.mxu0 %v868
  %887 = vmatprep.subr.mxu0 0.0
  %888 = vmatpush1.msra.mxu0 %v869
  %889 = vmatprep.subr.mxu0 0.0
  %890 = vmatpush1.msra.mxu0 %v870
  %891 = vmatprep.subr.mxu0 0.0
  %892 = vmatpush1.msra.mxu0 0.0
  %893 = vmatprep.subr.mxu0 0.0
  %894 = vmatpush1.msra.mxu0 0.0
  %895 = vmatprep.subr.mxu0 0.0
  %896 = vmatpush1.msra.mxu0 0.0
  %897 = vmatprep.subr.mxu0 0.0
  %898 = vmatpush1.msra.mxu0 0.0
  %899 = vmatprep.subr.mxu0 0.0
  %900 = vmatpush1.msra.mxu0 0.0
  %901 = vmatprep.subr.mxu0 0.0
  %902 = vmatpush1.msra.mxu0 0.0
  %903 = vmatprep.subr.mxu0 0.0
  %904 = vmatpush1.msra.mxu0 0.0
  %905 = vmatprep.subr.mxu0 0.0
  %906 = vmatpush1.msra.mxu0 0.0
  %907 = vmatprep.subr.mxu0 0.0
  %908 = vmatpush1.msra.mxu0 0.0
  %909 = vmatprep.subr.mxu0 0.0
  %910 = vmatpush1.msra.mxu0 0.0
  %911 = vmatprep.subr.mxu0 0.0
  %912 = vmatpush1.msra.mxu0 0.0
  %913 = vmatprep.subr.mxu0 0.0
  %914 = vmatpush1.msra.mxu0 0.0
  %915 = vmatprep.subr.mxu0 0.0
  %916 = vmatpush1.msra.mxu0 0.0
  %917 = vmatprep.subr.mxu0 0.0
  %918 = vmatpush1.msra.mxu0 0.0
  %919 = vmatprep.subr.mxu0 0.0
  %920 = vmatpush1.msra.mxu0 0.0
  %921 = vmatprep.subr.mxu0 0.0
  %922 = vmatpush1.msra.mxu0 0.0
  %923 = vmatprep.subr.mxu0 0.0
  %924 = vmatpush1.msra.mxu0 0.0
  %925 = vmatprep.subr.mxu0 0.0
  %926 = vmatpush1.msra.mxu0 0.0
  %927 = vmatprep.subr.mxu0 0.0
  %928 = vmatpush1.msra.mxu0 0.0
  %929 = vmatprep.subr.mxu0 0.0
  %930 = vmatpush1.msra.mxu0 0.0
  %931 = vmatprep.subr.mxu0 0.0
  %932 = vmatpush1.msra.mxu0 0.0
  %933 = vmatprep.subr.mxu0 0.0
  %934 = vmatpush1.msra.mxu0 0.0
  %935 = vmatprep.subr.mxu0 0.0
  %936 = vmatpush1.msra.mxu0 0.0
  %937 = vmatprep.subr.mxu0 0.0
  %938 = vmatpush1.msra.mxu0 0.0
  %939 = vmatprep.mubr.f32.mxu0 0.0
  %940 = vmatmul.mubr.f32.gmra.mrb[0].mxu0 %v873
  %v941 = vpop.f32.mrb[0].mxu0
  %v942 = vadd.f32 0.0, %v941
  %v943 = vpop.f32.mrb[0].mxu0
  %944 = vdwg.mxu0
  %v946 = vsel %vm871, %v545, 0
  %948 = vmatprep.subr.mxu0 0.0
  %949 = vmatpush1.msra.mxu0 %v546
  %950 = vmatprep.subr.mxu0 0.0
  %951 = vmatpush1.msra.mxu0 %v547
  %952 = vmatprep.subr.mxu0 0.0
  %953 = vmatpush1.msra.mxu0 %v548
  %954 = vmatprep.subr.mxu0 0.0
  %955 = vmatpush1.msra.mxu0 %v549
  %956 = vmatprep.subr.mxu0 0.0
  %957 = vmatpush1.msra.mxu0 %v550
  %958 = vmatprep.subr.mxu0 0.0
  %959 = vmatpush1.msra.mxu0 %v551
  %960 = vmatprep.subr.mxu0 0.0
  %961 = vmatpush1.msra.mxu0 %v552
  %962 = vmatprep.subr.mxu0 0.0
  %963 = vmatpush1.msra.mxu0 %v553
  %964 = vmatprep.subr.mxu0 0.0
  %965 = vmatpush1.msra.mxu0 0.0
  %966 = vmatprep.subr.mxu0 0.0
  %967 = vmatpush1.msra.mxu0 0.0
  %968 = vmatprep.subr.mxu0 0.0
  %969 = vmatpush1.msra.mxu0 0.0
  %970 = vmatprep.subr.mxu0 0.0
  %971 = vmatpush1.msra.mxu0 0.0
  %972 = vmatprep.subr.mxu0 0.0
  %973 = vmatpush1.msra.mxu0 0.0
  %974 = vmatprep.subr.mxu0 0.0
  %975 = vmatpush1.msra.mxu0 0.0
  %976 = vmatprep.subr.mxu0 0.0
  %977 = vmatpush1.msra.mxu0 0.0
  %978 = vmatprep.subr.mxu0 0.0
  %979 = vmatpush1.msra.mxu0 0.0
  %980 = vmatprep.subr.mxu0 0.0
  %981 = vmatpush1.msra.mxu0 0.0
  %982 = vmatprep.subr.mxu0 0.0
  %983 = vmatpush1.msra.mxu0 0.0
  %984 = vmatprep.subr.mxu0 0.0
  %985 = vmatpush1.msra.mxu0 0.0
  %986 = vmatprep.subr.mxu0 0.0
  %987 = vmatpush1.msra.mxu0 0.0
  %988 = vmatprep.subr.mxu0 0.0
  %989 = vmatpush1.msra.mxu0 0.0
  %990 = vmatprep.subr.mxu0 0.0
  %991 = vmatpush1.msra.mxu0 0.0
  %992 = vmatprep.subr.mxu0 0.0
  %993 = vmatpush1.msra.mxu0 0.0
  %994 = vmatprep.subr.mxu0 0.0
  %995 = vmatpush1.msra.mxu0 0.0
  %996 = vmatprep.subr.mxu0 0.0
  %997 = vmatpush1.msra.mxu0 0.0
  %998 = vmatprep.subr.mxu0 0.0
  %999 = vmatpush1.msra.mxu0 0.0
  %1000 = vmatprep.subr.mxu0 0.0
  %1001 = vmatpush1.msra.mxu0 0.0
  %1002 = vmatprep.subr.mxu0 0.0
  %1003 = vmatpush1.msra.mxu0 0.0
  %1004 = vmatprep.subr.mxu0 0.0
  %1005 = vmatpush1.msra.mxu0 0.0
  %1006 = vmatprep.subr.mxu0 0.0
  %1007 = vmatpush1.msra.mxu0 0.0
  %1008 = vmatprep.subr.mxu0 0.0
  %1009 = vmatpush1.msra.mxu0 0.0
  %1010 = vmatprep.subr.mxu0 0.0
  %1011 = vmatpush1.msra.mxu0 0.0
  %1012 = vmatprep.mubr.f32.mxu0 0.0
  %1013 = vmatmul.mubr.f32.gmra.mrb[0].mxu0 %v946
  %v1014 = vpop.f32.mrb[0].mxu0
  %v1015 = vadd.f32 %v942, %v1014
  %v1016 = vpop.f32.mrb[0].mxu0
  %1017 = vdwg.mxu0
  %s1018 = scalar_lea.vmem %s0, 112
  %v1019 = vld [vmem:[%s1018] sm:$0xff]
  %v1020 = vld [vmem:[%s1018 + $0x8] sm:$0xff]
  %v1021 = vld [vmem:[%s1018 + $0x10] sm:$0xff]
  %v1022 = vld [vmem:[%s1018 + $0x18] sm:$0xff]
  %v1023 = vld [vmem:[%s1018 + $0x20] sm:$0xff]
  %v1024 = vld [vmem:[%s1018 + $0x28] sm:$0xff]
  %v1025 = vld [vmem:[%s1018 + $0x30] sm:$0xff]
  %v1027 = vsel %vm245, %v1025, 0
  %1029 = vmatprep.subr.mxu0 %v34
  %1030 = vmatpush1.msra.mxu0 %v33
  %1031 = vmatprep.subr.mxu0 %v36
  %1032 = vmatpush1.msra.mxu0 %v35
  %1033 = vmatprep.subr.mxu0 %v38
  %1034 = vmatpush1.msra.mxu0 %v37
  %1035 = vmatprep.subr.mxu0 %v40
  %1036 = vmatpush1.msra.mxu0 %v39
  %1037 = vmatprep.subr.mxu0 %v42
  %1038 = vmatpush1.msra.mxu0 %v41
  %1039 = vmatprep.subr.mxu0 %v44
  %1040 = vmatpush1.msra.mxu0 %v43
  %1041 = vmatprep.subr.mxu0 %v46
  %1042 = vmatpush1.msra.mxu0 %v45
  %1043 = vmatprep.subr.mxu0 %v48
  %1044 = vmatpush1.msra.mxu0 %v47
  %1045 = vmatprep.subr.mxu0 %v50
  %1046 = vmatpush1.msra.mxu0 %v49
  %1047 = vmatprep.subr.mxu0 %v52
  %1048 = vmatpush1.msra.mxu0 %v51
  %1049 = vmatprep.subr.mxu0 %v54
  %1050 = vmatpush1.msra.mxu0 %v53
  %1051 = vmatprep.subr.mxu0 %v56
  %1052 = vmatpush1.msra.mxu0 %v55
  %1053 = vmatprep.subr.mxu0 %v58
  %1054 = vmatpush1.msra.mxu0 %v57
  %1055 = vmatprep.subr.mxu0 %v60
  %1056 = vmatpush1.msra.mxu0 %v59
  %1057 = vmatprep.subr.mxu0 %v62
  %1058 = vmatpush1.msra.mxu0 %v61
  %1059 = vmatprep.subr.mxu0 %v64
  %1060 = vmatpush1.msra.mxu0 %v63
  %1061 = vmatprep.subr.mxu0 %v66
  %1062 = vmatpush1.msra.mxu0 %v65
  %1063 = vmatprep.subr.mxu0 %v68
  %1064 = vmatpush1.msra.mxu0 %v67
  %1065 = vmatprep.subr.mxu0 %v70
  %1066 = vmatpush1.msra.mxu0 %v69
  %1067 = vmatprep.subr.mxu0 %v72
  %1068 = vmatpush1.msra.mxu0 %v71
  %1069 = vmatprep.subr.mxu0 %v74
  %1070 = vmatpush1.msra.mxu0 %v73
  %1071 = vmatprep.subr.mxu0 %v76
  %1072 = vmatpush1.msra.mxu0 %v75
  %1073 = vmatprep.subr.mxu0 %v78
  %1074 = vmatpush1.msra.mxu0 %v77
  %1075 = vmatprep.subr.mxu0 %v80
  %1076 = vmatpush1.msra.mxu0 %v79
  %1077 = vmatprep.subr.mxu0 %v82
  %1078 = vmatpush1.msra.mxu0 %v81
  %1079 = vmatprep.subr.mxu0 %v84
  %1080 = vmatpush1.msra.mxu0 %v83
  %1081 = vmatprep.subr.mxu0 %v86
  %1082 = vmatpush1.msra.mxu0 %v85
  %1083 = vmatprep.subr.mxu0 %v88
  %1084 = vmatpush1.msra.mxu0 %v87
  %1085 = vmatprep.subr.mxu0 %v90
  %1086 = vmatpush1.msra.mxu0 %v89
  %1087 = vmatprep.subr.mxu0 %v92
  %1088 = vmatpush1.msra.mxu0 %v91
  %1089 = vmatprep.subr.mxu0 %v94
  %1090 = vmatpush1.msra.mxu0 %v93
  %1091 = vmatprep.subr.mxu0 %v96
  %1092 = vmatpush1.msra.mxu0 %v95
  %1093 = vmatprep.mubr.f32.mxu0 %v1020
  %1094 = vmatmul.mubr.f32.gmra.mrb[0].mxu0 %v1019
  %v1095 = vpop.f32.mrb[0].mxu0
  %v1096 = vadd.f32 %v238, %v1095
  %v1097 = vpop.f32.mrb[0].mxu0
  %v1098 = vadd.f32 %v242, %v1097
  %1099 = vdwg.mxu0
  %1100 = vmatprep.subr.mxu0 %v98
  %1101 = vmatpush1.msra.mxu0 %v97
  %1102 = vmatprep.subr.mxu0 %v100
  %1103 = vmatpush1.msra.mxu0 %v99
  %1104 = vmatprep.subr.mxu0 %v102
  %1105 = vmatpush1.msra.mxu0 %v101
  %1106 = vmatprep.subr.mxu0 %v104
  %1107 = vmatpush1.msra.mxu0 %v103
  %1108 = vmatprep.subr.mxu0 %v106
  %1109 = vmatpush1.msra.mxu0 %v105
  %1110 = vmatprep.subr.mxu0 %v108
  %1111 = vmatpush1.msra.mxu0 %v107
  %1112 = vmatprep.subr.mxu0 %v110
  %1113 = vmatpush1.msra.mxu0 %v109
  %1114 = vmatprep.subr.mxu0 %v112
  %1115 = vmatpush1.msra.mxu0 %v111
  %1116 = vmatprep.subr.mxu0 %v114
  %1117 = vmatpush1.msra.mxu0 %v113
  %1118 = vmatprep.subr.mxu0 %v116
  %1119 = vmatpush1.msra.mxu0 %v115
  %1120 = vmatprep.subr.mxu0 %v118
  %1121 = vmatpush1.msra.mxu0 %v117
  %1122 = vmatprep.subr.mxu0 %v120
  %1123 = vmatpush1.msra.mxu0 %v119
  %1124 = vmatprep.subr.mxu0 %v122
  %1125 = vmatpush1.msra.mxu0 %v121
  %1126 = vmatprep.subr.mxu0 %v124
  %1127 = vmatpush1.msra.mxu0 %v123
  %1128 = vmatprep.subr.mxu0 %v126
  %1129 = vmatpush1.msra.mxu0 %v125
  %1130 = vmatprep.subr.mxu0 %v128
  %1131 = vmatpush1.msra.mxu0 %v127
  %1132 = vmatprep.subr.mxu0 %v130
  %1133 = vmatpush1.msra.mxu0 %v129
  %1134 = vmatprep.subr.mxu0 %v132
  %1135 = vmatpush1.msra.mxu0 %v131
  %1136 = vmatprep.subr.mxu0 %v134
  %1137 = vmatpush1.msra.mxu0 %v133
  %1138 = vmatprep.subr.mxu0 %v136
  %1139 = vmatpush1.msra.mxu0 %v135
  %1140 = vmatprep.subr.mxu0 %v138
  %1141 = vmatpush1.msra.mxu0 %v137
  %1142 = vmatprep.subr.mxu0 %v140
  %1143 = vmatpush1.msra.mxu0 %v139
  %1144 = vmatprep.subr.mxu0 %v142
  %1145 = vmatpush1.msra.mxu0 %v141
  %1146 = vmatprep.subr.mxu0 %v144
  %1147 = vmatpush1.msra.mxu0 %v143
  %1148 = vmatprep.subr.mxu0 %v146
  %1149 = vmatpush1.msra.mxu0 %v145
  %1150 = vmatprep.subr.mxu0 %v148
  %1151 = vmatpush1.msra.mxu0 %v147
  %1152 = vmatprep.subr.mxu0 %v150
  %1153 = vmatpush1.msra.mxu0 %v149
  %1154 = vmatprep.subr.mxu0 %v152
  %1155 = vmatpush1.msra.mxu0 %v151
  %1156 = vmatprep.subr.mxu0 %v154
  %1157 = vmatpush1.msra.mxu0 %v153
  %1158 = vmatprep.subr.mxu0 %v156
  %1159 = vmatpush1.msra.mxu0 %v155
  %1160 = vmatprep.subr.mxu0 %v158
  %1161 = vmatpush1.msra.mxu0 %v157
  %1162 = vmatprep.subr.mxu0 %v160
  %1163 = vmatpush1.msra.mxu0 %v159
  %1164 = vmatprep.mubr.f32.mxu0 %v1022
  %1165 = vmatmul.mubr.f32.gmra.mrb[0].mxu0 %v1021
  %v1166 = vpop.f32.mrb[0].mxu0
  %v1167 = vadd.f32 %v1096, %v1166
  %v1168 = vpop.f32.mrb[0].mxu0
  %v1169 = vadd.f32 %v1098, %v1168
  %1170 = vdwg.mxu0
  %1171 = vmatprep.subr.mxu0 %v162
  %1172 = vmatpush1.msra.mxu0 %v161
  %1173 = vmatprep.subr.mxu0 %v164
  %1174 = vmatpush1.msra.mxu0 %v163
  %1175 = vmatprep.subr.mxu0 %v166
  %1176 = vmatpush1.msra.mxu0 %v165
  %1177 = vmatprep.subr.mxu0 %v168
  %1178 = vmatpush1.msra.mxu0 %v167
  %1179 = vmatprep.subr.mxu0 %v170
  %1180 = vmatpush1.msra.mxu0 %v169
  %1181 = vmatprep.subr.mxu0 %v172
  %1182 = vmatpush1.msra.mxu0 %v171
  %1183 = vmatprep.subr.mxu0 %v174
  %1184 = vmatpush1.msra.mxu0 %v173
  %1185 = vmatprep.subr.mxu0 %v176
  %1186 = vmatpush1.msra.mxu0 %v175
  %1187 = vmatprep.subr.mxu0 %v178
  %1188 = vmatpush1.msra.mxu0 %v177
  %1189 = vmatprep.subr.mxu0 %v180
  %1190 = vmatpush1.msra.mxu0 %v179
  %1191 = vmatprep.subr.mxu0 %v182
  %1192 = vmatpush1.msra.mxu0 %v181
  %1193 = vmatprep.subr.mxu0 %v184
  %1194 = vmatpush1.msra.mxu0 %v183
  %1195 = vmatprep.subr.mxu0 %v186
  %1196 = vmatpush1.msra.mxu0 %v185
  %1197 = vmatprep.subr.mxu0 %v188
  %1198 = vmatpush1.msra.mxu0 %v187
  %1199 = vmatprep.subr.mxu0 %v190
  %1200 = vmatpush1.msra.mxu0 %v189
  %1201 = vmatprep.subr.mxu0 %v192
  %1202 = vmatpush1.msra.mxu0 %v191
  %1203 = vmatprep.subr.mxu0 %v194
  %1204 = vmatpush1.msra.mxu0 %v193
  %1205 = vmatprep.subr.mxu0 %v196
  %1206 = vmatpush1.msra.mxu0 %v195
  %1207 = vmatprep.subr.mxu0 %v198
  %1208 = vmatpush1.msra.mxu0 %v197
  %1209 = vmatprep.subr.mxu0 %v200
  %1210 = vmatpush1.msra.mxu0 %v199
  %1211 = vmatprep.subr.mxu0 %v202
  %1212 = vmatpush1.msra.mxu0 %v201
  %1213 = vmatprep.subr.mxu0 %v204
  %1214 = vmatpush1.msra.mxu0 %v203
  %1215 = vmatprep.subr.mxu0 %v206
  %1216 = vmatpush1.msra.mxu0 %v205
  %1217 = vmatprep.subr.mxu0 %v208
  %1218 = vmatpush1.msra.mxu0 %v207
  %1219 = vmatprep.subr.mxu0 %v210
  %1220 = vmatpush1.msra.mxu0 %v209
  %1221 = vmatprep.subr.mxu0 %v212
  %1222 = vmatpush1.msra.mxu0 %v211
  %1223 = vmatprep.subr.mxu0 %v214
  %1224 = vmatpush1.msra.mxu0 %v213
  %1225 = vmatprep.subr.mxu0 %v216
  %1226 = vmatpush1.msra.mxu0 %v215
  %1227 = vmatprep.subr.mxu0 %v218
  %1228 = vmatpush1.msra.mxu0 %v217
  %1229 = vmatprep.subr.mxu0 %v220
  %1230 = vmatpush1.msra.mxu0 %v219
  %1231 = vmatprep.subr.mxu0 %v222
  %1232 = vmatpush1.msra.mxu0 %v221
  %1233 = vmatprep.subr.mxu0 %v224
  %1234 = vmatpush1.msra.mxu0 %v223
  %1235 = vmatprep.mubr.f32.mxu0 %v1024
  %1236 = vmatmul.mubr.f32.gmra.mrb[0].mxu0 %v1023
  %v1237 = vpop.f32.mrb[0].mxu0
  %v1238 = vadd.f32 %v1167, %v1237
  %v1239 = vpop.f32.mrb[0].mxu0
  %v1240 = vadd.f32 %v1169, %v1239
  %1241 = vdwg.mxu0
  %1242 = vmatprep.subr.mxu0 %v226
  %1243 = vmatpush1.msra.mxu0 %v225
  %1244 = vmatprep.subr.mxu0 %v228
  %1245 = vmatpush1.msra.mxu0 %v227
  %1246 = vmatprep.subr.mxu0 %v230
  %1247 = vmatpush1.msra.mxu0 %v229
  %1248 = vmatprep.subr.mxu0 %v232
  %1249 = vmatpush1.msra.mxu0 %v231
  %1250 = vmatprep.subr.mxu0 0.0
  %1251 = vmatpush1.msra.mxu0 0.0
  %1252 = vmatprep.subr.mxu0 0.0
  %1253 = vmatpush1.msra.mxu0 0.0
  %1254 = vmatprep.subr.mxu0 0.0
  %1255 = vmatpush1.msra.mxu0 0.0
  %1256 = vmatprep.subr.mxu0 0.0
  %1257 = vmatpush1.msra.mxu0 0.0
  %1258 = vmatprep.subr.mxu0 0.0
  %1259 = vmatpush1.msra.mxu0 0.0
  %1260 = vmatprep.subr.mxu0 0.0
  %1261 = vmatpush1.msra.mxu0 0.0
  %1262 = vmatprep.subr.mxu0 0.0
  %1263 = vmatpush1.msra.mxu0 0.0
  %1264 = vmatprep.subr.mxu0 0.0
  %1265 = vmatpush1.msra.mxu0 0.0
  %1266 = vmatprep.subr.mxu0 0.0
  %1267 = vmatpush1.msra.mxu0 0.0
  %1268 = vmatprep.subr.mxu0 0.0
  %1269 = vmatpush1.msra.mxu0 0.0
  %1270 = vmatprep.subr.mxu0 0.0
  %1271 = vmatpush1.msra.mxu0 0.0
  %1272 = vmatprep.subr.mxu0 0.0
  %1273 = vmatpush1.msra.mxu0 0.0
  %1274 = vmatprep.subr.mxu0 0.0
  %1275 = vmatpush1.msra.mxu0 0.0
  %1276 = vmatprep.subr.mxu0 0.0
  %1277 = vmatpush1.msra.mxu0 0.0
  %1278 = vmatprep.subr.mxu0 0.0
  %1279 = vmatpush1.msra.mxu0 0.0
  %1280 = vmatprep.subr.mxu0 0.0
  %1281 = vmatpush1.msra.mxu0 0.0
  %1282 = vmatprep.subr.mxu0 0.0
  %1283 = vmatpush1.msra.mxu0 0.0
  %1284 = vmatprep.subr.mxu0 0.0
  %1285 = vmatpush1.msra.mxu0 0.0
  %1286 = vmatprep.subr.mxu0 0.0
  %1287 = vmatpush1.msra.mxu0 0.0
  %1288 = vmatprep.subr.mxu0 0.0
  %1289 = vmatpush1.msra.mxu0 0.0
  %1290 = vmatprep.subr.mxu0 0.0
  %1291 = vmatpush1.msra.mxu0 0.0
  %1292 = vmatprep.subr.mxu0 0.0
  %1293 = vmatpush1.msra.mxu0 0.0
  %1294 = vmatprep.subr.mxu0 0.0
  %1295 = vmatpush1.msra.mxu0 0.0
  %1296 = vmatprep.subr.mxu0 0.0
  %1297 = vmatpush1.msra.mxu0 0.0
  %1298 = vmatprep.subr.mxu0 0.0
  %1299 = vmatpush1.msra.mxu0 0.0
  %1300 = vmatprep.subr.mxu0 0.0
  %1301 = vmatpush1.msra.mxu0 0.0
  %1302 = vmatprep.subr.mxu0 0.0
  %1303 = vmatpush1.msra.mxu0 0.0
  %1304 = vmatprep.subr.mxu0 0.0
  %1305 = vmatpush1.msra.mxu0 0.0
  %1306 = vmatprep.mubr.f32.mxu0 0.0
  %1307 = vmatmul.mubr.f32.gmra.mrb[0].mxu0 %v1027
  %v1308 = vpop.f32.mrb[0].mxu0
  %v1309 = vadd.f32 %v1238, %v1308
  %v1310 = vpop.f32.mrb[0].mxu0
  %v1311 = vadd.f32 %v1240, %v1310
  %1312 = vdwg.mxu0
  %v1313 = vmax.f32 %v1309, 0.0
  %v1314 = vmax.f32 %v1311, 0.0
  %1316 = vrot.lane.b32.xlu0 %v1313, 64
  %v1317 = vpop.permute.xlu0 %1316
  %v1319 = vmax.f32 %v1313, %v1317
  %1321 = vrot.lane.b32.xlu0 %v1314, 64
  %v1322 = vpop.permute.xlu0 %1321
  %v1324 = vmax.f32 %v1314, %v1322
  %v1325 = vmax.f32 %v1319, %v1324
  %s1326 = scalar_lea.vmem %s3, 128
  %v1327 = vld [vmem:[%s1326] sm:$0xff]
  %v1328 = vld [vmem:[%s1326 + $0x8] sm:$0xff]
  %v1329 = vld [vmem:[%s1326 + $0x10] sm:$0xff]
  %v1330 = vld [vmem:[%s1326 + $0x18] sm:$0xff]
  %v1331 = vld [vmem:[%s1326 + $0x20] sm:$0xff]
  %v1332 = vld [vmem:[%s1326 + $0x28] sm:$0xff]
  %v1333 = vld [vmem:[%s1326 + $0x30] sm:$0xff]
  %v1334 = vld [vmem:[%s1326 + $0x38] sm:$0xff]
  %v1336 = vsel %vm871, %v1325, 0
  %1338 = vmatprep.subr.mxu0 0.0
  %1339 = vmatpush1.msra.mxu0 %v1327
  %1340 = vmatprep.subr.mxu0 0.0
  %1341 = vmatpush1.msra.mxu0 %v1328
  %1342 = vmatprep.subr.mxu0 0.0
  %1343 = vmatpush1.msra.mxu0 %v1329
  %1344 = vmatprep.subr.mxu0 0.0
  %1345 = vmatpush1.msra.mxu0 %v1330
  %1346 = vmatprep.subr.mxu0 0.0
  %1347 = vmatpush1.msra.mxu0 %v1331
  %1348 = vmatprep.subr.mxu0 0.0
  %1349 = vmatpush1.msra.mxu0 %v1332
  %1350 = vmatprep.subr.mxu0 0.0
  %1351 = vmatpush1.msra.mxu0 %v1333
  %1352 = vmatprep.subr.mxu0 0.0
  %1353 = vmatpush1.msra.mxu0 %v1334
  %1354 = vmatprep.subr.mxu0 0.0
  %1355 = vmatpush1.msra.mxu0 0.0
  %1356 = vmatprep.subr.mxu0 0.0
  %1357 = vmatpush1.msra.mxu0 0.0
  %1358 = vmatprep.subr.mxu0 0.0
  %1359 = vmatpush1.msra.mxu0 0.0
  %1360 = vmatprep.subr.mxu0 0.0
  %1361 = vmatpush1.msra.mxu0 0.0
  %1362 = vmatprep.subr.mxu0 0.0
  %1363 = vmatpush1.msra.mxu0 0.0
  %1364 = vmatprep.subr.mxu0 0.0
  %1365 = vmatpush1.msra.mxu0 0.0
  %1366 = vmatprep.subr.mxu0 0.0
  %1367 = vmatpush1.msra.mxu0 0.0
  %1368 = vmatprep.subr.mxu0 0.0
  %1369 = vmatpush1.msra.mxu0 0.0
  %1370 = vmatprep.subr.mxu0 0.0
  %1371 = vmatpush1.msra.mxu0 0.0
  %1372 = vmatprep.subr.mxu0 0.0
  %1373 = vmatpush1.msra.mxu0 0.0
  %1374 = vmatprep.subr.mxu0 0.0
  %1375 = vmatpush1.msra.mxu0 0.0
  %1376 = vmatprep.subr.mxu0 0.0
  %1377 = vmatpush1.msra.mxu0 0.0
  %1378 = vmatprep.subr.mxu0 0.0
  %1379 = vmatpush1.msra.mxu0 0.0
  %1380 = vmatprep.subr.mxu0 0.0
  %1381 = vmatpush1.msra.mxu0 0.0
  %1382 = vmatprep.subr.mxu0 0.0
  %1383 = vmatpush1.msra.mxu0 0.0
  %1384 = vmatprep.subr.mxu0 0.0
  %1385 = vmatpush1.msra.mxu0 0.0
  %1386 = vmatprep.subr.mxu0 0.0
  %1387 = vmatpush1.msra.mxu0 0.0
  %1388 = vmatprep.subr.mxu0 0.0
  %1389 = vmatpush1.msra.mxu0 0.0
  %1390 = vmatprep.subr.mxu0 0.0
  %1391 = vmatpush1.msra.mxu0 0.0
  %1392 = vmatprep.subr.mxu0 0.0
  %1393 = vmatpush1.msra.mxu0 0.0
  %1394 = vmatprep.subr.mxu0 0.0
  %1395 = vmatpush1.msra.mxu0 0.0
  %1396 = vmatprep.subr.mxu0 0.0
  %1397 = vmatpush1.msra.mxu0 0.0
  %1398 = vmatprep.subr.mxu0 0.0
  %1399 = vmatpush1.msra.mxu0 0.0
  %1400 = vmatprep.subr.mxu0 0.0
  %1401 = vmatpush1.msra.mxu0 0.0
  %1402 = vmatprep.mubr.f32.mxu0 0.0
  %1403 = vmatmul.mubr.f32.gmra.mrb[0].mxu0 %v1336
  %v1404 = vpop.f32.mrb[0].mxu0
  %v1405 = vadd.f32 0.0, %v1404
  %v1406 = vpop.f32.mrb[0].mxu0
  %1407 = vdwg.mxu0
  %v1408 = vadd.f32 %v1015, %v1405
  %s1409 = scalar_lea.vmem %s0, 168
  %v1410 = vld [vmem:[%s1409] sm:$0xff]
  %v1411 = vld [vmem:[%s1409 + $0x8] sm:$0xff]
  %v1412 = vld [vmem:[%s1409 + $0x10] sm:$0xff]
  %v1413 = vld [vmem:[%s1409 + $0x18] sm:$0xff]
  %v1414 = vld [vmem:[%s1409 + $0x20] sm:$0xff]
  %v1415 = vld [vmem:[%s1409 + $0x28] sm:$0xff]
  %v1416 = vld [vmem:[%s1409 + $0x30] sm:$0xff]
  %v1418 = vsel %vm245, %v1416, 0
  %1420 = vmatprep.subr.mxu0 %v34
  %1421 = vmatpush1.msra.mxu0 %v33
  %1422 = vmatprep.subr.mxu0 %v36
  %1423 = vmatpush1.msra.mxu0 %v35
  %1424 = vmatprep.subr.mxu0 %v38
  %1425 = vmatpush1.msra.mxu0 %v37
  %1426 = vmatprep.subr.mxu0 %v40
  %1427 = vmatpush1.msra.mxu0 %v39
  %1428 = vmatprep.subr.mxu0 %v42
  %1429 = vmatpush1.msra.mxu0 %v41
  %1430 = vmatprep.subr.mxu0 %v44
  %1431 = vmatpush1.msra.mxu0 %v43
  %1432 = vmatprep.subr.mxu0 %v46
  %1433 = vmatpush1.msra.mxu0 %v45
  %1434 = vmatprep.subr.mxu0 %v48
  %1435 = vmatpush1.msra.mxu0 %v47
  %1436 = vmatprep.subr.mxu0 %v50
  %1437 = vmatpush1.msra.mxu0 %v49
  %1438 = vmatprep.subr.mxu0 %v52
  %1439 = vmatpush1.msra.mxu0 %v51
  %1440 = vmatprep.subr.mxu0 %v54
  %1441 = vmatpush1.msra.mxu0 %v53
  %1442 = vmatprep.subr.mxu0 %v56
  %1443 = vmatpush1.msra.mxu0 %v55
  %1444 = vmatprep.subr.mxu0 %v58
  %1445 = vmatpush1.msra.mxu0 %v57
  %1446 = vmatprep.subr.mxu0 %v60
  %1447 = vmatpush1.msra.mxu0 %v59
  %1448 = vmatprep.subr.mxu0 %v62
  %1449 = vmatpush1.msra.mxu0 %v61
  %1450 = vmatprep.subr.mxu0 %v64
  %1451 = vmatpush1.msra.mxu0 %v63
  %1452 = vmatprep.subr.mxu0 %v66
  %1453 = vmatpush1.msra.mxu0 %v65
  %1454 = vmatprep.subr.mxu0 %v68
  %1455 = vmatpush1.msra.mxu0 %v67
  %1456 = vmatprep.subr.mxu0 %v70
  %1457 = vmatpush1.msra.mxu0 %v69
  %1458 = vmatprep.subr.mxu0 %v72
  %1459 = vmatpush1.msra.mxu0 %v71
  %1460 = vmatprep.subr.mxu0 %v74
  %1461 = vmatpush1.msra.mxu0 %v73
  %1462 = vmatprep.subr.mxu0 %v76
  %1463 = vmatpush1.msra.mxu0 %v75
  %1464 = vmatprep.subr.mxu0 %v78
  %1465 = vmatpush1.msra.mxu0 %v77
  %1466 = vmatprep.subr.mxu0 %v80
  %1467 = vmatpush1.msra.mxu0 %v79
  %1468 = vmatprep.subr.mxu0 %v82
  %1469 = vmatpush1.msra.mxu0 %v81
  %1470 = vmatprep.subr.mxu0 %v84
  %1471 = vmatpush1.msra.mxu0 %v83
  %1472 = vmatprep.subr.mxu0 %v86
  %1473 = vmatpush1.msra.mxu0 %v85
  %1474 = vmatprep.subr.mxu0 %v88
  %1475 = vmatpush1.msra.mxu0 %v87
  %1476 = vmatprep.subr.mxu0 %v90
  %1477 = vmatpush1.msra.mxu0 %v89
  %1478 = vmatprep.subr.mxu0 %v92
  %1479 = vmatpush1.msra.mxu0 %v91
  %1480 = vmatprep.subr.mxu0 %v94
  %1481 = vmatpush1.msra.mxu0 %v93
  %1482 = vmatprep.subr.mxu0 %v96
  %1483 = vmatpush1.msra.mxu0 %v95
  %1484 = vmatprep.mubr.f32.mxu0 %v1411
  %1485 = vmatmul.mubr.f32.gmra.mrb[0].mxu0 %v1410
  %v1486 = vpop.f32.mrb[0].mxu0
  %v1487 = vadd.f32 %v238, %v1486
  %v1488 = vpop.f32.mrb[0].mxu0
  %v1489 = vadd.f32 %v242, %v1488
  %1490 = vdwg.mxu0
  %1491 = vmatprep.subr.mxu0 %v98
  %1492 = vmatpush1.msra.mxu0 %v97
  %1493 = vmatprep.subr.mxu0 %v100
  %1494 = vmatpush1.msra.mxu0 %v99
  %1495 = vmatprep.subr.mxu0 %v102
  %1496 = vmatpush1.msra.mxu0 %v101
  %1497 = vmatprep.subr.mxu0 %v104
  %1498 = vmatpush1.msra.mxu0 %v103
  %1499 = vmatprep.subr.mxu0 %v106
  %1500 = vmatpush1.msra.mxu0 %v105
  %1501 = vmatprep.subr.mxu0 %v108
  %1502 = vmatpush1.msra.mxu0 %v107
  %1503 = vmatprep.subr.mxu0 %v110
  %1504 = vmatpush1.msra.mxu0 %v109
  %1505 = vmatprep.subr.mxu0 %v112
  %1506 = vmatpush1.msra.mxu0 %v111
  %1507 = vmatprep.subr.mxu0 %v114
  %1508 = vmatpush1.msra.mxu0 %v113
  %1509 = vmatprep.subr.mxu0 %v116
  %1510 = vmatpush1.msra.mxu0 %v115
  %1511 = vmatprep.subr.mxu0 %v118
  %1512 = vmatpush1.msra.mxu0 %v117
  %1513 = vmatprep.subr.mxu0 %v120
  %1514 = vmatpush1.msra.mxu0 %v119
  %1515 = vmatprep.subr.mxu0 %v122
  %1516 = vmatpush1.msra.mxu0 %v121
  %1517 = vmatprep.subr.mxu0 %v124
  %1518 = vmatpush1.msra.mxu0 %v123
  %1519 = vmatprep.subr.mxu0 %v126
  %1520 = vmatpush1.msra.mxu0 %v125
  %1521 = vmatprep.subr.mxu0 %v128
  %1522 = vmatpush1.msra.mxu0 %v127
  %1523 = vmatprep.subr.mxu0 %v130
  %1524 = vmatpush1.msra.mxu0 %v129
  %1525 = vmatprep.subr.mxu0 %v132
  %1526 = vmatpush1.msra.mxu0 %v131
  %1527 = vmatprep.subr.mxu0 %v134
  %1528 = vmatpush1.msra.mxu0 %v133
  %1529 = vmatprep.subr.mxu0 %v136
  %1530 = vmatpush1.msra.mxu0 %v135
  %1531 = vmatprep.subr.mxu0 %v138
  %1532 = vmatpush1.msra.mxu0 %v137
  %1533 = vmatprep.subr.mxu0 %v140
  %1534 = vmatpush1.msra.mxu0 %v139
  %1535 = vmatprep.subr.mxu0 %v142
  %1536 = vmatpush1.msra.mxu0 %v141
  %1537 = vmatprep.subr.mxu0 %v144
  %1538 = vmatpush1.msra.mxu0 %v143
  %1539 = vmatprep.subr.mxu0 %v146
  %1540 = vmatpush1.msra.mxu0 %v145
  %1541 = vmatprep.subr.mxu0 %v148
  %1542 = vmatpush1.msra.mxu0 %v147
  %1543 = vmatprep.subr.mxu0 %v150
  %1544 = vmatpush1.msra.mxu0 %v149
  %1545 = vmatprep.subr.mxu0 %v152
  %1546 = vmatpush1.msra.mxu0 %v151
  %1547 = vmatprep.subr.mxu0 %v154
  %1548 = vmatpush1.msra.mxu0 %v153
  %1549 = vmatprep.subr.mxu0 %v156
  %1550 = vmatpush1.msra.mxu0 %v155
  %1551 = vmatprep.subr.mxu0 %v158
  %1552 = vmatpush1.msra.mxu0 %v157
  %1553 = vmatprep.subr.mxu0 %v160
  %1554 = vmatpush1.msra.mxu0 %v159
  %1555 = vmatprep.mubr.f32.mxu0 %v1413
  %1556 = vmatmul.mubr.f32.gmra.mrb[0].mxu0 %v1412
  %v1557 = vpop.f32.mrb[0].mxu0
  %v1558 = vadd.f32 %v1487, %v1557
  %v1559 = vpop.f32.mrb[0].mxu0
  %v1560 = vadd.f32 %v1489, %v1559
  %1561 = vdwg.mxu0
  %1562 = vmatprep.subr.mxu0 %v162
  %1563 = vmatpush1.msra.mxu0 %v161
  %1564 = vmatprep.subr.mxu0 %v164
  %1565 = vmatpush1.msra.mxu0 %v163
  %1566 = vmatprep.subr.mxu0 %v166
  %1567 = vmatpush1.msra.mxu0 %v165
  %1568 = vmatprep.subr.mxu0 %v168
  %1569 = vmatpush1.msra.mxu0 %v167
  %1570 = vmatprep.subr.mxu0 %v170
  %1571 = vmatpush1.msra.mxu0 %v169
  %1572 = vmatprep.subr.mxu0 %v172
  %1573 = vmatpush1.msra.mxu0 %v171
  %1574 = vmatprep.subr.mxu0 %v174
  %1575 = vmatpush1.msra.mxu0 %v173
  %1576 = vmatprep.subr.mxu0 %v176
  %1577 = vmatpush1.msra.mxu0 %v175
  %1578 = vmatprep.subr.mxu0 %v178
  %1579 = vmatpush1.msra.mxu0 %v177
  %1580 = vmatprep.subr.mxu0 %v180
  %1581 = vmatpush1.msra.mxu0 %v179
  %1582 = vmatprep.subr.mxu0 %v182
  %1583 = vmatpush1.msra.mxu0 %v181
  %1584 = vmatprep.subr.mxu0 %v184
  %1585 = vmatpush1.msra.mxu0 %v183
  %1586 = vmatprep.subr.mxu0 %v186
  %1587 = vmatpush1.msra.mxu0 %v185
  %1588 = vmatprep.subr.mxu0 %v188
  %1589 = vmatpush1.msra.mxu0 %v187
  %1590 = vmatprep.subr.mxu0 %v190
  %1591 = vmatpush1.msra.mxu0 %v189
  %1592 = vmatprep.subr.mxu0 %v192
  %1593 = vmatpush1.msra.mxu0 %v191
  %1594 = vmatprep.subr.mxu0 %v194
  %1595 = vmatpush1.msra.mxu0 %v193
  %1596 = vmatprep.subr.mxu0 %v196
  %1597 = vmatpush1.msra.mxu0 %v195
  %1598 = vmatprep.subr.mxu0 %v198
  %1599 = vmatpush1.msra.mxu0 %v197
  %1600 = vmatprep.subr.mxu0 %v200
  %1601 = vmatpush1.msra.mxu0 %v199
  %1602 = vmatprep.subr.mxu0 %v202
  %1603 = vmatpush1.msra.mxu0 %v201
  %1604 = vmatprep.subr.mxu0 %v204
  %1605 = vmatpush1.msra.mxu0 %v203
  %1606 = vmatprep.subr.mxu0 %v206
  %1607 = vmatpush1.msra.mxu0 %v205
  %1608 = vmatprep.subr.mxu0 %v208
  %1609 = vmatpush1.msra.mxu0 %v207
  %1610 = vmatprep.subr.mxu0 %v210
  %1611 = vmatpush1.msra.mxu0 %v209
  %1612 = vmatprep.subr.mxu0 %v212
  %1613 = vmatpush1.msra.mxu0 %v211
  %1614 = vmatprep.subr.mxu0 %v214
  %1615 = vmatpush1.msra.mxu0 %v213
  %1616 = vmatprep.subr.mxu0 %v216
  %1617 = vmatpush1.msra.mxu0 %v215
  %1618 = vmatprep.subr.mxu0 %v218
  %1619 = vmatpush1.msra.mxu0 %v217
  %1620 = vmatprep.subr.mxu0 %v220
  %1621 = vmatpush1.msra.mxu0 %v219
  %1622 = vmatprep.subr.mxu0 %v222
  %1623 = vmatpush1.msra.mxu0 %v221
  %1624 = vmatprep.subr.mxu0 %v224
  %1625 = vmatpush1.msra.mxu0 %v223
  %1626 = vmatprep.mubr.f32.mxu0 %v1415
  %1627 = vmatmul.mubr.f32.gmra.mrb[0].mxu0 %v1414
  %v1628 = vpop.f32.mrb[0].mxu0
  %v1629 = vadd.f32 %v1558, %v1628
  %v1630 = vpop.f32.mrb[0].mxu0
  %v1631 = vadd.f32 %v1560, %v1630
  %1632 = vdwg.mxu0
  %1633 = vmatprep.subr.mxu0 %v226
  %1634 = vmatpush1.msra.mxu0 %v225
  %1635 = vmatprep.subr.mxu0 %v228
  %1636 = vmatpush1.msra.mxu0 %v227
  %1637 = vmatprep.subr.mxu0 %v230
  %1638 = vmatpush1.msra.mxu0 %v229
  %1639 = vmatprep.subr.mxu0 %v232
  %1640 = vmatpush1.msra.mxu0 %v231
  %1641 = vmatprep.subr.mxu0 0.0
  %1642 = vmatpush1.msra.mxu0 0.0
  %1643 = vmatprep.subr.mxu0 0.0
  %1644 = vmatpush1.msra.mxu0 0.0
  %1645 = vmatprep.subr.mxu0 0.0
  %1646 = vmatpush1.msra.mxu0 0.0
  %1647 = vmatprep.subr.mxu0 0.0
  %1648 = vmatpush1.msra.mxu0 0.0
  %1649 = vmatprep.subr.mxu0 0.0
  %1650 = vmatpush1.msra.mxu0 0.0
  %1651 = vmatprep.subr.mxu0 0.0
  %1652 = vmatpush1.msra.mxu0 0.0
  %1653 = vmatprep.subr.mxu0 0.0
  %1654 = vmatpush1.msra.mxu0 0.0
  %1655 = vmatprep.subr.mxu0 0.0
  %1656 = vmatpush1.msra.mxu0 0.0
  %1657 = vmatprep.subr.mxu0 0.0
  %1658 = vmatpush1.msra.mxu0 0.0
  %1659 = vmatprep.subr.mxu0 0.0
  %1660 = vmatpush1.msra.mxu0 0.0
  %1661 = vmatprep.subr.mxu0 0.0
  %1662 = vmatpush1.msra.mxu0 0.0
  %1663 = vmatprep.subr.mxu0 0.0
  %1664 = vmatpush1.msra.mxu0 0.0
  %1665 = vmatprep.subr.mxu0 0.0
  %1666 = vmatpush1.msra.mxu0 0.0
  %1667 = vmatprep.subr.mxu0 0.0
  %1668 = vmatpush1.msra.mxu0 0.0
  %1669 = vmatprep.subr.mxu0 0.0
  %1670 = vmatpush1.msra.mxu0 0.0
  %1671 = vmatprep.subr.mxu0 0.0
  %1672 = vmatpush1.msra.mxu0 0.0
  %1673 = vmatprep.subr.mxu0 0.0
  %1674 = vmatpush1.msra.mxu0 0.0
  %1675 = vmatprep.subr.mxu0 0.0
  %1676 = vmatpush1.msra.mxu0 0.0
  %1677 = vmatprep.subr.mxu0 0.0
  %1678 = vmatpush1.msra.mxu0 0.0
  %1679 = vmatprep.subr.mxu0 0.0
  %1680 = vmatpush1.msra.mxu0 0.0
  %1681 = vmatprep.subr.mxu0 0.0
  %1682 = vmatpush1.msra.mxu0 0.0
  %1683 = vmatprep.subr.mxu0 0.0
  %1684 = vmatpush1.msra.mxu0 0.0
  %1685 = vmatprep.subr.mxu0 0.0
  %1686 = vmatpush1.msra.mxu0 0.0
  %1687 = vmatprep.subr.mxu0 0.0
  %1688 = vmatpush1.msra.mxu0 0.0
  %1689 = vmatprep.subr.mxu0 0.0
  %1690 = vmatpush1.msra.mxu0 0.0
  %1691 = vmatprep.subr.mxu0 0.0
  %1692 = vmatpush1.msra.mxu0 0.0
  %1693 = vmatprep.subr.mxu0 0.0
  %1694 = vmatpush1.msra.mxu0 0.0
  %1695 = vmatprep.subr.mxu0 0.0
  %1696 = vmatpush1.msra.mxu0 0.0
  %1697 = vmatprep.mubr.f32.mxu0 0.0
  %1698 = vmatmul.mubr.f32.gmra.mrb[0].mxu0 %v1418
  %v1699 = vpop.f32.mrb[0].mxu0
  %v1700 = vadd.f32 %v1629, %v1699
  %v1701 = vpop.f32.mrb[0].mxu0
  %v1702 = vadd.f32 %v1631, %v1701
  %1703 = vdwg.mxu0
  %v1704 = vmax.f32 %v1700, 0.0
  %v1705 = vmax.f32 %v1702, 0.0
  %1707 = vrot.lane.b32.xlu0 %v1704, 64
  %v1708 = vpop.permute.xlu0 %1707
  %v1710 = vmax.f32 %v1704, %v1708
  %1712 = vrot.lane.b32.xlu0 %v1705, 64
  %v1713 = vpop.permute.xlu0 %1712
  %v1715 = vmax.f32 %v1705, %v1713
  %v1716 = vmax.f32 %v1710, %v1715
  %s1717 = scalar_lea.vmem %s3, 192
  %v1718 = vld [vmem:[%s1717] sm:$0xff]
  %v1719 = vld [vmem:[%s1717 + $0x8] sm:$0xff]
  %v1720 = vld [vmem:[%s1717 + $0x10] sm:$0xff]
  %v1721 = vld [vmem:[%s1717 + $0x18] sm:$0xff]
  %v1722 = vld [vmem:[%s1717 + $0x20] sm:$0xff]
  %v1723 = vld [vmem:[%s1717 + $0x28] sm:$0xff]
  %v1724 = vld [vmem:[%s1717 + $0x30] sm:$0xff]
  %v1725 = vld [vmem:[%s1717 + $0x38] sm:$0xff]
  %v1727 = vsel %vm871, %v1716, 0
  %1729 = vmatprep.subr.mxu0 0.0
  %1730 = vmatpush1.msra.mxu0 %v1718
  %1731 = vmatprep.subr.mxu0 0.0
  %1732 = vmatpush1.msra.mxu0 %v1719
  %1733 = vmatprep.subr.mxu0 0.0
  %1734 = vmatpush1.msra.mxu0 %v1720
  %1735 = vmatprep.subr.mxu0 0.0
  %1736 = vmatpush1.msra.mxu0 %v1721
  %1737 = vmatprep.subr.mxu0 0.0
  %1738 = vmatpush1.msra.mxu0 %v1722
  %1739 = vmatprep.subr.mxu0 0.0
  %1740 = vmatpush1.msra.mxu0 %v1723
  %1741 = vmatprep.subr.mxu0 0.0
  %1742 = vmatpush1.msra.mxu0 %v1724
  %1743 = vmatprep.subr.mxu0 0.0
  %1744 = vmatpush1.msra.mxu0 %v1725
  %1745 = vmatprep.subr.mxu0 0.0
  %1746 = vmatpush1.msra.mxu0 0.0
  %1747 = vmatprep.subr.mxu0 0.0
  %1748 = vmatpush1.msra.mxu0 0.0
  %1749 = vmatprep.subr.mxu0 0.0
  %1750 = vmatpush1.msra.mxu0 0.0
  %1751 = vmatprep.subr.mxu0 0.0
  %1752 = vmatpush1.msra.mxu0 0.0
  %1753 = vmatprep.subr.mxu0 0.0
  %1754 = vmatpush1.msra.mxu0 0.0
  %1755 = vmatprep.subr.mxu0 0.0
  %1756 = vmatpush1.msra.mxu0 0.0
  %1757 = vmatprep.subr.mxu0 0.0
  %1758 = vmatpush1.msra.mxu0 0.0
  %1759 = vmatprep.subr.mxu0 0.0
  %1760 = vmatpush1.msra.mxu0 0.0
  %1761 = vmatprep.subr.mxu0 0.0
  %1762 = vmatpush1.msra.mxu0 0.0
  %1763 = vmatprep.subr.mxu0 0.0
  %1764 = vmatpush1.msra.mxu0 0.0
  %1765 = vmatprep.subr.mxu0 0.0
  %1766 = vmatpush1.msra.mxu0 0.0
  %1767 = vmatprep.subr.mxu0 0.0
  %1768 = vmatpush1.msra.mxu0 0.0
  %1769 = vmatprep.subr.mxu0 0.0
  %1770 = vmatpush1.msra.mxu0 0.0
  %1771 = vmatprep.subr.mxu0 0.0
  %1772 = vmatpush1.msra.mxu0 0.0
  %1773 = vmatprep.subr.mxu0 0.0
  %1774 = vmatpush1.msra.mxu0 0.0
  %1775 = vmatprep.subr.mxu0 0.0
  %1776 = vmatpush1.msra.mxu0 0.0
  %1777 = vmatprep.subr.mxu0 0.0
  %1778 = vmatpush1.msra.mxu0 0.0
  %1779 = vmatprep.subr.mxu0 0.0
  %1780 = vmatpush1.msra.mxu0 0.0
  %1781 = vmatprep.subr.mxu0 0.0
  %1782 = vmatpush1.msra.mxu0 0.0
  %1783 = vmatprep.subr.mxu0 0.0
  %1784 = vmatpush1.msra.mxu0 0.0
  %1785 = vmatprep.subr.mxu0 0.0
  %1786 = vmatpush1.msra.mxu0 0.0
  %1787 = vmatprep.subr.mxu0 0.0
  %1788 = vmatpush1.msra.mxu0 0.0
  %1789 = vmatprep.subr.mxu0 0.0
  %1790 = vmatpush1.msra.mxu0 0.0
  %1791 = vmatprep.subr.mxu0 0.0
  %1792 = vmatpush1.msra.mxu0 0.0
  %1793 = vmatprep.mubr.f32.mxu0 0.0
  %1794 = vmatmul.mubr.f32.gmra.mrb[0].mxu0 %v1727
  %v1795 = vpop.f32.mrb[0].mxu0
  %v1796 = vadd.f32 0.0, %v1795
  %v1797 = vpop.f32.mrb[0].mxu0
  %1798 = vdwg.mxu0
  %v1799 = vadd.f32 %v1408, %v1796
  %s1800 = scalar_lea.vmem %s0, 224
  %v1801 = vld [vmem:[%s1800] sm:$0xff]
  %v1802 = vld [vmem:[%s1800 + $0x8] sm:$0xff]
  %v1803 = vld [vmem:[%s1800 + $0x10] sm:$0xff]
  %v1804 = vld [vmem:[%s1800 + $0x18] sm:$0xff]
  %v1805 = vld [vmem:[%s1800 + $0x20] sm:$0xff]
  %v1806 = vld [vmem:[%s1800 + $0x28] sm:$0xff]
  %v1807 = vld [vmem:[%s1800 + $0x30] sm:$0xff]
  %v1809 = vsel %vm245, %v1807, 0
  %1811 = vmatprep.subr.mxu0 %v34
  %1812 = vmatpush1.msra.mxu0 %v33
  %1813 = vmatprep.subr.mxu0 %v36
  %1814 = vmatpush1.msra.mxu0 %v35
  %1815 = vmatprep.subr.mxu0 %v38
  %1816 = vmatpush1.msra.mxu0 %v37
  %1817 = vmatprep.subr.mxu0 %v40
  %1818 = vmatpush1.msra.mxu0 %v39
  %1819 = vmatprep.subr.mxu0 %v42
  %1820 = vmatpush1.msra.mxu0 %v41
  %1821 = vmatprep.subr.mxu0 %v44
  %1822 = vmatpush1.msra.mxu0 %v43
  %1823 = vmatprep.subr.mxu0 %v46
  %1824 = vmatpush1.msra.mxu0 %v45
  %1825 = vmatprep.subr.mxu0 %v48
  %1826 = vmatpush1.msra.mxu0 %v47
  %1827 = vmatprep.subr.mxu0 %v50
  %1828 = vmatpush1.msra.mxu0 %v49
  %1829 = vmatprep.subr.mxu0 %v52
  %1830 = vmatpush1.msra.mxu0 %v51
  %1831 = vmatprep.subr.mxu0 %v54
  %1832 = vmatpush1.msra.mxu0 %v53
  %1833 = vmatprep.subr.mxu0 %v56
  %1834 = vmatpush1.msra.mxu0 %v55
  %1835 = vmatprep.subr.mxu0 %v58
  %1836 = vmatpush1.msra.mxu0 %v57
  %1837 = vmatprep.subr.mxu0 %v60
  %1838 = vmatpush1.msra.mxu0 %v59
  %1839 = vmatprep.subr.mxu0 %v62
  %1840 = vmatpush1.msra.mxu0 %v61
  %1841 = vmatprep.subr.mxu0 %v64
  %1842 = vmatpush1.msra.mxu0 %v63
  %1843 = vmatprep.subr.mxu0 %v66
  %1844 = vmatpush1.msra.mxu0 %v65
  %1845 = vmatprep.subr.mxu0 %v68
  %1846 = vmatpush1.msra.mxu0 %v67
  %1847 = vmatprep.subr.mxu0 %v70
  %1848 = vmatpush1.msra.mxu0 %v69
  %1849 = vmatprep.subr.mxu0 %v72
  %1850 = vmatpush1.msra.mxu0 %v71
  %1851 = vmatprep.subr.mxu0 %v74
  %1852 = vmatpush1.msra.mxu0 %v73
  %1853 = vmatprep.subr.mxu0 %v76
  %1854 = vmatpush1.msra.mxu0 %v75
  %1855 = vmatprep.subr.mxu0 %v78
  %1856 = vmatpush1.msra.mxu0 %v77
  %1857 = vmatprep.subr.mxu0 %v80
  %1858 = vmatpush1.msra.mxu0 %v79
  %1859 = vmatprep.subr.mxu0 %v82
  %1860 = vmatpush1.msra.mxu0 %v81
  %1861 = vmatprep.subr.mxu0 %v84
  %1862 = vmatpush1.msra.mxu0 %v83
  %1863 = vmatprep.subr.mxu0 %v86
  %1864 = vmatpush1.msra.mxu0 %v85
  %1865 = vmatprep.subr.mxu0 %v88
  %1866 = vmatpush1.msra.mxu0 %v87
  %1867 = vmatprep.subr.mxu0 %v90
  %1868 = vmatpush1.msra.mxu0 %v89
  %1869 = vmatprep.subr.mxu0 %v92
  %1870 = vmatpush1.msra.mxu0 %v91
  %1871 = vmatprep.subr.mxu0 %v94
  %1872 = vmatpush1.msra.mxu0 %v93
  %1873 = vmatprep.subr.mxu0 %v96
  %1874 = vmatpush1.msra.mxu0 %v95
  %1875 = vmatprep.mubr.f32.mxu0 %v1802
  %1876 = vmatmul.mubr.f32.gmra.mrb[0].mxu0 %v1801
  %v1877 = vpop.f32.mrb[0].mxu0
  %v1878 = vadd.f32 %v238, %v1877
  %v1879 = vpop.f32.mrb[0].mxu0
  %v1880 = vadd.f32 %v242, %v1879
  %1881 = vdwg.mxu0
  %1882 = vmatprep.subr.mxu0 %v98
  %1883 = vmatpush1.msra.mxu0 %v97
  %1884 = vmatprep.subr.mxu0 %v100
  %1885 = vmatpush1.msra.mxu0 %v99
  %1886 = vmatprep.subr.mxu0 %v102
  %1887 = vmatpush1.msra.mxu0 %v101
  %1888 = vmatprep.subr.mxu0 %v104
  %1889 = vmatpush1.msra.mxu0 %v103
  %1890 = vmatprep.subr.mxu0 %v106
  %1891 = vmatpush1.msra.mxu0 %v105
  %1892 = vmatprep.subr.mxu0 %v108
  %1893 = vmatpush1.msra.mxu0 %v107
  %1894 = vmatprep.subr.mxu0 %v110
  %1895 = vmatpush1.msra.mxu0 %v109
  %1896 = vmatprep.subr.mxu0 %v112
  %1897 = vmatpush1.msra.mxu0 %v111
  %1898 = vmatprep.subr.mxu0 %v114
  %1899 = vmatpush1.msra.mxu0 %v113
  %1900 = vmatprep.subr.mxu0 %v116
  %1901 = vmatpush1.msra.mxu0 %v115
  %1902 = vmatprep.subr.mxu0 %v118
  %1903 = vmatpush1.msra.mxu0 %v117
  %1904 = vmatprep.subr.mxu0 %v120
  %1905 = vmatpush1.msra.mxu0 %v119
  %1906 = vmatprep.subr.mxu0 %v122
  %1907 = vmatpush1.msra.mxu0 %v121
  %1908 = vmatprep.subr.mxu0 %v124
  %1909 = vmatpush1.msra.mxu0 %v123
  %1910 = vmatprep.subr.mxu0 %v126
  %1911 = vmatpush1.msra.mxu0 %v125
  %1912 = vmatprep.subr.mxu0 %v128
  %1913 = vmatpush1.msra.mxu0 %v127
  %1914 = vmatprep.subr.mxu0 %v130
  %1915 = vmatpush1.msra.mxu0 %v129
  %1916 = vmatprep.subr.mxu0 %v132
  %1917 = vmatpush1.msra.mxu0 %v131
  %1918 = vmatprep.subr.mxu0 %v134
  %1919 = vmatpush1.msra.mxu0 %v133
  %1920 = vmatprep.subr.mxu0 %v136
  %1921 = vmatpush1.msra.mxu0 %v135
  %1922 = vmatprep.subr.mxu0 %v138
  %1923 = vmatpush1.msra.mxu0 %v137
  %1924 = vmatprep.subr.mxu0 %v140
  %1925 = vmatpush1.msra.mxu0 %v139
  %1926 = vmatprep.subr.mxu0 %v142
  %1927 = vmatpush1.msra.mxu0 %v141
  %1928 = vmatprep.subr.mxu0 %v144
  %1929 = vmatpush1.msra.mxu0 %v143
  %1930 = vmatprep.subr.mxu0 %v146
  %1931 = vmatpush1.msra.mxu0 %v145
  %1932 = vmatprep.subr.mxu0 %v148
  %1933 = vmatpush1.msra.mxu0 %v147
  %1934 = vmatprep.subr.mxu0 %v150
  %1935 = vmatpush1.msra.mxu0 %v149
  %1936 = vmatprep.subr.mxu0 %v152
  %1937 = vmatpush1.msra.mxu0 %v151
  %1938 = vmatprep.subr.mxu0 %v154
  %1939 = vmatpush1.msra.mxu0 %v153
  %1940 = vmatprep.subr.mxu0 %v156
  %1941 = vmatpush1.msra.mxu0 %v155
  %1942 = vmatprep.subr.mxu0 %v158
  %1943 = vmatpush1.msra.mxu0 %v157
  %1944 = vmatprep.subr.mxu0 %v160
  %1945 = vmatpush1.msra.mxu0 %v159
  %1946 = vmatprep.mubr.f32.mxu0 %v1804
  %1947 = vmatmul.mubr.f32.gmra.mrb[0].mxu0 %v1803
  %v1948 = vpop.f32.mrb[0].mxu0
  %v1949 = vadd.f32 %v1878, %v1948
  %v1950 = vpop.f32.mrb[0].mxu0
  %v1951 = vadd.f32 %v1880, %v1950
  %1952 = vdwg.mxu0
  %1953 = vmatprep.subr.mxu0 %v162
  %1954 = vmatpush1.msra.mxu0 %v161
  %1955 = vmatprep.subr.mxu0 %v164
  %1956 = vmatpush1.msra.mxu0 %v163
  %1957 = vmatprep.subr.mxu0 %v166
  %1958 = vmatpush1.msra.mxu0 %v165
  %1959 = vmatprep.subr.mxu0 %v168
  %1960 = vmatpush1.msra.mxu0 %v167
  %1961 = vmatprep.subr.mxu0 %v170
  %1962 = vmatpush1.msra.mxu0 %v169
  %1963 = vmatprep.subr.mxu0 %v172
  %1964 = vmatpush1.msra.mxu0 %v171
  %1965 = vmatprep.subr.mxu0 %v174
  %1966 = vmatpush1.msra.mxu0 %v173
  %1967 = vmatprep.subr.mxu0 %v176
  %1968 = vmatpush1.msra.mxu0 %v175
  %1969 = vmatprep.subr.mxu0 %v178
  %1970 = vmatpush1.msra.mxu0 %v177
  %1971 = vmatprep.subr.mxu0 %v180
  %1972 = vmatpush1.msra.mxu0 %v179
  %1973 = vmatprep.subr.mxu0 %v182
  %1974 = vmatpush1.msra.mxu0 %v181
  %1975 = vmatprep.subr.mxu0 %v184
  %1976 = vmatpush1.msra.mxu0 %v183
  %1977 = vmatprep.subr.mxu0 %v186
  %1978 = vmatpush1.msra.mxu0 %v185
  %1979 = vmatprep.subr.mxu0 %v188
  %1980 = vmatpush1.msra.mxu0 %v187
  %1981 = vmatprep.subr.mxu0 %v190
  %1982 = vmatpush1.msra.mxu0 %v189
  %1983 = vmatprep.subr.mxu0 %v192
  %1984 = vmatpush1.msra.mxu0 %v191
  %1985 = vmatprep.subr.mxu0 %v194
  %1986 = vmatpush1.msra.mxu0 %v193
  %1987 = vmatprep.subr.mxu0 %v196
  %1988 = vmatpush1.msra.mxu0 %v195
  %1989 = vmatprep.subr.mxu0 %v198
  %1990 = vmatpush1.msra.mxu0 %v197
  %1991 = vmatprep.subr.mxu0 %v200
  %1992 = vmatpush1.msra.mxu0 %v199
  %1993 = vmatprep.subr.mxu0 %v202
  %1994 = vmatpush1.msra.mxu0 %v201
  %1995 = vmatprep.subr.mxu0 %v204
  %1996 = vmatpush1.msra.mxu0 %v203
  %1997 = vmatprep.subr.mxu0 %v206
  %1998 = vmatpush1.msra.mxu0 %v205
  %1999 = vmatprep.subr.mxu0 %v208
  %2000 = vmatpush1.msra.mxu0 %v207
  %2001 = vmatprep.subr.mxu0 %v210
  %2002 = vmatpush1.msra.mxu0 %v209
  %2003 = vmatprep.subr.mxu0 %v212
  %2004 = vmatpush1.msra.mxu0 %v211
  %2005 = vmatprep.subr.mxu0 %v214
  %2006 = vmatpush1.msra.mxu0 %v213
  %2007 = vmatprep.subr.mxu0 %v216
  %2008 = vmatpush1.msra.mxu0 %v215
  %2009 = vmatprep.subr.mxu0 %v218
  %2010 = vmatpush1.msra.mxu0 %v217
  %2011 = vmatprep.subr.mxu0 %v220
  %2012 = vmatpush1.msra.mxu0 %v219
  %2013 = vmatprep.subr.mxu0 %v222
  %2014 = vmatpush1.msra.mxu0 %v221
  %2015 = vmatprep.subr.mxu0 %v224
  %2016 = vmatpush1.msra.mxu0 %v223
  %2017 = vmatprep.mubr.f32.mxu0 %v1806
  %2018 = vmatmul.mubr.f32.gmra.mrb[0].mxu0 %v1805
  %v2019 = vpop.f32.mrb[0].mxu0
  %v2020 = vadd.f32 %v1949, %v2019
  %v2021 = vpop.f32.mrb[0].mxu0
  %v2022 = vadd.f32 %v1951, %v2021
  %2023 = vdwg.mxu0
  %2024 = vmatprep.subr.mxu0 %v226
  %2025 = vmatpush1.msra.mxu0 %v225
  %2026 = vmatprep.subr.mxu0 %v228
  %2027 = vmatpush1.msra.mxu0 %v227
  %2028 = vmatprep.subr.mxu0 %v230
  %2029 = vmatpush1.msra.mxu0 %v229
  %2030 = vmatprep.subr.mxu0 %v232
  %2031 = vmatpush1.msra.mxu0 %v231
  %2032 = vmatprep.subr.mxu0 0.0
  %2033 = vmatpush1.msra.mxu0 0.0
  %2034 = vmatprep.subr.mxu0 0.0
  %2035 = vmatpush1.msra.mxu0 0.0
  %2036 = vmatprep.subr.mxu0 0.0
  %2037 = vmatpush1.msra.mxu0 0.0
  %2038 = vmatprep.subr.mxu0 0.0
  %2039 = vmatpush1.msra.mxu0 0.0
  %2040 = vmatprep.subr.mxu0 0.0
  %2041 = vmatpush1.msra.mxu0 0.0
  %2042 = vmatprep.subr.mxu0 0.0
  %2043 = vmatpush1.msra.mxu0 0.0
  %2044 = vmatprep.subr.mxu0 0.0
  %2045 = vmatpush1.msra.mxu0 0.0
  %2046 = vmatprep.subr.mxu0 0.0
  %2047 = vmatpush1.msra.mxu0 0.0
  %2048 = vmatprep.subr.mxu0 0.0
  %2049 = vmatpush1.msra.mxu0 0.0
  %2050 = vmatprep.subr.mxu0 0.0
  %2051 = vmatpush1.msra.mxu0 0.0
  %2052 = vmatprep.subr.mxu0 0.0
  %2053 = vmatpush1.msra.mxu0 0.0
  %2054 = vmatprep.subr.mxu0 0.0
  %2055 = vmatpush1.msra.mxu0 0.0
  %2056 = vmatprep.subr.mxu0 0.0
  %2057 = vmatpush1.msra.mxu0 0.0
  %2058 = vmatprep.subr.mxu0 0.0
  %2059 = vmatpush1.msra.mxu0 0.0
  %2060 = vmatprep.subr.mxu0 0.0
  %2061 = vmatpush1.msra.mxu0 0.0
  %2062 = vmatprep.subr.mxu0 0.0
  %2063 = vmatpush1.msra.mxu0 0.0
  %2064 = vmatprep.subr.mxu0 0.0
  %2065 = vmatpush1.msra.mxu0 0.0
  %2066 = vmatprep.subr.mxu0 0.0
  %2067 = vmatpush1.msra.mxu0 0.0
  %2068 = vmatprep.subr.mxu0 0.0
  %2069 = vmatpush1.msra.mxu0 0.0
  %2070 = vmatprep.subr.mxu0 0.0
  %2071 = vmatpush1.msra.mxu0 0.0
  %2072 = vmatprep.subr.mxu0 0.0
  %2073 = vmatpush1.msra.mxu0 0.0
  %2074 = vmatprep.subr.mxu0 0.0
  %2075 = vmatpush1.msra.mxu0 0.0
  %2076 = vmatprep.subr.mxu0 0.0
  %2077 = vmatpush1.msra.mxu0 0.0
  %2078 = vmatprep.subr.mxu0 0.0
  %2079 = vmatpush1.msra.mxu0 0.0
  %2080 = vmatprep.subr.mxu0 0.0
  %2081 = vmatpush1.msra.mxu0 0.0
  %2082 = vmatprep.subr.mxu0 0.0
  %2083 = vmatpush1.msra.mxu0 0.0
  %2084 = vmatprep.subr.mxu0 0.0
  %2085 = vmatpush1.msra.mxu0 0.0
  %2086 = vmatprep.subr.mxu0 0.0
  %2087 = vmatpush1.msra.mxu0 0.0
  %2088 = vmatprep.mubr.f32.mxu0 0.0
  %2089 = vmatmul.mubr.f32.gmra.mrb[0].mxu0 %v1809
  %v2090 = vpop.f32.mrb[0].mxu0
  %v2091 = vadd.f32 %v2020, %v2090
  %v2092 = vpop.f32.mrb[0].mxu0
  %v2093 = vadd.f32 %v2022, %v2092
  %2094 = vdwg.mxu0
  %v2095 = vmax.f32 %v2091, 0.0
  %v2096 = vmax.f32 %v2093, 0.0
  %2098 = vrot.lane.b32.xlu0 %v2095, 64
  %v2099 = vpop.permute.xlu0 %2098
  %v2101 = vmax.f32 %v2095, %v2099
  %2103 = vrot.lane.b32.xlu0 %v2096, 64
  %v2104 = vpop.permute.xlu0 %2103
  %v2106 = vmax.f32 %v2096, %v2104
  %v2107 = vmax.f32 %v2101, %v2106
  %s2108 = scalar_lea.vmem %s3, 256
  %v2109 = vld [vmem:[%s2108] sm:$0xff]
  %v2110 = vld [vmem:[%s2108 + $0x8] sm:$0xff]
  %v2111 = vld [vmem:[%s2108 + $0x10] sm:$0xff]
  %v2112 = vld [vmem:[%s2108 + $0x18] sm:$0xff]
  %v2113 = vld [vmem:[%s2108 + $0x20] sm:$0xff]
  %v2114 = vld [vmem:[%s2108 + $0x28] sm:$0xff]
  %v2115 = vld [vmem:[%s2108 + $0x30] sm:$0xff]
  %v2116 = vld [vmem:[%s2108 + $0x38] sm:$0xff]
  %v2118 = vsel %vm871, %v2107, 0
  %2120 = vmatprep.subr.mxu0 0.0
  %2121 = vmatpush1.msra.mxu0 %v2109
  %2122 = vmatprep.subr.mxu0 0.0
  %2123 = vmatpush1.msra.mxu0 %v2110
  %2124 = vmatprep.subr.mxu0 0.0
  %2125 = vmatpush1.msra.mxu0 %v2111
  %2126 = vmatprep.subr.mxu0 0.0
  %2127 = vmatpush1.msra.mxu0 %v2112
  %2128 = vmatprep.subr.mxu0 0.0
  %2129 = vmatpush1.msra.mxu0 %v2113
  %2130 = vmatprep.subr.mxu0 0.0
  %2131 = vmatpush1.msra.mxu0 %v2114
  %2132 = vmatprep.subr.mxu0 0.0
  %2133 = vmatpush1.msra.mxu0 %v2115
  %2134 = vmatprep.subr.mxu0 0.0
  %2135 = vmatpush1.msra.mxu0 %v2116
  %2136 = vmatprep.subr.mxu0 0.0
  %2137 = vmatpush1.msra.mxu0 0.0
  %2138 = vmatprep.subr.mxu0 0.0
  %2139 = vmatpush1.msra.mxu0 0.0
  %2140 = vmatprep.subr.mxu0 0.0
  %2141 = vmatpush1.msra.mxu0 0.0
  %2142 = vmatprep.subr.mxu0 0.0
  %2143 = vmatpush1.msra.mxu0 0.0
  %2144 = vmatprep.subr.mxu0 0.0
  %2145 = vmatpush1.msra.mxu0 0.0
  %2146 = vmatprep.subr.mxu0 0.0
  %2147 = vmatpush1.msra.mxu0 0.0
  %2148 = vmatprep.subr.mxu0 0.0
  %2149 = vmatpush1.msra.mxu0 0.0
  %2150 = vmatprep.subr.mxu0 0.0
  %2151 = vmatpush1.msra.mxu0 0.0
  %2152 = vmatprep.subr.mxu0 0.0
  %2153 = vmatpush1.msra.mxu0 0.0
  %2154 = vmatprep.subr.mxu0 0.0
  %2155 = vmatpush1.msra.mxu0 0.0
  %2156 = vmatprep.subr.mxu0 0.0
  %2157 = vmatpush1.msra.mxu0 0.0
  %2158 = vmatprep.subr.mxu0 0.0
  %2159 = vmatpush1.msra.mxu0 0.0
  %2160 = vmatprep.subr.mxu0 0.0
  %2161 = vmatpush1.msra.mxu0 0.0
  %2162 = vmatprep.subr.mxu0 0.0
  %2163 = vmatpush1.msra.mxu0 0.0
  %2164 = vmatprep.subr.mxu0 0.0
  %2165 = vmatpush1.msra.mxu0 0.0
  %2166 = vmatprep.subr.mxu0 0.0
  %2167 = vmatpush1.msra.mxu0 0.0
  %2168 = vmatprep.subr.mxu0 0.0
  %2169 = vmatpush1.msra.mxu0 0.0
  %2170 = vmatprep.subr.mxu0 0.0
  %2171 = vmatpush1.msra.mxu0 0.0
  %2172 = vmatprep.subr.mxu0 0.0
  %2173 = vmatpush1.msra.mxu0 0.0
  %2174 = vmatprep.subr.mxu0 0.0
  %2175 = vmatpush1.msra.mxu0 0.0
  %2176 = vmatprep.subr.mxu0 0.0
  %2177 = vmatpush1.msra.mxu0 0.0
  %2178 = vmatprep.subr.mxu0 0.0
  %2179 = vmatpush1.msra.mxu0 0.0
  %2180 = vmatprep.subr.mxu0 0.0
  %2181 = vmatpush1.msra.mxu0 0.0
  %2182 = vmatprep.subr.mxu0 0.0
  %2183 = vmatpush1.msra.mxu0 0.0
  %2184 = vmatprep.mubr.f32.mxu0 0.0
  %2185 = vmatmul.mubr.f32.gmra.mrb[0].mxu0 %v2118
  %v2186 = vpop.f32.mrb[0].mxu0
  %v2187 = vadd.f32 0.0, %v2186
  %v2188 = vpop.f32.mrb[0].mxu0
  %2189 = vdwg.mxu0
  %v2190 = vadd.f32 %v1799, %v2187
  %s2191 = scalar_lea.vmem %s0, 280
  %v2192 = vld [vmem:[%s2191] sm:$0xff]
  %v2193 = vld [vmem:[%s2191 + $0x8] sm:$0xff]
  %v2194 = vld [vmem:[%s2191 + $0x10] sm:$0xff]
  %v2195 = vld [vmem:[%s2191 + $0x18] sm:$0xff]
  %v2196 = vld [vmem:[%s2191 + $0x20] sm:$0xff]
  %v2197 = vld [vmem:[%s2191 + $0x28] sm:$0xff]
  %v2198 = vld [vmem:[%s2191 + $0x30] sm:$0xff]
  %v2200 = vsel %vm245, %v2198, 0
  %2202 = vmatprep.subr.mxu0 %v34
  %2203 = vmatpush1.msra.mxu0 %v33
  %2204 = vmatprep.subr.mxu0 %v36
  %2205 = vmatpush1.msra.mxu0 %v35
  %2206 = vmatprep.subr.mxu0 %v38
  %2207 = vmatpush1.msra.mxu0 %v37
  %2208 = vmatprep.subr.mxu0 %v40
  %2209 = vmatpush1.msra.mxu0 %v39
  %2210 = vmatprep.subr.mxu0 %v42
  %2211 = vmatpush1.msra.mxu0 %v41
  %2212 = vmatprep.subr.mxu0 %v44
  %2213 = vmatpush1.msra.mxu0 %v43
  %2214 = vmatprep.subr.mxu0 %v46
  %2215 = vmatpush1.msra.mxu0 %v45
  %2216 = vmatprep.subr.mxu0 %v48
  %2217 = vmatpush1.msra.mxu0 %v47
  %2218 = vmatprep.subr.mxu0 %v50
  %2219 = vmatpush1.msra.mxu0 %v49
  %2220 = vmatprep.subr.mxu0 %v52
  %2221 = vmatpush1.msra.mxu0 %v51
  %2222 = vmatprep.subr.mxu0 %v54
  %2223 = vmatpush1.msra.mxu0 %v53
  %2224 = vmatprep.subr.mxu0 %v56
  %2225 = vmatpush1.msra.mxu0 %v55
  %2226 = vmatprep.subr.mxu0 %v58
  %2227 = vmatpush1.msra.mxu0 %v57
  %2228 = vmatprep.subr.mxu0 %v60
  %2229 = vmatpush1.msra.mxu0 %v59
  %2230 = vmatprep.subr.mxu0 %v62
  %2231 = vmatpush1.msra.mxu0 %v61
  %2232 = vmatprep.subr.mxu0 %v64
  %2233 = vmatpush1.msra.mxu0 %v63
  %2234 = vmatprep.subr.mxu0 %v66
  %2235 = vmatpush1.msra.mxu0 %v65
  %2236 = vmatprep.subr.mxu0 %v68
  %2237 = vmatpush1.msra.mxu0 %v67
  %2238 = vmatprep.subr.mxu0 %v70
  %2239 = vmatpush1.msra.mxu0 %v69
  %2240 = vmatprep.subr.mxu0 %v72
  %2241 = vmatpush1.msra.mxu0 %v71
  %2242 = vmatprep.subr.mxu0 %v74
  %2243 = vmatpush1.msra.mxu0 %v73
  %2244 = vmatprep.subr.mxu0 %v76
  %2245 = vmatpush1.msra.mxu0 %v75
  %2246 = vmatprep.subr.mxu0 %v78
  %2247 = vmatpush1.msra.mxu0 %v77
  %2248 = vmatprep.subr.mxu0 %v80
  %2249 = vmatpush1.msra.mxu0 %v79
  %2250 = vmatprep.subr.mxu0 %v82
  %2251 = vmatpush1.msra.mxu0 %v81
  %2252 = vmatprep.subr.mxu0 %v84
  %2253 = vmatpush1.msra.mxu0 %v83
  %2254 = vmatprep.subr.mxu0 %v86
  %2255 = vmatpush1.msra.mxu0 %v85
  %2256 = vmatprep.subr.mxu0 %v88
  %2257 = vmatpush1.msra.mxu0 %v87
  %2258 = vmatprep.subr.mxu0 %v90
  %2259 = vmatpush1.msra.mxu0 %v89
  %2260 = vmatprep.subr.mxu0 %v92
  %2261 = vmatpush1.msra.mxu0 %v91
  %2262 = vmatprep.subr.mxu0 %v94
  %2263 = vmatpush1.msra.mxu0 %v93
  %2264 = vmatprep.subr.mxu0 %v96
  %2265 = vmatpush1.msra.mxu0 %v95
  %2266 = vmatprep.mubr.f32.mxu0 %v2193
  %2267 = vmatmul.mubr.f32.gmra.mrb[0].mxu0 %v2192
  %v2268 = vpop.f32.mrb[0].mxu0
  %v2269 = vadd.f32 %v238, %v2268
  %v2270 = vpop.f32.mrb[0].mxu0
  %v2271 = vadd.f32 %v242, %v2270
  %2272 = vdwg.mxu0
  %2273 = vmatprep.subr.mxu0 %v98
  %2274 = vmatpush1.msra.mxu0 %v97
  %2275 = vmatprep.subr.mxu0 %v100
  %2276 = vmatpush1.msra.mxu0 %v99
  %2277 = vmatprep.subr.mxu0 %v102
  %2278 = vmatpush1.msra.mxu0 %v101
  %2279 = vmatprep.subr.mxu0 %v104
  %2280 = vmatpush1.msra.mxu0 %v103
  %2281 = vmatprep.subr.mxu0 %v106
  %2282 = vmatpush1.msra.mxu0 %v105
  %2283 = vmatprep.subr.mxu0 %v108
  %2284 = vmatpush1.msra.mxu0 %v107
  %2285 = vmatprep.subr.mxu0 %v110
  %2286 = vmatpush1.msra.mxu0 %v109
  %2287 = vmatprep.subr.mxu0 %v112
  %2288 = vmatpush1.msra.mxu0 %v111
  %2289 = vmatprep.subr.mxu0 %v114
  %2290 = vmatpush1.msra.mxu0 %v113
  %2291 = vmatprep.subr.mxu0 %v116
  %2292 = vmatpush1.msra.mxu0 %v115
  %2293 = vmatprep.subr.mxu0 %v118
  %2294 = vmatpush1.msra.mxu0 %v117
  %2295 = vmatprep.subr.mxu0 %v120
  %2296 = vmatpush1.msra.mxu0 %v119
  %2297 = vmatprep.subr.mxu0 %v122
  %2298 = vmatpush1.msra.mxu0 %v121
  %2299 = vmatprep.subr.mxu0 %v124
  %2300 = vmatpush1.msra.mxu0 %v123
  %2301 = vmatprep.subr.mxu0 %v126
  %2302 = vmatpush1.msra.mxu0 %v125
  %2303 = vmatprep.subr.mxu0 %v128
  %2304 = vmatpush1.msra.mxu0 %v127
  %2305 = vmatprep.subr.mxu0 %v130
  %2306 = vmatpush1.msra.mxu0 %v129
  %2307 = vmatprep.subr.mxu0 %v132
  %2308 = vmatpush1.msra.mxu0 %v131
  %2309 = vmatprep.subr.mxu0 %v134
  %2310 = vmatpush1.msra.mxu0 %v133
  %2311 = vmatprep.subr.mxu0 %v136
  %2312 = vmatpush1.msra.mxu0 %v135
  %2313 = vmatprep.subr.mxu0 %v138
  %2314 = vmatpush1.msra.mxu0 %v137
  %2315 = vmatprep.subr.mxu0 %v140
  %2316 = vmatpush1.msra.mxu0 %v139
  %2317 = vmatprep.subr.mxu0 %v142
  %2318 = vmatpush1.msra.mxu0 %v141
  %2319 = vmatprep.subr.mxu0 %v144
  %2320 = vmatpush1.msra.mxu0 %v143
  %2321 = vmatprep.subr.mxu0 %v146
  %2322 = vmatpush1.msra.mxu0 %v145
  %2323 = vmatprep.subr.mxu0 %v148
  %2324 = vmatpush1.msra.mxu0 %v147
  %2325 = vmatprep.subr.mxu0 %v150
  %2326 = vmatpush1.msra.mxu0 %v149
  %2327 = vmatprep.subr.mxu0 %v152
  %2328 = vmatpush1.msra.mxu0 %v151
  %2329 = vmatprep.subr.mxu0 %v154
  %2330 = vmatpush1.msra.mxu0 %v153
  %2331 = vmatprep.subr.mxu0 %v156
  %2332 = vmatpush1.msra.mxu0 %v155
  %2333 = vmatprep.subr.mxu0 %v158
  %2334 = vmatpush1.msra.mxu0 %v157
  %2335 = vmatprep.subr.mxu0 %v160
  %2336 = vmatpush1.msra.mxu0 %v159
  %2337 = vmatprep.mubr.f32.mxu0 %v2195
  %2338 = vmatmul.mubr.f32.gmra.mrb[0].mxu0 %v2194
  %v2339 = vpop.f32.mrb[0].mxu0
  %v2340 = vadd.f32 %v2269, %v2339
  %v2341 = vpop.f32.mrb[0].mxu0
  %v2342 = vadd.f32 %v2271, %v2341
  %2343 = vdwg.mxu0
  %2344 = vmatprep.subr.mxu0 %v162
  %2345 = vmatpush1.msra.mxu0 %v161
  %2346 = vmatprep.subr.mxu0 %v164
  %2347 = vmatpush1.msra.mxu0 %v163
  %2348 = vmatprep.subr.mxu0 %v166
  %2349 = vmatpush1.msra.mxu0 %v165
  %2350 = vmatprep.subr.mxu0 %v168
  %2351 = vmatpush1.msra.mxu0 %v167
  %2352 = vmatprep.subr.mxu0 %v170
  %2353 = vmatpush1.msra.mxu0 %v169
  %2354 = vmatprep.subr.mxu0 %v172
  %2355 = vmatpush1.msra.mxu0 %v171
  %2356 = vmatprep.subr.mxu0 %v174
  %2357 = vmatpush1.msra.mxu0 %v173
  %2358 = vmatprep.subr.mxu0 %v176
  %2359 = vmatpush1.msra.mxu0 %v175
  %2360 = vmatprep.subr.mxu0 %v178
  %2361 = vmatpush1.msra.mxu0 %v177
  %2362 = vmatprep.subr.mxu0 %v180
  %2363 = vmatpush1.msra.mxu0 %v179
  %2364 = vmatprep.subr.mxu0 %v182
  %2365 = vmatpush1.msra.mxu0 %v181
  %2366 = vmatprep.subr.mxu0 %v184
  %2367 = vmatpush1.msra.mxu0 %v183
  %2368 = vmatprep.subr.mxu0 %v186
  %2369 = vmatpush1.msra.mxu0 %v185
  %2370 = vmatprep.subr.mxu0 %v188
  %2371 = vmatpush1.msra.mxu0 %v187
  %2372 = vmatprep.subr.mxu0 %v190
  %2373 = vmatpush1.msra.mxu0 %v189
  %2374 = vmatprep.subr.mxu0 %v192
  %2375 = vmatpush1.msra.mxu0 %v191
  %2376 = vmatprep.subr.mxu0 %v194
  %2377 = vmatpush1.msra.mxu0 %v193
  %2378 = vmatprep.subr.mxu0 %v196
  %2379 = vmatpush1.msra.mxu0 %v195
  %2380 = vmatprep.subr.mxu0 %v198
  %2381 = vmatpush1.msra.mxu0 %v197
  %2382 = vmatprep.subr.mxu0 %v200
  %2383 = vmatpush1.msra.mxu0 %v199
  %2384 = vmatprep.subr.mxu0 %v202
  %2385 = vmatpush1.msra.mxu0 %v201
  %2386 = vmatprep.subr.mxu0 %v204
  %2387 = vmatpush1.msra.mxu0 %v203
  %2388 = vmatprep.subr.mxu0 %v206
  %2389 = vmatpush1.msra.mxu0 %v205
  %2390 = vmatprep.subr.mxu0 %v208
  %2391 = vmatpush1.msra.mxu0 %v207
  %2392 = vmatprep.subr.mxu0 %v210
  %2393 = vmatpush1.msra.mxu0 %v209
  %2394 = vmatprep.subr.mxu0 %v212
  %2395 = vmatpush1.msra.mxu0 %v211
  %2396 = vmatprep.subr.mxu0 %v214
  %2397 = vmatpush1.msra.mxu0 %v213
  %2398 = vmatprep.subr.mxu0 %v216
  %2399 = vmatpush1.msra.mxu0 %v215
  %2400 = vmatprep.subr.mxu0 %v218
  %2401 = vmatpush1.msra.mxu0 %v217
  %2402 = vmatprep.subr.mxu0 %v220
  %2403 = vmatpush1.msra.mxu0 %v219
  %2404 = vmatprep.subr.mxu0 %v222
  %2405 = vmatpush1.msra.mxu0 %v221
  %2406 = vmatprep.subr.mxu0 %v224
  %2407 = vmatpush1.msra.mxu0 %v223
  %2408 = vmatprep.mubr.f32.mxu0 %v2197
  %2409 = vmatmul.mubr.f32.gmra.mrb[0].mxu0 %v2196
  %v2410 = vpop.f32.mrb[0].mxu0
  %v2411 = vadd.f32 %v2340, %v2410
  %v2412 = vpop.f32.mrb[0].mxu0
  %v2413 = vadd.f32 %v2342, %v2412
  %2414 = vdwg.mxu0
  %2415 = vmatprep.subr.mxu0 %v226
  %2416 = vmatpush1.msra.mxu0 %v225
  %2417 = vmatprep.subr.mxu0 %v228
  %2418 = vmatpush1.msra.mxu0 %v227
  %2419 = vmatprep.subr.mxu0 %v230
  %2420 = vmatpush1.msra.mxu0 %v229
  %2421 = vmatprep.subr.mxu0 %v232
  %2422 = vmatpush1.msra.mxu0 %v231
  %2423 = vmatprep.subr.mxu0 0.0
  %2424 = vmatpush1.msra.mxu0 0.0
  %2425 = vmatprep.subr.mxu0 0.0
  %2426 = vmatpush1.msra.mxu0 0.0
  %2427 = vmatprep.subr.mxu0 0.0
  %2428 = vmatpush1.msra.mxu0 0.0
  %2429 = vmatprep.subr.mxu0 0.0
  %2430 = vmatpush1.msra.mxu0 0.0
  %2431 = vmatprep.subr.mxu0 0.0
  %2432 = vmatpush1.msra.mxu0 0.0
  %2433 = vmatprep.subr.mxu0 0.0
  %2434 = vmatpush1.msra.mxu0 0.0
  %2435 = vmatprep.subr.mxu0 0.0
  %2436 = vmatpush1.msra.mxu0 0.0
  %2437 = vmatprep.subr.mxu0 0.0
  %2438 = vmatpush1.msra.mxu0 0.0
  %2439 = vmatprep.subr.mxu0 0.0
  %2440 = vmatpush1.msra.mxu0 0.0
  %2441 = vmatprep.subr.mxu0 0.0
  %2442 = vmatpush1.msra.mxu0 0.0
  %2443 = vmatprep.subr.mxu0 0.0
  %2444 = vmatpush1.msra.mxu0 0.0
  %2445 = vmatprep.subr.mxu0 0.0
  %2446 = vmatpush1.msra.mxu0 0.0
  %2447 = vmatprep.subr.mxu0 0.0
  %2448 = vmatpush1.msra.mxu0 0.0
  %2449 = vmatprep.subr.mxu0 0.0
  %2450 = vmatpush1.msra.mxu0 0.0
  %2451 = vmatprep.subr.mxu0 0.0
  %2452 = vmatpush1.msra.mxu0 0.0
  %2453 = vmatprep.subr.mxu0 0.0
  %2454 = vmatpush1.msra.mxu0 0.0
  %2455 = vmatprep.subr.mxu0 0.0
  %2456 = vmatpush1.msra.mxu0 0.0
  %2457 = vmatprep.subr.mxu0 0.0
  %2458 = vmatpush1.msra.mxu0 0.0
  %2459 = vmatprep.subr.mxu0 0.0
  %2460 = vmatpush1.msra.mxu0 0.0
  %2461 = vmatprep.subr.mxu0 0.0
  %2462 = vmatpush1.msra.mxu0 0.0
  %2463 = vmatprep.subr.mxu0 0.0
  %2464 = vmatpush1.msra.mxu0 0.0
  %2465 = vmatprep.subr.mxu0 0.0
  %2466 = vmatpush1.msra.mxu0 0.0
  %2467 = vmatprep.subr.mxu0 0.0
  %2468 = vmatpush1.msra.mxu0 0.0
  %2469 = vmatprep.subr.mxu0 0.0
  %2470 = vmatpush1.msra.mxu0 0.0
  %2471 = vmatprep.subr.mxu0 0.0
  %2472 = vmatpush1.msra.mxu0 0.0
  %2473 = vmatprep.subr.mxu0 0.0
  %2474 = vmatpush1.msra.mxu0 0.0
  %2475 = vmatprep.subr.mxu0 0.0
  %2476 = vmatpush1.msra.mxu0 0.0
  %2477 = vmatprep.subr.mxu0 0.0
  %2478 = vmatpush1.msra.mxu0 0.0
  %2479 = vmatprep.mubr.f32.mxu0 0.0
  %2480 = vmatmul.mubr.f32.gmra.mrb[0].mxu0 %v2200
  %v2481 = vpop.f32.mrb[0].mxu0
  %v2482 = vadd.f32 %v2411, %v2481
  %v2483 = vpop.f32.mrb[0].mxu0
  %v2484 = vadd.f32 %v2413, %v2483
  %2485 = vdwg.mxu0
  %v2486 = vmax.f32 %v2482, 0.0
  %v2487 = vmax.f32 %v2484, 0.0
  %2489 = vrot.lane.b32.xlu0 %v2486, 64
  %v2490 = vpop.permute.xlu0 %2489
  %v2492 = vmax.f32 %v2486, %v2490
  %2494 = vrot.lane.b32.xlu0 %v2487, 64
  %v2495 = vpop.permute.xlu0 %2494
  %v2497 = vmax.f32 %v2487, %v2495
  %v2498 = vmax.f32 %v2492, %v2497
  %s2499 = scalar_lea.vmem %s3, 320
  %v2500 = vld [vmem:[%s2499] sm:$0xff]
  %v2501 = vld [vmem:[%s2499 + $0x8] sm:$0xff]
  %v2502 = vld [vmem:[%s2499 + $0x10] sm:$0xff]
  %v2503 = vld [vmem:[%s2499 + $0x18] sm:$0xff]
  %v2504 = vld [vmem:[%s2499 + $0x20] sm:$0xff]
  %v2505 = vld [vmem:[%s2499 + $0x28] sm:$0xff]
  %v2506 = vld [vmem:[%s2499 + $0x30] sm:$0xff]
  %v2507 = vld [vmem:[%s2499 + $0x38] sm:$0xff]
  %v2509 = vsel %vm871, %v2498, 0
  %2511 = vmatprep.subr.mxu0 0.0
  %2512 = vmatpush1.msra.mxu0 %v2500
  %2513 = vmatprep.subr.mxu0 0.0
  %2514 = vmatpush1.msra.mxu0 %v2501
  %2515 = vmatprep.subr.mxu0 0.0
  %2516 = vmatpush1.msra.mxu0 %v2502
  %2517 = vmatprep.subr.mxu0 0.0
  %2518 = vmatpush1.msra.mxu0 %v2503
  %2519 = vmatprep.subr.mxu0 0.0
  %2520 = vmatpush1.msra.mxu0 %v2504
  %2521 = vmatprep.subr.mxu0 0.0
  %2522 = vmatpush1.msra.mxu0 %v2505
  %2523 = vmatprep.subr.mxu0 0.0
  %2524 = vmatpush1.msra.mxu0 %v2506
  %2525 = vmatprep.subr.mxu0 0.0
  %2526 = vmatpush1.msra.mxu0 %v2507
  %2527 = vmatprep.subr.mxu0 0.0
  %2528 = vmatpush1.msra.mxu0 0.0
  %2529 = vmatprep.subr.mxu0 0.0
  %2530 = vmatpush1.msra.mxu0 0.0
  %2531 = vmatprep.subr.mxu0 0.0
  %2532 = vmatpush1.msra.mxu0 0.0
  %2533 = vmatprep.subr.mxu0 0.0
  %2534 = vmatpush1.msra.mxu0 0.0
  %2535 = vmatprep.subr.mxu0 0.0
  %2536 = vmatpush1.msra.mxu0 0.0
  %2537 = vmatprep.subr.mxu0 0.0
  %2538 = vmatpush1.msra.mxu0 0.0
  %2539 = vmatprep.subr.mxu0 0.0
  %2540 = vmatpush1.msra.mxu0 0.0
  %2541 = vmatprep.subr.mxu0 0.0
  %2542 = vmatpush1.msra.mxu0 0.0
  %2543 = vmatprep.subr.mxu0 0.0
  %2544 = vmatpush1.msra.mxu0 0.0
  %2545 = vmatprep.subr.mxu0 0.0
  %2546 = vmatpush1.msra.mxu0 0.0
  %2547 = vmatprep.subr.mxu0 0.0
  %2548 = vmatpush1.msra.mxu0 0.0
  %2549 = vmatprep.subr.mxu0 0.0
  %2550 = vmatpush1.msra.mxu0 0.0
  %2551 = vmatprep.subr.mxu0 0.0
  %2552 = vmatpush1.msra.mxu0 0.0
  %2553 = vmatprep.subr.mxu0 0.0
  %2554 = vmatpush1.msra.mxu0 0.0
  %2555 = vmatprep.subr.mxu0 0.0
  %2556 = vmatpush1.msra.mxu0 0.0
  %2557 = vmatprep.subr.mxu0 0.0
  %2558 = vmatpush1.msra.mxu0 0.0
  %2559 = vmatprep.subr.mxu0 0.0
  %2560 = vmatpush1.msra.mxu0 0.0
  %2561 = vmatprep.subr.mxu0 0.0
  %2562 = vmatpush1.msra.mxu0 0.0
  %2563 = vmatprep.subr.mxu0 0.0
  %2564 = vmatpush1.msra.mxu0 0.0
  %2565 = vmatprep.subr.mxu0 0.0
  %2566 = vmatpush1.msra.mxu0 0.0
  %2567 = vmatprep.subr.mxu0 0.0
  %2568 = vmatpush1.msra.mxu0 0.0
  %2569 = vmatprep.subr.mxu0 0.0
  %2570 = vmatpush1.msra.mxu0 0.0
  %2571 = vmatprep.subr.mxu0 0.0
  %2572 = vmatpush1.msra.mxu0 0.0
  %2573 = vmatprep.subr.mxu0 0.0
  %2574 = vmatpush1.msra.mxu0 0.0
  %2575 = vmatprep.mubr.f32.mxu0 0.0
  %2576 = vmatmul.mubr.f32.gmra.mrb[0].mxu0 %v2509
  %v2577 = vpop.f32.mrb[0].mxu0
  %v2578 = vadd.f32 0.0, %v2577
  %v2579 = vpop.f32.mrb[0].mxu0
  %2580 = vdwg.mxu0
  %v2581 = vadd.f32 %v2190, %v2578
  %s2582 = scalar_lea.vmem %s0, 336
  %v2583 = vld [vmem:[%s2582] sm:$0xff]
  %v2584 = vld [vmem:[%s2582 + $0x8] sm:$0xff]
  %v2585 = vld [vmem:[%s2582 + $0x10] sm:$0xff]
  %v2586 = vld [vmem:[%s2582 + $0x18] sm:$0xff]
  %v2587 = vld [vmem:[%s2582 + $0x20] sm:$0xff]
  %v2588 = vld [vmem:[%s2582 + $0x28] sm:$0xff]
  %v2589 = vld [vmem:[%s2582 + $0x30] sm:$0xff]
  %v2591 = vsel %vm245, %v2589, 0
  %2593 = vmatprep.subr.mxu0 %v34
  %2594 = vmatpush1.msra.mxu0 %v33
  %2595 = vmatprep.subr.mxu0 %v36
  %2596 = vmatpush1.msra.mxu0 %v35
  %2597 = vmatprep.subr.mxu0 %v38
  %2598 = vmatpush1.msra.mxu0 %v37
  %2599 = vmatprep.subr.mxu0 %v40
  %2600 = vmatpush1.msra.mxu0 %v39
  %2601 = vmatprep.subr.mxu0 %v42
  %2602 = vmatpush1.msra.mxu0 %v41
  %2603 = vmatprep.subr.mxu0 %v44
  %2604 = vmatpush1.msra.mxu0 %v43
  %2605 = vmatprep.subr.mxu0 %v46
  %2606 = vmatpush1.msra.mxu0 %v45
  %2607 = vmatprep.subr.mxu0 %v48
  %2608 = vmatpush1.msra.mxu0 %v47
  %2609 = vmatprep.subr.mxu0 %v50
  %2610 = vmatpush1.msra.mxu0 %v49
  %2611 = vmatprep.subr.mxu0 %v52
  %2612 = vmatpush1.msra.mxu0 %v51
  %2613 = vmatprep.subr.mxu0 %v54
  %2614 = vmatpush1.msra.mxu0 %v53
  %2615 = vmatprep.subr.mxu0 %v56
  %2616 = vmatpush1.msra.mxu0 %v55
  %2617 = vmatprep.subr.mxu0 %v58
  %2618 = vmatpush1.msra.mxu0 %v57
  %2619 = vmatprep.subr.mxu0 %v60
  %2620 = vmatpush1.msra.mxu0 %v59
  %2621 = vmatprep.subr.mxu0 %v62
  %2622 = vmatpush1.msra.mxu0 %v61
  %2623 = vmatprep.subr.mxu0 %v64
  %2624 = vmatpush1.msra.mxu0 %v63
  %2625 = vmatprep.subr.mxu0 %v66
  %2626 = vmatpush1.msra.mxu0 %v65
  %2627 = vmatprep.subr.mxu0 %v68
  %2628 = vmatpush1.msra.mxu0 %v67
  %2629 = vmatprep.subr.mxu0 %v70
  %2630 = vmatpush1.msra.mxu0 %v69
  %2631 = vmatprep.subr.mxu0 %v72
  %2632 = vmatpush1.msra.mxu0 %v71
  %2633 = vmatprep.subr.mxu0 %v74
  %2634 = vmatpush1.msra.mxu0 %v73
  %2635 = vmatprep.subr.mxu0 %v76
  %2636 = vmatpush1.msra.mxu0 %v75
  %2637 = vmatprep.subr.mxu0 %v78
  %2638 = vmatpush1.msra.mxu0 %v77
  %2639 = vmatprep.subr.mxu0 %v80
  %2640 = vmatpush1.msra.mxu0 %v79
  %2641 = vmatprep.subr.mxu0 %v82
  %2642 = vmatpush1.msra.mxu0 %v81
  %2643 = vmatprep.subr.mxu0 %v84
  %2644 = vmatpush1.msra.mxu0 %v83
  %2645 = vmatprep.subr.mxu0 %v86
  %2646 = vmatpush1.msra.mxu0 %v85
  %2647 = vmatprep.subr.mxu0 %v88
  %2648 = vmatpush1.msra.mxu0 %v87
  %2649 = vmatprep.subr.mxu0 %v90
  %2650 = vmatpush1.msra.mxu0 %v89
  %2651 = vmatprep.subr.mxu0 %v92
  %2652 = vmatpush1.msra.mxu0 %v91
  %2653 = vmatprep.subr.mxu0 %v94
  %2654 = vmatpush1.msra.mxu0 %v93
  %2655 = vmatprep.subr.mxu0 %v96
  %2656 = vmatpush1.msra.mxu0 %v95
  %2657 = vmatprep.mubr.f32.mxu0 %v2584
  %2658 = vmatmul.mubr.f32.gmra.mrb[0].mxu0 %v2583
  %v2659 = vpop.f32.mrb[0].mxu0
  %v2660 = vadd.f32 %v238, %v2659
  %v2661 = vpop.f32.mrb[0].mxu0
  %v2662 = vadd.f32 %v242, %v2661
  %2663 = vdwg.mxu0
  %2664 = vmatprep.subr.mxu0 %v98
  %2665 = vmatpush1.msra.mxu0 %v97
  %2666 = vmatprep.subr.mxu0 %v100
  %2667 = vmatpush1.msra.mxu0 %v99
  %2668 = vmatprep.subr.mxu0 %v102
  %2669 = vmatpush1.msra.mxu0 %v101
  %2670 = vmatprep.subr.mxu0 %v104
  %2671 = vmatpush1.msra.mxu0 %v103
  %2672 = vmatprep.subr.mxu0 %v106
  %2673 = vmatpush1.msra.mxu0 %v105
  %2674 = vmatprep.subr.mxu0 %v108
  %2675 = vmatpush1.msra.mxu0 %v107
  %2676 = vmatprep.subr.mxu0 %v110
  %2677 = vmatpush1.msra.mxu0 %v109
  %2678 = vmatprep.subr.mxu0 %v112
  %2679 = vmatpush1.msra.mxu0 %v111
  %2680 = vmatprep.subr.mxu0 %v114
  %2681 = vmatpush1.msra.mxu0 %v113
  %2682 = vmatprep.subr.mxu0 %v116
  %2683 = vmatpush1.msra.mxu0 %v115
  %2684 = vmatprep.subr.mxu0 %v118
  %2685 = vmatpush1.msra.mxu0 %v117
  %2686 = vmatprep.subr.mxu0 %v120
  %2687 = vmatpush1.msra.mxu0 %v119
  %2688 = vmatprep.subr.mxu0 %v122
  %2689 = vmatpush1.msra.mxu0 %v121
  %2690 = vmatprep.subr.mxu0 %v124
  %2691 = vmatpush1.msra.mxu0 %v123
  %2692 = vmatprep.subr.mxu0 %v126
  %2693 = vmatpush1.msra.mxu0 %v125
  %2694 = vmatprep.subr.mxu0 %v128
  %2695 = vmatpush1.msra.mxu0 %v127
  %2696 = vmatprep.subr.mxu0 %v130
  %2697 = vmatpush1.msra.mxu0 %v129
  %2698 = vmatprep.subr.mxu0 %v132
  %2699 = vmatpush1.msra.mxu0 %v131
  %2700 = vmatprep.subr.mxu0 %v134
  %2701 = vmatpush1.msra.mxu0 %v133
  %2702 = vmatprep.subr.mxu0 %v136
  %2703 = vmatpush1.msra.mxu0 %v135
  %2704 = vmatprep.subr.mxu0 %v138
  %2705 = vmatpush1.msra.mxu0 %v137
  %2706 = vmatprep.subr.mxu0 %v140
  %2707 = vmatpush1.msra.mxu0 %v139
  %2708 = vmatprep.subr.mxu0 %v142
  %2709 = vmatpush1.msra.mxu0 %v141
  %2710 = vmatprep.subr.mxu0 %v144
  %2711 = vmatpush1.msra.mxu0 %v143
  %2712 = vmatprep.subr.mxu0 %v146
  %2713 = vmatpush1.msra.mxu0 %v145
  %2714 = vmatprep.subr.mxu0 %v148
  %2715 = vmatpush1.msra.mxu0 %v147
  %2716 = vmatprep.subr.mxu0 %v150
  %2717 = vmatpush1.msra.mxu0 %v149
  %2718 = vmatprep.subr.mxu0 %v152
  %2719 = vmatpush1.msra.mxu0 %v151
  %2720 = vmatprep.subr.mxu0 %v154
  %2721 = vmatpush1.msra.mxu0 %v153
  %2722 = vmatprep.subr.mxu0 %v156
  %2723 = vmatpush1.msra.mxu0 %v155
  %2724 = vmatprep.subr.mxu0 %v158
  %2725 = vmatpush1.msra.mxu0 %v157
  %2726 = vmatprep.subr.mxu0 %v160
  %2727 = vmatpush1.msra.mxu0 %v159
  %2728 = vmatprep.mubr.f32.mxu0 %v2586
  %2729 = vmatmul.mubr.f32.gmra.mrb[0].mxu0 %v2585
  %v2730 = vpop.f32.mrb[0].mxu0
  %v2731 = vadd.f32 %v2660, %v2730
  %v2732 = vpop.f32.mrb[0].mxu0
  %v2733 = vadd.f32 %v2662, %v2732
  %2734 = vdwg.mxu0
  %2735 = vmatprep.subr.mxu0 %v162
  %2736 = vmatpush1.msra.mxu0 %v161
  %2737 = vmatprep.subr.mxu0 %v164
  %2738 = vmatpush1.msra.mxu0 %v163
  %2739 = vmatprep.subr.mxu0 %v166
  %2740 = vmatpush1.msra.mxu0 %v165
  %2741 = vmatprep.subr.mxu0 %v168
  %2742 = vmatpush1.msra.mxu0 %v167
  %2743 = vmatprep.subr.mxu0 %v170
  %2744 = vmatpush1.msra.mxu0 %v169
  %2745 = vmatprep.subr.mxu0 %v172
  %2746 = vmatpush1.msra.mxu0 %v171
  %2747 = vmatprep.subr.mxu0 %v174
  %2748 = vmatpush1.msra.mxu0 %v173
  %2749 = vmatprep.subr.mxu0 %v176
  %2750 = vmatpush1.msra.mxu0 %v175
  %2751 = vmatprep.subr.mxu0 %v178
  %2752 = vmatpush1.msra.mxu0 %v177
  %2753 = vmatprep.subr.mxu0 %v180
  %2754 = vmatpush1.msra.mxu0 %v179
  %2755 = vmatprep.subr.mxu0 %v182
  %2756 = vmatpush1.msra.mxu0 %v181
  %2757 = vmatprep.subr.mxu0 %v184
  %2758 = vmatpush1.msra.mxu0 %v183
  %2759 = vmatprep.subr.mxu0 %v186
  %2760 = vmatpush1.msra.mxu0 %v185
  %2761 = vmatprep.subr.mxu0 %v188
  %2762 = vmatpush1.msra.mxu0 %v187
  %2763 = vmatprep.subr.mxu0 %v190
  %2764 = vmatpush1.msra.mxu0 %v189
  %2765 = vmatprep.subr.mxu0 %v192
  %2766 = vmatpush1.msra.mxu0 %v191
  %2767 = vmatprep.subr.mxu0 %v194
  %2768 = vmatpush1.msra.mxu0 %v193
  %2769 = vmatprep.subr.mxu0 %v196
  %2770 = vmatpush1.msra.mxu0 %v195
  %2771 = vmatprep.subr.mxu0 %v198
  %2772 = vmatpush1.msra.mxu0 %v197
  %2773 = vmatprep.subr.mxu0 %v200
  %2774 = vmatpush1.msra.mxu0 %v199
  %2775 = vmatprep.subr.mxu0 %v202
  %2776 = vmatpush1.msra.mxu0 %v201
  %2777 = vmatprep.subr.mxu0 %v204
  %2778 = vmatpush1.msra.mxu0 %v203
  %2779 = vmatprep.subr.mxu0 %v206
  %2780 = vmatpush1.msra.mxu0 %v205
  %2781 = vmatprep.subr.mxu0 %v208
  %2782 = vmatpush1.msra.mxu0 %v207
  %2783 = vmatprep.subr.mxu0 %v210
  %2784 = vmatpush1.msra.mxu0 %v209
  %2785 = vmatprep.subr.mxu0 %v212
  %2786 = vmatpush1.msra.mxu0 %v211
  %2787 = vmatprep.subr.mxu0 %v214
  %2788 = vmatpush1.msra.mxu0 %v213
  %2789 = vmatprep.subr.mxu0 %v216
  %2790 = vmatpush1.msra.mxu0 %v215
  %2791 = vmatprep.subr.mxu0 %v218
  %2792 = vmatpush1.msra.mxu0 %v217
  %2793 = vmatprep.subr.mxu0 %v220
  %2794 = vmatpush1.msra.mxu0 %v219
  %2795 = vmatprep.subr.mxu0 %v222
  %2796 = vmatpush1.msra.mxu0 %v221
  %2797 = vmatprep.subr.mxu0 %v224
  %2798 = vmatpush1.msra.mxu0 %v223
  %2799 = vmatprep.mubr.f32.mxu0 %v2588
  %2800 = vmatmul.mubr.f32.gmra.mrb[0].mxu0 %v2587
  %v2801 = vpop.f32.mrb[0].mxu0
  %v2802 = vadd.f32 %v2731, %v2801
  %v2803 = vpop.f32.mrb[0].mxu0
  %v2804 = vadd.f32 %v2733, %v2803
  %2805 = vdwg.mxu0
  %2806 = vmatprep.subr.mxu0 %v226
  %2807 = vmatpush1.msra.mxu0 %v225
  %2808 = vmatprep.subr.mxu0 %v228
  %2809 = vmatpush1.msra.mxu0 %v227
  %2810 = vmatprep.subr.mxu0 %v230
  %2811 = vmatpush1.msra.mxu0 %v229
  %2812 = vmatprep.subr.mxu0 %v232
  %2813 = vmatpush1.msra.mxu0 %v231
  %2814 = vmatprep.subr.mxu0 0.0
  %2815 = vmatpush1.msra.mxu0 0.0
  %2816 = vmatprep.subr.mxu0 0.0
  %2817 = vmatpush1.msra.mxu0 0.0
  %2818 = vmatprep.subr.mxu0 0.0
  %2819 = vmatpush1.msra.mxu0 0.0
  %2820 = vmatprep.subr.mxu0 0.0
  %2821 = vmatpush1.msra.mxu0 0.0
  %2822 = vmatprep.subr.mxu0 0.0
  %2823 = vmatpush1.msra.mxu0 0.0
  %2824 = vmatprep.subr.mxu0 0.0
  %2825 = vmatpush1.msra.mxu0 0.0
  %2826 = vmatprep.subr.mxu0 0.0
  %2827 = vmatpush1.msra.mxu0 0.0
  %2828 = vmatprep.subr.mxu0 0.0
  %2829 = vmatpush1.msra.mxu0 0.0
  %2830 = vmatprep.subr.mxu0 0.0
  %2831 = vmatpush1.msra.mxu0 0.0
  %2832 = vmatprep.subr.mxu0 0.0
  %2833 = vmatpush1.msra.mxu0 0.0
  %2834 = vmatprep.subr.mxu0 0.0
  %2835 = vmatpush1.msra.mxu0 0.0
  %2836 = vmatprep.subr.mxu0 0.0
  %2837 = vmatpush1.msra.mxu0 0.0
  %2838 = vmatprep.subr.mxu0 0.0
  %2839 = vmatpush1.msra.mxu0 0.0
  %2840 = vmatprep.subr.mxu0 0.0
  %2841 = vmatpush1.msra.mxu0 0.0
  %2842 = vmatprep.subr.mxu0 0.0
  %2843 = vmatpush1.msra.mxu0 0.0
  %2844 = vmatprep.subr.mxu0 0.0
  %2845 = vmatpush1.msra.mxu0 0.0
  %2846 = vmatprep.subr.mxu0 0.0
  %2847 = vmatpush1.msra.mxu0 0.0
  %2848 = vmatprep.subr.mxu0 0.0
  %2849 = vmatpush1.msra.mxu0 0.0
  %2850 = vmatprep.subr.mxu0 0.0
  %2851 = vmatpush1.msra.mxu0 0.0
  %2852 = vmatprep.subr.mxu0 0.0
  %2853 = vmatpush1.msra.mxu0 0.0
  %2854 = vmatprep.subr.mxu0 0.0
  %2855 = vmatpush1.msra.mxu0 0.0
  %2856 = vmatprep.subr.mxu0 0.0
  %2857 = vmatpush1.msra.mxu0 0.0
  %2858 = vmatprep.subr.mxu0 0.0
  %2859 = vmatpush1.msra.mxu0 0.0
  %2860 = vmatprep.subr.mxu0 0.0
  %2861 = vmatpush1.msra.mxu0 0.0
  %2862 = vmatprep.subr.mxu0 0.0
  %2863 = vmatpush1.msra.mxu0 0.0
  %2864 = vmatprep.subr.mxu0 0.0
  %2865 = vmatpush1.msra.mxu0 0.0
  %2866 = vmatprep.subr.mxu0 0.0
  %2867 = vmatpush1.msra.mxu0 0.0
  %2868 = vmatprep.subr.mxu0 0.0
  %2869 = vmatpush1.msra.mxu0 0.0
  %2870 = vmatprep.mubr.f32.mxu0 0.0
  %2871 = vmatmul.mubr.f32.gmra.mrb[0].mxu0 %v2591
  %v2872 = vpop.f32.mrb[0].mxu0
  %v2873 = vadd.f32 %v2802, %v2872
  %v2874 = vpop.f32.mrb[0].mxu0
  %v2875 = vadd.f32 %v2804, %v2874
  %2876 = vdwg.mxu0
  %v2877 = vmax.f32 %v2873, 0.0
  %v2878 = vmax.f32 %v2875, 0.0
  %2880 = vrot.lane.b32.xlu0 %v2877, 64
  %v2881 = vpop.permute.xlu0 %2880
  %v2883 = vmax.f32 %v2877, %v2881
  %2885 = vrot.lane.b32.xlu0 %v2878, 64
  %v2886 = vpop.permute.xlu0 %2885
  %v2888 = vmax.f32 %v2878, %v2886
  %v2889 = vmax.f32 %v2883, %v2888
  %s2890 = scalar_lea.vmem %s3, 384
  %v2891 = vld [vmem:[%s2890] sm:$0xff]
  %v2892 = vld [vmem:[%s2890 + $0x8] sm:$0xff]
  %v2893 = vld [vmem:[%s2890 + $0x10] sm:$0xff]
  %v2894 = vld [vmem:[%s2890 + $0x18] sm:$0xff]
  %v2895 = vld [vmem:[%s2890 + $0x20] sm:$0xff]
  %v2896 = vld [vmem:[%s2890 + $0x28] sm:$0xff]
  %v2897 = vld [vmem:[%s2890 + $0x30] sm:$0xff]
  %v2898 = vld [vmem:[%s2890 + $0x38] sm:$0xff]
  %v2900 = vsel %vm871, %v2889, 0
  %2902 = vmatprep.subr.mxu0 0.0
  %2903 = vmatpush1.msra.mxu0 %v2891
  %2904 = vmatprep.subr.mxu0 0.0
  %2905 = vmatpush1.msra.mxu0 %v2892
  %2906 = vmatprep.subr.mxu0 0.0
  %2907 = vmatpush1.msra.mxu0 %v2893
  %2908 = vmatprep.subr.mxu0 0.0
  %2909 = vmatpush1.msra.mxu0 %v2894
  %2910 = vmatprep.subr.mxu0 0.0
  %2911 = vmatpush1.msra.mxu0 %v2895
  %2912 = vmatprep.subr.mxu0 0.0
  %2913 = vmatpush1.msra.mxu0 %v2896
  %2914 = vmatprep.subr.mxu0 0.0
  %2915 = vmatpush1.msra.mxu0 %v2897
  %2916 = vmatprep.subr.mxu0 0.0
  %2917 = vmatpush1.msra.mxu0 %v2898
  %2918 = vmatprep.subr.mxu0 0.0
  %2919 = vmatpush1.msra.mxu0 0.0
  %2920 = vmatprep.subr.mxu0 0.0
  %2921 = vmatpush1.msra.mxu0 0.0
  %2922 = vmatprep.subr.mxu0 0.0
  %2923 = vmatpush1.msra.mxu0 0.0
  %2924 = vmatprep.subr.mxu0 0.0
  %2925 = vmatpush1.msra.mxu0 0.0
  %2926 = vmatprep.subr.mxu0 0.0
  %2927 = vmatpush1.msra.mxu0 0.0
  %2928 = vmatprep.subr.mxu0 0.0
  %2929 = vmatpush1.msra.mxu0 0.0
  %2930 = vmatprep.subr.mxu0 0.0
  %2931 = vmatpush1.msra.mxu0 0.0
  %2932 = vmatprep.subr.mxu0 0.0
  %2933 = vmatpush1.msra.mxu0 0.0
  %2934 = vmatprep.subr.mxu0 0.0
  %2935 = vmatpush1.msra.mxu0 0.0
  %2936 = vmatprep.subr.mxu0 0.0
  %2937 = vmatpush1.msra.mxu0 0.0
  %2938 = vmatprep.subr.mxu0 0.0
  %2939 = vmatpush1.msra.mxu0 0.0
  %2940 = vmatprep.subr.mxu0 0.0
  %2941 = vmatpush1.msra.mxu0 0.0
  %2942 = vmatprep.subr.mxu0 0.0
  %2943 = vmatpush1.msra.mxu0 0.0
  %2944 = vmatprep.subr.mxu0 0.0
  %2945 = vmatpush1.msra.mxu0 0.0
  %2946 = vmatprep.subr.mxu0 0.0
  %2947 = vmatpush1.msra.mxu0 0.0
  %2948 = vmatprep.subr.mxu0 0.0
  %2949 = vmatpush1.msra.mxu0 0.0
  %2950 = vmatprep.subr.mxu0 0.0
  %2951 = vmatpush1.msra.mxu0 0.0
  %2952 = vmatprep.subr.mxu0 0.0
  %2953 = vmatpush1.msra.mxu0 0.0
  %2954 = vmatprep.subr.mxu0 0.0
  %2955 = vmatpush1.msra.mxu0 0.0
  %2956 = vmatprep.subr.mxu0 0.0
  %2957 = vmatpush1.msra.mxu0 0.0
  %2958 = vmatprep.subr.mxu0 0.0
  %2959 = vmatpush1.msra.mxu0 0.0
  %2960 = vmatprep.subr.mxu0 0.0
  %2961 = vmatpush1.msra.mxu0 0.0
  %2962 = vmatprep.subr.mxu0 0.0
  %2963 = vmatpush1.msra.mxu0 0.0
  %2964 = vmatprep.subr.mxu0 0.0
  %2965 = vmatpush1.msra.mxu0 0.0
  %2966 = vmatprep.mubr.f32.mxu0 0.0
  %2967 = vmatmul.mubr.f32.gmra.mrb[0].mxu0 %v2900
  %v2968 = vpop.f32.mrb[0].mxu0
  %v2969 = vadd.f32 0.0, %v2968
  %v2970 = vpop.f32.mrb[0].mxu0
  %2971 = vdwg.mxu0
  %v2972 = vadd.f32 %v2581, %v2969
  %s2973 = scalar_lea.vmem %s0, 392
  %v2974 = vld [vmem:[%s2973] sm:$0xff]
  %v2975 = vld [vmem:[%s2973 + $0x8] sm:$0xff]
  %v2976 = vld [vmem:[%s2973 + $0x10] sm:$0xff]
  %v2977 = vld [vmem:[%s2973 + $0x18] sm:$0xff]
  %v2978 = vld [vmem:[%s2973 + $0x20] sm:$0xff]
  %v2979 = vld [vmem:[%s2973 + $0x28] sm:$0xff]
  %v2980 = vld [vmem:[%s2973 + $0x30] sm:$0xff]
  %v2982 = vsel %vm245, %v2980, 0
  %2984 = vmatprep.subr.mxu0 %v34
  %2985 = vmatpush1.msra.mxu0 %v33
  %2986 = vmatprep.subr.mxu0 %v36
  %2987 = vmatpush1.msra.mxu0 %v35
  %2988 = vmatprep.subr.mxu0 %v38
  %2989 = vmatpush1.msra.mxu0 %v37
  %2990 = vmatprep.subr.mxu0 %v40
  %2991 = vmatpush1.msra.mxu0 %v39
  %2992 = vmatprep.subr.mxu0 %v42
  %2993 = vmatpush1.msra.mxu0 %v41
  %2994 = vmatprep.subr.mxu0 %v44
  %2995 = vmatpush1.msra.mxu0 %v43
  %2996 = vmatprep.subr.mxu0 %v46
  %2997 = vmatpush1.msra.mxu0 %v45
  %2998 = vmatprep.subr.mxu0 %v48
  %2999 = vmatpush1.msra.mxu0 %v47
  %3000 = vmatprep.subr.mxu0 %v50
  %3001 = vmatpush1.msra.mxu0 %v49
  %3002 = vmatprep.subr.mxu0 %v52
  %3003 = vmatpush1.msra.mxu0 %v51
  %3004 = vmatprep.subr.mxu0 %v54
  %3005 = vmatpush1.msra.mxu0 %v53
  %3006 = vmatprep.subr.mxu0 %v56
  %3007 = vmatpush1.msra.mxu0 %v55
  %3008 = vmatprep.subr.mxu0 %v58
  %3009 = vmatpush1.msra.mxu0 %v57
  %3010 = vmatprep.subr.mxu0 %v60
  %3011 = vmatpush1.msra.mxu0 %v59
  %3012 = vmatprep.subr.mxu0 %v62
  %3013 = vmatpush1.msra.mxu0 %v61
  %3014 = vmatprep.subr.mxu0 %v64
  %3015 = vmatpush1.msra.mxu0 %v63
  %3016 = vmatprep.subr.mxu0 %v66
  %3017 = vmatpush1.msra.mxu0 %v65
  %3018 = vmatprep.subr.mxu0 %v68
  %3019 = vmatpush1.msra.mxu0 %v67
  %3020 = vmatprep.subr.mxu0 %v70
  %3021 = vmatpush1.msra.mxu0 %v69
  %3022 = vmatprep.subr.mxu0 %v72
  %3023 = vmatpush1.msra.mxu0 %v71
  %3024 = vmatprep.subr.mxu0 %v74
  %3025 = vmatpush1.msra.mxu0 %v73
  %3026 = vmatprep.subr.mxu0 %v76
  %3027 = vmatpush1.msra.mxu0 %v75
  %3028 = vmatprep.subr.mxu0 %v78
  %3029 = vmatpush1.msra.mxu0 %v77
  %3030 = vmatprep.subr.mxu0 %v80
  %3031 = vmatpush1.msra.mxu0 %v79
  %3032 = vmatprep.subr.mxu0 %v82
  %3033 = vmatpush1.msra.mxu0 %v81
  %3034 = vmatprep.subr.mxu0 %v84
  %3035 = vmatpush1.msra.mxu0 %v83
  %3036 = vmatprep.subr.mxu0 %v86
  %3037 = vmatpush1.msra.mxu0 %v85
  %3038 = vmatprep.subr.mxu0 %v88
  %3039 = vmatpush1.msra.mxu0 %v87
  %3040 = vmatprep.subr.mxu0 %v90
  %3041 = vmatpush1.msra.mxu0 %v89
  %3042 = vmatprep.subr.mxu0 %v92
  %3043 = vmatpush1.msra.mxu0 %v91
  %3044 = vmatprep.subr.mxu0 %v94
  %3045 = vmatpush1.msra.mxu0 %v93
  %3046 = vmatprep.subr.mxu0 %v96
  %3047 = vmatpush1.msra.mxu0 %v95
  %3048 = vmatprep.mubr.f32.mxu0 %v2975
  %3049 = vmatmul.mubr.f32.gmra.mrb[0].mxu0 %v2974
  %v3050 = vpop.f32.mrb[0].mxu0
  %v3051 = vadd.f32 %v238, %v3050
  %v3052 = vpop.f32.mrb[0].mxu0
  %v3053 = vadd.f32 %v242, %v3052
  %3054 = vdwg.mxu0
  %3055 = vmatprep.subr.mxu0 %v98
  %3056 = vmatpush1.msra.mxu0 %v97
  %3057 = vmatprep.subr.mxu0 %v100
  %3058 = vmatpush1.msra.mxu0 %v99
  %3059 = vmatprep.subr.mxu0 %v102
  %3060 = vmatpush1.msra.mxu0 %v101
  %3061 = vmatprep.subr.mxu0 %v104
  %3062 = vmatpush1.msra.mxu0 %v103
  %3063 = vmatprep.subr.mxu0 %v106
  %3064 = vmatpush1.msra.mxu0 %v105
  %3065 = vmatprep.subr.mxu0 %v108
  %3066 = vmatpush1.msra.mxu0 %v107
  %3067 = vmatprep.subr.mxu0 %v110
  %3068 = vmatpush1.msra.mxu0 %v109
  %3069 = vmatprep.subr.mxu0 %v112
  %3070 = vmatpush1.msra.mxu0 %v111
  %3071 = vmatprep.subr.mxu0 %v114
  %3072 = vmatpush1.msra.mxu0 %v113
  %3073 = vmatprep.subr.mxu0 %v116
  %3074 = vmatpush1.msra.mxu0 %v115
  %3075 = vmatprep.subr.mxu0 %v118
  %3076 = vmatpush1.msra.mxu0 %v117
  %3077 = vmatprep.subr.mxu0 %v120
  %3078 = vmatpush1.msra.mxu0 %v119
  %3079 = vmatprep.subr.mxu0 %v122
  %3080 = vmatpush1.msra.mxu0 %v121
  %3081 = vmatprep.subr.mxu0 %v124
  %3082 = vmatpush1.msra.mxu0 %v123
  %3083 = vmatprep.subr.mxu0 %v126
  %3084 = vmatpush1.msra.mxu0 %v125
  %3085 = vmatprep.subr.mxu0 %v128
  %3086 = vmatpush1.msra.mxu0 %v127
  %3087 = vmatprep.subr.mxu0 %v130
  %3088 = vmatpush1.msra.mxu0 %v129
  %3089 = vmatprep.subr.mxu0 %v132
  %3090 = vmatpush1.msra.mxu0 %v131
  %3091 = vmatprep.subr.mxu0 %v134
  %3092 = vmatpush1.msra.mxu0 %v133
  %3093 = vmatprep.subr.mxu0 %v136
  %3094 = vmatpush1.msra.mxu0 %v135
  %3095 = vmatprep.subr.mxu0 %v138
  %3096 = vmatpush1.msra.mxu0 %v137
  %3097 = vmatprep.subr.mxu0 %v140
  %3098 = vmatpush1.msra.mxu0 %v139
  %3099 = vmatprep.subr.mxu0 %v142
  %3100 = vmatpush1.msra.mxu0 %v141
  %3101 = vmatprep.subr.mxu0 %v144
  %3102 = vmatpush1.msra.mxu0 %v143
  %3103 = vmatprep.subr.mxu0 %v146
  %3104 = vmatpush1.msra.mxu0 %v145
  %3105 = vmatprep.subr.mxu0 %v148
  %3106 = vmatpush1.msra.mxu0 %v147
  %3107 = vmatprep.subr.mxu0 %v150
  %3108 = vmatpush1.msra.mxu0 %v149
  %3109 = vmatprep.subr.mxu0 %v152
  %3110 = vmatpush1.msra.mxu0 %v151
  %3111 = vmatprep.subr.mxu0 %v154
  %3112 = vmatpush1.msra.mxu0 %v153
  %3113 = vmatprep.subr.mxu0 %v156
  %3114 = vmatpush1.msra.mxu0 %v155
  %3115 = vmatprep.subr.mxu0 %v158
  %3116 = vmatpush1.msra.mxu0 %v157
  %3117 = vmatprep.subr.mxu0 %v160
  %3118 = vmatpush1.msra.mxu0 %v159
  %3119 = vmatprep.mubr.f32.mxu0 %v2977
  %3120 = vmatmul.mubr.f32.gmra.mrb[0].mxu0 %v2976
  %v3121 = vpop.f32.mrb[0].mxu0
  %v3122 = vadd.f32 %v3051, %v3121
  %v3123 = vpop.f32.mrb[0].mxu0
  %v3124 = vadd.f32 %v3053, %v3123
  %3125 = vdwg.mxu0
  %3126 = vmatprep.subr.mxu0 %v162
  %3127 = vmatpush1.msra.mxu0 %v161
  %3128 = vmatprep.subr.mxu0 %v164
  %3129 = vmatpush1.msra.mxu0 %v163
  %3130 = vmatprep.subr.mxu0 %v166
  %3131 = vmatpush1.msra.mxu0 %v165
  %3132 = vmatprep.subr.mxu0 %v168
  %3133 = vmatpush1.msra.mxu0 %v167
  %3134 = vmatprep.subr.mxu0 %v170
  %3135 = vmatpush1.msra.mxu0 %v169
  %3136 = vmatprep.subr.mxu0 %v172
  %3137 = vmatpush1.msra.mxu0 %v171
  %3138 = vmatprep.subr.mxu0 %v174
  %3139 = vmatpush1.msra.mxu0 %v173
  %3140 = vmatprep.subr.mxu0 %v176
  %3141 = vmatpush1.msra.mxu0 %v175
  %3142 = vmatprep.subr.mxu0 %v178
  %3143 = vmatpush1.msra.mxu0 %v177
  %3144 = vmatprep.subr.mxu0 %v180
  %3145 = vmatpush1.msra.mxu0 %v179
  %3146 = vmatprep.subr.mxu0 %v182
  %3147 = vmatpush1.msra.mxu0 %v181
  %3148 = vmatprep.subr.mxu0 %v184
  %3149 = vmatpush1.msra.mxu0 %v183
  %3150 = vmatprep.subr.mxu0 %v186
  %3151 = vmatpush1.msra.mxu0 %v185
  %3152 = vmatprep.subr.mxu0 %v188
  %3153 = vmatpush1.msra.mxu0 %v187
  %3154 = vmatprep.subr.mxu0 %v190
  %3155 = vmatpush1.msra.mxu0 %v189
  %3156 = vmatprep.subr.mxu0 %v192
  %3157 = vmatpush1.msra.mxu0 %v191
  %3158 = vmatprep.subr.mxu0 %v194
  %3159 = vmatpush1.msra.mxu0 %v193
  %3160 = vmatprep.subr.mxu0 %v196
  %3161 = vmatpush1.msra.mxu0 %v195
  %3162 = vmatprep.subr.mxu0 %v198
  %3163 = vmatpush1.msra.mxu0 %v197
  %3164 = vmatprep.subr.mxu0 %v200
  %3165 = vmatpush1.msra.mxu0 %v199
  %3166 = vmatprep.subr.mxu0 %v202
  %3167 = vmatpush1.msra.mxu0 %v201
  %3168 = vmatprep.subr.mxu0 %v204
  %3169 = vmatpush1.msra.mxu0 %v203
  %3170 = vmatprep.subr.mxu0 %v206
  %3171 = vmatpush1.msra.mxu0 %v205
  %3172 = vmatprep.subr.mxu0 %v208
  %3173 = vmatpush1.msra.mxu0 %v207
  %3174 = vmatprep.subr.mxu0 %v210
  %3175 = vmatpush1.msra.mxu0 %v209
  %3176 = vmatprep.subr.mxu0 %v212
  %3177 = vmatpush1.msra.mxu0 %v211
  %3178 = vmatprep.subr.mxu0 %v214
  %3179 = vmatpush1.msra.mxu0 %v213
  %3180 = vmatprep.subr.mxu0 %v216
  %3181 = vmatpush1.msra.mxu0 %v215
  %3182 = vmatprep.subr.mxu0 %v218
  %3183 = vmatpush1.msra.mxu0 %v217
  %3184 = vmatprep.subr.mxu0 %v220
  %3185 = vmatpush1.msra.mxu0 %v219
  %3186 = vmatprep.subr.mxu0 %v222
  %3187 = vmatpush1.msra.mxu0 %v221
  %3188 = vmatprep.subr.mxu0 %v224
  %3189 = vmatpush1.msra.mxu0 %v223
  %3190 = vmatprep.mubr.f32.mxu0 %v2979
  %3191 = vmatmul.mubr.f32.gmra.mrb[0].mxu0 %v2978
  %v3192 = vpop.f32.mrb[0].mxu0
  %v3193 = vadd.f32 %v3122, %v3192
  %v3194 = vpop.f32.mrb[0].mxu0
  %v3195 = vadd.f32 %v3124, %v3194
  %3196 = vdwg.mxu0
  %3197 = vmatprep.subr.mxu0 %v226
  %3198 = vmatpush1.msra.mxu0 %v225
  %3199 = vmatprep.subr.mxu0 %v228
  %3200 = vmatpush1.msra.mxu0 %v227
  %3201 = vmatprep.subr.mxu0 %v230
  %3202 = vmatpush1.msra.mxu0 %v229
  %3203 = vmatprep.subr.mxu0 %v232
  %3204 = vmatpush1.msra.mxu0 %v231
  %3205 = vmatprep.subr.mxu0 0.0
  %3206 = vmatpush1.msra.mxu0 0.0
  %3207 = vmatprep.subr.mxu0 0.0
  %3208 = vmatpush1.msra.mxu0 0.0
  %3209 = vmatprep.subr.mxu0 0.0
  %3210 = vmatpush1.msra.mxu0 0.0
  %3211 = vmatprep.subr.mxu0 0.0
  %3212 = vmatpush1.msra.mxu0 0.0
  %3213 = vmatprep.subr.mxu0 0.0
  %3214 = vmatpush1.msra.mxu0 0.0
  %3215 = vmatprep.subr.mxu0 0.0
  %3216 = vmatpush1.msra.mxu0 0.0
  %3217 = vmatprep.subr.mxu0 0.0
  %3218 = vmatpush1.msra.mxu0 0.0
  %3219 = vmatprep.subr.mxu0 0.0
  %3220 = vmatpush1.msra.mxu0 0.0
  %3221 = vmatprep.subr.mxu0 0.0
  %3222 = vmatpush1.msra.mxu0 0.0
  %3223 = vmatprep.subr.mxu0 0.0
  %3224 = vmatpush1.msra.mxu0 0.0
  %3225 = vmatprep.subr.mxu0 0.0
  %3226 = vmatpush1.msra.mxu0 0.0
  %3227 = vmatprep.subr.mxu0 0.0
  %3228 = vmatpush1.msra.mxu0 0.0
  %3229 = vmatprep.subr.mxu0 0.0
  %3230 = vmatpush1.msra.mxu0 0.0
  %3231 = vmatprep.subr.mxu0 0.0
  %3232 = vmatpush1.msra.mxu0 0.0
  %3233 = vmatprep.subr.mxu0 0.0
  %3234 = vmatpush1.msra.mxu0 0.0
  %3235 = vmatprep.subr.mxu0 0.0
  %3236 = vmatpush1.msra.mxu0 0.0
  %3237 = vmatprep.subr.mxu0 0.0
  %3238 = vmatpush1.msra.mxu0 0.0
  %3239 = vmatprep.subr.mxu0 0.0
  %3240 = vmatpush1.msra.mxu0 0.0
  %3241 = vmatprep.subr.mxu0 0.0
  %3242 = vmatpush1.msra.mxu0 0.0
  %3243 = vmatprep.subr.mxu0 0.0
  %3244 = vmatpush1.msra.mxu0 0.0
  %3245 = vmatprep.subr.mxu0 0.0
  %3246 = vmatpush1.msra.mxu0 0.0
  %3247 = vmatprep.subr.mxu0 0.0
  %3248 = vmatpush1.msra.mxu0 0.0
  %3249 = vmatprep.subr.mxu0 0.0
  %3250 = vmatpush1.msra.mxu0 0.0
  %3251 = vmatprep.subr.mxu0 0.0
  %3252 = vmatpush1.msra.mxu0 0.0
  %3253 = vmatprep.subr.mxu0 0.0
  %3254 = vmatpush1.msra.mxu0 0.0
  %3255 = vmatprep.subr.mxu0 0.0
  %3256 = vmatpush1.msra.mxu0 0.0
  %3257 = vmatprep.subr.mxu0 0.0
  %3258 = vmatpush1.msra.mxu0 0.0
  %3259 = vmatprep.subr.mxu0 0.0
  %3260 = vmatpush1.msra.mxu0 0.0
  %3261 = vmatprep.mubr.f32.mxu0 0.0
  %3262 = vmatmul.mubr.f32.gmra.mrb[0].mxu0 %v2982
  %v3263 = vpop.f32.mrb[0].mxu0
  %v3264 = vadd.f32 %v3193, %v3263
  %v3265 = vpop.f32.mrb[0].mxu0
  %v3266 = vadd.f32 %v3195, %v3265
  %3267 = vdwg.mxu0
  %v3268 = vmax.f32 %v3264, 0.0
  %v3269 = vmax.f32 %v3266, 0.0
  %3271 = vrot.lane.b32.xlu0 %v3268, 64
  %v3272 = vpop.permute.xlu0 %3271
  %v3274 = vmax.f32 %v3268, %v3272
  %3276 = vrot.lane.b32.xlu0 %v3269, 64
  %v3277 = vpop.permute.xlu0 %3276
  %v3279 = vmax.f32 %v3269, %v3277
  %v3280 = vmax.f32 %v3274, %v3279
  %s3281 = scalar_lea.vmem %s3, 448
  %v3282 = vld [vmem:[%s3281] sm:$0xff]
  %v3283 = vld [vmem:[%s3281 + $0x8] sm:$0xff]
  %v3284 = vld [vmem:[%s3281 + $0x10] sm:$0xff]
  %v3285 = vld [vmem:[%s3281 + $0x18] sm:$0xff]
  %v3286 = vld [vmem:[%s3281 + $0x20] sm:$0xff]
  %v3287 = vld [vmem:[%s3281 + $0x28] sm:$0xff]
  %v3288 = vld [vmem:[%s3281 + $0x30] sm:$0xff]
  %v3289 = vld [vmem:[%s3281 + $0x38] sm:$0xff]
  %v3291 = vsel %vm871, %v3280, 0
  %3293 = vmatprep.subr.mxu0 0.0
  %3294 = vmatpush1.msra.mxu0 %v3282
  %3295 = vmatprep.subr.mxu0 0.0
  %3296 = vmatpush1.msra.mxu0 %v3283
  %3297 = vmatprep.subr.mxu0 0.0
  %3298 = vmatpush1.msra.mxu0 %v3284
  %3299 = vmatprep.subr.mxu0 0.0
  %3300 = vmatpush1.msra.mxu0 %v3285
  %3301 = vmatprep.subr.mxu0 0.0
  %3302 = vmatpush1.msra.mxu0 %v3286
  %3303 = vmatprep.subr.mxu0 0.0
  %3304 = vmatpush1.msra.mxu0 %v3287
  %3305 = vmatprep.subr.mxu0 0.0
  %3306 = vmatpush1.msra.mxu0 %v3288
  %3307 = vmatprep.subr.mxu0 0.0
  %3308 = vmatpush1.msra.mxu0 %v3289
  %3309 = vmatprep.subr.mxu0 0.0
  %3310 = vmatpush1.msra.mxu0 0.0
  %3311 = vmatprep.subr.mxu0 0.0
  %3312 = vmatpush1.msra.mxu0 0.0
  %3313 = vmatprep.subr.mxu0 0.0
  %3314 = vmatpush1.msra.mxu0 0.0
  %3315 = vmatprep.subr.mxu0 0.0
  %3316 = vmatpush1.msra.mxu0 0.0
  %3317 = vmatprep.subr.mxu0 0.0
  %3318 = vmatpush1.msra.mxu0 0.0
  %3319 = vmatprep.subr.mxu0 0.0
  %3320 = vmatpush1.msra.mxu0 0.0
  %3321 = vmatprep.subr.mxu0 0.0
  %3322 = vmatpush1.msra.mxu0 0.0
  %3323 = vmatprep.subr.mxu0 0.0
  %3324 = vmatpush1.msra.mxu0 0.0
  %3325 = vmatprep.subr.mxu0 0.0
  %3326 = vmatpush1.msra.mxu0 0.0
  %3327 = vmatprep.subr.mxu0 0.0
  %3328 = vmatpush1.msra.mxu0 0.0
  %3329 = vmatprep.subr.mxu0 0.0
  %3330 = vmatpush1.msra.mxu0 0.0
  %3331 = vmatprep.subr.mxu0 0.0
  %3332 = vmatpush1.msra.mxu0 0.0
  %3333 = vmatprep.subr.mxu0 0.0
  %3334 = vmatpush1.msra.mxu0 0.0
  %3335 = vmatprep.subr.mxu0 0.0
  %3336 = vmatpush1.msra.mxu0 0.0
  %3337 = vmatprep.subr.mxu0 0.0
  %3338 = vmatpush1.msra.mxu0 0.0
  %3339 = vmatprep.subr.mxu0 0.0
  %3340 = vmatpush1.msra.mxu0 0.0
  %3341 = vmatprep.subr.mxu0 0.0
  %3342 = vmatpush1.msra.mxu0 0.0
  %3343 = vmatprep.subr.mxu0 0.0
  %3344 = vmatpush1.msra.mxu0 0.0
  %3345 = vmatprep.subr.mxu0 0.0
  %3346 = vmatpush1.msra.mxu0 0.0
  %3347 = vmatprep.subr.mxu0 0.0
  %3348 = vmatpush1.msra.mxu0 0.0
  %3349 = vmatprep.subr.mxu0 0.0
  %3350 = vmatpush1.msra.mxu0 0.0
  %3351 = vmatprep.subr.mxu0 0.0
  %3352 = vmatpush1.msra.mxu0 0.0
  %3353 = vmatprep.subr.mxu0 0.0
  %3354 = vmatpush1.msra.mxu0 0.0
  %3355 = vmatprep.subr.mxu0 0.0
  %3356 = vmatpush1.msra.mxu0 0.0
  %3357 = vmatprep.mubr.f32.mxu0 0.0
  %3358 = vmatmul.mubr.f32.gmra.mrb[0].mxu0 %v3291
  %v3359 = vpop.f32.mrb[0].mxu0
  %v3360 = vadd.f32 0.0, %v3359
  %v3361 = vpop.f32.mrb[0].mxu0
  %3362 = vdwg.mxu0
  %v3363 = vadd.f32 %v2972, %v3360
  %s3364 = scalar_lea.vmem %s0, 448
  %v3365 = vld [vmem:[%s3364] sm:$0xff]
  %v3366 = vld [vmem:[%s3364 + $0x8] sm:$0xff]
  %v3367 = vld [vmem:[%s3364 + $0x10] sm:$0xff]
  %v3368 = vld [vmem:[%s3364 + $0x18] sm:$0xff]
  %v3369 = vld [vmem:[%s3364 + $0x20] sm:$0xff]
  %v3370 = vld [vmem:[%s3364 + $0x28] sm:$0xff]
  %v3371 = vld [vmem:[%s3364 + $0x30] sm:$0xff]
  %v3373 = vsel %vm245, %v3371, 0
  %3375 = vmatprep.subr.mxu0 %v34
  %3376 = vmatpush1.msra.mxu0 %v33
  %3377 = vmatprep.subr.mxu0 %v36
  %3378 = vmatpush1.msra.mxu0 %v35
  %3379 = vmatprep.subr.mxu0 %v38
  %3380 = vmatpush1.msra.mxu0 %v37
  %3381 = vmatprep.subr.mxu0 %v40
  %3382 = vmatpush1.msra.mxu0 %v39
  %3383 = vmatprep.subr.mxu0 %v42
  %3384 = vmatpush1.msra.mxu0 %v41
  %3385 = vmatprep.subr.mxu0 %v44
  %3386 = vmatpush1.msra.mxu0 %v43
  %3387 = vmatprep.subr.mxu0 %v46
  %3388 = vmatpush1.msra.mxu0 %v45
  %3389 = vmatprep.subr.mxu0 %v48
  %3390 = vmatpush1.msra.mxu0 %v47
  %3391 = vmatprep.subr.mxu0 %v50
  %3392 = vmatpush1.msra.mxu0 %v49
  %3393 = vmatprep.subr.mxu0 %v52
  %3394 = vmatpush1.msra.mxu0 %v51
  %3395 = vmatprep.subr.mxu0 %v54
  %3396 = vmatpush1.msra.mxu0 %v53
  %3397 = vmatprep.subr.mxu0 %v56
  %3398 = vmatpush1.msra.mxu0 %v55
  %3399 = vmatprep.subr.mxu0 %v58
  %3400 = vmatpush1.msra.mxu0 %v57
  %3401 = vmatprep.subr.mxu0 %v60
  %3402 = vmatpush1.msra.mxu0 %v59
  %3403 = vmatprep.subr.mxu0 %v62
  %3404 = vmatpush1.msra.mxu0 %v61
  %3405 = vmatprep.subr.mxu0 %v64
  %3406 = vmatpush1.msra.mxu0 %v63
  %3407 = vmatprep.subr.mxu0 %v66
  %3408 = vmatpush1.msra.mxu0 %v65
  %3409 = vmatprep.subr.mxu0 %v68
  %3410 = vmatpush1.msra.mxu0 %v67
  %3411 = vmatprep.subr.mxu0 %v70
  %3412 = vmatpush1.msra.mxu0 %v69
  %3413 = vmatprep.subr.mxu0 %v72
  %3414 = vmatpush1.msra.mxu0 %v71
  %3415 = vmatprep.subr.mxu0 %v74
  %3416 = vmatpush1.msra.mxu0 %v73
  %3417 = vmatprep.subr.mxu0 %v76
  %3418 = vmatpush1.msra.mxu0 %v75
  %3419 = vmatprep.subr.mxu0 %v78
  %3420 = vmatpush1.msra.mxu0 %v77
  %3421 = vmatprep.subr.mxu0 %v80
  %3422 = vmatpush1.msra.mxu0 %v79
  %3423 = vmatprep.subr.mxu0 %v82
  %3424 = vmatpush1.msra.mxu0 %v81
  %3425 = vmatprep.subr.mxu0 %v84
  %3426 = vmatpush1.msra.mxu0 %v83
  %3427 = vmatprep.subr.mxu0 %v86
  %3428 = vmatpush1.msra.mxu0 %v85
  %3429 = vmatprep.subr.mxu0 %v88
  %3430 = vmatpush1.msra.mxu0 %v87
  %3431 = vmatprep.subr.mxu0 %v90
  %3432 = vmatpush1.msra.mxu0 %v89
  %3433 = vmatprep.subr.mxu0 %v92
  %3434 = vmatpush1.msra.mxu0 %v91
  %3435 = vmatprep.subr.mxu0 %v94
  %3436 = vmatpush1.msra.mxu0 %v93
  %3437 = vmatprep.subr.mxu0 %v96
  %3438 = vmatpush1.msra.mxu0 %v95
  %3439 = vmatprep.mubr.f32.mxu0 %v3366
  %3440 = vmatmul.mubr.f32.gmra.mrb[0].mxu0 %v3365
  %v3441 = vpop.f32.mrb[0].mxu0
  %v3442 = vadd.f32 %v238, %v3441
  %v3443 = vpop.f32.mrb[0].mxu0
  %v3444 = vadd.f32 %v242, %v3443
  %3445 = vdwg.mxu0
  %3446 = vmatprep.subr.mxu0 %v98
  %3447 = vmatpush1.msra.mxu0 %v97
  %3448 = vmatprep.subr.mxu0 %v100
  %3449 = vmatpush1.msra.mxu0 %v99
  %3450 = vmatprep.subr.mxu0 %v102
  %3451 = vmatpush1.msra.mxu0 %v101
  %3452 = vmatprep.subr.mxu0 %v104
  %3453 = vmatpush1.msra.mxu0 %v103
  %3454 = vmatprep.subr.mxu0 %v106
  %3455 = vmatpush1.msra.mxu0 %v105
  %3456 = vmatprep.subr.mxu0 %v108
  %3457 = vmatpush1.msra.mxu0 %v107
  %3458 = vmatprep.subr.mxu0 %v110
  %3459 = vmatpush1.msra.mxu0 %v109
  %3460 = vmatprep.subr.mxu0 %v112
  %3461 = vmatpush1.msra.mxu0 %v111
  %3462 = vmatprep.subr.mxu0 %v114
  %3463 = vmatpush1.msra.mxu0 %v113
  %3464 = vmatprep.subr.mxu0 %v116
  %3465 = vmatpush1.msra.mxu0 %v115
  %3466 = vmatprep.subr.mxu0 %v118
  %3467 = vmatpush1.msra.mxu0 %v117
  %3468 = vmatprep.subr.mxu0 %v120
  %3469 = vmatpush1.msra.mxu0 %v119
  %3470 = vmatprep.subr.mxu0 %v122
  %3471 = vmatpush1.msra.mxu0 %v121
  %3472 = vmatprep.subr.mxu0 %v124
  %3473 = vmatpush1.msra.mxu0 %v123
  %3474 = vmatprep.subr.mxu0 %v126
  %3475 = vmatpush1.msra.mxu0 %v125
  %3476 = vmatprep.subr.mxu0 %v128
  %3477 = vmatpush1.msra.mxu0 %v127
  %3478 = vmatprep.subr.mxu0 %v130
  %3479 = vmatpush1.msra.mxu0 %v129
  %3480 = vmatprep.subr.mxu0 %v132
  %3481 = vmatpush1.msra.mxu0 %v131
  %3482 = vmatprep.subr.mxu0 %v134
  %3483 = vmatpush1.msra.mxu0 %v133
  %3484 = vmatprep.subr.mxu0 %v136
  %3485 = vmatpush1.msra.mxu0 %v135
  %3486 = vmatprep.subr.mxu0 %v138
  %3487 = vmatpush1.msra.mxu0 %v137
  %3488 = vmatprep.subr.mxu0 %v140
  %3489 = vmatpush1.msra.mxu0 %v139
  %3490 = vmatprep.subr.mxu0 %v142
  %3491 = vmatpush1.msra.mxu0 %v141
  %3492 = vmatprep.subr.mxu0 %v144
  %3493 = vmatpush1.msra.mxu0 %v143
  %3494 = vmatprep.subr.mxu0 %v146
  %3495 = vmatpush1.msra.mxu0 %v145
  %3496 = vmatprep.subr.mxu0 %v148
  %3497 = vmatpush1.msra.mxu0 %v147
  %3498 = vmatprep.subr.mxu0 %v150
  %3499 = vmatpush1.msra.mxu0 %v149
  %3500 = vmatprep.subr.mxu0 %v152
  %3501 = vmatpush1.msra.mxu0 %v151
  %3502 = vmatprep.subr.mxu0 %v154
  %3503 = vmatpush1.msra.mxu0 %v153
  %3504 = vmatprep.subr.mxu0 %v156
  %3505 = vmatpush1.msra.mxu0 %v155
  %3506 = vmatprep.subr.mxu0 %v158
  %3507 = vmatpush1.msra.mxu0 %v157
  %3508 = vmatprep.subr.mxu0 %v160
  %3509 = vmatpush1.msra.mxu0 %v159
  %3510 = vmatprep.mubr.f32.mxu0 %v3368
  %3511 = vmatmul.mubr.f32.gmra.mrb[0].mxu0 %v3367
  %v3512 = vpop.f32.mrb[0].mxu0
  %v3513 = vadd.f32 %v3442, %v3512
  %v3514 = vpop.f32.mrb[0].mxu0
  %v3515 = vadd.f32 %v3444, %v3514
  %3516 = vdwg.mxu0
  %3517 = vmatprep.subr.mxu0 %v162
  %3518 = vmatpush1.msra.mxu0 %v161
  %3519 = vmatprep.subr.mxu0 %v164
  %3520 = vmatpush1.msra.mxu0 %v163
  %3521 = vmatprep.subr.mxu0 %v166
  %3522 = vmatpush1.msra.mxu0 %v165
  %3523 = vmatprep.subr.mxu0 %v168
  %3524 = vmatpush1.msra.mxu0 %v167
  %3525 = vmatprep.subr.mxu0 %v170
  %3526 = vmatpush1.msra.mxu0 %v169
  %3527 = vmatprep.subr.mxu0 %v172
  %3528 = vmatpush1.msra.mxu0 %v171
  %3529 = vmatprep.subr.mxu0 %v174
  %3530 = vmatpush1.msra.mxu0 %v173
  %3531 = vmatprep.subr.mxu0 %v176
  %3532 = vmatpush1.msra.mxu0 %v175
  %3533 = vmatprep.subr.mxu0 %v178
  %3534 = vmatpush1.msra.mxu0 %v177
  %3535 = vmatprep.subr.mxu0 %v180
  %3536 = vmatpush1.msra.mxu0 %v179
  %3537 = vmatprep.subr.mxu0 %v182
  %3538 = vmatpush1.msra.mxu0 %v181
  %3539 = vmatprep.subr.mxu0 %v184
  %3540 = vmatpush1.msra.mxu0 %v183
  %3541 = vmatprep.subr.mxu0 %v186
  %3542 = vmatpush1.msra.mxu0 %v185
  %3543 = vmatprep.subr.mxu0 %v188
  %3544 = vmatpush1.msra.mxu0 %v187
  %3545 = vmatprep.subr.mxu0 %v190
  %3546 = vmatpush1.msra.mxu0 %v189
  %3547 = vmatprep.subr.mxu0 %v192
  %3548 = vmatpush1.msra.mxu0 %v191
  %3549 = vmatprep.subr.mxu0 %v194
  %3550 = vmatpush1.msra.mxu0 %v193
  %3551 = vmatprep.subr.mxu0 %v196
  %3552 = vmatpush1.msra.mxu0 %v195
  %3553 = vmatprep.subr.mxu0 %v198
  %3554 = vmatpush1.msra.mxu0 %v197
  %3555 = vmatprep.subr.mxu0 %v200
  %3556 = vmatpush1.msra.mxu0 %v199
  %3557 = vmatprep.subr.mxu0 %v202
  %3558 = vmatpush1.msra.mxu0 %v201
  %3559 = vmatprep.subr.mxu0 %v204
  %3560 = vmatpush1.msra.mxu0 %v203
  %3561 = vmatprep.subr.mxu0 %v206
  %3562 = vmatpush1.msra.mxu0 %v205
  %3563 = vmatprep.subr.mxu0 %v208
  %3564 = vmatpush1.msra.mxu0 %v207
  %3565 = vmatprep.subr.mxu0 %v210
  %3566 = vmatpush1.msra.mxu0 %v209
  %3567 = vmatprep.subr.mxu0 %v212
  %3568 = vmatpush1.msra.mxu0 %v211
  %3569 = vmatprep.subr.mxu0 %v214
  %3570 = vmatpush1.msra.mxu0 %v213
  %3571 = vmatprep.subr.mxu0 %v216
  %3572 = vmatpush1.msra.mxu0 %v215
  %3573 = vmatprep.subr.mxu0 %v218
  %3574 = vmatpush1.msra.mxu0 %v217
  %3575 = vmatprep.subr.mxu0 %v220
  %3576 = vmatpush1.msra.mxu0 %v219
  %3577 = vmatprep.subr.mxu0 %v222
  %3578 = vmatpush1.msra.mxu0 %v221
  %3579 = vmatprep.subr.mxu0 %v224
  %3580 = vmatpush1.msra.mxu0 %v223
  %3581 = vmatprep.mubr.f32.mxu0 %v3370
  %3582 = vmatmul.mubr.f32.gmra.mrb[0].mxu0 %v3369
  %v3583 = vpop.f32.mrb[0].mxu0
  %v3584 = vadd.f32 %v3513, %v3583
  %v3585 = vpop.f32.mrb[0].mxu0
  %v3586 = vadd.f32 %v3515, %v3585
  %3587 = vdwg.mxu0
  %3588 = vmatprep.subr.mxu0 %v226
  %3589 = vmatpush1.msra.mxu0 %v225
  %3590 = vmatprep.subr.mxu0 %v228
  %3591 = vmatpush1.msra.mxu0 %v227
  %3592 = vmatprep.subr.mxu0 %v230
  %3593 = vmatpush1.msra.mxu0 %v229
  %3594 = vmatprep.subr.mxu0 %v232
  %3595 = vmatpush1.msra.mxu0 %v231
  %3596 = vmatprep.subr.mxu0 0.0
  %3597 = vmatpush1.msra.mxu0 0.0
  %3598 = vmatprep.subr.mxu0 0.0
  %3599 = vmatpush1.msra.mxu0 0.0
  %3600 = vmatprep.subr.mxu0 0.0
  %3601 = vmatpush1.msra.mxu0 0.0
  %3602 = vmatprep.subr.mxu0 0.0
  %3603 = vmatpush1.msra.mxu0 0.0
  %3604 = vmatprep.subr.mxu0 0.0
  %3605 = vmatpush1.msra.mxu0 0.0
  %3606 = vmatprep.subr.mxu0 0.0
  %3607 = vmatpush1.msra.mxu0 0.0
  %3608 = vmatprep.subr.mxu0 0.0
  %3609 = vmatpush1.msra.mxu0 0.0
  %3610 = vmatprep.subr.mxu0 0.0
  %3611 = vmatpush1.msra.mxu0 0.0
  %3612 = vmatprep.subr.mxu0 0.0
  %3613 = vmatpush1.msra.mxu0 0.0
  %3614 = vmatprep.subr.mxu0 0.0
  %3615 = vmatpush1.msra.mxu0 0.0
  %3616 = vmatprep.subr.mxu0 0.0
  %3617 = vmatpush1.msra.mxu0 0.0
  %3618 = vmatprep.subr.mxu0 0.0
  %3619 = vmatpush1.msra.mxu0 0.0
  %3620 = vmatprep.subr.mxu0 0.0
  %3621 = vmatpush1.msra.mxu0 0.0
  %3622 = vmatprep.subr.mxu0 0.0
  %3623 = vmatpush1.msra.mxu0 0.0
  %3624 = vmatprep.subr.mxu0 0.0
  %3625 = vmatpush1.msra.mxu0 0.0
  %3626 = vmatprep.subr.mxu0 0.0
  %3627 = vmatpush1.msra.mxu0 0.0
  %3628 = vmatprep.subr.mxu0 0.0
  %3629 = vmatpush1.msra.mxu0 0.0
  %3630 = vmatprep.subr.mxu0 0.0
  %3631 = vmatpush1.msra.mxu0 0.0
  %3632 = vmatprep.subr.mxu0 0.0
  %3633 = vmatpush1.msra.mxu0 0.0
  %3634 = vmatprep.subr.mxu0 0.0
  %3635 = vmatpush1.msra.mxu0 0.0
  %3636 = vmatprep.subr.mxu0 0.0
  %3637 = vmatpush1.msra.mxu0 0.0
  %3638 = vmatprep.subr.mxu0 0.0
  %3639 = vmatpush1.msra.mxu0 0.0
  %3640 = vmatprep.subr.mxu0 0.0
  %3641 = vmatpush1.msra.mxu0 0.0
  %3642 = vmatprep.subr.mxu0 0.0
  %3643 = vmatpush1.msra.mxu0 0.0
  %3644 = vmatprep.subr.mxu0 0.0
  %3645 = vmatpush1.msra.mxu0 0.0
  %3646 = vmatprep.subr.mxu0 0.0
  %3647 = vmatpush1.msra.mxu0 0.0
  %3648 = vmatprep.subr.mxu0 0.0
  %3649 = vmatpush1.msra.mxu0 0.0
  %3650 = vmatprep.subr.mxu0 0.0
  %3651 = vmatpush1.msra.mxu0 0.0
  %3652 = vmatprep.mubr.f32.mxu0 0.0
  %3653 = vmatmul.mubr.f32.gmra.mrb[0].mxu0 %v3373
  %v3654 = vpop.f32.mrb[0].mxu0
  %v3655 = vadd.f32 %v3584, %v3654
  %v3656 = vpop.f32.mrb[0].mxu0
  %v3657 = vadd.f32 %v3586, %v3656
  %3658 = vdwg.mxu0
  %v3659 = vmax.f32 %v3655, 0.0
  %v3660 = vmax.f32 %v3657, 0.0
  %3662 = vrot.lane.b32.xlu0 %v3659, 64
  %v3663 = vpop.permute.xlu0 %3662
  %v3665 = vmax.f32 %v3659, %v3663
  %3667 = vrot.lane.b32.xlu0 %v3660, 64
  %v3668 = vpop.permute.xlu0 %3667
  %v3670 = vmax.f32 %v3660, %v3668
  %v3671 = vmax.f32 %v3665, %v3670
  %s3672 = scalar_lea.vmem %s3, 512
  %v3673 = vld [vmem:[%s3672] sm:$0xff]
  %v3674 = vld [vmem:[%s3672 + $0x8] sm:$0xff]
  %v3675 = vld [vmem:[%s3672 + $0x10] sm:$0xff]
  %v3676 = vld [vmem:[%s3672 + $0x18] sm:$0xff]
  %v3677 = vld [vmem:[%s3672 + $0x20] sm:$0xff]
  %v3678 = vld [vmem:[%s3672 + $0x28] sm:$0xff]
  %v3679 = vld [vmem:[%s3672 + $0x30] sm:$0xff]
  %v3680 = vld [vmem:[%s3672 + $0x38] sm:$0xff]
  %v3682 = vsel %vm871, %v3671, 0
  %3684 = vmatprep.subr.mxu0 0.0
  %3685 = vmatpush1.msra.mxu0 %v3673
  %3686 = vmatprep.subr.mxu0 0.0
  %3687 = vmatpush1.msra.mxu0 %v3674
  %3688 = vmatprep.subr.mxu0 0.0
  %3689 = vmatpush1.msra.mxu0 %v3675
  %3690 = vmatprep.subr.mxu0 0.0
  %3691 = vmatpush1.msra.mxu0 %v3676
  %3692 = vmatprep.subr.mxu0 0.0
  %3693 = vmatpush1.msra.mxu0 %v3677
  %3694 = vmatprep.subr.mxu0 0.0
  %3695 = vmatpush1.msra.mxu0 %v3678
  %3696 = vmatprep.subr.mxu0 0.0
  %3697 = vmatpush1.msra.mxu0 %v3679
  %3698 = vmatprep.subr.mxu0 0.0
  %3699 = vmatpush1.msra.mxu0 %v3680
  %3700 = vmatprep.subr.mxu0 0.0
  %3701 = vmatpush1.msra.mxu0 0.0
  %3702 = vmatprep.subr.mxu0 0.0
  %3703 = vmatpush1.msra.mxu0 0.0
  %3704 = vmatprep.subr.mxu0 0.0
  %3705 = vmatpush1.msra.mxu0 0.0
  %3706 = vmatprep.subr.mxu0 0.0
  %3707 = vmatpush1.msra.mxu0 0.0
  %3708 = vmatprep.subr.mxu0 0.0
  %3709 = vmatpush1.msra.mxu0 0.0
  %3710 = vmatprep.subr.mxu0 0.0
  %3711 = vmatpush1.msra.mxu0 0.0
  %3712 = vmatprep.subr.mxu0 0.0
  %3713 = vmatpush1.msra.mxu0 0.0
  %3714 = vmatprep.subr.mxu0 0.0
  %3715 = vmatpush1.msra.mxu0 0.0
  %3716 = vmatprep.subr.mxu0 0.0
  %3717 = vmatpush1.msra.mxu0 0.0
  %3718 = vmatprep.subr.mxu0 0.0
  %3719 = vmatpush1.msra.mxu0 0.0
  %3720 = vmatprep.subr.mxu0 0.0
  %3721 = vmatpush1.msra.mxu0 0.0
  %3722 = vmatprep.subr.mxu0 0.0
  %3723 = vmatpush1.msra.mxu0 0.0
  %3724 = vmatprep.subr.mxu0 0.0
  %3725 = vmatpush1.msra.mxu0 0.0
  %3726 = vmatprep.subr.mxu0 0.0
  %3727 = vmatpush1.msra.mxu0 0.0
  %3728 = vmatprep.subr.mxu0 0.0
  %3729 = vmatpush1.msra.mxu0 0.0
  %3730 = vmatprep.subr.mxu0 0.0
  %3731 = vmatpush1.msra.mxu0 0.0
  %3732 = vmatprep.subr.mxu0 0.0
  %3733 = vmatpush1.msra.mxu0 0.0
  %3734 = vmatprep.subr.mxu0 0.0
  %3735 = vmatpush1.msra.mxu0 0.0
  %3736 = vmatprep.subr.mxu0 0.0
  %3737 = vmatpush1.msra.mxu0 0.0
  %3738 = vmatprep.subr.mxu0 0.0
  %3739 = vmatpush1.msra.mxu0 0.0
  %3740 = vmatprep.subr.mxu0 0.0
  %3741 = vmatpush1.msra.mxu0 0.0
  %3742 = vmatprep.subr.mxu0 0.0
  %3743 = vmatpush1.msra.mxu0 0.0
  %3744 = vmatprep.subr.mxu0 0.0
  %3745 = vmatpush1.msra.mxu0 0.0
  %3746 = vmatprep.subr.mxu0 0.0
  %3747 = vmatpush1.msra.mxu0 0.0
  %3748 = vmatprep.mubr.f32.mxu0 0.0
  %3749 = vmatmul.mubr.f32.gmra.mrb[0].mxu0 %v3682
  %v3750 = vpop.f32.mrb[0].mxu0
  %v3751 = vadd.f32 0.0, %v3750
  %v3752 = vpop.f32.mrb[0].mxu0
  %3753 = vdwg.mxu0
  %v3754 = vadd.f32 %v3363, %v3751
  %v3755 = vld [vmem:[%s4] sm:$0x1]
  %v3757 = vlaneseq
  %v3758 = vshrl.u32 %v3757, 7
  %v3759 = vsub.s32 0, %v3758
  %v3760 = vrot.slane %v3755, %v3759
  %v3762 = vadd.f32 %v3754, %v3760
  %v3763 = vmax.f32 %v3762, 0.0
  %v3764 = vld [vmem:[%s5] sm:$0xff]
  %v3765 = vld [vmem:[%s5 + $0x8] sm:$0xff]
  %v3766 = vld [vmem:[%s5 + $0x10] sm:$0xff]
  %v3767 = vld [vmem:[%s5 + $0x18] sm:$0xff]
  %v3768 = vld [vmem:[%s5 + $0x20] sm:$0xff]
  %v3769 = vld [vmem:[%s5 + $0x28] sm:$0xff]
  %v3770 = vld [vmem:[%s5 + $0x30] sm:$0xff]
  %v3771 = vld [vmem:[%s5 + $0x38] sm:$0xff]
  %v3772 = vld [vmem:[%s5 + $0x40] sm:$0xff]
  %v3773 = vld [vmem:[%s5 + $0x48] sm:$0xff]
  %v3774 = vld [vmem:[%s5 + $0x50] sm:$0xff]
  %v3775 = vld [vmem:[%s5 + $0x58] sm:$0xff]
  %v3776 = vld [vmem:[%s5 + $0x60] sm:$0xff]
  %v3777 = vld [vmem:[%s5 + $0x68] sm:$0xff]
  %v3778 = vld [vmem:[%s5 + $0x70] sm:$0xff]
  %v3779 = vld [vmem:[%s5 + $0x78] sm:$0xff]
  %v3780 = vld [vmem:[%s6] sm:$0x1]
  %v3782 = vlaneseq
  %v3783 = vshrl.u32 %v3782, 7
  %v3784 = vsub.s32 0, %v3783
  %v3785 = vrot.slane %v3780, %v3784
  %3787 = vmatprep.subr.mxu0 0.0
  %3788 = vmatpush1.msra.mxu0 %v3764
  %3789 = vmatprep.subr.mxu0 0.0
  %3790 = vmatpush1.msra.mxu0 %v3765
  %3791 = vmatprep.subr.mxu0 0.0
  %3792 = vmatpush1.msra.mxu0 %v3766
  %3793 = vmatprep.subr.mxu0 0.0
  %3794 = vmatpush1.msra.mxu0 %v3767
  %3795 = vmatprep.subr.mxu0 0.0
  %3796 = vmatpush1.msra.mxu0 %v3768
  %3797 = vmatprep.subr.mxu0 0.0
  %3798 = vmatpush1.msra.mxu0 %v3769
  %3799 = vmatprep.subr.mxu0 0.0
  %3800 = vmatpush1.msra.mxu0 %v3770
  %3801 = vmatprep.subr.mxu0 0.0
  %3802 = vmatpush1.msra.mxu0 %v3771
  %3803 = vmatprep.subr.mxu0 0.0
  %3804 = vmatpush1.msra.mxu0 %v3772
  %3805 = vmatprep.subr.mxu0 0.0
  %3806 = vmatpush1.msra.mxu0 %v3773
  %3807 = vmatprep.subr.mxu0 0.0
  %3808 = vmatpush1.msra.mxu0 %v3774
  %3809 = vmatprep.subr.mxu0 0.0
  %3810 = vmatpush1.msra.mxu0 %v3775
  %3811 = vmatprep.subr.mxu0 0.0
  %3812 = vmatpush1.msra.mxu0 %v3776
  %3813 = vmatprep.subr.mxu0 0.0
  %3814 = vmatpush1.msra.mxu0 %v3777
  %3815 = vmatprep.subr.mxu0 0.0
  %3816 = vmatpush1.msra.mxu0 %v3778
  %3817 = vmatprep.subr.mxu0 0.0
  %3818 = vmatpush1.msra.mxu0 %v3779
  %3819 = vmatprep.subr.mxu0 0.0
  %3820 = vmatpush1.msra.mxu0 0.0
  %3821 = vmatprep.subr.mxu0 0.0
  %3822 = vmatpush1.msra.mxu0 0.0
  %3823 = vmatprep.subr.mxu0 0.0
  %3824 = vmatpush1.msra.mxu0 0.0
  %3825 = vmatprep.subr.mxu0 0.0
  %3826 = vmatpush1.msra.mxu0 0.0
  %3827 = vmatprep.subr.mxu0 0.0
  %3828 = vmatpush1.msra.mxu0 0.0
  %3829 = vmatprep.subr.mxu0 0.0
  %3830 = vmatpush1.msra.mxu0 0.0
  %3831 = vmatprep.subr.mxu0 0.0
  %3832 = vmatpush1.msra.mxu0 0.0
  %3833 = vmatprep.subr.mxu0 0.0
  %3834 = vmatpush1.msra.mxu0 0.0
  %3835 = vmatprep.subr.mxu0 0.0
  %3836 = vmatpush1.msra.mxu0 0.0
  %3837 = vmatprep.subr.mxu0 0.0
  %3838 = vmatpush1.msra.mxu0 0.0
  %3839 = vmatprep.subr.mxu0 0.0
  %3840 = vmatpush1.msra.mxu0 0.0
  %3841 = vmatprep.subr.mxu0 0.0
  %3842 = vmatpush1.msra.mxu0 0.0
  %3843 = vmatprep.subr.mxu0 0.0
  %3844 = vmatpush1.msra.mxu0 0.0
  %3845 = vmatprep.subr.mxu0 0.0
  %3846 = vmatpush1.msra.mxu0 0.0
  %3847 = vmatprep.subr.mxu0 0.0
  %3848 = vmatpush1.msra.mxu0 0.0
  %3849 = vmatprep.subr.mxu0 0.0
  %3850 = vmatpush1.msra.mxu0 0.0
  %3851 = vmatprep.mubr.f32.mxu0 0.0
  %3852 = vmatmul.mubr.f32.gmra.mrb[0].mxu0 %v3763
  %v3853 = vpop.f32.mrb[0].mxu0
  %v3854 = vadd.f32 %v3785, %v3853
  %v3855 = vpop.f32.mrb[0].mxu0
  %3856 = vdwg.mxu0
  %vm3857 = vcmask 31744
  %3858 = vst.msk [vmem:[%s7] sm:$0xff] %vm3857, %v3854
  // Predicated region
  $region30: #{dqn_forward.3} parent=0 // pred_check
    _
  $region31: #{dqn_forward.3} parent=0 // pred_check_branch
    %3860 = sbr.rel (0) target = $region33
  $region32: #{dqn_forward.3} parent=0 // pred_region
    _
  $region33: #{dqn_forward.3} parent=0 // pred_fallthru
    _
  // Predicated region
  $region34: #{dqn_forward.3} parent=0 // pred_check
    _
  $region35: #{dqn_forward.3} parent=0 // pred_check_branch
    %3862 = sbr.rel (0) target = $region37
  $region36: #{dqn_forward.3} parent=0 // pred_region
    _
  $region37: #{dqn_forward.3} parent=0 // pred_fallthru
    _

</llo_original>
